<compile_context>
chip_gen: v7x
topology: tpu7x:2x2x1
jax: 0.10.0
libtpu: 0.0.40
codegen_flags: <defaults>
</compile_context>

<pallas_src>
import functools

import jax
import jax.numpy as jnp
from jax.experimental import pallas as pl
from jax.experimental.pallas import tpu as pltpu

KSIZE = 3          # kernel_size=3 -> autopad -> padding=1 ("same")
PAD = KSIZE // 2


def _conv_bn_silu_kernel(x_ref, w_ref, bias_ref, o_ref, acc_ref, *, num_k):
    """One step of grid = (N_blocks, K); K (Cin tiles) is the trailing axis.

    x_ref:    (nb, H+2, W+2, tk)  bf16  spatially padded input, one Cin tile
    w_ref:    (3, 3, Cin, Cout)   bf16  full weight slab (BN scale folded in),
                                        VMEM-resident across the whole grid
    bias_ref: (1, Cout)           f32   folded BN bias
    o_ref:    (nb, H, W, Cout)          output tile (x dtype)
    acc_ref:  (nb*H*W, Cout)      f32   persistent accumulator (used iff K > 1)
    """
    k = pl.program_id(1)
    nb, H, W, Cout = o_ref.shape
    tk = x_ref.shape[3]
    M = nb * H * W

    # 3x3 conv as 9 MXU matmuls accumulated into ONE local f32 value
    # (a single accumulator RMW per grid step instead of nine).
    taps = None
    for kw in range(KSIZE):
        # One sublane-shifted staging copy per kw; the kh offset below is a
        # leading-dim slice of the already-loaded value (no relayout).
        xs = x_ref[:, :, kw:kw + W, :]                        # (nb, H+2, W, tk)
        for kh in range(KSIZE):
            patch = xs[:, kh:kh + H].reshape(M, tk)           # free if W % 8 == 0
            if num_k == 1:
                wkk = w_ref[kh, kw]                           # (Cin, Cout)
            else:
                cin_off = pl.multiple_of(k * tk, tk)
                wkk = w_ref[kh, kw, pl.ds(cin_off, tk), :]    # (tk, Cout)
            d = jnp.dot(patch, wkk, preferred_element_type=jnp.float32)
            taps = d if taps is None else taps + d

    def _epilogue(total):
        y = total + bias_ref[...]                             # folded BN bias
        y = y * jax.nn.sigmoid(y)                             # SiLU
        o_ref[...] = y.reshape(nb, H, W, Cout).astype(o_ref.dtype)

    if num_k == 1:
        # No reduction loop: straight from the tap sum to the epilogue.
        _epilogue(taps)
    else:
        @pl.when(k == 0)
        def _():
            acc_ref[...] = taps

        @pl.when(jnp.logical_and(k > 0, k < num_k - 1))
        def _():
            acc_ref[...] += taps

        @pl.when(k == num_k - 1)
        def _():
            _epilogue(acc_ref[...] + taps)


def _vmem_budget_and_max_tile(H, W, Cin):
    """Generation-aware (budget_bytes, max_cin_tile)."""
    phys = None
    try:
        phys = getattr(pltpu.get_tpu_info(), "vmem_capacity_bytes", None)
    except Exception:
        phys = None
    if phys is None:                       # unknown chip: stay conservative
        return 48 << 20, 512
    if phys >= (96 << 20):                 # v5e / v6e: 128 MiB physical VMEM
        return 100 << 20, Cin
    # v7x-class: 64 MiB physical; leave headroom for Mosaic internal scratch.
    return 50 << 20, (256 if H * W >= 80 * 80 else 512)


def _estimate_vmem(nb, tk, H, W, Cin, Cout, out_itemsize):
    Hp, Wp = H + 2 * PAD, W + 2 * PAD
    x_tile = nb * Hp * Wp * tk * 2                 # bf16, double-buffered
    w_full = KSIZE * KSIZE * Cin * Cout * 2        # resident slab (2 buffers)
    o_tile = nb * H * W * Cout * out_itemsize
    acc = nb * H * W * Cout * 4 if tk < Cin else 0 # f32 accumulator (K > 1 only)
    staging = KSIZE * nb * Hp * W * tk * 2         # kw-shifted staging copies
    epilogue = 2 * nb * H * W * Cout * 4           # local taps + f32 epilogue temp
    return (2 * x_tile + 2 * w_full + 2 * o_tile + acc + staging + epilogue
            + 2 * Cout * 4)


def _plan(N, H, W, Cin, Cout, out_itemsize, cin_tile, batch_block):
    """Pick (batch_block nb, cin_tile tk, vmem_limit_bytes)."""
    budget, max_tk = _vmem_budget_and_max_tile(H, W, Cin)

    if cin_tile is not None:
        tk_cands = [cin_tile]
    else:
        tk_cands = [t for t in (Cin, 2048, 1024, 768, 512, 384, 256, 128)
                    if t <= min(Cin, max_tk) and Cin % t == 0
                    and (t == Cin or t % 128 == 0)]
        tk_cands = sorted(set(tk_cands), reverse=True) or [Cin]

    if batch_block is not None:
        nb_cands = [batch_block]
    elif N > 1 and H * W <= 4096:
        nb_cands = [N, 1]        # fold batch into the block on small FPN levels
    else:
        nb_cands = [1] if N > 1 else [N]

    for nb in nb_cands:
        for tk in tk_cands:
            est = _estimate_vmem(nb, tk, H, W, Cin, Cout, out_itemsize)
            if est <= budget:
                limit = int(min(budget, max(32 << 20, int(1.25 * est))))
                return nb, tk, limit
    nb, tk = nb_cands[-1], tk_cands[-1]
    est = _estimate_vmem(nb, tk, H, W, Cin, Cout, out_itemsize)
    return nb, tk, int(min(budget, max(32 << 20, int(1.25 * est))))


def conv_bn_silu_nhwc(x_nhwc, w_hwio_bf16, bias, *, cin_tile=None,
                      batch_block=None):
    """x_nhwc: (N, H, W, Cin); returns (N, H, W, Cout) in x's dtype."""
    N, H, W, Cin = x_nhwc.shape
    Cout = w_hwio_bf16.shape[-1]
    out_dtype = x_nhwc.dtype
    out_itemsize = jnp.dtype(out_dtype).itemsize

    nb, tk, vmem_limit = _plan(N, H, W, Cin, Cout, out_itemsize,
                               cin_tile, batch_block)
    assert Cin % tk == 0, "Cin must be divisible by the Cin tile"
    assert tk == Cin or tk % 128 == 0, "partial Cin tiles must be lane-dense"
    assert N % nb == 0, "batch block must divide the batch"
    K = Cin // tk
    NB = N // nb

    # bf16 activations on the MXU; cast + 'same' halo pad fuse into one XLA pass.
    x_bf = x_nhwc.astype(jnp.bfloat16)
    x_pad = jnp.pad(x_bf, ((0, 0), (PAD, PAD), (PAD, PAD), (0, 0)))
    Hp, Wp = H + 2 * PAD, W + 2 * PAD

    bias2 = bias.reshape(1, Cout).astype(jnp.float32)

    cost = pl.CostEstimate(
        flops=2 * KSIZE * KSIZE * Cin * Cout * H * W * N,
        transcendentals=N * H * W * Cout,                     # sigmoid
        bytes_accessed=(x_pad.size * 2 + w_hwio_bf16.size * 2  # weights once
                        + N * H * W * Cout * out_itemsize))

    kernel = functools.partial(_conv_bn_silu_kernel, num_k=K)
    acc_shape = (nb * H * W, Cout) if K > 1 else (8, 128)     # unused when K==1

    return pl.pallas_call(
        kernel,
        out_shape=jax.ShapeDtypeStruct((N, H, W, Cout), out_dtype),
        grid_spec=pltpu.PrefetchScalarGridSpec(
            num_scalar_prefetch=0,
            grid=(NB, K),                                     # reduction axis last
            in_specs=[
                pl.BlockSpec((nb, Hp, Wp, tk), lambda n, k: (n, 0, 0, k)),
                # Full weight slab, constant index map -> fetched once, resident.
                pl.BlockSpec((KSIZE, KSIZE, Cin, Cout),
                             lambda n, k: (0, 0, 0, 0)),
                pl.BlockSpec((1, Cout), lambda n, k: (0, 0)),
            ],
            out_specs=pl.BlockSpec((nb, H, W, Cout), lambda n, k: (n, 0, 0, 0)),
            scratch_shapes=[pltpu.VMEM(acc_shape, jnp.float32)],
        ),
        compiler_params=pltpu.CompilerParams(
            dimension_semantics=("parallel", "arbitrary"),
            vmem_limit_bytes=vmem_limit),
        cost_estimate=cost,
    )(x_pad, w_hwio_bf16, bias2)


class MyNeckPallas:
    """JAX/Pallas re-implementation of MyNeck's forward pass.

    Conv2d(Cin, Cout, k=3, s=1, p=1, bias=False) + BatchNorm2d(Cout) + SiLU,
    applied independently to every tensor in the input tuple.  BatchNorm runs in
    eval mode; its scale is folded into the conv weights and its bias into a
    per-channel bias add.
    """

    def __init__(self, Cin=2048, Cout=256, key=jax.random.PRNGKey(0),
                 cin_tile=None, batch_block=None):
        self.Cin, self.Cout = Cin, Cout
        self.cin_tile = cin_tile
        self.batch_block = batch_block

        # Kaiming normal, mode='fan_in', nonlinearity='linear':
        #   std = 1 / sqrt(fan_in), fan_in = Cin * k * k
        fan_in = Cin * KSIZE * KSIZE
        std = 1.0 / jnp.sqrt(jnp.float32(fan_in))
        w_oihw = jax.random.normal(key, (Cout, Cin, KSIZE, KSIZE),
                                   jnp.float32) * std
        w_hwio = jnp.transpose(w_oihw, (2, 3, 1, 0))             # HWIO, f32

        # BatchNorm2d default init (eval-mode statistics), eps=1e-5.
        gamma = jnp.ones((Cout,), jnp.float32)
        beta = jnp.zeros((Cout,), jnp.float32)
        running_mean = jnp.zeros((Cout,), jnp.float32)
        running_var = jnp.ones((Cout,), jnp.float32)
        eps = 1e-5
        bn_scale = gamma / jnp.sqrt(running_var + eps)
        self.bn_bias = beta - running_mean * bn_scale

        # Fold BN scale into the conv weights, then cast once to bf16.
        self.w_hwio_scaled = w_hwio * bn_scale                   # f32 (reference)
        self.w_hwio_bf16 = self.w_hwio_scaled.astype(jnp.bfloat16)

    @functools.partial(jax.jit, static_argnums=0)
    def _apply_one(self, x_nchw):
        # NCHW in/out to match PyTorch; transpose + cast + pad fuse in XLA.
        # For best performance keep NHWC end-to-end and call conv_bn_silu_nhwc.
        x_nhwc = jnp.transpose(x_nchw, (0, 2, 3, 1))
        y_nhwc = conv_bn_silu_nhwc(x_nhwc, self.w_hwio_bf16, self.bn_bias,
                                   cin_tile=self.cin_tile,
                                   batch_block=self.batch_block)
        return jnp.transpose(y_nhwc, (0, 3, 1, 2))

    def __call__(self, x_tuple):
        return tuple(self._apply_one(x) for x in x_tuple)


def _reference_one(x_nchw, w_hwio_scaled, bias):
    """Pure-JAX reference (lax conv) using the same bf16-rounded inputs."""
    xb = x_nchw.astype(jnp.bfloat16).astype(jnp.float32)
    wb = w_hwio_scaled.astype(jnp.bfloat16).astype(jnp.float32)
    w_oihw = jnp.transpose(wb, (3, 2, 0, 1))
    y = jax.lax.conv_general_dilated(
        xb, w_oihw, window_strides=(1, 1), padding="SAME",
        dimension_numbers=("NCHW", "OIHW", "NCHW"),
        precision=jax.lax.Precision.HIGHEST)
    y = y + bias[None, :, None, None]
    return y * jax.nn.sigmoid(y)


if __name__ == "__main__":
    key = jax.random.PRNGKey(0)
    k_w, k_x0, k_x1 = jax.random.split(key, 3)

    # Small but representative shapes: lane-dense channels, two FPN levels.
    Cin, Cout = 256, 128
    x0 = jax.random.normal(k_x0, (2, Cin, 16, 16), jnp.float32)
    x1 = jax.random.normal(k_x1, (2, Cin, 8, 8), jnp.float32)

    # Auto plan: K == 1 (tk = Cin), batch folded into the block (nb = N).
    neck = MyNeckPallas(Cin=Cin, Cout=Cout, key=k_w)
    outs = neck((x0, x1))
    outs = jax.tree_util.tree_map(jax.block_until_ready, outs)

    # Also exercise the multi-step reduction (K = 2) and per-image (nb = 1) path.
    neck_k2 = MyNeckPallas(Cin=Cin, Cout=Cout, key=k_w,
                           cin_tile=128, batch_block=1)
    outs_k2 = neck_k2((x0,))
    outs_k2 = jax.tree_util.tree_map(jax.block_until_ready, outs_k2)

    # Sanity check against a pure-JAX reference (same folded weights).
    for x, y in zip((x0, x1, x0), outs + outs_k2):
        y_ref = _reference_one(x, neck.w_hwio_scaled, neck.bn_bias)
        assert y.shape == y_ref.shape
        err = float(jnp.max(jnp.abs(y - y_ref)))
        assert err < 5e-3, f"mismatch vs reference: {err}"

    print("KERNEL_OK")
</pallas_src>

<mosaic_0001>
module attributes {stable_mosaic.version = 11 : i64} {
  func.func @_conv_bn_silu_kernel(%arg0: i32, %arg1: i32, %arg2: memref<2x18x18x256xbf16, #tpu.memory_space<vmem>>, %arg3: memref<3x3x256x128xbf16, #tpu.memory_space<vmem>>, %arg4: memref<1x128xf32, #tpu.memory_space<vmem>>, %arg5: memref<2x16x16x128xf32, #tpu.memory_space<vmem>>, %arg6: memref<8x128xf32, #tpu.memory_space<vmem>>) attributes {dimension_semantics = [#tpu.dimension_semantics<parallel>, #tpu.dimension_semantics<arbitrary>], iteration_bounds = array<i64: 1, 1>, scalar_prefetch = 0 : i64, scratch_operands = 1 : i64, tpu.core_type = #tpu.core_type<tc>, window_params = [{transform_indices = @transform_0, window_bounds = array<i64: 2, 18, 18, 256>}, {pipeline_mode = #tpu.pipeline_mode<synchronous>, transform_indices = @transform_1, window_bounds = array<i64: 3, 3, 256, 128>}, {pipeline_mode = #tpu.pipeline_mode<synchronous>, transform_indices = @transform_2, window_bounds = array<i64: 1, 128>}, {transform_indices = @transform_3, window_bounds = array<i64: 2, 16, 16, 128>}]} {
    %c0 = arith.constant 0 : index
    %c0_0 = arith.constant 0 : index
    %c0_1 = arith.constant 0 : index
    %c0_2 = arith.constant 0 : index
    %0 = vector.load %arg2[%c0, %c0_0, %c0_1, %c0_2] : memref<2x18x18x256xbf16, #tpu.memory_space<vmem>>, vector<2x18x16x256xbf16>
    %1 = vector.extract_strided_slice %0 {offsets = [0, 0, 0, 0], sizes = [2, 16, 16, 256], strides = [1, 1, 1, 1]} : vector<2x18x16x256xbf16> to vector<2x16x16x256xbf16>
    %2 = vector.shape_cast %1 : vector<2x16x16x256xbf16> to vector<512x256xbf16>
    %c0_3 = arith.constant 0 : index
    %c0_4 = arith.constant 0 : index
    %c0_5 = arith.constant 0 : index
    %c0_6 = arith.constant 0 : index
    %3 = vector.load %arg3[%c0_3, %c0_4, %c0_5, %c0_6] : memref<3x3x256x128xbf16, #tpu.memory_space<vmem>>, vector<1x1x256x128xbf16>
    %4 = vector.shape_cast %3 : vector<1x1x256x128xbf16> to vector<256x128xbf16>
    %cst = arith.constant dense<0.000000e+00> : vector<512x128xf32>
    %5 = tpu.matmul %2, %4, %cst {dimension_numbers = #tpu.dot_dimension_numbers<[1], [0], [0], [1], [0, 0, 1, 1], [], []>} : vector<512x256xbf16>, vector<256x128xbf16>, vector<512x128xf32> -> vector<512x128xf32>
    %6 = vector.extract_strided_slice %0 {offsets = [0, 1, 0, 0], sizes = [2, 16, 16, 256], strides = [1, 1, 1, 1]} : vector<2x18x16x256xbf16> to vector<2x16x16x256xbf16>
    %7 = vector.shape_cast %6 : vector<2x16x16x256xbf16> to vector<512x256xbf16>
    %c1 = arith.constant 1 : index
    %c0_7 = arith.constant 0 : index
    %c0_8 = arith.constant 0 : index
    %c0_9 = arith.constant 0 : index
    %8 = vector.load %arg3[%c1, %c0_7, %c0_8, %c0_9] : memref<3x3x256x128xbf16, #tpu.memory_space<vmem>>, vector<1x1x256x128xbf16>
    %9 = vector.shape_cast %8 : vector<1x1x256x128xbf16> to vector<256x128xbf16>
    %cst_10 = arith.constant dense<0.000000e+00> : vector<512x128xf32>
    %10 = tpu.matmul %7, %9, %cst_10 {dimension_numbers = #tpu.dot_dimension_numbers<[1], [0], [0], [1], [0, 0, 1, 1], [], []>} : vector<512x256xbf16>, vector<256x128xbf16>, vector<512x128xf32> -> vector<512x128xf32>
    %11 = arith.addf %5, %10 : vector<512x128xf32>
    %12 = vector.extract_strided_slice %0 {offsets = [0, 2, 0, 0], sizes = [2, 16, 16, 256], strides = [1, 1, 1, 1]} : vector<2x18x16x256xbf16> to vector<2x16x16x256xbf16>
    %13 = vector.shape_cast %12 : vector<2x16x16x256xbf16> to vector<512x256xbf16>
    %c2 = arith.constant 2 : index
    %c0_11 = arith.constant 0 : index
    %c0_12 = arith.constant 0 : index
    %c0_13 = arith.constant 0 : index
    %14 = vector.load %arg3[%c2, %c0_11, %c0_12, %c0_13] : memref<3x3x256x128xbf16, #tpu.memory_space<vmem>>, vector<1x1x256x128xbf16>
    %15 = vector.shape_cast %14 : vector<1x1x256x128xbf16> to vector<256x128xbf16>
    %cst_14 = arith.constant dense<0.000000e+00> : vector<512x128xf32>
    %16 = tpu.matmul %13, %15, %cst_14 {dimension_numbers = #tpu.dot_dimension_numbers<[1], [0], [0], [1], [0, 0, 1, 1], [], []>} : vector<512x256xbf16>, vector<256x128xbf16>, vector<512x128xf32> -> vector<512x128xf32>
    %17 = arith.addf %11, %16 : vector<512x128xf32>
    %c0_15 = arith.constant 0 : index
    %c0_16 = arith.constant 0 : index
    %c1_17 = arith.constant 1 : index
    %c0_18 = arith.constant 0 : index
    %18 = vector.load %arg2[%c0_15, %c0_16, %c1_17, %c0_18] : memref<2x18x18x256xbf16, #tpu.memory_space<vmem>>, vector<2x18x16x256xbf16>
    %19 = vector.extract_strided_slice %18 {offsets = [0, 0, 0, 0], sizes = [2, 16, 16, 256], strides = [1, 1, 1, 1]} : vector<2x18x16x256xbf16> to vector<2x16x16x256xbf16>
    %20 = vector.shape_cast %19 : vector<2x16x16x256xbf16> to vector<512x256xbf16>
    %c0_19 = arith.constant 0 : index
    %c1_20 = arith.constant 1 : index
    %c0_21 = arith.constant 0 : index
    %c0_22 = arith.constant 0 : index
    %21 = vector.load %arg3[%c0_19, %c1_20, %c0_21, %c0_22] : memref<3x3x256x128xbf16, #tpu.memory_space<vmem>>, vector<1x1x256x128xbf16>
    %22 = vector.shape_cast %21 : vector<1x1x256x128xbf16> to vector<256x128xbf16>
    %cst_23 = arith.constant dense<0.000000e+00> : vector<512x128xf32>
    %23 = tpu.matmul %20, %22, %cst_23 {dimension_numbers = #tpu.dot_dimension_numbers<[1], [0], [0], [1], [0, 0, 1, 1], [], []>} : vector<512x256xbf16>, vector<256x128xbf16>, vector<512x128xf32> -> vector<512x128xf32>
    %24 = arith.addf %17, %23 : vector<512x128xf32>
    %25 = vector.extract_strided_slice %18 {offsets = [0, 1, 0, 0], sizes = [2, 16, 16, 256], strides = [1, 1, 1, 1]} : vector<2x18x16x256xbf16> to vector<2x16x16x256xbf16>
    %26 = vector.shape_cast %25 : vector<2x16x16x256xbf16> to vector<512x256xbf16>
    %c1_24 = arith.constant 1 : index
    %c1_25 = arith.constant 1 : index
    %c0_26 = arith.constant 0 : index
    %c0_27 = arith.constant 0 : index
    %27 = vector.load %arg3[%c1_24, %c1_25, %c0_26, %c0_27] : memref<3x3x256x128xbf16, #tpu.memory_space<vmem>>, vector<1x1x256x128xbf16>
    %28 = vector.shape_cast %27 : vector<1x1x256x128xbf16> to vector<256x128xbf16>
    %cst_28 = arith.constant dense<0.000000e+00> : vector<512x128xf32>
    %29 = tpu.matmul %26, %28, %cst_28 {dimension_numbers = #tpu.dot_dimension_numbers<[1], [0], [0], [1], [0, 0, 1, 1], [], []>} : vector<512x256xbf16>, vector<256x128xbf16>, vector<512x128xf32> -> vector<512x128xf32>
    %30 = arith.addf %24, %29 : vector<512x128xf32>
    %31 = vector.extract_strided_slice %18 {offsets = [0, 2, 0, 0], sizes = [2, 16, 16, 256], strides = [1, 1, 1, 1]} : vector<2x18x16x256xbf16> to vector<2x16x16x256xbf16>
    %32 = vector.shape_cast %31 : vector<2x16x16x256xbf16> to vector<512x256xbf16>
    %c2_29 = arith.constant 2 : index
    %c1_30 = arith.constant 1 : index
    %c0_31 = arith.constant 0 : index
    %c0_32 = arith.constant 0 : index
    %33 = vector.load %arg3[%c2_29, %c1_30, %c0_31, %c0_32] : memref<3x3x256x128xbf16, #tpu.memory_space<vmem>>, vector<1x1x256x128xbf16>
    %34 = vector.shape_cast %33 : vector<1x1x256x128xbf16> to vector<256x128xbf16>
    %cst_33 = arith.constant dense<0.000000e+00> : vector<512x128xf32>
    %35 = tpu.matmul %32, %34, %cst_33 {dimension_numbers = #tpu.dot_dimension_numbers<[1], [0], [0], [1], [0, 0, 1, 1], [], []>} : vector<512x256xbf16>, vector<256x128xbf16>, vector<512x128xf32> -> vector<512x128xf32>
    %36 = arith.addf %30, %35 : vector<512x128xf32>
    %c0_34 = arith.constant 0 : index
    %c0_35 = arith.constant 0 : index
    %c2_36 = arith.constant 2 : index
    %c0_37 = arith.constant 0 : index
    %37 = vector.load %arg2[%c0_34, %c0_35, %c2_36, %c0_37] : memref<2x18x18x256xbf16, #tpu.memory_space<vmem>>, vector<2x18x16x256xbf16>
    %38 = vector.extract_strided_slice %37 {offsets = [0, 0, 0, 0], sizes = [2, 16, 16, 256], strides = [1, 1, 1, 1]} : vector<2x18x16x256xbf16> to vector<2x16x16x256xbf16>
    %39 = vector.shape_cast %38 : vector<2x16x16x256xbf16> to vector<512x256xbf16>
    %c0_38 = arith.constant 0 : index
    %c2_39 = arith.constant 2 : index
    %c0_40 = arith.constant 0 : index
    %c0_41 = arith.constant 0 : index
    %40 = vector.load %arg3[%c0_38, %c2_39, %c0_40, %c0_41] : memref<3x3x256x128xbf16, #tpu.memory_space<vmem>>, vector<1x1x256x128xbf16>
    %41 = vector.shape_cast %40 : vector<1x1x256x128xbf16> to vector<256x128xbf16>
    %cst_42 = arith.constant dense<0.000000e+00> : vector<512x128xf32>
    %42 = tpu.matmul %39, %41, %cst_42 {dimension_numbers = #tpu.dot_dimension_numbers<[1], [0], [0], [1], [0, 0, 1, 1], [], []>} : vector<512x256xbf16>, vector<256x128xbf16>, vector<512x128xf32> -> vector<512x128xf32>
    %43 = arith.addf %36, %42 : vector<512x128xf32>
    %44 = vector.extract_strided_slice %37 {offsets = [0, 1, 0, 0], sizes = [2, 16, 16, 256], strides = [1, 1, 1, 1]} : vector<2x18x16x256xbf16> to vector<2x16x16x256xbf16>
    %45 = vector.shape_cast %44 : vector<2x16x16x256xbf16> to vector<512x256xbf16>
    %c1_43 = arith.constant 1 : index
    %c2_44 = arith.constant 2 : index
    %c0_45 = arith.constant 0 : index
    %c0_46 = arith.constant 0 : index
    %46 = vector.load %arg3[%c1_43, %c2_44, %c0_45, %c0_46] : memref<3x3x256x128xbf16, #tpu.memory_space<vmem>>, vector<1x1x256x128xbf16>
    %47 = vector.shape_cast %46 : vector<1x1x256x128xbf16> to vector<256x128xbf16>
    %cst_47 = arith.constant dense<0.000000e+00> : vector<512x128xf32>
    %48 = tpu.matmul %45, %47, %cst_47 {dimension_numbers = #tpu.dot_dimension_numbers<[1], [0], [0], [1], [0, 0, 1, 1], [], []>} : vector<512x256xbf16>, vector<256x128xbf16>, vector<512x128xf32> -> vector<512x128xf32>
    %49 = arith.addf %43, %48 : vector<512x128xf32>
    %50 = vector.extract_strided_slice %37 {offsets = [0, 2, 0, 0], sizes = [2, 16, 16, 256], strides = [1, 1, 1, 1]} : vector<2x18x16x256xbf16> to vector<2x16x16x256xbf16>
    %51 = vector.shape_cast %50 : vector<2x16x16x256xbf16> to vector<512x256xbf16>
    %c2_48 = arith.constant 2 : index
    %c2_49 = arith.constant 2 : index
    %c0_50 = arith.constant 0 : index
    %c0_51 = arith.constant 0 : index
    %52 = vector.load %arg3[%c2_48, %c2_49, %c0_50, %c0_51] : memref<3x3x256x128xbf16, #tpu.memory_space<vmem>>, vector<1x1x256x128xbf16>
    %53 = vector.shape_cast %52 : vector<1x1x256x128xbf16> to vector<256x128xbf16>
    %cst_52 = arith.constant dense<0.000000e+00> : vector<512x128xf32>
    %54 = tpu.matmul %51, %53, %cst_52 {dimension_numbers = #tpu.dot_dimension_numbers<[1], [0], [0], [1], [0, 0, 1, 1], [], []>} : vector<512x256xbf16>, vector<256x128xbf16>, vector<512x128xf32> -> vector<512x128xf32>
    %55 = arith.addf %49, %54 : vector<512x128xf32>
    %c0_53 = arith.constant 0 : index
    %c0_54 = arith.constant 0 : index
    %56 = vector.load %arg4[%c0_53, %c0_54] : memref<1x128xf32, #tpu.memory_space<vmem>>, vector<1x128xf32>
    %57 = vector.broadcast %56 : vector<1x128xf32> to vector<512x128xf32>
    %58 = arith.addf %55, %57 : vector<512x128xf32>
    %59 = arith.negf %58 : vector<512x128xf32>
    %60 = math.exp %59 : vector<512x128xf32>
    %cst_55 = arith.constant 1.000000e+00 : f32
    %61 = vector.broadcast %cst_55 : f32 to vector<512x128xf32>
    %62 = arith.addf %61, %60 : vector<512x128xf32>
    %63 = arith.divf %61, %62 : vector<512x128xf32>
    %64 = arith.mulf %58, %63 : vector<512x128xf32>
    %65 = vector.shape_cast %64 : vector<512x128xf32> to vector<2x16x16x128xf32>
    %c0_56 = arith.constant 0 : index
    %c0_57 = arith.constant 0 : index
    %c0_58 = arith.constant 0 : index
    %c0_59 = arith.constant 0 : index
    %66 = vector.load %arg5[%c0_56, %c0_57, %c0_58, %c0_59] : memref<2x16x16x128xf32, #tpu.memory_space<vmem>>, vector<2x16x16x128xf32>
    tpu.vector_store %arg5[%c0_56, %c0_57, %c0_58, %c0_59], %65 {strides = array<i32>} : memref<2x16x16x128xf32, #tpu.memory_space<vmem>>, vector<2x16x16x128xf32>,
    return
  }
  func.func @transform_0(%arg0: i32, %arg1: i32) -> (i32, i32, i32, i32) {
    %c0_i32 = arith.constant 0 : i32
    %c0_i32_0 = arith.constant 0 : i32
    %c0_i32_1 = arith.constant 0 : i32
    return %arg0, %c0_i32, %c0_i32_0, %arg1 : i32, i32, i32, i32
  }
  func.func @transform_1(%arg0: i32, %arg1: i32) -> (i32, i32, i32, i32) {
    %c0_i32 = arith.constant 0 : i32
    %c0_i32_0 = arith.constant 0 : i32
    %c0_i32_1 = arith.constant 0 : i32
    %c0_i32_2 = arith.constant 0 : i32
    %c0_i32_3 = arith.constant 0 : i32
    return %c0_i32, %c0_i32_0, %c0_i32_1, %c0_i32_2 : i32, i32, i32, i32
  }
  func.func @transform_2(%arg0: i32, %arg1: i32) -> (i32, i32) {
    %c0_i32 = arith.constant 0 : i32
    %c0_i32_0 = arith.constant 0 : i32
    %c0_i32_1 = arith.constant 0 : i32
    return %c0_i32, %c0_i32_0 : i32, i32
  }
  func.func @transform_3(%arg0: i32, %arg1: i32) -> (i32, i32, i32, i32) {
    %c0_i32 = arith.constant 0 : i32
    %c0_i32_0 = arith.constant 0 : i32
    %c0_i32_1 = arith.constant 0 : i32
    %c0_i32_2 = arith.constant 0 : i32
    return %arg0, %c0_i32, %c0_i32_0, %c0_i32_1 : i32, i32, i32, i32
  }
}

</mosaic_0001>

<llo_original>
// kernel: _apply_one.1
$region0: #{_apply_one.1}
  #allocation0 [shape = 'u32[]', space=smem, size = 0x4, offset = 0x4, fixed_abs, tag = 'smem constant byte address 0x4 - core index']
  #allocation1 [shape = 'u32[144,128]{1,0:T(1,128)}', space=vmem, size = 0x12000, scoped, tag = 'internal scratch']
  #allocation2 [shape = 'f32[8,128]{1,0:T(8,128)}', space=vmem, size = 0x1000, scoped, tag = 'scratch operand']
  %s0 = inlined_call_operand.vmem [shape: bf16[2,18,18,256], index: 0, kind: input, shape index: {}]
  %s1 = inlined_call_operand.vmem [shape: bf16[3,3,256,128], index: 1, kind: input, shape index: {}]
  %s2 = inlined_call_operand.vmem [shape: f32[1,128], index: 2, kind: input, shape index: {}]
  %s3 = inlined_call_operand.hbm [shape: f32[2,16,16,128], index: 3, kind: output, shape index: {}]
  %s4 = sld [smem:[#allocation0]]
  $region22: #{_apply_one.1} parent=0
    _
  %s6 = ssub.s32 1, %s4
  %s7 = scalar_select 0, %s6, %s4
  $region1: #{_apply_one.1} parent=0
    #allocation3 [shape = 'u8[262144]{0}', space=vmem, size = 0x40000, scoped, tag = 'output window, operand 0, single buffered']
    #allocation4 [shape = 's32[1]{0}', space=sflag, size = 0x4, scoped, tag = 'scoped memory for _apply_one.1']
    %8 = vsyncpa [#allocation4], 0
    // Predicated region
    $region2: #{_apply_one.1} parent=1 // pred_check
      _
    $region3: #{_apply_one.1} parent=1 // pred_check_branch
      %10 = sbr.rel (0) target = $region5
    $region4: #{_apply_one.1} parent=1 // pred_region
      _
    $region5: #{_apply_one.1} parent=1 // pred_fallthru
      _
    // Predicated region
    $region6: #{_apply_one.1} parent=1 // pred_check
      _
    $region7: #{_apply_one.1} parent=1 // pred_check_branch
      %12 = sbr.rel (0) target = $region9
    $region8: #{_apply_one.1} parent=1 // pred_region
      _
    $region9: #{_apply_one.1} parent=1 // pred_fallthru
      _
    // Predicated region
    $region10: #{_apply_one.1} parent=1 // pred_check
      _
    $region11: #{_apply_one.1} parent=1 // pred_check_branch
      %14 = sbr.rel (0) target = $region13
    $region12: #{_apply_one.1} parent=1 // pred_region
      _
    $region13: #{_apply_one.1} parent=1 // pred_fallthru
      _
    %v16 = vld [vmem:[%s0] sm:$0xff]
    %v17 = vld [vmem:[%s0 + $0x8] sm:$0xff]
    %v18 = vld [vmem:[%s0 + $0x18] sm:$0xff]
    %v19 = vld [vmem:[%s0 + $0x20] sm:$0xff]
    %v20 = vld [vmem:[%s0 + $0x30] sm:$0xff]
    %v21 = vld [vmem:[%s0 + $0x38] sm:$0xff]
    %v22 = vld [vmem:[%s0 + $0x48] sm:$0xff]
    %v23 = vld [vmem:[%s0 + $0x50] sm:$0xff]
    %v24 = vld [vmem:[%s0 + $0x60] sm:$0xff]
    %v25 = vld [vmem:[%s0 + $0x68] sm:$0xff]
    %v26 = vld [vmem:[%s0 + $0x78] sm:$0xff]
    %v27 = vld [vmem:[%s0 + $0x80] sm:$0xff]
    %v28 = vld [vmem:[%s0 + $0x90] sm:$0xff]
    %v29 = vld [vmem:[%s0 + $0x98] sm:$0xff]
    %v30 = vld [vmem:[%s0 + $0xa8] sm:$0xff]
    %v31 = vld [vmem:[%s0 + $0xb0] sm:$0xff]
    %v32 = vld [vmem:[%s0 + $0xc0] sm:$0xff]
    %v33 = vld [vmem:[%s0 + $0xc8] sm:$0xff]
    %v34 = vld [vmem:[%s0 + $0xd8] sm:$0xff]
    %v35 = vld [vmem:[%s0 + $0xe0] sm:$0xff]
    %v36 = vld [vmem:[%s0 + $0xf0] sm:$0xff]
    %v37 = vld [vmem:[%s0 + $0xf8] sm:$0xff]
    %v38 = vld [vmem:[%s0 + $0x108] sm:$0xff]
    %v39 = vld [vmem:[%s0 + $0x110] sm:$0xff]
    %v40 = vld [vmem:[%s0 + $0x120] sm:$0xff]
    %v41 = vld [vmem:[%s0 + $0x128] sm:$0xff]
    %v42 = vld [vmem:[%s0 + $0x138] sm:$0xff]
    %v43 = vld [vmem:[%s0 + $0x140] sm:$0xff]
    %v44 = vld [vmem:[%s0 + $0x150] sm:$0xff]
    %v45 = vld [vmem:[%s0 + $0x158] sm:$0xff]
    %v46 = vld [vmem:[%s0 + $0x168] sm:$0xff]
    %v47 = vld [vmem:[%s0 + $0x170] sm:$0xff]
    %v48 = vld [vmem:[%s0 + $0x180] sm:$0xff]
    %v49 = vld [vmem:[%s0 + $0x188] sm:$0xff]
    %v50 = vld [vmem:[%s0 + $0x198] sm:$0xff]
    %v51 = vld [vmem:[%s0 + $0x1a0] sm:$0xff]
    %v52 = vld [vmem:[%s0 + $0x1b0] sm:$0xff]
    %v53 = vld [vmem:[%s0 + $0x1b8] sm:$0xff]
    %v54 = vld [vmem:[%s0 + $0x1c8] sm:$0xff]
    %v55 = vld [vmem:[%s0 + $0x1d0] sm:$0xff]
    %v56 = vld [vmem:[%s0 + $0x1e0] sm:$0xff]
    %v57 = vld [vmem:[%s0 + $0x1e8] sm:$0xff]
    %v58 = vld [vmem:[%s0 + $0x1f8] sm:$0xff]
    %v59 = vld [vmem:[%s0 + $0x200] sm:$0xff]
    %v60 = vld [vmem:[%s0 + $0x210] sm:$0xff]
    %v61 = vld [vmem:[%s0 + $0x218] sm:$0xff]
    %v62 = vld [vmem:[%s0 + $0x228] sm:$0xff]
    %v63 = vld [vmem:[%s0 + $0x230] sm:$0xff]
    %v64 = vld [vmem:[%s0 + $0x240] sm:$0xff]
    %v65 = vld [vmem:[%s0 + $0x248] sm:$0xff]
    %v66 = vld [vmem:[%s0 + $0x258] sm:$0xff]
    %v67 = vld [vmem:[%s0 + $0x260] sm:$0xff]
    %v68 = vld [vmem:[%s0 + $0x270] sm:$0xff]
    %v69 = vld [vmem:[%s0 + $0x278] sm:$0xff]
    %v70 = vld [vmem:[%s0 + $0x288] sm:$0xff]
    %v71 = vld [vmem:[%s0 + $0x290] sm:$0xff]
    %v72 = vld [vmem:[%s0 + $0x2a0] sm:$0xff]
    %v73 = vld [vmem:[%s0 + $0x2a8] sm:$0xff]
    %v74 = vld [vmem:[%s0 + $0x2b8] sm:$0xff]
    %v75 = vld [vmem:[%s0 + $0x2c0] sm:$0xff]
    %v76 = vld [vmem:[%s0 + $0x2d0] sm:$0xff]
    %v77 = vld [vmem:[%s0 + $0x2d8] sm:$0xff]
    %v78 = vld [vmem:[%s0 + $0x2e8] sm:$0xff]
    %v79 = vld [vmem:[%s0 + $0x2f0] sm:$0xff]
    %v80 = vld [vmem:[%s0 + $0x300] sm:$0xff]
    %v81 = vld [vmem:[%s0 + $0x308] sm:$0xff]
    %v82 = vld [vmem:[%s0 + $0x318] sm:$0xff]
    %v83 = vld [vmem:[%s0 + $0x320] sm:$0xff]
    %v84 = vld [vmem:[%s0 + $0x330] sm:$0xff]
    %v85 = vld [vmem:[%s0 + $0x338] sm:$0xff]
    %v86 = vld [vmem:[%s0 + $0x348] sm:$0xff]
    %v87 = vld [vmem:[%s0 + $0x350] sm:$0xff]
    %v88 = vld [vmem:[%s1] sm:$0xf]
    %v89 = vld [vmem:[%s1 + $0x4] sm:$0xf]
    %v90 = vld [vmem:[%s1 + $0x8] sm:$0xf]
    %v91 = vld [vmem:[%s1 + $0xc] sm:$0xf]
    %v92 = vld [vmem:[%s1 + $0x10] sm:$0xf]
    %v93 = vld [vmem:[%s1 + $0x14] sm:$0xf]
    %v94 = vld [vmem:[%s1 + $0x18] sm:$0xf]
    %v95 = vld [vmem:[%s1 + $0x1c] sm:$0xf]
    %v96 = vld [vmem:[%s1 + $0x20] sm:$0xf]
    %v97 = vld [vmem:[%s1 + $0x24] sm:$0xf]
    %v98 = vld [vmem:[%s1 + $0x28] sm:$0xf]
    %v99 = vld [vmem:[%s1 + $0x2c] sm:$0xf]
    %v100 = vld [vmem:[%s1 + $0x30] sm:$0xf]
    %v101 = vld [vmem:[%s1 + $0x34] sm:$0xf]
    %v102 = vld [vmem:[%s1 + $0x38] sm:$0xf]
    %v103 = vld [vmem:[%s1 + $0x3c] sm:$0xf]
    %v104 = vld [vmem:[%s1 + $0x40] sm:$0xf]
    %v105 = vld [vmem:[%s1 + $0x44] sm:$0xf]
    %v106 = vld [vmem:[%s1 + $0x48] sm:$0xf]
    %v107 = vld [vmem:[%s1 + $0x4c] sm:$0xf]
    %v108 = vld [vmem:[%s1 + $0x50] sm:$0xf]
    %v109 = vld [vmem:[%s1 + $0x54] sm:$0xf]
    %v110 = vld [vmem:[%s1 + $0x58] sm:$0xf]
    %v111 = vld [vmem:[%s1 + $0x5c] sm:$0xf]
    %v112 = vld [vmem:[%s1 + $0x60] sm:$0xf]
    %v113 = vld [vmem:[%s1 + $0x64] sm:$0xf]
    %v114 = vld [vmem:[%s1 + $0x68] sm:$0xf]
    %v115 = vld [vmem:[%s1 + $0x6c] sm:$0xf]
    %v116 = vld [vmem:[%s1 + $0x70] sm:$0xf]
    %v117 = vld [vmem:[%s1 + $0x74] sm:$0xf]
    %v118 = vld [vmem:[%s1 + $0x78] sm:$0xf]
    %v119 = vld [vmem:[%s1 + $0x7c] sm:$0xf]
    %s120 = scalar_lea.vmem %s1, 384
    %v121 = vld [vmem:[%s120] sm:$0xf]
    %v122 = vld [vmem:[%s120 + $0x4] sm:$0xf]
    %v123 = vld [vmem:[%s120 + $0x8] sm:$0xf]
    %v124 = vld [vmem:[%s120 + $0xc] sm:$0xf]
    %v125 = vld [vmem:[%s120 + $0x10] sm:$0xf]
    %v126 = vld [vmem:[%s120 + $0x14] sm:$0xf]
    %v127 = vld [vmem:[%s120 + $0x18] sm:$0xf]
    %v128 = vld [vmem:[%s120 + $0x1c] sm:$0xf]
    %v129 = vld [vmem:[%s120 + $0x20] sm:$0xf]
    %v130 = vld [vmem:[%s120 + $0x24] sm:$0xf]
    %v131 = vld [vmem:[%s120 + $0x28] sm:$0xf]
    %v132 = vld [vmem:[%s120 + $0x2c] sm:$0xf]
    %v133 = vld [vmem:[%s120 + $0x30] sm:$0xf]
    %v134 = vld [vmem:[%s120 + $0x34] sm:$0xf]
    %v135 = vld [vmem:[%s120 + $0x38] sm:$0xf]
    %v136 = vld [vmem:[%s120 + $0x3c] sm:$0xf]
    %v137 = vld [vmem:[%s120 + $0x40] sm:$0xf]
    %v138 = vld [vmem:[%s120 + $0x44] sm:$0xf]
    %v139 = vld [vmem:[%s120 + $0x48] sm:$0xf]
    %v140 = vld [vmem:[%s120 + $0x4c] sm:$0xf]
    %v141 = vld [vmem:[%s120 + $0x50] sm:$0xf]
    %v142 = vld [vmem:[%s120 + $0x54] sm:$0xf]
    %v143 = vld [vmem:[%s120 + $0x58] sm:$0xf]
    %v144 = vld [vmem:[%s120 + $0x5c] sm:$0xf]
    %v145 = vld [vmem:[%s120 + $0x60] sm:$0xf]
    %v146 = vld [vmem:[%s120 + $0x64] sm:$0xf]
    %v147 = vld [vmem:[%s120 + $0x68] sm:$0xf]
    %v148 = vld [vmem:[%s120 + $0x6c] sm:$0xf]
    %v149 = vld [vmem:[%s120 + $0x70] sm:$0xf]
    %v150 = vld [vmem:[%s120 + $0x74] sm:$0xf]
    %v151 = vld [vmem:[%s120 + $0x78] sm:$0xf]
    %v152 = vld [vmem:[%s120 + $0x7c] sm:$0xf]
    %v217 = vunpack.c.l.b16 %v18
    %v218 = vunpack.c.h.b16 %v18
    %v219 = vunpack.c.l.b16 %v19
    %v220 = vunpack.c.h.b16 %v19
    %v221 = vunpack.c.l.b16 %v20
    %v222 = vunpack.c.h.b16 %v20
    %v223 = vunpack.c.l.b16 %v21
    %v224 = vunpack.c.h.b16 %v21
    %v225 = vunpack.c.l.b16 %v22
    %v226 = vunpack.c.h.b16 %v22
    %v227 = vunpack.c.l.b16 %v23
    %v228 = vunpack.c.h.b16 %v23
    %v229 = vunpack.c.l.b16 %v24
    %v230 = vunpack.c.h.b16 %v24
    %v231 = vunpack.c.l.b16 %v25
    %v232 = vunpack.c.h.b16 %v25
    %v233 = vunpack.c.l.b16 %v26
    %v234 = vunpack.c.h.b16 %v26
    %v235 = vunpack.c.l.b16 %v27
    %v236 = vunpack.c.h.b16 %v27
    %v237 = vunpack.c.l.b16 %v28
    %v238 = vunpack.c.h.b16 %v28
    %v239 = vunpack.c.l.b16 %v29
    %v240 = vunpack.c.h.b16 %v29
    %v241 = vunpack.c.l.b16 %v30
    %v242 = vunpack.c.h.b16 %v30
    %v243 = vunpack.c.l.b16 %v31
    %v244 = vunpack.c.h.b16 %v31
    %v245 = vunpack.c.l.b16 %v32
    %v246 = vunpack.c.h.b16 %v32
    %v247 = vunpack.c.l.b16 %v33
    %v248 = vunpack.c.h.b16 %v33
    %v249 = vunpack.c.l.b16 %v34
    %v250 = vunpack.c.h.b16 %v34
    %v251 = vunpack.c.l.b16 %v35
    %v252 = vunpack.c.h.b16 %v35
    %v253 = vunpack.c.l.b16 %v36
    %v254 = vunpack.c.h.b16 %v36
    %v255 = vunpack.c.l.b16 %v37
    %v256 = vunpack.c.h.b16 %v37
    %v257 = vunpack.c.l.b16 %v38
    %v258 = vunpack.c.h.b16 %v38
    %v259 = vunpack.c.l.b16 %v39
    %v260 = vunpack.c.h.b16 %v39
    %v261 = vunpack.c.l.b16 %v40
    %v262 = vunpack.c.h.b16 %v40
    %v263 = vunpack.c.l.b16 %v41
    %v264 = vunpack.c.h.b16 %v41
    %v265 = vunpack.c.l.b16 %v42
    %v266 = vunpack.c.h.b16 %v42
    %v267 = vunpack.c.l.b16 %v43
    %v268 = vunpack.c.h.b16 %v43
    %v269 = vunpack.c.l.b16 %v44
    %v270 = vunpack.c.h.b16 %v44
    %v271 = vunpack.c.l.b16 %v45
    %v272 = vunpack.c.h.b16 %v45
    %v273 = vunpack.c.l.b16 %v46
    %v274 = vunpack.c.h.b16 %v46
    %v275 = vunpack.c.l.b16 %v47
    %v276 = vunpack.c.h.b16 %v47
    %v277 = vunpack.c.l.b16 %v48
    %v278 = vunpack.c.h.b16 %v48
    %v279 = vunpack.c.l.b16 %v49
    %v280 = vunpack.c.h.b16 %v49
    %v281 = vunpack.c.l.b16 %v54
    %v282 = vunpack.c.h.b16 %v54
    %v283 = vunpack.c.l.b16 %v55
    %v284 = vunpack.c.h.b16 %v55
    %v285 = vunpack.c.l.b16 %v56
    %v286 = vunpack.c.h.b16 %v56
    %v287 = vunpack.c.l.b16 %v57
    %v288 = vunpack.c.h.b16 %v57
    %v289 = vunpack.c.l.b16 %v58
    %v290 = vunpack.c.h.b16 %v58
    %v291 = vunpack.c.l.b16 %v59
    %v292 = vunpack.c.h.b16 %v59
    %v293 = vunpack.c.l.b16 %v60
    %v294 = vunpack.c.h.b16 %v60
    %v295 = vunpack.c.l.b16 %v61
    %v296 = vunpack.c.h.b16 %v61
    %v297 = vunpack.c.l.b16 %v62
    %v298 = vunpack.c.h.b16 %v62
    %v299 = vunpack.c.l.b16 %v63
    %v300 = vunpack.c.h.b16 %v63
    %v301 = vunpack.c.l.b16 %v64
    %v302 = vunpack.c.h.b16 %v64
    %v303 = vunpack.c.l.b16 %v65
    %v304 = vunpack.c.h.b16 %v65
    %v305 = vunpack.c.l.b16 %v66
    %v306 = vunpack.c.h.b16 %v66
    %v307 = vunpack.c.l.b16 %v67
    %v308 = vunpack.c.h.b16 %v67
    %v309 = vunpack.c.l.b16 %v68
    %v310 = vunpack.c.h.b16 %v68
    %v311 = vunpack.c.l.b16 %v69
    %v312 = vunpack.c.h.b16 %v69
    %v313 = vunpack.c.l.b16 %v70
    %v314 = vunpack.c.h.b16 %v70
    %v315 = vunpack.c.l.b16 %v71
    %v316 = vunpack.c.h.b16 %v71
    %v317 = vunpack.c.l.b16 %v72
    %v318 = vunpack.c.h.b16 %v72
    %v319 = vunpack.c.l.b16 %v73
    %v320 = vunpack.c.h.b16 %v73
    %v321 = vunpack.c.l.b16 %v74
    %v322 = vunpack.c.h.b16 %v74
    %v323 = vunpack.c.l.b16 %v75
    %v324 = vunpack.c.h.b16 %v75
    %v325 = vunpack.c.l.b16 %v76
    %v326 = vunpack.c.h.b16 %v76
    %v327 = vunpack.c.l.b16 %v77
    %v328 = vunpack.c.h.b16 %v77
    %v329 = vunpack.c.l.b16 %v78
    %v330 = vunpack.c.h.b16 %v78
    %v331 = vunpack.c.l.b16 %v79
    %v332 = vunpack.c.h.b16 %v79
    %v333 = vunpack.c.l.b16 %v80
    %v334 = vunpack.c.h.b16 %v80
    %v335 = vunpack.c.l.b16 %v81
    %v336 = vunpack.c.h.b16 %v81
    %v337 = vunpack.c.l.b16 %v82
    %v338 = vunpack.c.h.b16 %v82
    %v339 = vunpack.c.l.b16 %v83
    %v340 = vunpack.c.h.b16 %v83
    %v341 = vunpack.c.l.b16 %v84
    %v342 = vunpack.c.h.b16 %v84
    %v343 = vunpack.c.l.b16 %v85
    %v344 = vunpack.c.h.b16 %v85
    %v345 = vpack.c.b16 %v219, %v217
    %v346 = vpack.c.b16 %v220, %v218
    %v347 = vpack.c.b16 %v223, %v221
    %v348 = vpack.c.b16 %v224, %v222
    %v349 = vpack.c.b16 %v227, %v225
    %v350 = vpack.c.b16 %v228, %v226
    %v351 = vpack.c.b16 %v231, %v229
    %v352 = vpack.c.b16 %v232, %v230
    %v353 = vpack.c.b16 %v235, %v233
    %v354 = vpack.c.b16 %v236, %v234
    %v355 = vpack.c.b16 %v239, %v237
    %v356 = vpack.c.b16 %v240, %v238
    %v357 = vpack.c.b16 %v243, %v241
    %v358 = vpack.c.b16 %v244, %v242
    %v359 = vpack.c.b16 %v247, %v245
    %v360 = vpack.c.b16 %v248, %v246
    %v361 = vpack.c.b16 %v251, %v249
    %v362 = vpack.c.b16 %v252, %v250
    %v363 = vpack.c.b16 %v255, %v253
    %v364 = vpack.c.b16 %v256, %v254
    %v365 = vpack.c.b16 %v259, %v257
    %v366 = vpack.c.b16 %v260, %v258
    %v367 = vpack.c.b16 %v263, %v261
    %v368 = vpack.c.b16 %v264, %v262
    %v369 = vpack.c.b16 %v267, %v265
    %v370 = vpack.c.b16 %v268, %v266
    %v371 = vpack.c.b16 %v271, %v269
    %v372 = vpack.c.b16 %v272, %v270
    %v373 = vpack.c.b16 %v275, %v273
    %v374 = vpack.c.b16 %v276, %v274
    %v375 = vpack.c.b16 %v279, %v277
    %v376 = vpack.c.b16 %v280, %v278
    %v377 = vpack.c.b16 %v283, %v281
    %v378 = vpack.c.b16 %v284, %v282
    %v379 = vpack.c.b16 %v287, %v285
    %v380 = vpack.c.b16 %v288, %v286
    %v381 = vpack.c.b16 %v291, %v289
    %v382 = vpack.c.b16 %v292, %v290
    %v383 = vpack.c.b16 %v295, %v293
    %v384 = vpack.c.b16 %v296, %v294
    %v385 = vpack.c.b16 %v299, %v297
    %v386 = vpack.c.b16 %v300, %v298
    %v387 = vpack.c.b16 %v303, %v301
    %v388 = vpack.c.b16 %v304, %v302
    %v389 = vpack.c.b16 %v307, %v305
    %v390 = vpack.c.b16 %v308, %v306
    %v391 = vpack.c.b16 %v311, %v309
    %v392 = vpack.c.b16 %v312, %v310
    %v393 = vpack.c.b16 %v315, %v313
    %v394 = vpack.c.b16 %v316, %v314
    %v395 = vpack.c.b16 %v319, %v317
    %v396 = vpack.c.b16 %v320, %v318
    %v397 = vpack.c.b16 %v323, %v321
    %v398 = vpack.c.b16 %v324, %v322
    %v399 = vpack.c.b16 %v327, %v325
    %v400 = vpack.c.b16 %v328, %v326
    %v401 = vpack.c.b16 %v331, %v329
    %v402 = vpack.c.b16 %v332, %v330
    %v403 = vpack.c.b16 %v335, %v333
    %v404 = vpack.c.b16 %v336, %v334
    %v405 = vpack.c.b16 %v339, %v337
    %v406 = vpack.c.b16 %v340, %v338
    %v407 = vpack.c.b16 %v343, %v341
    %v408 = vpack.c.b16 %v344, %v342
    %v505 = vunpack.c.l.b16 %v121
    %v506 = vunpack.c.l.b16 %v122
    %v507 = vunpack.c.l.b16 %v123
    %v508 = vunpack.c.l.b16 %v124
    %v509 = vunpack.c.l.b16 %v125
    %v510 = vunpack.c.l.b16 %v126
    %v511 = vunpack.c.l.b16 %v127
    %v512 = vunpack.c.l.b16 %v128
    %v513 = vunpack.c.l.b16 %v129
    %v514 = vunpack.c.l.b16 %v130
    %v515 = vunpack.c.l.b16 %v131
    %v516 = vunpack.c.l.b16 %v132
    %v517 = vunpack.c.l.b16 %v133
    %v518 = vunpack.c.l.b16 %v134
    %v519 = vunpack.c.l.b16 %v135
    %v520 = vunpack.c.l.b16 %v136
    %v521 = vunpack.c.l.b16 %v137
    %v522 = vunpack.c.l.b16 %v138
    %v523 = vunpack.c.l.b16 %v139
    %v524 = vunpack.c.l.b16 %v140
    %v525 = vunpack.c.l.b16 %v141
    %v526 = vunpack.c.l.b16 %v142
    %v527 = vunpack.c.l.b16 %v143
    %v528 = vunpack.c.l.b16 %v144
    %v529 = vunpack.c.l.b16 %v145
    %v530 = vunpack.c.l.b16 %v146
    %v531 = vunpack.c.l.b16 %v147
    %v532 = vunpack.c.l.b16 %v148
    %v533 = vunpack.c.l.b16 %v149
    %v534 = vunpack.c.l.b16 %v150
    %v535 = vunpack.c.l.b16 %v151
    %v536 = vunpack.c.l.b16 %v152
    %v537 = vpack.c.b16 %v506, %v505
    %v538 = vpack.c.b16 %v508, %v507
    %v539 = vpack.c.b16 %v510, %v509
    %v540 = vpack.c.b16 %v512, %v511
    %v541 = vpack.c.b16 %v514, %v513
    %v542 = vpack.c.b16 %v516, %v515
    %v543 = vpack.c.b16 %v518, %v517
    %v544 = vpack.c.b16 %v520, %v519
    %v545 = vpack.c.b16 %v522, %v521
    %v546 = vpack.c.b16 %v524, %v523
    %v547 = vpack.c.b16 %v526, %v525
    %v548 = vpack.c.b16 %v528, %v527
    %v549 = vpack.c.b16 %v530, %v529
    %v550 = vpack.c.b16 %v532, %v531
    %v551 = vpack.c.b16 %v534, %v533
    %v552 = vpack.c.b16 %v536, %v535
    %569 = vmatprep.subr.bf16.mxu0 0
    %570 = vmatpush1.bf16.msra.mxu0 %v537
    %571 = vmatprep.subr.bf16.mxu0 0
    %572 = vmatpush1.bf16.msra.mxu0 %v538
    %573 = vmatprep.subr.bf16.mxu0 0
    %574 = vmatpush1.bf16.msra.mxu0 %v539
    %575 = vmatprep.subr.bf16.mxu0 0
    %576 = vmatpush1.bf16.msra.mxu0 %v540
    %577 = vmatprep.subr.bf16.mxu0 0
    %578 = vmatpush1.bf16.msra.mxu0 %v541
    %579 = vmatprep.subr.bf16.mxu0 0
    %580 = vmatpush1.bf16.msra.mxu0 %v542
    %581 = vmatprep.subr.bf16.mxu0 0
    %582 = vmatpush1.bf16.msra.mxu0 %v543
    %583 = vmatprep.subr.bf16.mxu0 0
    %584 = vmatpush1.bf16.msra.mxu0 %v544
    %585 = vmatprep.subr.bf16.mxu0 0
    %586 = vmatpush1.bf16.msra.mxu0 %v545
    %587 = vmatprep.subr.bf16.mxu0 0
    %588 = vmatpush1.bf16.msra.mxu0 %v546
    %589 = vmatprep.subr.bf16.mxu0 0
    %590 = vmatpush1.bf16.msra.mxu0 %v547
    %591 = vmatprep.subr.bf16.mxu0 0
    %592 = vmatpush1.bf16.msra.mxu0 %v548
    %593 = vmatprep.subr.bf16.mxu0 0
    %594 = vmatpush1.bf16.msra.mxu0 %v549
    %595 = vmatprep.subr.bf16.mxu0 0
    %596 = vmatpush1.bf16.msra.mxu0 %v550
    %597 = vmatprep.subr.bf16.mxu0 0
    %598 = vmatpush1.bf16.msra.mxu0 %v551
    %599 = vmatprep.subr.bf16.mxu0 0
    %600 = vmatpush1.bf16.msra.mxu0 %v552
    %601 = vmatprep.mubr.bf16.mxu0 %v346
    %602 = vmatmul.mubr.bf16.gmra.mrb[0].mxu0 %v345
    %v603 = vpop.f32.mrb[0].mxu0
    %v604 = vadd.f32 0.0, %v603
    %v605 = vpop.f32.mrb[0].mxu0
    %v606 = vpop.f32.mrb[0].mxu0
    %v607 = vadd.f32 0.0, %v606
    %v608 = vpop.f32.mrb[0].mxu0
    %609 = vmatprep.mubr.bf16.mxu0 %v348
    %610 = vmatmul.mubr.bf16.gmra.mrb[0].mxu0 %v347
    %v611 = vpop.f32.mrb[0].mxu0
    %v612 = vadd.f32 0.0, %v611
    %v613 = vpop.f32.mrb[0].mxu0
    %v614 = vpop.f32.mrb[0].mxu0
    %v615 = vadd.f32 0.0, %v614
    %v616 = vpop.f32.mrb[0].mxu0
    %617 = vmatprep.mubr.bf16.mxu0 %v350
    %618 = vmatmul.mubr.bf16.gmra.mrb[0].mxu0 %v349
    %v619 = vpop.f32.mrb[0].mxu0
    %v620 = vadd.f32 0.0, %v619
    %v621 = vpop.f32.mrb[0].mxu0
    %v622 = vpop.f32.mrb[0].mxu0
    %v623 = vadd.f32 0.0, %v622
    %v624 = vpop.f32.mrb[0].mxu0
    %625 = vmatprep.mubr.bf16.mxu0 %v352
    %626 = vmatmul.mubr.bf16.gmra.mrb[0].mxu0 %v351
    %v627 = vpop.f32.mrb[0].mxu0
    %v628 = vadd.f32 0.0, %v627
    %v629 = vpop.f32.mrb[0].mxu0
    %v630 = vpop.f32.mrb[0].mxu0
    %v631 = vadd.f32 0.0, %v630
    %v632 = vpop.f32.mrb[0].mxu0
    %633 = vmatprep.mubr.bf16.mxu0 %v354
    %634 = vmatmul.mubr.bf16.gmra.mrb[0].mxu0 %v353
    %v635 = vpop.f32.mrb[0].mxu0
    %v636 = vadd.f32 0.0, %v635
    %v637 = vpop.f32.mrb[0].mxu0
    %v638 = vpop.f32.mrb[0].mxu0
    %v639 = vadd.f32 0.0, %v638
    %v640 = vpop.f32.mrb[0].mxu0
    %641 = vmatprep.mubr.bf16.mxu0 %v356
    %642 = vmatmul.mubr.bf16.gmra.mrb[0].mxu0 %v355
    %v643 = vpop.f32.mrb[0].mxu0
    %v644 = vadd.f32 0.0, %v643
    %v645 = vpop.f32.mrb[0].mxu0
    %v646 = vpop.f32.mrb[0].mxu0
    %v647 = vadd.f32 0.0, %v646
    %v648 = vpop.f32.mrb[0].mxu0
    %649 = vmatprep.mubr.bf16.mxu0 %v358
    %650 = vmatmul.mubr.bf16.gmra.mrb[0].mxu0 %v357
    %v651 = vpop.f32.mrb[0].mxu0
    %v652 = vadd.f32 0.0, %v651
    %v653 = vpop.f32.mrb[0].mxu0
    %v654 = vpop.f32.mrb[0].mxu0
    %v655 = vadd.f32 0.0, %v654
    %v656 = vpop.f32.mrb[0].mxu0
    %657 = vmatprep.mubr.bf16.mxu0 %v360
    %658 = vmatmul.mubr.bf16.gmra.mrb[0].mxu0 %v359
    %v659 = vpop.f32.mrb[0].mxu0
    %v660 = vadd.f32 0.0, %v659
    %v661 = vpop.f32.mrb[0].mxu0
    %v662 = vpop.f32.mrb[0].mxu0
    %v663 = vadd.f32 0.0, %v662
    %v664 = vpop.f32.mrb[0].mxu0
    %665 = vmatprep.mubr.bf16.mxu0 %v362
    %666 = vmatmul.mubr.bf16.gmra.mrb[0].mxu0 %v361
    %v667 = vpop.f32.mrb[0].mxu0
    %v668 = vadd.f32 0.0, %v667
    %v669 = vpop.f32.mrb[0].mxu0
    %v670 = vpop.f32.mrb[0].mxu0
    %v671 = vadd.f32 0.0, %v670
    %v672 = vpop.f32.mrb[0].mxu0
    %673 = vmatprep.mubr.bf16.mxu0 %v364
    %674 = vmatmul.mubr.bf16.gmra.mrb[0].mxu0 %v363
    %v675 = vpop.f32.mrb[0].mxu0
    %v676 = vadd.f32 0.0, %v675
    %v677 = vpop.f32.mrb[0].mxu0
    %v678 = vpop.f32.mrb[0].mxu0
    %v679 = vadd.f32 0.0, %v678
    %v680 = vpop.f32.mrb[0].mxu0
    %681 = vmatprep.mubr.bf16.mxu0 %v366
    %682 = vmatmul.mubr.bf16.gmra.mrb[0].mxu0 %v365
    %v683 = vpop.f32.mrb[0].mxu0
    %v684 = vadd.f32 0.0, %v683
    %v685 = vpop.f32.mrb[0].mxu0
    %v686 = vpop.f32.mrb[0].mxu0
    %v687 = vadd.f32 0.0, %v686
    %v688 = vpop.f32.mrb[0].mxu0
    %689 = vmatprep.mubr.bf16.mxu0 %v368
    %690 = vmatmul.mubr.bf16.gmra.mrb[0].mxu0 %v367
    %v691 = vpop.f32.mrb[0].mxu0
    %v692 = vadd.f32 0.0, %v691
    %v693 = vpop.f32.mrb[0].mxu0
    %v694 = vpop.f32.mrb[0].mxu0
    %v695 = vadd.f32 0.0, %v694
    %v696 = vpop.f32.mrb[0].mxu0
    %697 = vmatprep.mubr.bf16.mxu0 %v370
    %698 = vmatmul.mubr.bf16.gmra.mrb[0].mxu0 %v369
    %v699 = vpop.f32.mrb[0].mxu0
    %v700 = vadd.f32 0.0, %v699
    %v701 = vpop.f32.mrb[0].mxu0
    %v702 = vpop.f32.mrb[0].mxu0
    %v703 = vadd.f32 0.0, %v702
    %v704 = vpop.f32.mrb[0].mxu0
    %705 = vmatprep.mubr.bf16.mxu0 %v372
    %706 = vmatmul.mubr.bf16.gmra.mrb[0].mxu0 %v371
    %v707 = vpop.f32.mrb[0].mxu0
    %v708 = vadd.f32 0.0, %v707
    %v709 = vpop.f32.mrb[0].mxu0
    %v710 = vpop.f32.mrb[0].mxu0
    %v711 = vadd.f32 0.0, %v710
    %v712 = vpop.f32.mrb[0].mxu0
    %713 = vmatprep.mubr.bf16.mxu0 %v374
    %714 = vmatmul.mubr.bf16.gmra.mrb[0].mxu0 %v373
    %v715 = vpop.f32.mrb[0].mxu0
    %v716 = vadd.f32 0.0, %v715
    %v717 = vpop.f32.mrb[0].mxu0
    %v718 = vpop.f32.mrb[0].mxu0
    %v719 = vadd.f32 0.0, %v718
    %v720 = vpop.f32.mrb[0].mxu0
    %721 = vmatprep.mubr.bf16.mxu0 %v376
    %722 = vmatmul.mubr.bf16.gmra.mrb[0].mxu0 %v375
    %v723 = vpop.f32.mrb[0].mxu0
    %v724 = vadd.f32 0.0, %v723
    %v725 = vpop.f32.mrb[0].mxu0
    %v726 = vpop.f32.mrb[0].mxu0
    %v727 = vadd.f32 0.0, %v726
    %v728 = vpop.f32.mrb[0].mxu0
    %729 = vmatprep.mubr.bf16.mxu0 %v378
    %730 = vmatmul.mubr.bf16.gmra.mrb[0].mxu0 %v377
    %v731 = vpop.f32.mrb[0].mxu0
    %v732 = vadd.f32 0.0, %v731
    %v733 = vpop.f32.mrb[0].mxu0
    %v734 = vpop.f32.mrb[0].mxu0
    %v735 = vadd.f32 0.0, %v734
    %v736 = vpop.f32.mrb[0].mxu0
    %737 = vmatprep.mubr.bf16.mxu0 %v380
    %738 = vmatmul.mubr.bf16.gmra.mrb[0].mxu0 %v379
    %v739 = vpop.f32.mrb[0].mxu0
    %v740 = vadd.f32 0.0, %v739
    %v741 = vpop.f32.mrb[0].mxu0
    %v742 = vpop.f32.mrb[0].mxu0
    %v743 = vadd.f32 0.0, %v742
    %v744 = vpop.f32.mrb[0].mxu0
    %745 = vmatprep.mubr.bf16.mxu0 %v382
    %746 = vmatmul.mubr.bf16.gmra.mrb[0].mxu0 %v381
    %v747 = vpop.f32.mrb[0].mxu0
    %v748 = vadd.f32 0.0, %v747
    %v749 = vpop.f32.mrb[0].mxu0
    %v750 = vpop.f32.mrb[0].mxu0
    %v751 = vadd.f32 0.0, %v750
    %v752 = vpop.f32.mrb[0].mxu0
    %753 = vmatprep.mubr.bf16.mxu0 %v384
    %754 = vmatmul.mubr.bf16.gmra.mrb[0].mxu0 %v383
    %v755 = vpop.f32.mrb[0].mxu0
    %v756 = vadd.f32 0.0, %v755
    %v757 = vpop.f32.mrb[0].mxu0
    %v758 = vpop.f32.mrb[0].mxu0
    %v759 = vadd.f32 0.0, %v758
    %v760 = vpop.f32.mrb[0].mxu0
    %761 = vmatprep.mubr.bf16.mxu0 %v386
    %762 = vmatmul.mubr.bf16.gmra.mrb[0].mxu0 %v385
    %v763 = vpop.f32.mrb[0].mxu0
    %v764 = vadd.f32 0.0, %v763
    %v765 = vpop.f32.mrb[0].mxu0
    %v766 = vpop.f32.mrb[0].mxu0
    %v767 = vadd.f32 0.0, %v766
    %v768 = vpop.f32.mrb[0].mxu0
    %769 = vmatprep.mubr.bf16.mxu0 %v388
    %770 = vmatmul.mubr.bf16.gmra.mrb[0].mxu0 %v387
    %v771 = vpop.f32.mrb[0].mxu0
    %v772 = vadd.f32 0.0, %v771
    %v773 = vpop.f32.mrb[0].mxu0
    %v774 = vpop.f32.mrb[0].mxu0
    %v775 = vadd.f32 0.0, %v774
    %v776 = vpop.f32.mrb[0].mxu0
    %777 = vmatprep.mubr.bf16.mxu0 %v390
    %778 = vmatmul.mubr.bf16.gmra.mrb[0].mxu0 %v389
    %v779 = vpop.f32.mrb[0].mxu0
    %v780 = vadd.f32 0.0, %v779
    %v781 = vpop.f32.mrb[0].mxu0
    %v782 = vpop.f32.mrb[0].mxu0
    %v783 = vadd.f32 0.0, %v782
    %v784 = vpop.f32.mrb[0].mxu0
    %785 = vmatprep.mubr.bf16.mxu0 %v392
    %786 = vmatmul.mubr.bf16.gmra.mrb[0].mxu0 %v391
    %v787 = vpop.f32.mrb[0].mxu0
    %v788 = vadd.f32 0.0, %v787
    %v789 = vpop.f32.mrb[0].mxu0
    %v790 = vpop.f32.mrb[0].mxu0
    %v791 = vadd.f32 0.0, %v790
    %v792 = vpop.f32.mrb[0].mxu0
    %793 = vmatprep.mubr.bf16.mxu0 %v394
    %794 = vmatmul.mubr.bf16.gmra.mrb[0].mxu0 %v393
    %v795 = vpop.f32.mrb[0].mxu0
    %v796 = vadd.f32 0.0, %v795
    %v797 = vpop.f32.mrb[0].mxu0
    %v798 = vpop.f32.mrb[0].mxu0
    %v799 = vadd.f32 0.0, %v798
    %v800 = vpop.f32.mrb[0].mxu0
    %801 = vmatprep.mubr.bf16.mxu0 %v396
    %802 = vmatmul.mubr.bf16.gmra.mrb[0].mxu0 %v395
    %v803 = vpop.f32.mrb[0].mxu0
    %v804 = vadd.f32 0.0, %v803
    %v805 = vpop.f32.mrb[0].mxu0
    %v806 = vpop.f32.mrb[0].mxu0
    %v807 = vadd.f32 0.0, %v806
    %v808 = vpop.f32.mrb[0].mxu0
    %809 = vmatprep.mubr.bf16.mxu0 %v398
    %810 = vmatmul.mubr.bf16.gmra.mrb[0].mxu0 %v397
    %v811 = vpop.f32.mrb[0].mxu0
    %v812 = vadd.f32 0.0, %v811
    %v813 = vpop.f32.mrb[0].mxu0
    %v814 = vpop.f32.mrb[0].mxu0
    %v815 = vadd.f32 0.0, %v814
    %v816 = vpop.f32.mrb[0].mxu0
    %817 = vmatprep.mubr.bf16.mxu0 %v400
    %818 = vmatmul.mubr.bf16.gmra.mrb[0].mxu0 %v399
    %v819 = vpop.f32.mrb[0].mxu0
    %v820 = vadd.f32 0.0, %v819
    %v821 = vpop.f32.mrb[0].mxu0
    %v822 = vpop.f32.mrb[0].mxu0
    %v823 = vadd.f32 0.0, %v822
    %v824 = vpop.f32.mrb[0].mxu0
    %825 = vmatprep.mubr.bf16.mxu0 %v402
    %826 = vmatmul.mubr.bf16.gmra.mrb[0].mxu0 %v401
    %v827 = vpop.f32.mrb[0].mxu0
    %v828 = vadd.f32 0.0, %v827
    %v829 = vpop.f32.mrb[0].mxu0
    %v830 = vpop.f32.mrb[0].mxu0
    %v831 = vadd.f32 0.0, %v830
    %v832 = vpop.f32.mrb[0].mxu0
    %833 = vmatprep.mubr.bf16.mxu0 %v404
    %834 = vmatmul.mubr.bf16.gmra.mrb[0].mxu0 %v403
    %v835 = vpop.f32.mrb[0].mxu0
    %v836 = vadd.f32 0.0, %v835
    %v837 = vpop.f32.mrb[0].mxu0
    %v838 = vpop.f32.mrb[0].mxu0
    %v839 = vadd.f32 0.0, %v838
    %v840 = vpop.f32.mrb[0].mxu0
    %841 = vmatprep.mubr.bf16.mxu0 %v406
    %842 = vmatmul.mubr.bf16.gmra.mrb[0].mxu0 %v405
    %v843 = vpop.f32.mrb[0].mxu0
    %v844 = vadd.f32 0.0, %v843
    %v845 = vpop.f32.mrb[0].mxu0
    %v846 = vpop.f32.mrb[0].mxu0
    %v847 = vadd.f32 0.0, %v846
    %v848 = vpop.f32.mrb[0].mxu0
    %849 = vmatprep.mubr.bf16.mxu0 %v408
    %850 = vmatmul.mubr.bf16.gmra.mrb[0].mxu0 %v407
    %v851 = vpop.f32.mrb[0].mxu0
    %v852 = vadd.f32 0.0, %v851
    %v853 = vpop.f32.mrb[0].mxu0
    %v854 = vpop.f32.mrb[0].mxu0
    %v855 = vadd.f32 0.0, %v854
    %v856 = vpop.f32.mrb[0].mxu0
    %857 = vdwg.mxu0
    %v862 = vunpack.c.l.b16 %v16
    %v863 = vunpack.c.h.b16 %v16
    %v864 = vunpack.c.l.b16 %v17
    %v865 = vunpack.c.h.b16 %v17
    %v866 = vunpack.c.l.b16 %v52
    %v867 = vunpack.c.h.b16 %v52
    %v868 = vunpack.c.l.b16 %v53
    %v869 = vunpack.c.h.b16 %v53
    %v870 = vpack.c.b16 %v864, %v862
    %v871 = vpack.c.b16 %v865, %v863
    %v872 = vpack.c.b16 %v868, %v866
    %v873 = vpack.c.b16 %v869, %v867
    %v910 = vunpack.c.l.b16 %v88
    %v911 = vunpack.c.l.b16 %v89
    %v912 = vunpack.c.l.b16 %v90
    %v913 = vunpack.c.l.b16 %v91
    %v914 = vunpack.c.l.b16 %v92
    %v915 = vunpack.c.l.b16 %v93
    %v916 = vunpack.c.l.b16 %v94
    %v917 = vunpack.c.l.b16 %v95
    %v918 = vunpack.c.l.b16 %v96
    %v919 = vunpack.c.l.b16 %v97
    %v920 = vunpack.c.l.b16 %v98
    %v921 = vunpack.c.l.b16 %v99
    %v922 = vunpack.c.l.b16 %v100
    %v923 = vunpack.c.l.b16 %v101
    %v924 = vunpack.c.l.b16 %v102
    %v925 = vunpack.c.l.b16 %v103
    %v926 = vunpack.c.l.b16 %v104
    %v927 = vunpack.c.l.b16 %v105
    %v928 = vunpack.c.l.b16 %v106
    %v929 = vunpack.c.l.b16 %v107
    %v930 = vunpack.c.l.b16 %v108
    %v931 = vunpack.c.l.b16 %v109
    %v932 = vunpack.c.l.b16 %v110
    %v933 = vunpack.c.l.b16 %v111
    %v934 = vunpack.c.l.b16 %v112
    %v935 = vunpack.c.l.b16 %v113
    %v936 = vunpack.c.l.b16 %v114
    %v937 = vunpack.c.l.b16 %v115
    %v938 = vunpack.c.l.b16 %v116
    %v939 = vunpack.c.l.b16 %v117
    %v940 = vunpack.c.l.b16 %v118
    %v941 = vunpack.c.l.b16 %v119
    %v942 = vpack.c.b16 %v911, %v910
    %v943 = vpack.c.b16 %v913, %v912
    %v944 = vpack.c.b16 %v915, %v914
    %v945 = vpack.c.b16 %v917, %v916
    %v946 = vpack.c.b16 %v919, %v918
    %v947 = vpack.c.b16 %v921, %v920
    %v948 = vpack.c.b16 %v923, %v922
    %v949 = vpack.c.b16 %v925, %v924
    %v950 = vpack.c.b16 %v927, %v926
    %v951 = vpack.c.b16 %v929, %v928
    %v952 = vpack.c.b16 %v931, %v930
    %v953 = vpack.c.b16 %v933, %v932
    %v954 = vpack.c.b16 %v935, %v934
    %v955 = vpack.c.b16 %v937, %v936
    %v956 = vpack.c.b16 %v939, %v938
    %v957 = vpack.c.b16 %v941, %v940
    %974 = vmatprep.subr.bf16.mxu0 0
    %975 = vmatpush1.bf16.msra.mxu0 %v942
    %976 = vmatprep.subr.bf16.mxu0 0
    %977 = vmatpush1.bf16.msra.mxu0 %v943
    %978 = vmatprep.subr.bf16.mxu0 0
    %979 = vmatpush1.bf16.msra.mxu0 %v944
    %980 = vmatprep.subr.bf16.mxu0 0
    %981 = vmatpush1.bf16.msra.mxu0 %v945
    %982 = vmatprep.subr.bf16.mxu0 0
    %983 = vmatpush1.bf16.msra.mxu0 %v946
    %984 = vmatprep.subr.bf16.mxu0 0
    %985 = vmatpush1.bf16.msra.mxu0 %v947
    %986 = vmatprep.subr.bf16.mxu0 0
    %987 = vmatpush1.bf16.msra.mxu0 %v948
    %988 = vmatprep.subr.bf16.mxu0 0
    %989 = vmatpush1.bf16.msra.mxu0 %v949
    %990 = vmatprep.subr.bf16.mxu0 0
    %991 = vmatpush1.bf16.msra.mxu0 %v950
    %992 = vmatprep.subr.bf16.mxu0 0
    %993 = vmatpush1.bf16.msra.mxu0 %v951
    %994 = vmatprep.subr.bf16.mxu0 0
    %995 = vmatpush1.bf16.msra.mxu0 %v952
    %996 = vmatprep.subr.bf16.mxu0 0
    %997 = vmatpush1.bf16.msra.mxu0 %v953
    %998 = vmatprep.subr.bf16.mxu0 0
    %999 = vmatpush1.bf16.msra.mxu0 %v954
    %1000 = vmatprep.subr.bf16.mxu0 0
    %1001 = vmatpush1.bf16.msra.mxu0 %v955
    %1002 = vmatprep.subr.bf16.mxu0 0
    %1003 = vmatpush1.bf16.msra.mxu0 %v956
    %1004 = vmatprep.subr.bf16.mxu0 0
    %1005 = vmatpush1.bf16.msra.mxu0 %v957
    %1006 = vmatprep.mubr.bf16.mxu0 %v871
    %1007 = vmatmul.mubr.bf16.gmra.mrb[0].mxu0 %v870
    %v1008 = vpop.f32.mrb[0].mxu0
    %v1009 = vadd.f32 %v604, %v1008
    %v1010 = vpop.f32.mrb[0].mxu0
    %v1011 = vpop.f32.mrb[0].mxu0
    %v1012 = vadd.f32 %v607, %v1011
    %v1013 = vpop.f32.mrb[0].mxu0
    %1014 = vmatprep.mubr.bf16.mxu0 %v346
    %1015 = vmatmul.mubr.bf16.gmra.mrb[0].mxu0 %v345
    %v1016 = vpop.f32.mrb[0].mxu0
    %v1017 = vadd.f32 %v612, %v1016
    %v1018 = vpop.f32.mrb[0].mxu0
    %v1019 = vpop.f32.mrb[0].mxu0
    %v1020 = vadd.f32 %v615, %v1019
    %v1021 = vpop.f32.mrb[0].mxu0
    %1022 = vmatprep.mubr.bf16.mxu0 %v348
    %1023 = vmatmul.mubr.bf16.gmra.mrb[0].mxu0 %v347
    %v1024 = vpop.f32.mrb[0].mxu0
    %v1025 = vadd.f32 %v620, %v1024
    %v1026 = vpop.f32.mrb[0].mxu0
    %v1027 = vpop.f32.mrb[0].mxu0
    %v1028 = vadd.f32 %v623, %v1027
    %v1029 = vpop.f32.mrb[0].mxu0
    %1030 = vmatprep.mubr.bf16.mxu0 %v350
    %1031 = vmatmul.mubr.bf16.gmra.mrb[0].mxu0 %v349
    %v1032 = vpop.f32.mrb[0].mxu0
    %v1033 = vadd.f32 %v628, %v1032
    %v1034 = vpop.f32.mrb[0].mxu0
    %v1035 = vpop.f32.mrb[0].mxu0
    %v1036 = vadd.f32 %v631, %v1035
    %v1037 = vpop.f32.mrb[0].mxu0
    %1038 = vmatprep.mubr.bf16.mxu0 %v352
    %1039 = vmatmul.mubr.bf16.gmra.mrb[0].mxu0 %v351
    %v1040 = vpop.f32.mrb[0].mxu0
    %v1041 = vadd.f32 %v636, %v1040
    %v1042 = vpop.f32.mrb[0].mxu0
    %v1043 = vpop.f32.mrb[0].mxu0
    %v1044 = vadd.f32 %v639, %v1043
    %v1045 = vpop.f32.mrb[0].mxu0
    %1046 = vmatprep.mubr.bf16.mxu0 %v354
    %1047 = vmatmul.mubr.bf16.gmra.mrb[0].mxu0 %v353
    %v1048 = vpop.f32.mrb[0].mxu0
    %v1049 = vadd.f32 %v644, %v1048
    %v1050 = vpop.f32.mrb[0].mxu0
    %v1051 = vpop.f32.mrb[0].mxu0
    %v1052 = vadd.f32 %v647, %v1051
    %v1053 = vpop.f32.mrb[0].mxu0
    %1054 = vmatprep.mubr.bf16.mxu0 %v356
    %1055 = vmatmul.mubr.bf16.gmra.mrb[0].mxu0 %v355
    %v1056 = vpop.f32.mrb[0].mxu0
    %v1057 = vadd.f32 %v652, %v1056
    %v1058 = vpop.f32.mrb[0].mxu0
    %v1059 = vpop.f32.mrb[0].mxu0
    %v1060 = vadd.f32 %v655, %v1059
    %v1061 = vpop.f32.mrb[0].mxu0
    %1062 = vmatprep.mubr.bf16.mxu0 %v358
    %1063 = vmatmul.mubr.bf16.gmra.mrb[0].mxu0 %v357
    %v1064 = vpop.f32.mrb[0].mxu0
    %v1065 = vadd.f32 %v660, %v1064
    %v1066 = vpop.f32.mrb[0].mxu0
    %v1067 = vpop.f32.mrb[0].mxu0
    %v1068 = vadd.f32 %v663, %v1067
    %v1069 = vpop.f32.mrb[0].mxu0
    %1070 = vmatprep.mubr.bf16.mxu0 %v360
    %1071 = vmatmul.mubr.bf16.gmra.mrb[0].mxu0 %v359
    %v1072 = vpop.f32.mrb[0].mxu0
    %v1073 = vadd.f32 %v668, %v1072
    %v1074 = vpop.f32.mrb[0].mxu0
    %v1075 = vpop.f32.mrb[0].mxu0
    %v1076 = vadd.f32 %v671, %v1075
    %v1077 = vpop.f32.mrb[0].mxu0
    %1078 = vmatprep.mubr.bf16.mxu0 %v362
    %1079 = vmatmul.mubr.bf16.gmra.mrb[0].mxu0 %v361
    %v1080 = vpop.f32.mrb[0].mxu0
    %v1081 = vadd.f32 %v676, %v1080
    %v1082 = vpop.f32.mrb[0].mxu0
    %v1083 = vpop.f32.mrb[0].mxu0
    %v1084 = vadd.f32 %v679, %v1083
    %v1085 = vpop.f32.mrb[0].mxu0
    %1086 = vmatprep.mubr.bf16.mxu0 %v364
    %1087 = vmatmul.mubr.bf16.gmra.mrb[0].mxu0 %v363
    %v1088 = vpop.f32.mrb[0].mxu0
    %v1089 = vadd.f32 %v684, %v1088
    %v1090 = vpop.f32.mrb[0].mxu0
    %v1091 = vpop.f32.mrb[0].mxu0
    %v1092 = vadd.f32 %v687, %v1091
    %v1093 = vpop.f32.mrb[0].mxu0
    %1094 = vmatprep.mubr.bf16.mxu0 %v366
    %1095 = vmatmul.mubr.bf16.gmra.mrb[0].mxu0 %v365
    %v1096 = vpop.f32.mrb[0].mxu0
    %v1097 = vadd.f32 %v692, %v1096
    %v1098 = vpop.f32.mrb[0].mxu0
    %v1099 = vpop.f32.mrb[0].mxu0
    %v1100 = vadd.f32 %v695, %v1099
    %v1101 = vpop.f32.mrb[0].mxu0
    %1102 = vmatprep.mubr.bf16.mxu0 %v368
    %1103 = vmatmul.mubr.bf16.gmra.mrb[0].mxu0 %v367
    %v1104 = vpop.f32.mrb[0].mxu0
    %v1105 = vadd.f32 %v700, %v1104
    %v1106 = vpop.f32.mrb[0].mxu0
    %v1107 = vpop.f32.mrb[0].mxu0
    %v1108 = vadd.f32 %v703, %v1107
    %v1109 = vpop.f32.mrb[0].mxu0
    %1110 = vmatprep.mubr.bf16.mxu0 %v370
    %1111 = vmatmul.mubr.bf16.gmra.mrb[0].mxu0 %v369
    %v1112 = vpop.f32.mrb[0].mxu0
    %v1113 = vadd.f32 %v708, %v1112
    %v1114 = vpop.f32.mrb[0].mxu0
    %v1115 = vpop.f32.mrb[0].mxu0
    %v1116 = vadd.f32 %v711, %v1115
    %v1117 = vpop.f32.mrb[0].mxu0
    %1118 = vmatprep.mubr.bf16.mxu0 %v372
    %1119 = vmatmul.mubr.bf16.gmra.mrb[0].mxu0 %v371
    %v1120 = vpop.f32.mrb[0].mxu0
    %v1121 = vadd.f32 %v716, %v1120
    %v1122 = vpop.f32.mrb[0].mxu0
    %v1123 = vpop.f32.mrb[0].mxu0
    %v1124 = vadd.f32 %v719, %v1123
    %v1125 = vpop.f32.mrb[0].mxu0
    %1126 = vmatprep.mubr.bf16.mxu0 %v374
    %1127 = vmatmul.mubr.bf16.gmra.mrb[0].mxu0 %v373
    %v1128 = vpop.f32.mrb[0].mxu0
    %v1129 = vadd.f32 %v724, %v1128
    %v1130 = vpop.f32.mrb[0].mxu0
    %v1131 = vpop.f32.mrb[0].mxu0
    %v1132 = vadd.f32 %v727, %v1131
    %v1133 = vpop.f32.mrb[0].mxu0
    %1134 = vmatprep.mubr.bf16.mxu0 %v873
    %1135 = vmatmul.mubr.bf16.gmra.mrb[0].mxu0 %v872
    %v1136 = vpop.f32.mrb[0].mxu0
    %v1137 = vadd.f32 %v732, %v1136
    %v1138 = vpop.f32.mrb[0].mxu0
    %v1139 = vpop.f32.mrb[0].mxu0
    %v1140 = vadd.f32 %v735, %v1139
    %v1141 = vpop.f32.mrb[0].mxu0
    %1142 = vmatprep.mubr.bf16.mxu0 %v378
    %1143 = vmatmul.mubr.bf16.gmra.mrb[0].mxu0 %v377
    %v1144 = vpop.f32.mrb[0].mxu0
    %v1145 = vadd.f32 %v740, %v1144
    %v1146 = vpop.f32.mrb[0].mxu0
    %v1147 = vpop.f32.mrb[0].mxu0
    %v1148 = vadd.f32 %v743, %v1147
    %v1149 = vpop.f32.mrb[0].mxu0
    %1150 = vmatprep.mubr.bf16.mxu0 %v380
    %1151 = vmatmul.mubr.bf16.gmra.mrb[0].mxu0 %v379
    %v1152 = vpop.f32.mrb[0].mxu0
    %v1153 = vadd.f32 %v748, %v1152
    %v1154 = vpop.f32.mrb[0].mxu0
    %v1155 = vpop.f32.mrb[0].mxu0
    %v1156 = vadd.f32 %v751, %v1155
    %v1157 = vpop.f32.mrb[0].mxu0
    %1158 = vmatprep.mubr.bf16.mxu0 %v382
    %1159 = vmatmul.mubr.bf16.gmra.mrb[0].mxu0 %v381
    %v1160 = vpop.f32.mrb[0].mxu0
    %v1161 = vadd.f32 %v756, %v1160
    %v1162 = vpop.f32.mrb[0].mxu0
    %v1163 = vpop.f32.mrb[0].mxu0
    %v1164 = vadd.f32 %v759, %v1163
    %v1165 = vpop.f32.mrb[0].mxu0
    %1166 = vmatprep.mubr.bf16.mxu0 %v384
    %1167 = vmatmul.mubr.bf16.gmra.mrb[0].mxu0 %v383
    %v1168 = vpop.f32.mrb[0].mxu0
    %v1169 = vadd.f32 %v764, %v1168
    %v1170 = vpop.f32.mrb[0].mxu0
    %v1171 = vpop.f32.mrb[0].mxu0
    %v1172 = vadd.f32 %v767, %v1171
    %v1173 = vpop.f32.mrb[0].mxu0
    %1174 = vmatprep.mubr.bf16.mxu0 %v386
    %1175 = vmatmul.mubr.bf16.gmra.mrb[0].mxu0 %v385
    %v1176 = vpop.f32.mrb[0].mxu0
    %v1177 = vadd.f32 %v772, %v1176
    %v1178 = vpop.f32.mrb[0].mxu0
    %v1179 = vpop.f32.mrb[0].mxu0
    %v1180 = vadd.f32 %v775, %v1179
    %v1181 = vpop.f32.mrb[0].mxu0
    %1182 = vmatprep.mubr.bf16.mxu0 %v388
    %1183 = vmatmul.mubr.bf16.gmra.mrb[0].mxu0 %v387
    %v1184 = vpop.f32.mrb[0].mxu0
    %v1185 = vadd.f32 %v780, %v1184
    %v1186 = vpop.f32.mrb[0].mxu0
    %v1187 = vpop.f32.mrb[0].mxu0
    %v1188 = vadd.f32 %v783, %v1187
    %v1189 = vpop.f32.mrb[0].mxu0
    %1190 = vmatprep.mubr.bf16.mxu0 %v390
    %1191 = vmatmul.mubr.bf16.gmra.mrb[0].mxu0 %v389
    %v1192 = vpop.f32.mrb[0].mxu0
    %v1193 = vadd.f32 %v788, %v1192
    %v1194 = vpop.f32.mrb[0].mxu0
    %v1195 = vpop.f32.mrb[0].mxu0
    %v1196 = vadd.f32 %v791, %v1195
    %v1197 = vpop.f32.mrb[0].mxu0
    %1198 = vmatprep.mubr.bf16.mxu0 %v392
    %1199 = vmatmul.mubr.bf16.gmra.mrb[0].mxu0 %v391
    %v1200 = vpop.f32.mrb[0].mxu0
    %v1201 = vadd.f32 %v796, %v1200
    %v1202 = vpop.f32.mrb[0].mxu0
    %v1203 = vpop.f32.mrb[0].mxu0
    %v1204 = vadd.f32 %v799, %v1203
    %v1205 = vpop.f32.mrb[0].mxu0
    %1206 = vmatprep.mubr.bf16.mxu0 %v394
    %1207 = vmatmul.mubr.bf16.gmra.mrb[0].mxu0 %v393
    %v1208 = vpop.f32.mrb[0].mxu0
    %v1209 = vadd.f32 %v804, %v1208
    %v1210 = vpop.f32.mrb[0].mxu0
    %v1211 = vpop.f32.mrb[0].mxu0
    %v1212 = vadd.f32 %v807, %v1211
    %v1213 = vpop.f32.mrb[0].mxu0
    %1214 = vmatprep.mubr.bf16.mxu0 %v396
    %1215 = vmatmul.mubr.bf16.gmra.mrb[0].mxu0 %v395
    %v1216 = vpop.f32.mrb[0].mxu0
    %v1217 = vadd.f32 %v812, %v1216
    %v1218 = vpop.f32.mrb[0].mxu0
    %v1219 = vpop.f32.mrb[0].mxu0
    %v1220 = vadd.f32 %v815, %v1219
    %v1221 = vpop.f32.mrb[0].mxu0
    %1222 = vmatprep.mubr.bf16.mxu0 %v398
    %1223 = vmatmul.mubr.bf16.gmra.mrb[0].mxu0 %v397
    %v1224 = vpop.f32.mrb[0].mxu0
    %v1225 = vadd.f32 %v820, %v1224
    %v1226 = vpop.f32.mrb[0].mxu0
    %v1227 = vpop.f32.mrb[0].mxu0
    %v1228 = vadd.f32 %v823, %v1227
    %v1229 = vpop.f32.mrb[0].mxu0
    %1230 = vmatprep.mubr.bf16.mxu0 %v400
    %1231 = vmatmul.mubr.bf16.gmra.mrb[0].mxu0 %v399
    %v1232 = vpop.f32.mrb[0].mxu0
    %v1233 = vadd.f32 %v828, %v1232
    %v1234 = vpop.f32.mrb[0].mxu0
    %v1235 = vpop.f32.mrb[0].mxu0
    %v1236 = vadd.f32 %v831, %v1235
    %v1237 = vpop.f32.mrb[0].mxu0
    %1238 = vmatprep.mubr.bf16.mxu0 %v402
    %1239 = vmatmul.mubr.bf16.gmra.mrb[0].mxu0 %v401
    %v1240 = vpop.f32.mrb[0].mxu0
    %v1241 = vadd.f32 %v836, %v1240
    %v1242 = vpop.f32.mrb[0].mxu0
    %v1243 = vpop.f32.mrb[0].mxu0
    %v1244 = vadd.f32 %v839, %v1243
    %v1245 = vpop.f32.mrb[0].mxu0
    %1246 = vmatprep.mubr.bf16.mxu0 %v404
    %1247 = vmatmul.mubr.bf16.gmra.mrb[0].mxu0 %v403
    %v1248 = vpop.f32.mrb[0].mxu0
    %v1249 = vadd.f32 %v844, %v1248
    %v1250 = vpop.f32.mrb[0].mxu0
    %v1251 = vpop.f32.mrb[0].mxu0
    %v1252 = vadd.f32 %v847, %v1251
    %v1253 = vpop.f32.mrb[0].mxu0
    %1254 = vmatprep.mubr.bf16.mxu0 %v406
    %1255 = vmatmul.mubr.bf16.gmra.mrb[0].mxu0 %v405
    %v1256 = vpop.f32.mrb[0].mxu0
    %v1257 = vadd.f32 %v852, %v1256
    %v1258 = vpop.f32.mrb[0].mxu0
    %v1259 = vpop.f32.mrb[0].mxu0
    %v1260 = vadd.f32 %v855, %v1259
    %v1261 = vpop.f32.mrb[0].mxu0
    %1262 = vdwg.mxu0
    %s1263 = scalar_lea.vmem %s1, 768
    %v1264 = vld [vmem:[%s1263] sm:$0xf]
    %v1265 = vld [vmem:[%s1263 + $0x4] sm:$0xf]
    %v1266 = vld [vmem:[%s1263 + $0x8] sm:$0xf]
    %v1267 = vld [vmem:[%s1263 + $0xc] sm:$0xf]
    %v1268 = vld [vmem:[%s1263 + $0x10] sm:$0xf]
    %v1269 = vld [vmem:[%s1263 + $0x14] sm:$0xf]
    %v1270 = vld [vmem:[%s1263 + $0x18] sm:$0xf]
    %v1271 = vld [vmem:[%s1263 + $0x1c] sm:$0xf]
    %v1272 = vld [vmem:[%s1263 + $0x20] sm:$0xf]
    %v1273 = vld [vmem:[%s1263 + $0x24] sm:$0xf]
    %v1274 = vld [vmem:[%s1263 + $0x28] sm:$0xf]
    %v1275 = vld [vmem:[%s1263 + $0x2c] sm:$0xf]
    %v1276 = vld [vmem:[%s1263 + $0x30] sm:$0xf]
    %v1277 = vld [vmem:[%s1263 + $0x34] sm:$0xf]
    %v1278 = vld [vmem:[%s1263 + $0x38] sm:$0xf]
    %v1279 = vld [vmem:[%s1263 + $0x3c] sm:$0xf]
    %v1280 = vld [vmem:[%s1263 + $0x40] sm:$0xf]
    %v1281 = vld [vmem:[%s1263 + $0x44] sm:$0xf]
    %v1282 = vld [vmem:[%s1263 + $0x48] sm:$0xf]
    %v1283 = vld [vmem:[%s1263 + $0x4c] sm:$0xf]
    %v1284 = vld [vmem:[%s1263 + $0x50] sm:$0xf]
    %v1285 = vld [vmem:[%s1263 + $0x54] sm:$0xf]
    %v1286 = vld [vmem:[%s1263 + $0x58] sm:$0xf]
    %v1287 = vld [vmem:[%s1263 + $0x5c] sm:$0xf]
    %v1288 = vld [vmem:[%s1263 + $0x60] sm:$0xf]
    %v1289 = vld [vmem:[%s1263 + $0x64] sm:$0xf]
    %v1290 = vld [vmem:[%s1263 + $0x68] sm:$0xf]
    %v1291 = vld [vmem:[%s1263 + $0x6c] sm:$0xf]
    %v1292 = vld [vmem:[%s1263 + $0x70] sm:$0xf]
    %v1293 = vld [vmem:[%s1263 + $0x74] sm:$0xf]
    %v1294 = vld [vmem:[%s1263 + $0x78] sm:$0xf]
    %v1295 = vld [vmem:[%s1263 + $0x7c] sm:$0xf]
    %v1300 = vunpack.c.l.b16 %v50
    %v1301 = vunpack.c.h.b16 %v50
    %v1302 = vunpack.c.l.b16 %v51
    %v1303 = vunpack.c.h.b16 %v51
    %v1304 = vunpack.c.l.b16 %v86
    %v1305 = vunpack.c.h.b16 %v86
    %v1306 = vunpack.c.l.b16 %v87
    %v1307 = vunpack.c.h.b16 %v87
    %v1308 = vpack.c.b16 %v1302, %v1300
    %v1309 = vpack.c.b16 %v1303, %v1301
    %v1310 = vpack.c.b16 %v1306, %v1304
    %v1311 = vpack.c.b16 %v1307, %v1305
    %v1348 = vunpack.c.l.b16 %v1264
    %v1349 = vunpack.c.l.b16 %v1265
    %v1350 = vunpack.c.l.b16 %v1266
    %v1351 = vunpack.c.l.b16 %v1267
    %v1352 = vunpack.c.l.b16 %v1268
    %v1353 = vunpack.c.l.b16 %v1269
    %v1354 = vunpack.c.l.b16 %v1270
    %v1355 = vunpack.c.l.b16 %v1271
    %v1356 = vunpack.c.l.b16 %v1272
    %v1357 = vunpack.c.l.b16 %v1273
    %v1358 = vunpack.c.l.b16 %v1274
    %v1359 = vunpack.c.l.b16 %v1275
    %v1360 = vunpack.c.l.b16 %v1276
    %v1361 = vunpack.c.l.b16 %v1277
    %v1362 = vunpack.c.l.b16 %v1278
    %v1363 = vunpack.c.l.b16 %v1279
    %v1364 = vunpack.c.l.b16 %v1280
    %v1365 = vunpack.c.l.b16 %v1281
    %v1366 = vunpack.c.l.b16 %v1282
    %v1367 = vunpack.c.l.b16 %v1283
    %v1368 = vunpack.c.l.b16 %v1284
    %v1369 = vunpack.c.l.b16 %v1285
    %v1370 = vunpack.c.l.b16 %v1286
    %v1371 = vunpack.c.l.b16 %v1287
    %v1372 = vunpack.c.l.b16 %v1288
    %v1373 = vunpack.c.l.b16 %v1289
    %v1374 = vunpack.c.l.b16 %v1290
    %v1375 = vunpack.c.l.b16 %v1291
    %v1376 = vunpack.c.l.b16 %v1292
    %v1377 = vunpack.c.l.b16 %v1293
    %v1378 = vunpack.c.l.b16 %v1294
    %v1379 = vunpack.c.l.b16 %v1295
    %v1380 = vpack.c.b16 %v1349, %v1348
    %v1381 = vpack.c.b16 %v1351, %v1350
    %v1382 = vpack.c.b16 %v1353, %v1352
    %v1383 = vpack.c.b16 %v1355, %v1354
    %v1384 = vpack.c.b16 %v1357, %v1356
    %v1385 = vpack.c.b16 %v1359, %v1358
    %v1386 = vpack.c.b16 %v1361, %v1360
    %v1387 = vpack.c.b16 %v1363, %v1362
    %v1388 = vpack.c.b16 %v1365, %v1364
    %v1389 = vpack.c.b16 %v1367, %v1366
    %v1390 = vpack.c.b16 %v1369, %v1368
    %v1391 = vpack.c.b16 %v1371, %v1370
    %v1392 = vpack.c.b16 %v1373, %v1372
    %v1393 = vpack.c.b16 %v1375, %v1374
    %v1394 = vpack.c.b16 %v1377, %v1376
    %v1395 = vpack.c.b16 %v1379, %v1378
    %1412 = vmatprep.subr.bf16.mxu0 0
    %1413 = vmatpush1.bf16.msra.mxu0 %v1380
    %1414 = vmatprep.subr.bf16.mxu0 0
    %1415 = vmatpush1.bf16.msra.mxu0 %v1381
    %1416 = vmatprep.subr.bf16.mxu0 0
    %1417 = vmatpush1.bf16.msra.mxu0 %v1382
    %1418 = vmatprep.subr.bf16.mxu0 0
    %1419 = vmatpush1.bf16.msra.mxu0 %v1383
    %1420 = vmatprep.subr.bf16.mxu0 0
    %1421 = vmatpush1.bf16.msra.mxu0 %v1384
    %1422 = vmatprep.subr.bf16.mxu0 0
    %1423 = vmatpush1.bf16.msra.mxu0 %v1385
    %1424 = vmatprep.subr.bf16.mxu0 0
    %1425 = vmatpush1.bf16.msra.mxu0 %v1386
    %1426 = vmatprep.subr.bf16.mxu0 0
    %1427 = vmatpush1.bf16.msra.mxu0 %v1387
    %1428 = vmatprep.subr.bf16.mxu0 0
    %1429 = vmatpush1.bf16.msra.mxu0 %v1388
    %1430 = vmatprep.subr.bf16.mxu0 0
    %1431 = vmatpush1.bf16.msra.mxu0 %v1389
    %1432 = vmatprep.subr.bf16.mxu0 0
    %1433 = vmatpush1.bf16.msra.mxu0 %v1390
    %1434 = vmatprep.subr.bf16.mxu0 0
    %1435 = vmatpush1.bf16.msra.mxu0 %v1391
    %1436 = vmatprep.subr.bf16.mxu0 0
    %1437 = vmatpush1.bf16.msra.mxu0 %v1392
    %1438 = vmatprep.subr.bf16.mxu0 0
    %1439 = vmatpush1.bf16.msra.mxu0 %v1393
    %1440 = vmatprep.subr.bf16.mxu0 0
    %1441 = vmatpush1.bf16.msra.mxu0 %v1394
    %1442 = vmatprep.subr.bf16.mxu0 0
    %1443 = vmatpush1.bf16.msra.mxu0 %v1395
    %1444 = vmatprep.mubr.bf16.mxu0 %v348
    %1445 = vmatmul.mubr.bf16.gmra.mrb[0].mxu0 %v347
    %v1446 = vpop.f32.mrb[0].mxu0
    %v1447 = vadd.f32 0.0, %v1446
    %v1448 = vpop.f32.mrb[0].mxu0
    %v1449 = vpop.f32.mrb[0].mxu0
    %v1450 = vadd.f32 0.0, %v1449
    %v1451 = vpop.f32.mrb[0].mxu0
    %1452 = vmatprep.mubr.bf16.mxu0 %v350
    %1453 = vmatmul.mubr.bf16.gmra.mrb[0].mxu0 %v349
    %v1454 = vpop.f32.mrb[0].mxu0
    %v1455 = vadd.f32 0.0, %v1454
    %v1456 = vpop.f32.mrb[0].mxu0
    %v1457 = vpop.f32.mrb[0].mxu0
    %v1458 = vadd.f32 0.0, %v1457
    %v1459 = vpop.f32.mrb[0].mxu0
    %1460 = vmatprep.mubr.bf16.mxu0 %v352
    %1461 = vmatmul.mubr.bf16.gmra.mrb[0].mxu0 %v351
    %v1462 = vpop.f32.mrb[0].mxu0
    %v1463 = vadd.f32 0.0, %v1462
    %v1464 = vpop.f32.mrb[0].mxu0
    %v1465 = vpop.f32.mrb[0].mxu0
    %v1466 = vadd.f32 0.0, %v1465
    %v1467 = vpop.f32.mrb[0].mxu0
    %1468 = vmatprep.mubr.bf16.mxu0 %v354
    %1469 = vmatmul.mubr.bf16.gmra.mrb[0].mxu0 %v353
    %v1470 = vpop.f32.mrb[0].mxu0
    %v1471 = vadd.f32 0.0, %v1470
    %v1472 = vpop.f32.mrb[0].mxu0
    %v1473 = vpop.f32.mrb[0].mxu0
    %v1474 = vadd.f32 0.0, %v1473
    %v1475 = vpop.f32.mrb[0].mxu0
    %1476 = vmatprep.mubr.bf16.mxu0 %v356
    %1477 = vmatmul.mubr.bf16.gmra.mrb[0].mxu0 %v355
    %v1478 = vpop.f32.mrb[0].mxu0
    %v1479 = vadd.f32 0.0, %v1478
    %v1480 = vpop.f32.mrb[0].mxu0
    %v1481 = vpop.f32.mrb[0].mxu0
    %v1482 = vadd.f32 0.0, %v1481
    %v1483 = vpop.f32.mrb[0].mxu0
    %1484 = vmatprep.mubr.bf16.mxu0 %v358
    %1485 = vmatmul.mubr.bf16.gmra.mrb[0].mxu0 %v357
    %v1486 = vpop.f32.mrb[0].mxu0
    %v1487 = vadd.f32 0.0, %v1486
    %v1488 = vpop.f32.mrb[0].mxu0
    %v1489 = vpop.f32.mrb[0].mxu0
    %v1490 = vadd.f32 0.0, %v1489
    %v1491 = vpop.f32.mrb[0].mxu0
    %1492 = vmatprep.mubr.bf16.mxu0 %v360
    %1493 = vmatmul.mubr.bf16.gmra.mrb[0].mxu0 %v359
    %v1494 = vpop.f32.mrb[0].mxu0
    %v1495 = vadd.f32 0.0, %v1494
    %v1496 = vpop.f32.mrb[0].mxu0
    %v1497 = vpop.f32.mrb[0].mxu0
    %v1498 = vadd.f32 0.0, %v1497
    %v1499 = vpop.f32.mrb[0].mxu0
    %1500 = vmatprep.mubr.bf16.mxu0 %v362
    %1501 = vmatmul.mubr.bf16.gmra.mrb[0].mxu0 %v361
    %v1502 = vpop.f32.mrb[0].mxu0
    %v1503 = vadd.f32 0.0, %v1502
    %v1504 = vpop.f32.mrb[0].mxu0
    %v1505 = vpop.f32.mrb[0].mxu0
    %v1506 = vadd.f32 0.0, %v1505
    %v1507 = vpop.f32.mrb[0].mxu0
    %1508 = vmatprep.mubr.bf16.mxu0 %v364
    %1509 = vmatmul.mubr.bf16.gmra.mrb[0].mxu0 %v363
    %v1510 = vpop.f32.mrb[0].mxu0
    %v1511 = vadd.f32 0.0, %v1510
    %v1512 = vpop.f32.mrb[0].mxu0
    %v1513 = vpop.f32.mrb[0].mxu0
    %v1514 = vadd.f32 0.0, %v1513
    %v1515 = vpop.f32.mrb[0].mxu0
    %1516 = vmatprep.mubr.bf16.mxu0 %v366
    %1517 = vmatmul.mubr.bf16.gmra.mrb[0].mxu0 %v365
    %v1518 = vpop.f32.mrb[0].mxu0
    %v1519 = vadd.f32 0.0, %v1518
    %v1520 = vpop.f32.mrb[0].mxu0
    %v1521 = vpop.f32.mrb[0].mxu0
    %v1522 = vadd.f32 0.0, %v1521
    %v1523 = vpop.f32.mrb[0].mxu0
    %1524 = vmatprep.mubr.bf16.mxu0 %v368
    %1525 = vmatmul.mubr.bf16.gmra.mrb[0].mxu0 %v367
    %v1526 = vpop.f32.mrb[0].mxu0
    %v1527 = vadd.f32 0.0, %v1526
    %v1528 = vpop.f32.mrb[0].mxu0
    %v1529 = vpop.f32.mrb[0].mxu0
    %v1530 = vadd.f32 0.0, %v1529
    %v1531 = vpop.f32.mrb[0].mxu0
    %1532 = vmatprep.mubr.bf16.mxu0 %v370
    %1533 = vmatmul.mubr.bf16.gmra.mrb[0].mxu0 %v369
    %v1534 = vpop.f32.mrb[0].mxu0
    %v1535 = vadd.f32 0.0, %v1534
    %v1536 = vpop.f32.mrb[0].mxu0
    %v1537 = vpop.f32.mrb[0].mxu0
    %v1538 = vadd.f32 0.0, %v1537
    %v1539 = vpop.f32.mrb[0].mxu0
    %1540 = vmatprep.mubr.bf16.mxu0 %v372
    %1541 = vmatmul.mubr.bf16.gmra.mrb[0].mxu0 %v371
    %v1542 = vpop.f32.mrb[0].mxu0
    %v1543 = vadd.f32 0.0, %v1542
    %v1544 = vpop.f32.mrb[0].mxu0
    %v1545 = vpop.f32.mrb[0].mxu0
    %v1546 = vadd.f32 0.0, %v1545
    %v1547 = vpop.f32.mrb[0].mxu0
    %1548 = vmatprep.mubr.bf16.mxu0 %v374
    %1549 = vmatmul.mubr.bf16.gmra.mrb[0].mxu0 %v373
    %v1550 = vpop.f32.mrb[0].mxu0
    %v1551 = vadd.f32 0.0, %v1550
    %v1552 = vpop.f32.mrb[0].mxu0
    %v1553 = vpop.f32.mrb[0].mxu0
    %v1554 = vadd.f32 0.0, %v1553
    %v1555 = vpop.f32.mrb[0].mxu0
    %1556 = vmatprep.mubr.bf16.mxu0 %v376
    %1557 = vmatmul.mubr.bf16.gmra.mrb[0].mxu0 %v375
    %v1558 = vpop.f32.mrb[0].mxu0
    %v1559 = vadd.f32 0.0, %v1558
    %v1560 = vpop.f32.mrb[0].mxu0
    %v1561 = vpop.f32.mrb[0].mxu0
    %v1562 = vadd.f32 0.0, %v1561
    %v1563 = vpop.f32.mrb[0].mxu0
    %1564 = vmatprep.mubr.bf16.mxu0 %v1309
    %1565 = vmatmul.mubr.bf16.gmra.mrb[0].mxu0 %v1308
    %v1566 = vpop.f32.mrb[0].mxu0
    %v1567 = vadd.f32 0.0, %v1566
    %v1568 = vpop.f32.mrb[0].mxu0
    %v1569 = vpop.f32.mrb[0].mxu0
    %v1570 = vadd.f32 0.0, %v1569
    %v1571 = vpop.f32.mrb[0].mxu0
    %1572 = vmatprep.mubr.bf16.mxu0 %v380
    %1573 = vmatmul.mubr.bf16.gmra.mrb[0].mxu0 %v379
    %v1574 = vpop.f32.mrb[0].mxu0
    %v1575 = vadd.f32 0.0, %v1574
    %v1576 = vpop.f32.mrb[0].mxu0
    %v1577 = vpop.f32.mrb[0].mxu0
    %v1578 = vadd.f32 0.0, %v1577
    %v1579 = vpop.f32.mrb[0].mxu0
    %1580 = vmatprep.mubr.bf16.mxu0 %v382
    %1581 = vmatmul.mubr.bf16.gmra.mrb[0].mxu0 %v381
    %v1582 = vpop.f32.mrb[0].mxu0
    %v1583 = vadd.f32 0.0, %v1582
    %v1584 = vpop.f32.mrb[0].mxu0
    %v1585 = vpop.f32.mrb[0].mxu0
    %v1586 = vadd.f32 0.0, %v1585
    %v1587 = vpop.f32.mrb[0].mxu0
    %1588 = vmatprep.mubr.bf16.mxu0 %v384
    %1589 = vmatmul.mubr.bf16.gmra.mrb[0].mxu0 %v383
    %v1590 = vpop.f32.mrb[0].mxu0
    %v1591 = vadd.f32 0.0, %v1590
    %v1592 = vpop.f32.mrb[0].mxu0
    %v1593 = vpop.f32.mrb[0].mxu0
    %v1594 = vadd.f32 0.0, %v1593
    %v1595 = vpop.f32.mrb[0].mxu0
    %1596 = vmatprep.mubr.bf16.mxu0 %v386
    %1597 = vmatmul.mubr.bf16.gmra.mrb[0].mxu0 %v385
    %v1598 = vpop.f32.mrb[0].mxu0
    %v1599 = vadd.f32 0.0, %v1598
    %v1600 = vpop.f32.mrb[0].mxu0
    %v1601 = vpop.f32.mrb[0].mxu0
    %v1602 = vadd.f32 0.0, %v1601
    %v1603 = vpop.f32.mrb[0].mxu0
    %1604 = vmatprep.mubr.bf16.mxu0 %v388
    %1605 = vmatmul.mubr.bf16.gmra.mrb[0].mxu0 %v387
    %v1606 = vpop.f32.mrb[0].mxu0
    %v1607 = vadd.f32 0.0, %v1606
    %v1608 = vpop.f32.mrb[0].mxu0
    %v1609 = vpop.f32.mrb[0].mxu0
    %v1610 = vadd.f32 0.0, %v1609
    %v1611 = vpop.f32.mrb[0].mxu0
    %1612 = vmatprep.mubr.bf16.mxu0 %v390
    %1613 = vmatmul.mubr.bf16.gmra.mrb[0].mxu0 %v389
    %v1614 = vpop.f32.mrb[0].mxu0
    %v1615 = vadd.f32 0.0, %v1614
    %v1616 = vpop.f32.mrb[0].mxu0
    %v1617 = vpop.f32.mrb[0].mxu0
    %v1618 = vadd.f32 0.0, %v1617
    %v1619 = vpop.f32.mrb[0].mxu0
    %1620 = vmatprep.mubr.bf16.mxu0 %v392
    %1621 = vmatmul.mubr.bf16.gmra.mrb[0].mxu0 %v391
    %v1622 = vpop.f32.mrb[0].mxu0
    %v1623 = vadd.f32 0.0, %v1622
    %v1624 = vpop.f32.mrb[0].mxu0
    %v1625 = vpop.f32.mrb[0].mxu0
    %v1626 = vadd.f32 0.0, %v1625
    %v1627 = vpop.f32.mrb[0].mxu0
    %1628 = vmatprep.mubr.bf16.mxu0 %v394
    %1629 = vmatmul.mubr.bf16.gmra.mrb[0].mxu0 %v393
    %v1630 = vpop.f32.mrb[0].mxu0
    %v1631 = vadd.f32 0.0, %v1630
    %v1632 = vpop.f32.mrb[0].mxu0
    %v1633 = vpop.f32.mrb[0].mxu0
    %v1634 = vadd.f32 0.0, %v1633
    %v1635 = vpop.f32.mrb[0].mxu0
    %1636 = vmatprep.mubr.bf16.mxu0 %v396
    %1637 = vmatmul.mubr.bf16.gmra.mrb[0].mxu0 %v395
    %v1638 = vpop.f32.mrb[0].mxu0
    %v1639 = vadd.f32 0.0, %v1638
    %v1640 = vpop.f32.mrb[0].mxu0
    %v1641 = vpop.f32.mrb[0].mxu0
    %v1642 = vadd.f32 0.0, %v1641
    %v1643 = vpop.f32.mrb[0].mxu0
    %1644 = vmatprep.mubr.bf16.mxu0 %v398
    %1645 = vmatmul.mubr.bf16.gmra.mrb[0].mxu0 %v397
    %v1646 = vpop.f32.mrb[0].mxu0
    %v1647 = vadd.f32 0.0, %v1646
    %v1648 = vpop.f32.mrb[0].mxu0
    %v1649 = vpop.f32.mrb[0].mxu0
    %v1650 = vadd.f32 0.0, %v1649
    %v1651 = vpop.f32.mrb[0].mxu0
    %1652 = vmatprep.mubr.bf16.mxu0 %v400
    %1653 = vmatmul.mubr.bf16.gmra.mrb[0].mxu0 %v399
    %v1654 = vpop.f32.mrb[0].mxu0
    %v1655 = vadd.f32 0.0, %v1654
    %v1656 = vpop.f32.mrb[0].mxu0
    %v1657 = vpop.f32.mrb[0].mxu0
    %v1658 = vadd.f32 0.0, %v1657
    %v1659 = vpop.f32.mrb[0].mxu0
    %1660 = vmatprep.mubr.bf16.mxu0 %v402
    %1661 = vmatmul.mubr.bf16.gmra.mrb[0].mxu0 %v401
    %v1662 = vpop.f32.mrb[0].mxu0
    %v1663 = vadd.f32 0.0, %v1662
    %v1664 = vpop.f32.mrb[0].mxu0
    %v1665 = vpop.f32.mrb[0].mxu0
    %v1666 = vadd.f32 0.0, %v1665
    %v1667 = vpop.f32.mrb[0].mxu0
    %1668 = vmatprep.mubr.bf16.mxu0 %v404
    %1669 = vmatmul.mubr.bf16.gmra.mrb[0].mxu0 %v403
    %v1670 = vpop.f32.mrb[0].mxu0
    %v1671 = vadd.f32 0.0, %v1670
    %v1672 = vpop.f32.mrb[0].mxu0
    %v1673 = vpop.f32.mrb[0].mxu0
    %v1674 = vadd.f32 0.0, %v1673
    %v1675 = vpop.f32.mrb[0].mxu0
    %1676 = vmatprep.mubr.bf16.mxu0 %v406
    %1677 = vmatmul.mubr.bf16.gmra.mrb[0].mxu0 %v405
    %v1678 = vpop.f32.mrb[0].mxu0
    %v1679 = vadd.f32 0.0, %v1678
    %v1680 = vpop.f32.mrb[0].mxu0
    %v1681 = vpop.f32.mrb[0].mxu0
    %v1682 = vadd.f32 0.0, %v1681
    %v1683 = vpop.f32.mrb[0].mxu0
    %1684 = vmatprep.mubr.bf16.mxu0 %v408
    %1685 = vmatmul.mubr.bf16.gmra.mrb[0].mxu0 %v407
    %v1686 = vpop.f32.mrb[0].mxu0
    %v1687 = vadd.f32 0.0, %v1686
    %v1688 = vpop.f32.mrb[0].mxu0
    %v1689 = vpop.f32.mrb[0].mxu0
    %v1690 = vadd.f32 0.0, %v1689
    %v1691 = vpop.f32.mrb[0].mxu0
    %1692 = vmatprep.mubr.bf16.mxu0 %v1311
    %1693 = vmatmul.mubr.bf16.gmra.mrb[0].mxu0 %v1310
    %v1694 = vpop.f32.mrb[0].mxu0
    %v1695 = vadd.f32 0.0, %v1694
    %v1696 = vpop.f32.mrb[0].mxu0
    %v1697 = vpop.f32.mrb[0].mxu0
    %v1698 = vadd.f32 0.0, %v1697
    %v1699 = vpop.f32.mrb[0].mxu0
    %1700 = vdwg.mxu0
    %v1701 = vadd.f32 %v1009, %v1447
    %v1702 = vadd.f32 %v1012, %v1450
    %v1703 = vadd.f32 %v1017, %v1455
    %v1704 = vadd.f32 %v1020, %v1458
    %v1705 = vadd.f32 %v1025, %v1463
    %v1706 = vadd.f32 %v1028, %v1466
    %v1707 = vadd.f32 %v1033, %v1471
    %v1708 = vadd.f32 %v1036, %v1474
    %v1709 = vadd.f32 %v1041, %v1479
    %v1710 = vadd.f32 %v1044, %v1482
    %v1711 = vadd.f32 %v1049, %v1487
    %v1712 = vadd.f32 %v1052, %v1490
    %v1713 = vadd.f32 %v1057, %v1495
    %v1714 = vadd.f32 %v1060, %v1498
    %v1715 = vadd.f32 %v1065, %v1503
    %v1716 = vadd.f32 %v1068, %v1506
    %v1717 = vadd.f32 %v1073, %v1511
    %v1718 = vadd.f32 %v1076, %v1514
    %v1719 = vadd.f32 %v1081, %v1519
    %v1720 = vadd.f32 %v1084, %v1522
    %v1721 = vadd.f32 %v1089, %v1527
    %v1722 = vadd.f32 %v1092, %v1530
    %v1723 = vadd.f32 %v1097, %v1535
    %v1724 = vadd.f32 %v1100, %v1538
    %v1725 = vadd.f32 %v1105, %v1543
    %v1726 = vadd.f32 %v1108, %v1546
    %v1727 = vadd.f32 %v1113, %v1551
    %v1728 = vadd.f32 %v1116, %v1554
    %v1729 = vadd.f32 %v1121, %v1559
    %v1730 = vadd.f32 %v1124, %v1562
    %v1731 = vadd.f32 %v1129, %v1567
    %v1732 = vadd.f32 %v1132, %v1570
    %v1733 = vadd.f32 %v1137, %v1575
    %v1734 = vadd.f32 %v1140, %v1578
    %v1735 = vadd.f32 %v1145, %v1583
    %v1736 = vadd.f32 %v1148, %v1586
    %v1737 = vadd.f32 %v1153, %v1591
    %v1738 = vadd.f32 %v1156, %v1594
    %v1739 = vadd.f32 %v1161, %v1599
    %v1740 = vadd.f32 %v1164, %v1602
    %v1741 = vadd.f32 %v1169, %v1607
    %v1742 = vadd.f32 %v1172, %v1610
    %v1743 = vadd.f32 %v1177, %v1615
    %v1744 = vadd.f32 %v1180, %v1618
    %v1745 = vadd.f32 %v1185, %v1623
    %v1746 = vadd.f32 %v1188, %v1626
    %v1747 = vadd.f32 %v1193, %v1631
    %v1748 = vadd.f32 %v1196, %v1634
    %v1749 = vadd.f32 %v1201, %v1639
    %v1750 = vadd.f32 %v1204, %v1642
    %v1751 = vadd.f32 %v1209, %v1647
    %v1752 = vadd.f32 %v1212, %v1650
    %v1753 = vadd.f32 %v1217, %v1655
    %v1754 = vadd.f32 %v1220, %v1658
    %v1755 = vadd.f32 %v1225, %v1663
    %v1756 = vadd.f32 %v1228, %v1666
    %v1757 = vadd.f32 %v1233, %v1671
    %v1758 = vadd.f32 %v1236, %v1674
    %v1759 = vadd.f32 %v1241, %v1679
    %v1760 = vadd.f32 %v1244, %v1682
    %v1761 = vadd.f32 %v1249, %v1687
    %v1762 = vadd.f32 %v1252, %v1690
    %v1763 = vadd.f32 %v1257, %v1695
    %v1764 = vadd.f32 %v1260, %v1698
    %v1765 = vld [vmem:[%s0] sm:$0xff]
    %v1766 = vld [vmem:[%s0 + $0x8] sm:$0xff]
    %v1767 = vld [vmem:[%s0 + $0x10] sm:$0x11]
    %v1768 = vld [vmem:[%s0 + $0x18] sm:$0xff]
    %v1769 = vld [vmem:[%s0 + $0x20] sm:$0xff]
    %v1770 = vld [vmem:[%s0 + $0x28] sm:$0x11]
    %v1771 = vld [vmem:[%s0 + $0x30] sm:$0xff]
    %v1772 = vld [vmem:[%s0 + $0x38] sm:$0xff]
    %v1773 = vld [vmem:[%s0 + $0x40] sm:$0x11]
    %v1774 = vld [vmem:[%s0 + $0x48] sm:$0xff]
    %v1775 = vld [vmem:[%s0 + $0x50] sm:$0xff]
    %v1776 = vld [vmem:[%s0 + $0x58] sm:$0x11]
    %v1777 = vld [vmem:[%s0 + $0x60] sm:$0xff]
    %v1778 = vld [vmem:[%s0 + $0x68] sm:$0xff]
    %v1779 = vld [vmem:[%s0 + $0x70] sm:$0x11]
    %v1780 = vld [vmem:[%s0 + $0x78] sm:$0xff]
    %v1781 = vld [vmem:[%s0 + $0x80] sm:$0xff]
    %v1782 = vld [vmem:[%s0 + $0x88] sm:$0x11]
    %v1783 = vld [vmem:[%s0 + $0x90] sm:$0xff]
    %v1784 = vld [vmem:[%s0 + $0x98] sm:$0xff]
    %v1785 = vld [vmem:[%s0 + $0xa0] sm:$0x11]
    %v1786 = vld [vmem:[%s0 + $0xa8] sm:$0xff]
    %v1787 = vld [vmem:[%s0 + $0xb0] sm:$0xff]
    %v1788 = vld [vmem:[%s0 + $0xb8] sm:$0x11]
    %v1789 = vld [vmem:[%s0 + $0xc0] sm:$0xff]
    %v1790 = vld [vmem:[%s0 + $0xc8] sm:$0xff]
    %v1791 = vld [vmem:[%s0 + $0xd0] sm:$0x11]
    %v1792 = vld [vmem:[%s0 + $0xd8] sm:$0xff]
    %v1793 = vld [vmem:[%s0 + $0xe0] sm:$0xff]
    %v1794 = vld [vmem:[%s0 + $0xe8] sm:$0x11]
    %v1795 = vld [vmem:[%s0 + $0xf0] sm:$0xff]
    %v1796 = vld [vmem:[%s0 + $0xf8] sm:$0xff]
    %v1797 = vld [vmem:[%s0 + $0x100] sm:$0x11]
    %v1798 = vld [vmem:[%s0 + $0x108] sm:$0xff]
    %v1799 = vld [vmem:[%s0 + $0x110] sm:$0xff]
    %v1800 = vld [vmem:[%s0 + $0x118] sm:$0x11]
    %v1801 = vld [vmem:[%s0 + $0x120] sm:$0xff]
    %v1802 = vld [vmem:[%s0 + $0x128] sm:$0xff]
    %v1803 = vld [vmem:[%s0 + $0x130] sm:$0x11]
    %v1804 = vld [vmem:[%s0 + $0x138] sm:$0xff]
    %v1805 = vld [vmem:[%s0 + $0x140] sm:$0xff]
    %v1806 = vld [vmem:[%s0 + $0x148] sm:$0x11]
    %v1807 = vld [vmem:[%s0 + $0x150] sm:$0xff]
    %v1808 = vld [vmem:[%s0 + $0x158] sm:$0xff]
    %v1809 = vld [vmem:[%s0 + $0x160] sm:$0x11]
    %v1810 = vld [vmem:[%s0 + $0x168] sm:$0xff]
    %v1811 = vld [vmem:[%s0 + $0x170] sm:$0xff]
    %v1812 = vld [vmem:[%s0 + $0x178] sm:$0x11]
    %v1813 = vld [vmem:[%s0 + $0x180] sm:$0xff]
    %v1814 = vld [vmem:[%s0 + $0x188] sm:$0xff]
    %v1815 = vld [vmem:[%s0 + $0x190] sm:$0x11]
    %v1816 = vld [vmem:[%s0 + $0x198] sm:$0xff]
    %v1817 = vld [vmem:[%s0 + $0x1a0] sm:$0xff]
    %v1818 = vld [vmem:[%s0 + $0x1a8] sm:$0x11]
    %v1819 = vld [vmem:[%s0 + $0x1b0] sm:$0xff]
    %v1820 = vld [vmem:[%s0 + $0x1b8] sm:$0xff]
    %v1821 = vld [vmem:[%s0 + $0x1c0] sm:$0x11]
    %v1822 = vld [vmem:[%s0 + $0x1c8] sm:$0xff]
    %v1823 = vld [vmem:[%s0 + $0x1d0] sm:$0xff]
    %v1824 = vld [vmem:[%s0 + $0x1d8] sm:$0x11]
    %v1825 = vld [vmem:[%s0 + $0x1e0] sm:$0xff]
    %v1826 = vld [vmem:[%s0 + $0x1e8] sm:$0xff]
    %v1827 = vld [vmem:[%s0 + $0x1f0] sm:$0x11]
    %v1828 = vld [vmem:[%s0 + $0x1f8] sm:$0xff]
    %v1829 = vld [vmem:[%s0 + $0x200] sm:$0xff]
    %v1830 = vld [vmem:[%s0 + $0x208] sm:$0x11]
    %v1831 = vld [vmem:[%s0 + $0x210] sm:$0xff]
    %v1832 = vld [vmem:[%s0 + $0x218] sm:$0xff]
    %v1833 = vld [vmem:[%s0 + $0x220] sm:$0x11]
    %v1834 = vld [vmem:[%s0 + $0x228] sm:$0xff]
    %v1835 = vld [vmem:[%s0 + $0x230] sm:$0xff]
    %v1836 = vld [vmem:[%s0 + $0x238] sm:$0x11]
    %v1837 = vld [vmem:[%s0 + $0x240] sm:$0xff]
    %v1838 = vld [vmem:[%s0 + $0x248] sm:$0xff]
    %v1839 = vld [vmem:[%s0 + $0x250] sm:$0x11]
    %v1840 = vld [vmem:[%s0 + $0x258] sm:$0xff]
    %v1841 = vld [vmem:[%s0 + $0x260] sm:$0xff]
    %v1842 = vld [vmem:[%s0 + $0x268] sm:$0x11]
    %v1843 = vld [vmem:[%s0 + $0x270] sm:$0xff]
    %v1844 = vld [vmem:[%s0 + $0x278] sm:$0xff]
    %v1845 = vld [vmem:[%s0 + $0x280] sm:$0x11]
    %v1846 = vld [vmem:[%s0 + $0x288] sm:$0xff]
    %v1847 = vld [vmem:[%s0 + $0x290] sm:$0xff]
    %v1848 = vld [vmem:[%s0 + $0x298] sm:$0x11]
    %v1849 = vld [vmem:[%s0 + $0x2a0] sm:$0xff]
    %v1850 = vld [vmem:[%s0 + $0x2a8] sm:$0xff]
    %v1851 = vld [vmem:[%s0 + $0x2b0] sm:$0x11]
    %v1852 = vld [vmem:[%s0 + $0x2b8] sm:$0xff]
    %v1853 = vld [vmem:[%s0 + $0x2c0] sm:$0xff]
    %v1854 = vld [vmem:[%s0 + $0x2c8] sm:$0x11]
    %v1855 = vld [vmem:[%s0 + $0x2d0] sm:$0xff]
    %v1856 = vld [vmem:[%s0 + $0x2d8] sm:$0xff]
    %v1857 = vld [vmem:[%s0 + $0x2e0] sm:$0x11]
    %v1858 = vld [vmem:[%s0 + $0x2e8] sm:$0xff]
    %v1859 = vld [vmem:[%s0 + $0x2f0] sm:$0xff]
    %v1860 = vld [vmem:[%s0 + $0x2f8] sm:$0x11]
    %v1861 = vld [vmem:[%s0 + $0x300] sm:$0xff]
    %v1862 = vld [vmem:[%s0 + $0x308] sm:$0xff]
    %v1863 = vld [vmem:[%s0 + $0x310] sm:$0x11]
    %v1864 = vld [vmem:[%s0 + $0x318] sm:$0xff]
    %v1865 = vld [vmem:[%s0 + $0x320] sm:$0xff]
    %v1866 = vld [vmem:[%s0 + $0x328] sm:$0x11]
    %v1867 = vld [vmem:[%s0 + $0x330] sm:$0xff]
    %v1868 = vld [vmem:[%s0 + $0x338] sm:$0xff]
    %v1869 = vld [vmem:[%s0 + $0x340] sm:$0x11]
    %v1870 = vld [vmem:[%s0 + $0x348] sm:$0xff]
    %v1871 = vld [vmem:[%s0 + $0x350] sm:$0xff]
    %v1872 = vld [vmem:[%s0 + $0x358] sm:$0x11]
    %vm1873 = vsmask.f32 3328
    %vm1874 = vsmask.f32 7440
    %vm1875 = vmor %vm1873, %vm1874
    %v1877 = vshrl.u32 %v1765, 16
    %v1879 = vrot.slane %v1877, 4
    %v1880 = vshll.u32 %v1765, 16
    %v1882 = vrot.slane %v1880, 5
    %v1883 = vor.u32 %v1879, %v1882
    %v1884 = vrot.slane %v1883, 4
    %v1886 = vshll.u32 %v1766, 16
    %v1888 = vrot.slane %v1886, 5
    %v1889 = vsel %vm1875, %v1884, %v1888
    %v1890 = vshrl.u32 %v1766, 16
    %v1892 = vrot.slane %v1890, 4
    %v1893 = vor.u32 %v1892, %v1888
    %v1894 = vrot.slane %v1893, 4
    %v1896 = vshll.u32 %v1767, 16
    %v1898 = vrot.slane %v1896, 5
    %v1899 = vsel %vm1875, %v1894, %v1898
    %v1901 = vshrl.u32 %v1768, 16
    %v1903 = vrot.slane %v1901, 4
    %v1904 = vshll.u32 %v1768, 16
    %v1906 = vrot.slane %v1904, 5
    %v1907 = vor.u32 %v1903, %v1906
    %v1908 = vrot.slane %v1907, 4
    %v1910 = vshll.u32 %v1769, 16
    %v1912 = vrot.slane %v1910, 5
    %v1913 = vsel %vm1875, %v1908, %v1912
    %v1914 = vshrl.u32 %v1769, 16
    %v1916 = vrot.slane %v1914, 4
    %v1917 = vor.u32 %v1916, %v1912
    %v1918 = vrot.slane %v1917, 4
    %v1920 = vshll.u32 %v1770, 16
    %v1922 = vrot.slane %v1920, 5
    %v1923 = vsel %vm1875, %v1918, %v1922
    %v1925 = vshrl.u32 %v1771, 16
    %v1927 = vrot.slane %v1925, 4
    %v1928 = vshll.u32 %v1771, 16
    %v1930 = vrot.slane %v1928, 5
    %v1931 = vor.u32 %v1927, %v1930
    %v1932 = vrot.slane %v1931, 4
    %v1934 = vshll.u32 %v1772, 16
    %v1936 = vrot.slane %v1934, 5
    %v1937 = vsel %vm1875, %v1932, %v1936
    %v1938 = vshrl.u32 %v1772, 16
    %v1940 = vrot.slane %v1938, 4
    %v1941 = vor.u32 %v1940, %v1936
    %v1942 = vrot.slane %v1941, 4
    %v1944 = vshll.u32 %v1773, 16
    %v1946 = vrot.slane %v1944, 5
    %v1947 = vsel %vm1875, %v1942, %v1946
    %v1949 = vshrl.u32 %v1774, 16
    %v1951 = vrot.slane %v1949, 4
    %v1952 = vshll.u32 %v1774, 16
    %v1954 = vrot.slane %v1952, 5
    %v1955 = vor.u32 %v1951, %v1954
    %v1956 = vrot.slane %v1955, 4
    %v1958 = vshll.u32 %v1775, 16
    %v1960 = vrot.slane %v1958, 5
    %v1961 = vsel %vm1875, %v1956, %v1960
    %v1962 = vshrl.u32 %v1775, 16
    %v1964 = vrot.slane %v1962, 4
    %v1965 = vor.u32 %v1964, %v1960
    %v1966 = vrot.slane %v1965, 4
    %v1968 = vshll.u32 %v1776, 16
    %v1970 = vrot.slane %v1968, 5
    %v1971 = vsel %vm1875, %v1966, %v1970
    %v1973 = vshrl.u32 %v1777, 16
    %v1975 = vrot.slane %v1973, 4
    %v1976 = vshll.u32 %v1777, 16
    %v1978 = vrot.slane %v1976, 5
    %v1979 = vor.u32 %v1975, %v1978
    %v1980 = vrot.slane %v1979, 4
    %v1982 = vshll.u32 %v1778, 16
    %v1984 = vrot.slane %v1982, 5
    %v1985 = vsel %vm1875, %v1980, %v1984
    %v1986 = vshrl.u32 %v1778, 16
    %v1988 = vrot.slane %v1986, 4
    %v1989 = vor.u32 %v1988, %v1984
    %v1990 = vrot.slane %v1989, 4
    %v1992 = vshll.u32 %v1779, 16
    %v1994 = vrot.slane %v1992, 5
    %v1995 = vsel %vm1875, %v1990, %v1994
    %v1997 = vshrl.u32 %v1780, 16
    %v1999 = vrot.slane %v1997, 4
    %v2000 = vshll.u32 %v1780, 16
    %v2002 = vrot.slane %v2000, 5
    %v2003 = vor.u32 %v1999, %v2002
    %v2004 = vrot.slane %v2003, 4
    %v2006 = vshll.u32 %v1781, 16
    %v2008 = vrot.slane %v2006, 5
    %v2009 = vsel %vm1875, %v2004, %v2008
    %v2010 = vshrl.u32 %v1781, 16
    %v2012 = vrot.slane %v2010, 4
    %v2013 = vor.u32 %v2012, %v2008
    %v2014 = vrot.slane %v2013, 4
    %v2016 = vshll.u32 %v1782, 16
    %v2018 = vrot.slane %v2016, 5
    %v2019 = vsel %vm1875, %v2014, %v2018
    %v2021 = vshrl.u32 %v1783, 16
    %v2023 = vrot.slane %v2021, 4
    %v2024 = vshll.u32 %v1783, 16
    %v2026 = vrot.slane %v2024, 5
    %v2027 = vor.u32 %v2023, %v2026
    %v2028 = vrot.slane %v2027, 4
    %v2030 = vshll.u32 %v1784, 16
    %v2032 = vrot.slane %v2030, 5
    %v2033 = vsel %vm1875, %v2028, %v2032
    %v2034 = vshrl.u32 %v1784, 16
    %v2036 = vrot.slane %v2034, 4
    %v2037 = vor.u32 %v2036, %v2032
    %v2038 = vrot.slane %v2037, 4
    %v2040 = vshll.u32 %v1785, 16
    %v2042 = vrot.slane %v2040, 5
    %v2043 = vsel %vm1875, %v2038, %v2042
    %v2045 = vshrl.u32 %v1786, 16
    %v2047 = vrot.slane %v2045, 4
    %v2048 = vshll.u32 %v1786, 16
    %v2050 = vrot.slane %v2048, 5
    %v2051 = vor.u32 %v2047, %v2050
    %v2052 = vrot.slane %v2051, 4
    %v2054 = vshll.u32 %v1787, 16
    %v2056 = vrot.slane %v2054, 5
    %v2057 = vsel %vm1875, %v2052, %v2056
    %v2058 = vshrl.u32 %v1787, 16
    %v2060 = vrot.slane %v2058, 4
    %v2061 = vor.u32 %v2060, %v2056
    %v2062 = vrot.slane %v2061, 4
    %v2064 = vshll.u32 %v1788, 16
    %v2066 = vrot.slane %v2064, 5
    %v2067 = vsel %vm1875, %v2062, %v2066
    %v2069 = vshrl.u32 %v1789, 16
    %v2071 = vrot.slane %v2069, 4
    %v2072 = vshll.u32 %v1789, 16
    %v2074 = vrot.slane %v2072, 5
    %v2075 = vor.u32 %v2071, %v2074
    %v2076 = vrot.slane %v2075, 4
    %v2078 = vshll.u32 %v1790, 16
    %v2080 = vrot.slane %v2078, 5
    %v2081 = vsel %vm1875, %v2076, %v2080
    %v2082 = vshrl.u32 %v1790, 16
    %v2084 = vrot.slane %v2082, 4
    %v2085 = vor.u32 %v2084, %v2080
    %v2086 = vrot.slane %v2085, 4
    %v2088 = vshll.u32 %v1791, 16
    %v2090 = vrot.slane %v2088, 5
    %v2091 = vsel %vm1875, %v2086, %v2090
    %v2093 = vshrl.u32 %v1792, 16
    %v2095 = vrot.slane %v2093, 4
    %v2096 = vshll.u32 %v1792, 16
    %v2098 = vrot.slane %v2096, 5
    %v2099 = vor.u32 %v2095, %v2098
    %v2100 = vrot.slane %v2099, 4
    %v2102 = vshll.u32 %v1793, 16
    %v2104 = vrot.slane %v2102, 5
    %v2105 = vsel %vm1875, %v2100, %v2104
    %v2106 = vshrl.u32 %v1793, 16
    %v2108 = vrot.slane %v2106, 4
    %v2109 = vor.u32 %v2108, %v2104
    %v2110 = vrot.slane %v2109, 4
    %v2112 = vshll.u32 %v1794, 16
    %v2114 = vrot.slane %v2112, 5
    %v2115 = vsel %vm1875, %v2110, %v2114
    %v2117 = vshrl.u32 %v1795, 16
    %v2119 = vrot.slane %v2117, 4
    %v2120 = vshll.u32 %v1795, 16
    %v2122 = vrot.slane %v2120, 5
    %v2123 = vor.u32 %v2119, %v2122
    %v2124 = vrot.slane %v2123, 4
    %v2126 = vshll.u32 %v1796, 16
    %v2128 = vrot.slane %v2126, 5
    %v2129 = vsel %vm1875, %v2124, %v2128
    %v2130 = vshrl.u32 %v1796, 16
    %v2132 = vrot.slane %v2130, 4
    %v2133 = vor.u32 %v2132, %v2128
    %v2134 = vrot.slane %v2133, 4
    %v2136 = vshll.u32 %v1797, 16
    %v2138 = vrot.slane %v2136, 5
    %v2139 = vsel %vm1875, %v2134, %v2138
    %v2141 = vshrl.u32 %v1798, 16
    %v2143 = vrot.slane %v2141, 4
    %v2144 = vshll.u32 %v1798, 16
    %v2146 = vrot.slane %v2144, 5
    %v2147 = vor.u32 %v2143, %v2146
    %v2148 = vrot.slane %v2147, 4
    %v2150 = vshll.u32 %v1799, 16
    %v2152 = vrot.slane %v2150, 5
    %v2153 = vsel %vm1875, %v2148, %v2152
    %v2154 = vshrl.u32 %v1799, 16
    %v2156 = vrot.slane %v2154, 4
    %v2157 = vor.u32 %v2156, %v2152
    %v2158 = vrot.slane %v2157, 4
    %v2160 = vshll.u32 %v1800, 16
    %v2162 = vrot.slane %v2160, 5
    %v2163 = vsel %vm1875, %v2158, %v2162
    %v2165 = vshrl.u32 %v1801, 16
    %v2167 = vrot.slane %v2165, 4
    %v2168 = vshll.u32 %v1801, 16
    %v2170 = vrot.slane %v2168, 5
    %v2171 = vor.u32 %v2167, %v2170
    %v2172 = vrot.slane %v2171, 4
    %v2174 = vshll.u32 %v1802, 16
    %v2176 = vrot.slane %v2174, 5
    %v2177 = vsel %vm1875, %v2172, %v2176
    %v2178 = vshrl.u32 %v1802, 16
    %v2180 = vrot.slane %v2178, 4
    %v2181 = vor.u32 %v2180, %v2176
    %v2182 = vrot.slane %v2181, 4
    %v2184 = vshll.u32 %v1803, 16
    %v2186 = vrot.slane %v2184, 5
    %v2187 = vsel %vm1875, %v2182, %v2186
    %v2189 = vshrl.u32 %v1804, 16
    %v2191 = vrot.slane %v2189, 4
    %v2192 = vshll.u32 %v1804, 16
    %v2194 = vrot.slane %v2192, 5
    %v2195 = vor.u32 %v2191, %v2194
    %v2196 = vrot.slane %v2195, 4
    %v2198 = vshll.u32 %v1805, 16
    %v2200 = vrot.slane %v2198, 5
    %v2201 = vsel %vm1875, %v2196, %v2200
    %v2202 = vshrl.u32 %v1805, 16
    %v2204 = vrot.slane %v2202, 4
    %v2205 = vor.u32 %v2204, %v2200
    %v2206 = vrot.slane %v2205, 4
    %v2208 = vshll.u32 %v1806, 16
    %v2210 = vrot.slane %v2208, 5
    %v2211 = vsel %vm1875, %v2206, %v2210
    %v2213 = vshrl.u32 %v1807, 16
    %v2215 = vrot.slane %v2213, 4
    %v2216 = vshll.u32 %v1807, 16
    %v2218 = vrot.slane %v2216, 5
    %v2219 = vor.u32 %v2215, %v2218
    %v2220 = vrot.slane %v2219, 4
    %v2222 = vshll.u32 %v1808, 16
    %v2224 = vrot.slane %v2222, 5
    %v2225 = vsel %vm1875, %v2220, %v2224
    %v2226 = vshrl.u32 %v1808, 16
    %v2228 = vrot.slane %v2226, 4
    %v2229 = vor.u32 %v2228, %v2224
    %v2230 = vrot.slane %v2229, 4
    %v2232 = vshll.u32 %v1809, 16
    %v2234 = vrot.slane %v2232, 5
    %v2235 = vsel %vm1875, %v2230, %v2234
    %v2237 = vshrl.u32 %v1810, 16
    %v2239 = vrot.slane %v2237, 4
    %v2240 = vshll.u32 %v1810, 16
    %v2242 = vrot.slane %v2240, 5
    %v2243 = vor.u32 %v2239, %v2242
    %v2244 = vrot.slane %v2243, 4
    %v2246 = vshll.u32 %v1811, 16
    %v2248 = vrot.slane %v2246, 5
    %v2249 = vsel %vm1875, %v2244, %v2248
    %v2250 = vshrl.u32 %v1811, 16
    %v2252 = vrot.slane %v2250, 4
    %v2253 = vor.u32 %v2252, %v2248
    %v2254 = vrot.slane %v2253, 4
    %v2256 = vshll.u32 %v1812, 16
    %v2258 = vrot.slane %v2256, 5
    %v2259 = vsel %vm1875, %v2254, %v2258
    %v2261 = vshrl.u32 %v1819, 16
    %v2263 = vrot.slane %v2261, 4
    %v2264 = vshll.u32 %v1819, 16
    %v2266 = vrot.slane %v2264, 5
    %v2267 = vor.u32 %v2263, %v2266
    %v2268 = vrot.slane %v2267, 4
    %v2270 = vshll.u32 %v1820, 16
    %v2272 = vrot.slane %v2270, 5
    %v2273 = vsel %vm1875, %v2268, %v2272
    %v2274 = vshrl.u32 %v1820, 16
    %v2276 = vrot.slane %v2274, 4
    %v2277 = vor.u32 %v2276, %v2272
    %v2278 = vrot.slane %v2277, 4
    %v2280 = vshll.u32 %v1821, 16
    %v2282 = vrot.slane %v2280, 5
    %v2283 = vsel %vm1875, %v2278, %v2282
    %v2285 = vshrl.u32 %v1822, 16
    %v2287 = vrot.slane %v2285, 4
    %v2288 = vshll.u32 %v1822, 16
    %v2290 = vrot.slane %v2288, 5
    %v2291 = vor.u32 %v2287, %v2290
    %v2292 = vrot.slane %v2291, 4
    %v2294 = vshll.u32 %v1823, 16
    %v2296 = vrot.slane %v2294, 5
    %v2297 = vsel %vm1875, %v2292, %v2296
    %v2298 = vshrl.u32 %v1823, 16
    %v2300 = vrot.slane %v2298, 4
    %v2301 = vor.u32 %v2300, %v2296
    %v2302 = vrot.slane %v2301, 4
    %v2304 = vshll.u32 %v1824, 16
    %v2306 = vrot.slane %v2304, 5
    %v2307 = vsel %vm1875, %v2302, %v2306
    %v2309 = vshrl.u32 %v1825, 16
    %v2311 = vrot.slane %v2309, 4
    %v2312 = vshll.u32 %v1825, 16
    %v2314 = vrot.slane %v2312, 5
    %v2315 = vor.u32 %v2311, %v2314
    %v2316 = vrot.slane %v2315, 4
    %v2318 = vshll.u32 %v1826, 16
    %v2320 = vrot.slane %v2318, 5
    %v2321 = vsel %vm1875, %v2316, %v2320
    %v2322 = vshrl.u32 %v1826, 16
    %v2324 = vrot.slane %v2322, 4
    %v2325 = vor.u32 %v2324, %v2320
    %v2326 = vrot.slane %v2325, 4
    %v2328 = vshll.u32 %v1827, 16
    %v2330 = vrot.slane %v2328, 5
    %v2331 = vsel %vm1875, %v2326, %v2330
    %v2333 = vshrl.u32 %v1828, 16
    %v2335 = vrot.slane %v2333, 4
    %v2336 = vshll.u32 %v1828, 16
    %v2338 = vrot.slane %v2336, 5
    %v2339 = vor.u32 %v2335, %v2338
    %v2340 = vrot.slane %v2339, 4
    %v2342 = vshll.u32 %v1829, 16
    %v2344 = vrot.slane %v2342, 5
    %v2345 = vsel %vm1875, %v2340, %v2344
    %v2346 = vshrl.u32 %v1829, 16
    %v2348 = vrot.slane %v2346, 4
    %v2349 = vor.u32 %v2348, %v2344
    %v2350 = vrot.slane %v2349, 4
    %v2352 = vshll.u32 %v1830, 16
    %v2354 = vrot.slane %v2352, 5
    %v2355 = vsel %vm1875, %v2350, %v2354
    %v2357 = vshrl.u32 %v1831, 16
    %v2359 = vrot.slane %v2357, 4
    %v2360 = vshll.u32 %v1831, 16
    %v2362 = vrot.slane %v2360, 5
    %v2363 = vor.u32 %v2359, %v2362
    %v2364 = vrot.slane %v2363, 4
    %v2366 = vshll.u32 %v1832, 16
    %v2368 = vrot.slane %v2366, 5
    %v2369 = vsel %vm1875, %v2364, %v2368
    %v2370 = vshrl.u32 %v1832, 16
    %v2372 = vrot.slane %v2370, 4
    %v2373 = vor.u32 %v2372, %v2368
    %v2374 = vrot.slane %v2373, 4
    %v2376 = vshll.u32 %v1833, 16
    %v2378 = vrot.slane %v2376, 5
    %v2379 = vsel %vm1875, %v2374, %v2378
    %v2381 = vshrl.u32 %v1834, 16
    %v2383 = vrot.slane %v2381, 4
    %v2384 = vshll.u32 %v1834, 16
    %v2386 = vrot.slane %v2384, 5
    %v2387 = vor.u32 %v2383, %v2386
    %v2388 = vrot.slane %v2387, 4
    %v2390 = vshll.u32 %v1835, 16
    %v2392 = vrot.slane %v2390, 5
    %v2393 = vsel %vm1875, %v2388, %v2392
    %v2394 = vshrl.u32 %v1835, 16
    %v2396 = vrot.slane %v2394, 4
    %v2397 = vor.u32 %v2396, %v2392
    %v2398 = vrot.slane %v2397, 4
    %v2400 = vshll.u32 %v1836, 16
    %v2402 = vrot.slane %v2400, 5
    %v2403 = vsel %vm1875, %v2398, %v2402
    %v2405 = vshrl.u32 %v1837, 16
    %v2407 = vrot.slane %v2405, 4
    %v2408 = vshll.u32 %v1837, 16
    %v2410 = vrot.slane %v2408, 5
    %v2411 = vor.u32 %v2407, %v2410
    %v2412 = vrot.slane %v2411, 4
    %v2414 = vshll.u32 %v1838, 16
    %v2416 = vrot.slane %v2414, 5
    %v2417 = vsel %vm1875, %v2412, %v2416
    %v2418 = vshrl.u32 %v1838, 16
    %v2420 = vrot.slane %v2418, 4
    %v2421 = vor.u32 %v2420, %v2416
    %v2422 = vrot.slane %v2421, 4
    %v2424 = vshll.u32 %v1839, 16
    %v2426 = vrot.slane %v2424, 5
    %v2427 = vsel %vm1875, %v2422, %v2426
    %v2429 = vshrl.u32 %v1840, 16
    %v2431 = vrot.slane %v2429, 4
    %v2432 = vshll.u32 %v1840, 16
    %v2434 = vrot.slane %v2432, 5
    %v2435 = vor.u32 %v2431, %v2434
    %v2436 = vrot.slane %v2435, 4
    %v2438 = vshll.u32 %v1841, 16
    %v2440 = vrot.slane %v2438, 5
    %v2441 = vsel %vm1875, %v2436, %v2440
    %v2442 = vshrl.u32 %v1841, 16
    %v2444 = vrot.slane %v2442, 4
    %v2445 = vor.u32 %v2444, %v2440
    %v2446 = vrot.slane %v2445, 4
    %v2448 = vshll.u32 %v1842, 16
    %v2450 = vrot.slane %v2448, 5
    %v2451 = vsel %vm1875, %v2446, %v2450
    %v2453 = vshrl.u32 %v1843, 16
    %v2455 = vrot.slane %v2453, 4
    %v2456 = vshll.u32 %v1843, 16
    %v2458 = vrot.slane %v2456, 5
    %v2459 = vor.u32 %v2455, %v2458
    %v2460 = vrot.slane %v2459, 4
    %v2462 = vshll.u32 %v1844, 16
    %v2464 = vrot.slane %v2462, 5
    %v2465 = vsel %vm1875, %v2460, %v2464
    %v2466 = vshrl.u32 %v1844, 16
    %v2468 = vrot.slane %v2466, 4
    %v2469 = vor.u32 %v2468, %v2464
    %v2470 = vrot.slane %v2469, 4
    %v2472 = vshll.u32 %v1845, 16
    %v2474 = vrot.slane %v2472, 5
    %v2475 = vsel %vm1875, %v2470, %v2474
    %v2477 = vshrl.u32 %v1846, 16
    %v2479 = vrot.slane %v2477, 4
    %v2480 = vshll.u32 %v1846, 16
    %v2482 = vrot.slane %v2480, 5
    %v2483 = vor.u32 %v2479, %v2482
    %v2484 = vrot.slane %v2483, 4
    %v2486 = vshll.u32 %v1847, 16
    %v2488 = vrot.slane %v2486, 5
    %v2489 = vsel %vm1875, %v2484, %v2488
    %v2490 = vshrl.u32 %v1847, 16
    %v2492 = vrot.slane %v2490, 4
    %v2493 = vor.u32 %v2492, %v2488
    %v2494 = vrot.slane %v2493, 4
    %v2496 = vshll.u32 %v1848, 16
    %v2498 = vrot.slane %v2496, 5
    %v2499 = vsel %vm1875, %v2494, %v2498
    %v2501 = vshrl.u32 %v1849, 16
    %v2503 = vrot.slane %v2501, 4
    %v2504 = vshll.u32 %v1849, 16
    %v2506 = vrot.slane %v2504, 5
    %v2507 = vor.u32 %v2503, %v2506
    %v2508 = vrot.slane %v2507, 4
    %v2510 = vshll.u32 %v1850, 16
    %v2512 = vrot.slane %v2510, 5
    %v2513 = vsel %vm1875, %v2508, %v2512
    %v2514 = vshrl.u32 %v1850, 16
    %v2516 = vrot.slane %v2514, 4
    %v2517 = vor.u32 %v2516, %v2512
    %v2518 = vrot.slane %v2517, 4
    %v2520 = vshll.u32 %v1851, 16
    %v2522 = vrot.slane %v2520, 5
    %v2523 = vsel %vm1875, %v2518, %v2522
    %v2525 = vshrl.u32 %v1852, 16
    %v2527 = vrot.slane %v2525, 4
    %v2528 = vshll.u32 %v1852, 16
    %v2530 = vrot.slane %v2528, 5
    %v2531 = vor.u32 %v2527, %v2530
    %v2532 = vrot.slane %v2531, 4
    %v2534 = vshll.u32 %v1853, 16
    %v2536 = vrot.slane %v2534, 5
    %v2537 = vsel %vm1875, %v2532, %v2536
    %v2538 = vshrl.u32 %v1853, 16
    %v2540 = vrot.slane %v2538, 4
    %v2541 = vor.u32 %v2540, %v2536
    %v2542 = vrot.slane %v2541, 4
    %v2544 = vshll.u32 %v1854, 16
    %v2546 = vrot.slane %v2544, 5
    %v2547 = vsel %vm1875, %v2542, %v2546
    %v2549 = vshrl.u32 %v1855, 16
    %v2551 = vrot.slane %v2549, 4
    %v2552 = vshll.u32 %v1855, 16
    %v2554 = vrot.slane %v2552, 5
    %v2555 = vor.u32 %v2551, %v2554
    %v2556 = vrot.slane %v2555, 4
    %v2558 = vshll.u32 %v1856, 16
    %v2560 = vrot.slane %v2558, 5
    %v2561 = vsel %vm1875, %v2556, %v2560
    %v2562 = vshrl.u32 %v1856, 16
    %v2564 = vrot.slane %v2562, 4
    %v2565 = vor.u32 %v2564, %v2560
    %v2566 = vrot.slane %v2565, 4
    %v2568 = vshll.u32 %v1857, 16
    %v2570 = vrot.slane %v2568, 5
    %v2571 = vsel %vm1875, %v2566, %v2570
    %v2573 = vshrl.u32 %v1858, 16
    %v2575 = vrot.slane %v2573, 4
    %v2576 = vshll.u32 %v1858, 16
    %v2578 = vrot.slane %v2576, 5
    %v2579 = vor.u32 %v2575, %v2578
    %v2580 = vrot.slane %v2579, 4
    %v2582 = vshll.u32 %v1859, 16
    %v2584 = vrot.slane %v2582, 5
    %v2585 = vsel %vm1875, %v2580, %v2584
    %v2586 = vshrl.u32 %v1859, 16
    %v2588 = vrot.slane %v2586, 4
    %v2589 = vor.u32 %v2588, %v2584
    %v2590 = vrot.slane %v2589, 4
    %v2592 = vshll.u32 %v1860, 16
    %v2594 = vrot.slane %v2592, 5
    %v2595 = vsel %vm1875, %v2590, %v2594
    %v2597 = vshrl.u32 %v1861, 16
    %v2599 = vrot.slane %v2597, 4
    %v2600 = vshll.u32 %v1861, 16
    %v2602 = vrot.slane %v2600, 5
    %v2603 = vor.u32 %v2599, %v2602
    %v2604 = vrot.slane %v2603, 4
    %v2606 = vshll.u32 %v1862, 16
    %v2608 = vrot.slane %v2606, 5
    %v2609 = vsel %vm1875, %v2604, %v2608
    %v2610 = vshrl.u32 %v1862, 16
    %v2612 = vrot.slane %v2610, 4
    %v2613 = vor.u32 %v2612, %v2608
    %v2614 = vrot.slane %v2613, 4
    %v2616 = vshll.u32 %v1863, 16
    %v2618 = vrot.slane %v2616, 5
    %v2619 = vsel %vm1875, %v2614, %v2618
    %v2621 = vshrl.u32 %v1864, 16
    %v2623 = vrot.slane %v2621, 4
    %v2624 = vshll.u32 %v1864, 16
    %v2626 = vrot.slane %v2624, 5
    %v2627 = vor.u32 %v2623, %v2626
    %v2628 = vrot.slane %v2627, 4
    %v2630 = vshll.u32 %v1865, 16
    %v2632 = vrot.slane %v2630, 5
    %v2633 = vsel %vm1875, %v2628, %v2632
    %v2634 = vshrl.u32 %v1865, 16
    %v2636 = vrot.slane %v2634, 4
    %v2637 = vor.u32 %v2636, %v2632
    %v2638 = vrot.slane %v2637, 4
    %v2640 = vshll.u32 %v1866, 16
    %v2642 = vrot.slane %v2640, 5
    %v2643 = vsel %vm1875, %v2638, %v2642
    %s2644 = scalar_lea.vmem %s1, 128
    %v2645 = vld [vmem:[%s2644] sm:$0xf]
    %v2646 = vld [vmem:[%s2644 + $0x4] sm:$0xf]
    %v2647 = vld [vmem:[%s2644 + $0x8] sm:$0xf]
    %v2648 = vld [vmem:[%s2644 + $0xc] sm:$0xf]
    %v2649 = vld [vmem:[%s2644 + $0x10] sm:$0xf]
    %v2650 = vld [vmem:[%s2644 + $0x14] sm:$0xf]
    %v2651 = vld [vmem:[%s2644 + $0x18] sm:$0xf]
    %v2652 = vld [vmem:[%s2644 + $0x1c] sm:$0xf]
    %v2653 = vld [vmem:[%s2644 + $0x20] sm:$0xf]
    %v2654 = vld [vmem:[%s2644 + $0x24] sm:$0xf]
    %v2655 = vld [vmem:[%s2644 + $0x28] sm:$0xf]
    %v2656 = vld [vmem:[%s2644 + $0x2c] sm:$0xf]
    %v2657 = vld [vmem:[%s2644 + $0x30] sm:$0xf]
    %v2658 = vld [vmem:[%s2644 + $0x34] sm:$0xf]
    %v2659 = vld [vmem:[%s2644 + $0x38] sm:$0xf]
    %v2660 = vld [vmem:[%s2644 + $0x3c] sm:$0xf]
    %v2661 = vld [vmem:[%s2644 + $0x40] sm:$0xf]
    %v2662 = vld [vmem:[%s2644 + $0x44] sm:$0xf]
    %v2663 = vld [vmem:[%s2644 + $0x48] sm:$0xf]
    %v2664 = vld [vmem:[%s2644 + $0x4c] sm:$0xf]
    %v2665 = vld [vmem:[%s2644 + $0x50] sm:$0xf]
    %v2666 = vld [vmem:[%s2644 + $0x54] sm:$0xf]
    %v2667 = vld [vmem:[%s2644 + $0x58] sm:$0xf]
    %v2668 = vld [vmem:[%s2644 + $0x5c] sm:$0xf]
    %v2669 = vld [vmem:[%s2644 + $0x60] sm:$0xf]
    %v2670 = vld [vmem:[%s2644 + $0x64] sm:$0xf]
    %v2671 = vld [vmem:[%s2644 + $0x68] sm:$0xf]
    %v2672 = vld [vmem:[%s2644 + $0x6c] sm:$0xf]
    %v2673 = vld [vmem:[%s2644 + $0x70] sm:$0xf]
    %v2674 = vld [vmem:[%s2644 + $0x74] sm:$0xf]
    %v2675 = vld [vmem:[%s2644 + $0x78] sm:$0xf]
    %v2676 = vld [vmem:[%s2644 + $0x7c] sm:$0xf]
    %v2677 = vunpack.c.l.b16 %v1889
    %v2678 = vunpack.c.h.b16 %v1889
    %v2679 = vunpack.c.l.b16 %v1899
    %v2680 = vunpack.c.h.b16 %v1899
    %v2681 = vunpack.c.l.b16 %v1913
    %v2682 = vunpack.c.h.b16 %v1913
    %v2683 = vunpack.c.l.b16 %v1923
    %v2684 = vunpack.c.h.b16 %v1923
    %v2685 = vunpack.c.l.b16 %v1937
    %v2686 = vunpack.c.h.b16 %v1937
    %v2687 = vunpack.c.l.b16 %v1947
    %v2688 = vunpack.c.h.b16 %v1947
    %v2689 = vunpack.c.l.b16 %v1961
    %v2690 = vunpack.c.h.b16 %v1961
    %v2691 = vunpack.c.l.b16 %v1971
    %v2692 = vunpack.c.h.b16 %v1971
    %v2693 = vunpack.c.l.b16 %v1985
    %v2694 = vunpack.c.h.b16 %v1985
    %v2695 = vunpack.c.l.b16 %v1995
    %v2696 = vunpack.c.h.b16 %v1995
    %v2697 = vunpack.c.l.b16 %v2009
    %v2698 = vunpack.c.h.b16 %v2009
    %v2699 = vunpack.c.l.b16 %v2019
    %v2700 = vunpack.c.h.b16 %v2019
    %v2701 = vunpack.c.l.b16 %v2033
    %v2702 = vunpack.c.h.b16 %v2033
    %v2703 = vunpack.c.l.b16 %v2043
    %v2704 = vunpack.c.h.b16 %v2043
    %v2705 = vunpack.c.l.b16 %v2057
    %v2706 = vunpack.c.h.b16 %v2057
    %v2707 = vunpack.c.l.b16 %v2067
    %v2708 = vunpack.c.h.b16 %v2067
    %v2709 = vunpack.c.l.b16 %v2081
    %v2710 = vunpack.c.h.b16 %v2081
    %v2711 = vunpack.c.l.b16 %v2091
    %v2712 = vunpack.c.h.b16 %v2091
    %v2713 = vunpack.c.l.b16 %v2105
    %v2714 = vunpack.c.h.b16 %v2105
    %v2715 = vunpack.c.l.b16 %v2115
    %v2716 = vunpack.c.h.b16 %v2115
    %v2717 = vunpack.c.l.b16 %v2129
    %v2718 = vunpack.c.h.b16 %v2129
    %v2719 = vunpack.c.l.b16 %v2139
    %v2720 = vunpack.c.h.b16 %v2139
    %v2721 = vunpack.c.l.b16 %v2153
    %v2722 = vunpack.c.h.b16 %v2153
    %v2723 = vunpack.c.l.b16 %v2163
    %v2724 = vunpack.c.h.b16 %v2163
    %v2725 = vunpack.c.l.b16 %v2177
    %v2726 = vunpack.c.h.b16 %v2177
    %v2727 = vunpack.c.l.b16 %v2187
    %v2728 = vunpack.c.h.b16 %v2187
    %v2729 = vunpack.c.l.b16 %v2201
    %v2730 = vunpack.c.h.b16 %v2201
    %v2731 = vunpack.c.l.b16 %v2211
    %v2732 = vunpack.c.h.b16 %v2211
    %v2733 = vunpack.c.l.b16 %v2225
    %v2734 = vunpack.c.h.b16 %v2225
    %v2735 = vunpack.c.l.b16 %v2235
    %v2736 = vunpack.c.h.b16 %v2235
    %v2737 = vunpack.c.l.b16 %v2249
    %v2738 = vunpack.c.h.b16 %v2249
    %v2739 = vunpack.c.l.b16 %v2259
    %v2740 = vunpack.c.h.b16 %v2259
    %v2741 = vunpack.c.l.b16 %v2273
    %v2742 = vunpack.c.h.b16 %v2273
    %v2743 = vunpack.c.l.b16 %v2283
    %v2744 = vunpack.c.h.b16 %v2283
    %v2745 = vunpack.c.l.b16 %v2297
    %v2746 = vunpack.c.h.b16 %v2297
    %v2747 = vunpack.c.l.b16 %v2307
    %v2748 = vunpack.c.h.b16 %v2307
    %v2749 = vunpack.c.l.b16 %v2321
    %v2750 = vunpack.c.h.b16 %v2321
    %v2751 = vunpack.c.l.b16 %v2331
    %v2752 = vunpack.c.h.b16 %v2331
    %v2753 = vunpack.c.l.b16 %v2345
    %v2754 = vunpack.c.h.b16 %v2345
    %v2755 = vunpack.c.l.b16 %v2355
    %v2756 = vunpack.c.h.b16 %v2355
    %v2757 = vunpack.c.l.b16 %v2369
    %v2758 = vunpack.c.h.b16 %v2369
    %v2759 = vunpack.c.l.b16 %v2379
    %v2760 = vunpack.c.h.b16 %v2379
    %v2761 = vunpack.c.l.b16 %v2393
    %v2762 = vunpack.c.h.b16 %v2393
    %v2763 = vunpack.c.l.b16 %v2403
    %v2764 = vunpack.c.h.b16 %v2403
    %v2765 = vunpack.c.l.b16 %v2417
    %v2766 = vunpack.c.h.b16 %v2417
    %v2767 = vunpack.c.l.b16 %v2427
    %v2768 = vunpack.c.h.b16 %v2427
    %v2769 = vunpack.c.l.b16 %v2441
    %v2770 = vunpack.c.h.b16 %v2441
    %v2771 = vunpack.c.l.b16 %v2451
    %v2772 = vunpack.c.h.b16 %v2451
    %v2773 = vunpack.c.l.b16 %v2465
    %v2774 = vunpack.c.h.b16 %v2465
    %v2775 = vunpack.c.l.b16 %v2475
    %v2776 = vunpack.c.h.b16 %v2475
    %v2777 = vunpack.c.l.b16 %v2489
    %v2778 = vunpack.c.h.b16 %v2489
    %v2779 = vunpack.c.l.b16 %v2499
    %v2780 = vunpack.c.h.b16 %v2499
    %v2781 = vunpack.c.l.b16 %v2513
    %v2782 = vunpack.c.h.b16 %v2513
    %v2783 = vunpack.c.l.b16 %v2523
    %v2784 = vunpack.c.h.b16 %v2523
    %v2785 = vunpack.c.l.b16 %v2537
    %v2786 = vunpack.c.h.b16 %v2537
    %v2787 = vunpack.c.l.b16 %v2547
    %v2788 = vunpack.c.h.b16 %v2547
    %v2789 = vunpack.c.l.b16 %v2561
    %v2790 = vunpack.c.h.b16 %v2561
    %v2791 = vunpack.c.l.b16 %v2571
    %v2792 = vunpack.c.h.b16 %v2571
    %v2793 = vunpack.c.l.b16 %v2585
    %v2794 = vunpack.c.h.b16 %v2585
    %v2795 = vunpack.c.l.b16 %v2595
    %v2796 = vunpack.c.h.b16 %v2595
    %v2797 = vunpack.c.l.b16 %v2609
    %v2798 = vunpack.c.h.b16 %v2609
    %v2799 = vunpack.c.l.b16 %v2619
    %v2800 = vunpack.c.h.b16 %v2619
    %v2801 = vunpack.c.l.b16 %v2633
    %v2802 = vunpack.c.h.b16 %v2633
    %v2803 = vunpack.c.l.b16 %v2643
    %v2804 = vunpack.c.h.b16 %v2643
    %v2805 = vpack.c.b16 %v2679, %v2677
    %v2806 = vpack.c.b16 %v2680, %v2678
    %v2807 = vpack.c.b16 %v2683, %v2681
    %v2808 = vpack.c.b16 %v2684, %v2682
    %v2809 = vpack.c.b16 %v2687, %v2685
    %v2810 = vpack.c.b16 %v2688, %v2686
    %v2811 = vpack.c.b16 %v2691, %v2689
    %v2812 = vpack.c.b16 %v2692, %v2690
    %v2813 = vpack.c.b16 %v2695, %v2693
    %v2814 = vpack.c.b16 %v2696, %v2694
    %v2815 = vpack.c.b16 %v2699, %v2697
    %v2816 = vpack.c.b16 %v2700, %v2698
    %v2817 = vpack.c.b16 %v2703, %v2701
    %v2818 = vpack.c.b16 %v2704, %v2702
    %v2819 = vpack.c.b16 %v2707, %v2705
    %v2820 = vpack.c.b16 %v2708, %v2706
    %v2821 = vpack.c.b16 %v2711, %v2709
    %v2822 = vpack.c.b16 %v2712, %v2710
    %v2823 = vpack.c.b16 %v2715, %v2713
    %v2824 = vpack.c.b16 %v2716, %v2714
    %v2825 = vpack.c.b16 %v2719, %v2717
    %v2826 = vpack.c.b16 %v2720, %v2718
    %v2827 = vpack.c.b16 %v2723, %v2721
    %v2828 = vpack.c.b16 %v2724, %v2722
    %v2829 = vpack.c.b16 %v2727, %v2725
    %v2830 = vpack.c.b16 %v2728, %v2726
    %v2831 = vpack.c.b16 %v2731, %v2729
    %v2832 = vpack.c.b16 %v2732, %v2730
    %v2833 = vpack.c.b16 %v2735, %v2733
    %v2834 = vpack.c.b16 %v2736, %v2734
    %v2835 = vpack.c.b16 %v2739, %v2737
    %v2836 = vpack.c.b16 %v2740, %v2738
    %v2837 = vpack.c.b16 %v2743, %v2741
    %v2838 = vpack.c.b16 %v2744, %v2742
    %v2839 = vpack.c.b16 %v2747, %v2745
    %v2840 = vpack.c.b16 %v2748, %v2746
    %v2841 = vpack.c.b16 %v2751, %v2749
    %v2842 = vpack.c.b16 %v2752, %v2750
    %v2843 = vpack.c.b16 %v2755, %v2753
    %v2844 = vpack.c.b16 %v2756, %v2754
    %v2845 = vpack.c.b16 %v2759, %v2757
    %v2846 = vpack.c.b16 %v2760, %v2758
    %v2847 = vpack.c.b16 %v2763, %v2761
    %v2848 = vpack.c.b16 %v2764, %v2762
    %v2849 = vpack.c.b16 %v2767, %v2765
    %v2850 = vpack.c.b16 %v2768, %v2766
    %v2851 = vpack.c.b16 %v2771, %v2769
    %v2852 = vpack.c.b16 %v2772, %v2770
    %v2853 = vpack.c.b16 %v2775, %v2773
    %v2854 = vpack.c.b16 %v2776, %v2774
    %v2855 = vpack.c.b16 %v2779, %v2777
    %v2856 = vpack.c.b16 %v2780, %v2778
    %v2857 = vpack.c.b16 %v2783, %v2781
    %v2858 = vpack.c.b16 %v2784, %v2782
    %v2859 = vpack.c.b16 %v2787, %v2785
    %v2860 = vpack.c.b16 %v2788, %v2786
    %v2861 = vpack.c.b16 %v2791, %v2789
    %v2862 = vpack.c.b16 %v2792, %v2790
    %v2863 = vpack.c.b16 %v2795, %v2793
    %v2864 = vpack.c.b16 %v2796, %v2794
    %v2865 = vpack.c.b16 %v2799, %v2797
    %v2866 = vpack.c.b16 %v2800, %v2798
    %v2867 = vpack.c.b16 %v2803, %v2801
    %v2868 = vpack.c.b16 %v2804, %v2802
    %v2965 = vunpack.c.l.b16 %v2645
    %v2966 = vunpack.c.l.b16 %v2646
    %v2967 = vunpack.c.l.b16 %v2647
    %v2968 = vunpack.c.l.b16 %v2648
    %v2969 = vunpack.c.l.b16 %v2649
    %v2970 = vunpack.c.l.b16 %v2650
    %v2971 = vunpack.c.l.b16 %v2651
    %v2972 = vunpack.c.l.b16 %v2652
    %v2973 = vunpack.c.l.b16 %v2653
    %v2974 = vunpack.c.l.b16 %v2654
    %v2975 = vunpack.c.l.b16 %v2655
    %v2976 = vunpack.c.l.b16 %v2656
    %v2977 = vunpack.c.l.b16 %v2657
    %v2978 = vunpack.c.l.b16 %v2658
    %v2979 = vunpack.c.l.b16 %v2659
    %v2980 = vunpack.c.l.b16 %v2660
    %v2981 = vunpack.c.l.b16 %v2661
    %v2982 = vunpack.c.l.b16 %v2662
    %v2983 = vunpack.c.l.b16 %v2663
    %v2984 = vunpack.c.l.b16 %v2664
    %v2985 = vunpack.c.l.b16 %v2665
    %v2986 = vunpack.c.l.b16 %v2666
    %v2987 = vunpack.c.l.b16 %v2667
    %v2988 = vunpack.c.l.b16 %v2668
    %v2989 = vunpack.c.l.b16 %v2669
    %v2990 = vunpack.c.l.b16 %v2670
    %v2991 = vunpack.c.l.b16 %v2671
    %v2992 = vunpack.c.l.b16 %v2672
    %v2993 = vunpack.c.l.b16 %v2673
    %v2994 = vunpack.c.l.b16 %v2674
    %v2995 = vunpack.c.l.b16 %v2675
    %v2996 = vunpack.c.l.b16 %v2676
    %v2997 = vpack.c.b16 %v2966, %v2965
    %v2998 = vpack.c.b16 %v2968, %v2967
    %v2999 = vpack.c.b16 %v2970, %v2969
    %v3000 = vpack.c.b16 %v2972, %v2971
    %v3001 = vpack.c.b16 %v2974, %v2973
    %v3002 = vpack.c.b16 %v2976, %v2975
    %v3003 = vpack.c.b16 %v2978, %v2977
    %v3004 = vpack.c.b16 %v2980, %v2979
    %v3005 = vpack.c.b16 %v2982, %v2981
    %v3006 = vpack.c.b16 %v2984, %v2983
    %v3007 = vpack.c.b16 %v2986, %v2985
    %v3008 = vpack.c.b16 %v2988, %v2987
    %v3009 = vpack.c.b16 %v2990, %v2989
    %v3010 = vpack.c.b16 %v2992, %v2991
    %v3011 = vpack.c.b16 %v2994, %v2993
    %v3012 = vpack.c.b16 %v2996, %v2995
    %3029 = vmatprep.subr.bf16.mxu0 0
    %3030 = vmatpush1.bf16.msra.mxu0 %v2997
    %3031 = vmatprep.subr.bf16.mxu0 0
    %3032 = vmatpush1.bf16.msra.mxu0 %v2998
    %3033 = vmatprep.subr.bf16.mxu0 0
    %3034 = vmatpush1.bf16.msra.mxu0 %v2999
    %3035 = vmatprep.subr.bf16.mxu0 0
    %3036 = vmatpush1.bf16.msra.mxu0 %v3000
    %3037 = vmatprep.subr.bf16.mxu0 0
    %3038 = vmatpush1.bf16.msra.mxu0 %v3001
    %3039 = vmatprep.subr.bf16.mxu0 0
    %3040 = vmatpush1.bf16.msra.mxu0 %v3002
    %3041 = vmatprep.subr.bf16.mxu0 0
    %3042 = vmatpush1.bf16.msra.mxu0 %v3003
    %3043 = vmatprep.subr.bf16.mxu0 0
    %3044 = vmatpush1.bf16.msra.mxu0 %v3004
    %3045 = vmatprep.subr.bf16.mxu0 0
    %3046 = vmatpush1.bf16.msra.mxu0 %v3005
    %3047 = vmatprep.subr.bf16.mxu0 0
    %3048 = vmatpush1.bf16.msra.mxu0 %v3006
    %3049 = vmatprep.subr.bf16.mxu0 0
    %3050 = vmatpush1.bf16.msra.mxu0 %v3007
    %3051 = vmatprep.subr.bf16.mxu0 0
    %3052 = vmatpush1.bf16.msra.mxu0 %v3008
    %3053 = vmatprep.subr.bf16.mxu0 0
    %3054 = vmatpush1.bf16.msra.mxu0 %v3009
    %3055 = vmatprep.subr.bf16.mxu0 0
    %3056 = vmatpush1.bf16.msra.mxu0 %v3010
    %3057 = vmatprep.subr.bf16.mxu0 0
    %3058 = vmatpush1.bf16.msra.mxu0 %v3011
    %3059 = vmatprep.subr.bf16.mxu0 0
    %3060 = vmatpush1.bf16.msra.mxu0 %v3012
    %3061 = vmatprep.mubr.bf16.mxu0 %v2806
    %3062 = vmatmul.mubr.bf16.gmra.mrb[0].mxu0 %v2805
    %v3063 = vpop.f32.mrb[0].mxu0
    %v3064 = vadd.f32 0.0, %v3063
    %v3065 = vpop.f32.mrb[0].mxu0
    %v3066 = vpop.f32.mrb[0].mxu0
    %v3067 = vadd.f32 0.0, %v3066
    %v3068 = vpop.f32.mrb[0].mxu0
    %3069 = vmatprep.mubr.bf16.mxu0 %v2808
    %3070 = vmatmul.mubr.bf16.gmra.mrb[0].mxu0 %v2807
    %v3071 = vpop.f32.mrb[0].mxu0
    %v3072 = vadd.f32 0.0, %v3071
    %v3073 = vpop.f32.mrb[0].mxu0
    %v3074 = vpop.f32.mrb[0].mxu0
    %v3075 = vadd.f32 0.0, %v3074
    %v3076 = vpop.f32.mrb[0].mxu0
    %3077 = vmatprep.mubr.bf16.mxu0 %v2810
    %3078 = vmatmul.mubr.bf16.gmra.mrb[0].mxu0 %v2809
    %v3079 = vpop.f32.mrb[0].mxu0
    %v3080 = vadd.f32 0.0, %v3079
    %v3081 = vpop.f32.mrb[0].mxu0
    %v3082 = vpop.f32.mrb[0].mxu0
    %v3083 = vadd.f32 0.0, %v3082
    %v3084 = vpop.f32.mrb[0].mxu0
    %3085 = vmatprep.mubr.bf16.mxu0 %v2812
    %3086 = vmatmul.mubr.bf16.gmra.mrb[0].mxu0 %v2811
    %v3087 = vpop.f32.mrb[0].mxu0
    %v3088 = vadd.f32 0.0, %v3087
    %v3089 = vpop.f32.mrb[0].mxu0
    %v3090 = vpop.f32.mrb[0].mxu0
    %v3091 = vadd.f32 0.0, %v3090
    %v3092 = vpop.f32.mrb[0].mxu0
    %3093 = vmatprep.mubr.bf16.mxu0 %v2814
    %3094 = vmatmul.mubr.bf16.gmra.mrb[0].mxu0 %v2813
    %v3095 = vpop.f32.mrb[0].mxu0
    %v3096 = vadd.f32 0.0, %v3095
    %v3097 = vpop.f32.mrb[0].mxu0
    %v3098 = vpop.f32.mrb[0].mxu0
    %v3099 = vadd.f32 0.0, %v3098
    %v3100 = vpop.f32.mrb[0].mxu0
    %3101 = vmatprep.mubr.bf16.mxu0 %v2816
    %3102 = vmatmul.mubr.bf16.gmra.mrb[0].mxu0 %v2815
    %v3103 = vpop.f32.mrb[0].mxu0
    %v3104 = vadd.f32 0.0, %v3103
    %v3105 = vpop.f32.mrb[0].mxu0
    %v3106 = vpop.f32.mrb[0].mxu0
    %v3107 = vadd.f32 0.0, %v3106
    %v3108 = vpop.f32.mrb[0].mxu0
    %3109 = vmatprep.mubr.bf16.mxu0 %v2818
    %3110 = vmatmul.mubr.bf16.gmra.mrb[0].mxu0 %v2817
    %v3111 = vpop.f32.mrb[0].mxu0
    %v3112 = vadd.f32 0.0, %v3111
    %v3113 = vpop.f32.mrb[0].mxu0
    %v3114 = vpop.f32.mrb[0].mxu0
    %v3115 = vadd.f32 0.0, %v3114
    %v3116 = vpop.f32.mrb[0].mxu0
    %3117 = vmatprep.mubr.bf16.mxu0 %v2820
    %3118 = vmatmul.mubr.bf16.gmra.mrb[0].mxu0 %v2819
    %v3119 = vpop.f32.mrb[0].mxu0
    %v3120 = vadd.f32 0.0, %v3119
    %v3121 = vpop.f32.mrb[0].mxu0
    %v3122 = vpop.f32.mrb[0].mxu0
    %v3123 = vadd.f32 0.0, %v3122
    %v3124 = vpop.f32.mrb[0].mxu0
    %3125 = vmatprep.mubr.bf16.mxu0 %v2822
    %3126 = vmatmul.mubr.bf16.gmra.mrb[0].mxu0 %v2821
    %v3127 = vpop.f32.mrb[0].mxu0
    %v3128 = vadd.f32 0.0, %v3127
    %v3129 = vpop.f32.mrb[0].mxu0
    %v3130 = vpop.f32.mrb[0].mxu0
    %v3131 = vadd.f32 0.0, %v3130
    %v3132 = vpop.f32.mrb[0].mxu0
    %3133 = vmatprep.mubr.bf16.mxu0 %v2824
    %3134 = vmatmul.mubr.bf16.gmra.mrb[0].mxu0 %v2823
    %v3135 = vpop.f32.mrb[0].mxu0
    %v3136 = vadd.f32 0.0, %v3135
    %v3137 = vpop.f32.mrb[0].mxu0
    %v3138 = vpop.f32.mrb[0].mxu0
    %v3139 = vadd.f32 0.0, %v3138
    %v3140 = vpop.f32.mrb[0].mxu0
    %3141 = vmatprep.mubr.bf16.mxu0 %v2826
    %3142 = vmatmul.mubr.bf16.gmra.mrb[0].mxu0 %v2825
    %v3143 = vpop.f32.mrb[0].mxu0
    %v3144 = vadd.f32 0.0, %v3143
    %v3145 = vpop.f32.mrb[0].mxu0
    %v3146 = vpop.f32.mrb[0].mxu0
    %v3147 = vadd.f32 0.0, %v3146
    %v3148 = vpop.f32.mrb[0].mxu0
    %3149 = vmatprep.mubr.bf16.mxu0 %v2828
    %3150 = vmatmul.mubr.bf16.gmra.mrb[0].mxu0 %v2827
    %v3151 = vpop.f32.mrb[0].mxu0
    %v3152 = vadd.f32 0.0, %v3151
    %v3153 = vpop.f32.mrb[0].mxu0
    %v3154 = vpop.f32.mrb[0].mxu0
    %v3155 = vadd.f32 0.0, %v3154
    %v3156 = vpop.f32.mrb[0].mxu0
    %3157 = vmatprep.mubr.bf16.mxu0 %v2830
    %3158 = vmatmul.mubr.bf16.gmra.mrb[0].mxu0 %v2829
    %v3159 = vpop.f32.mrb[0].mxu0
    %v3160 = vadd.f32 0.0, %v3159
    %v3161 = vpop.f32.mrb[0].mxu0
    %v3162 = vpop.f32.mrb[0].mxu0
    %v3163 = vadd.f32 0.0, %v3162
    %v3164 = vpop.f32.mrb[0].mxu0
    %3165 = vmatprep.mubr.bf16.mxu0 %v2832
    %3166 = vmatmul.mubr.bf16.gmra.mrb[0].mxu0 %v2831
    %v3167 = vpop.f32.mrb[0].mxu0
    %v3168 = vadd.f32 0.0, %v3167
    %v3169 = vpop.f32.mrb[0].mxu0
    %v3170 = vpop.f32.mrb[0].mxu0
    %v3171 = vadd.f32 0.0, %v3170
    %v3172 = vpop.f32.mrb[0].mxu0
    %3173 = vmatprep.mubr.bf16.mxu0 %v2834
    %3174 = vmatmul.mubr.bf16.gmra.mrb[0].mxu0 %v2833
    %v3175 = vpop.f32.mrb[0].mxu0
    %v3176 = vadd.f32 0.0, %v3175
    %v3177 = vpop.f32.mrb[0].mxu0
    %v3178 = vpop.f32.mrb[0].mxu0
    %v3179 = vadd.f32 0.0, %v3178
    %v3180 = vpop.f32.mrb[0].mxu0
    %3181 = vmatprep.mubr.bf16.mxu0 %v2836
    %3182 = vmatmul.mubr.bf16.gmra.mrb[0].mxu0 %v2835
    %v3183 = vpop.f32.mrb[0].mxu0
    %v3184 = vadd.f32 0.0, %v3183
    %v3185 = vpop.f32.mrb[0].mxu0
    %v3186 = vpop.f32.mrb[0].mxu0
    %v3187 = vadd.f32 0.0, %v3186
    %v3188 = vpop.f32.mrb[0].mxu0
    %3189 = vmatprep.mubr.bf16.mxu0 %v2838
    %3190 = vmatmul.mubr.bf16.gmra.mrb[0].mxu0 %v2837
    %v3191 = vpop.f32.mrb[0].mxu0
    %v3192 = vadd.f32 0.0, %v3191
    %v3193 = vpop.f32.mrb[0].mxu0
    %v3194 = vpop.f32.mrb[0].mxu0
    %v3195 = vadd.f32 0.0, %v3194
    %v3196 = vpop.f32.mrb[0].mxu0
    %3197 = vmatprep.mubr.bf16.mxu0 %v2840
    %3198 = vmatmul.mubr.bf16.gmra.mrb[0].mxu0 %v2839
    %v3199 = vpop.f32.mrb[0].mxu0
    %v3200 = vadd.f32 0.0, %v3199
    %v3201 = vpop.f32.mrb[0].mxu0
    %v3202 = vpop.f32.mrb[0].mxu0
    %v3203 = vadd.f32 0.0, %v3202
    %v3204 = vpop.f32.mrb[0].mxu0
    %3205 = vmatprep.mubr.bf16.mxu0 %v2842
    %3206 = vmatmul.mubr.bf16.gmra.mrb[0].mxu0 %v2841
    %v3207 = vpop.f32.mrb[0].mxu0
    %v3208 = vadd.f32 0.0, %v3207
    %v3209 = vpop.f32.mrb[0].mxu0
    %v3210 = vpop.f32.mrb[0].mxu0
    %v3211 = vadd.f32 0.0, %v3210
    %v3212 = vpop.f32.mrb[0].mxu0
    %3213 = vmatprep.mubr.bf16.mxu0 %v2844
    %3214 = vmatmul.mubr.bf16.gmra.mrb[0].mxu0 %v2843
    %v3215 = vpop.f32.mrb[0].mxu0
    %v3216 = vadd.f32 0.0, %v3215
    %v3217 = vpop.f32.mrb[0].mxu0
    %v3218 = vpop.f32.mrb[0].mxu0
    %v3219 = vadd.f32 0.0, %v3218
    %v3220 = vpop.f32.mrb[0].mxu0
    %3221 = vmatprep.mubr.bf16.mxu0 %v2846
    %3222 = vmatmul.mubr.bf16.gmra.mrb[0].mxu0 %v2845
    %v3223 = vpop.f32.mrb[0].mxu0
    %v3224 = vadd.f32 0.0, %v3223
    %v3225 = vpop.f32.mrb[0].mxu0
    %v3226 = vpop.f32.mrb[0].mxu0
    %v3227 = vadd.f32 0.0, %v3226
    %v3228 = vpop.f32.mrb[0].mxu0
    %3229 = vmatprep.mubr.bf16.mxu0 %v2848
    %3230 = vmatmul.mubr.bf16.gmra.mrb[0].mxu0 %v2847
    %v3231 = vpop.f32.mrb[0].mxu0
    %v3232 = vadd.f32 0.0, %v3231
    %v3233 = vpop.f32.mrb[0].mxu0
    %v3234 = vpop.f32.mrb[0].mxu0
    %v3235 = vadd.f32 0.0, %v3234
    %v3236 = vpop.f32.mrb[0].mxu0
    %3237 = vmatprep.mubr.bf16.mxu0 %v2850
    %3238 = vmatmul.mubr.bf16.gmra.mrb[0].mxu0 %v2849
    %v3239 = vpop.f32.mrb[0].mxu0
    %v3240 = vadd.f32 0.0, %v3239
    %v3241 = vpop.f32.mrb[0].mxu0
    %v3242 = vpop.f32.mrb[0].mxu0
    %v3243 = vadd.f32 0.0, %v3242
    %v3244 = vpop.f32.mrb[0].mxu0
    %3245 = vmatprep.mubr.bf16.mxu0 %v2852
    %3246 = vmatmul.mubr.bf16.gmra.mrb[0].mxu0 %v2851
    %v3247 = vpop.f32.mrb[0].mxu0
    %v3248 = vadd.f32 0.0, %v3247
    %v3249 = vpop.f32.mrb[0].mxu0
    %v3250 = vpop.f32.mrb[0].mxu0
    %v3251 = vadd.f32 0.0, %v3250
    %v3252 = vpop.f32.mrb[0].mxu0
    %3253 = vmatprep.mubr.bf16.mxu0 %v2854
    %3254 = vmatmul.mubr.bf16.gmra.mrb[0].mxu0 %v2853
    %v3255 = vpop.f32.mrb[0].mxu0
    %v3256 = vadd.f32 0.0, %v3255
    %v3257 = vpop.f32.mrb[0].mxu0
    %v3258 = vpop.f32.mrb[0].mxu0
    %v3259 = vadd.f32 0.0, %v3258
    %v3260 = vpop.f32.mrb[0].mxu0
    %3261 = vmatprep.mubr.bf16.mxu0 %v2856
    %3262 = vmatmul.mubr.bf16.gmra.mrb[0].mxu0 %v2855
    %v3263 = vpop.f32.mrb[0].mxu0
    %v3264 = vadd.f32 0.0, %v3263
    %v3265 = vpop.f32.mrb[0].mxu0
    %v3266 = vpop.f32.mrb[0].mxu0
    %v3267 = vadd.f32 0.0, %v3266
    %v3268 = vpop.f32.mrb[0].mxu0
    %3269 = vmatprep.mubr.bf16.mxu0 %v2858
    %3270 = vmatmul.mubr.bf16.gmra.mrb[0].mxu0 %v2857
    %v3271 = vpop.f32.mrb[0].mxu0
    %v3272 = vadd.f32 0.0, %v3271
    %v3273 = vpop.f32.mrb[0].mxu0
    %v3274 = vpop.f32.mrb[0].mxu0
    %v3275 = vadd.f32 0.0, %v3274
    %v3276 = vpop.f32.mrb[0].mxu0
    %3277 = vmatprep.mubr.bf16.mxu0 %v2860
    %3278 = vmatmul.mubr.bf16.gmra.mrb[0].mxu0 %v2859
    %v3279 = vpop.f32.mrb[0].mxu0
    %v3280 = vadd.f32 0.0, %v3279
    %v3281 = vpop.f32.mrb[0].mxu0
    %v3282 = vpop.f32.mrb[0].mxu0
    %v3283 = vadd.f32 0.0, %v3282
    %v3284 = vpop.f32.mrb[0].mxu0
    %3285 = vmatprep.mubr.bf16.mxu0 %v2862
    %3286 = vmatmul.mubr.bf16.gmra.mrb[0].mxu0 %v2861
    %v3287 = vpop.f32.mrb[0].mxu0
    %v3288 = vadd.f32 0.0, %v3287
    %v3289 = vpop.f32.mrb[0].mxu0
    %v3290 = vpop.f32.mrb[0].mxu0
    %v3291 = vadd.f32 0.0, %v3290
    %v3292 = vpop.f32.mrb[0].mxu0
    %3293 = vmatprep.mubr.bf16.mxu0 %v2864
    %3294 = vmatmul.mubr.bf16.gmra.mrb[0].mxu0 %v2863
    %v3295 = vpop.f32.mrb[0].mxu0
    %v3296 = vadd.f32 0.0, %v3295
    %v3297 = vpop.f32.mrb[0].mxu0
    %v3298 = vpop.f32.mrb[0].mxu0
    %v3299 = vadd.f32 0.0, %v3298
    %v3300 = vpop.f32.mrb[0].mxu0
    %3301 = vmatprep.mubr.bf16.mxu0 %v2866
    %3302 = vmatmul.mubr.bf16.gmra.mrb[0].mxu0 %v2865
    %v3303 = vpop.f32.mrb[0].mxu0
    %v3304 = vadd.f32 0.0, %v3303
    %v3305 = vpop.f32.mrb[0].mxu0
    %v3306 = vpop.f32.mrb[0].mxu0
    %v3307 = vadd.f32 0.0, %v3306
    %v3308 = vpop.f32.mrb[0].mxu0
    %3309 = vmatprep.mubr.bf16.mxu0 %v2868
    %3310 = vmatmul.mubr.bf16.gmra.mrb[0].mxu0 %v2867
    %v3311 = vpop.f32.mrb[0].mxu0
    %v3312 = vadd.f32 0.0, %v3311
    %v3313 = vpop.f32.mrb[0].mxu0
    %v3314 = vpop.f32.mrb[0].mxu0
    %v3315 = vadd.f32 0.0, %v3314
    %v3316 = vpop.f32.mrb[0].mxu0
    %3317 = vdwg.mxu0
    %v3318 = vadd.f32 %v1701, %v3064
    %v3319 = vadd.f32 %v1702, %v3067
    %v3320 = vadd.f32 %v1703, %v3072
    %v3321 = vadd.f32 %v1704, %v3075
    %v3322 = vadd.f32 %v1705, %v3080
    %v3323 = vadd.f32 %v1706, %v3083
    %v3324 = vadd.f32 %v1707, %v3088
    %v3325 = vadd.f32 %v1708, %v3091
    %v3326 = vadd.f32 %v1709, %v3096
    %v3327 = vadd.f32 %v1710, %v3099
    %v3328 = vadd.f32 %v1711, %v3104
    %v3329 = vadd.f32 %v1712, %v3107
    %v3330 = vadd.f32 %v1713, %v3112
    %v3331 = vadd.f32 %v1714, %v3115
    %v3332 = vadd.f32 %v1715, %v3120
    %v3333 = vadd.f32 %v1716, %v3123
    %v3334 = vadd.f32 %v1717, %v3128
    %v3335 = vadd.f32 %v1718, %v3131
    %v3336 = vadd.f32 %v1719, %v3136
    %v3337 = vadd.f32 %v1720, %v3139
    %v3338 = vadd.f32 %v1721, %v3144
    %v3339 = vadd.f32 %v1722, %v3147
    %v3340 = vadd.f32 %v1723, %v3152
    %v3341 = vadd.f32 %v1724, %v3155
    %v3342 = vadd.f32 %v1725, %v3160
    %v3343 = vadd.f32 %v1726, %v3163
    %v3344 = vadd.f32 %v1727, %v3168
    %v3345 = vadd.f32 %v1728, %v3171
    %v3346 = vadd.f32 %v1729, %v3176
    %v3347 = vadd.f32 %v1730, %v3179
    %v3348 = vadd.f32 %v1731, %v3184
    %v3349 = vadd.f32 %v1732, %v3187
    %v3350 = vadd.f32 %v1733, %v3192
    %v3351 = vadd.f32 %v1734, %v3195
    %v3352 = vadd.f32 %v1735, %v3200
    %v3353 = vadd.f32 %v1736, %v3203
    %v3354 = vadd.f32 %v1737, %v3208
    %v3355 = vadd.f32 %v1738, %v3211
    %v3356 = vadd.f32 %v1739, %v3216
    %v3357 = vadd.f32 %v1740, %v3219
    %v3358 = vadd.f32 %v1741, %v3224
    %v3359 = vadd.f32 %v1742, %v3227
    %v3360 = vadd.f32 %v1743, %v3232
    %v3361 = vadd.f32 %v1744, %v3235
    %v3362 = vadd.f32 %v1745, %v3240
    %v3363 = vadd.f32 %v1746, %v3243
    %v3364 = vadd.f32 %v1747, %v3248
    %v3365 = vadd.f32 %v1748, %v3251
    %v3366 = vadd.f32 %v1749, %v3256
    %v3367 = vadd.f32 %v1750, %v3259
    %v3368 = vadd.f32 %v1751, %v3264
    %v3369 = vadd.f32 %v1752, %v3267
    %v3370 = vadd.f32 %v1753, %v3272
    %v3371 = vadd.f32 %v1754, %v3275
    %v3372 = vadd.f32 %v1755, %v3280
    %v3373 = vadd.f32 %v1756, %v3283
    %v3374 = vadd.f32 %v1757, %v3288
    %v3375 = vadd.f32 %v1758, %v3291
    %v3376 = vadd.f32 %v1759, %v3296
    %v3377 = vadd.f32 %v1760, %v3299
    %v3378 = vadd.f32 %v1761, %v3304
    %v3379 = vadd.f32 %v1762, %v3307
    %v3380 = vadd.f32 %v1763, %v3312
    %v3381 = vadd.f32 %v1764, %v3315
    %v3383 = vshrl.u32 %v1813, 16
    %v3385 = vrot.slane %v3383, 4
    %v3386 = vshll.u32 %v1813, 16
    %v3388 = vrot.slane %v3386, 5
    %v3389 = vor.u32 %v3385, %v3388
    %v3390 = vrot.slane %v3389, 4
    %v3392 = vshll.u32 %v1814, 16
    %v3394 = vrot.slane %v3392, 5
    %v3395 = vsel %vm1875, %v3390, %v3394
    %v3396 = vshrl.u32 %v1814, 16
    %v3398 = vrot.slane %v3396, 4
    %v3399 = vor.u32 %v3398, %v3394
    %v3400 = vrot.slane %v3399, 4
    %v3402 = vshll.u32 %v1815, 16
    %v3404 = vrot.slane %v3402, 5
    %v3405 = vsel %vm1875, %v3400, %v3404
    %v3407 = vshrl.u32 %v1867, 16
    %v3409 = vrot.slane %v3407, 4
    %v3410 = vshll.u32 %v1867, 16
    %v3412 = vrot.slane %v3410, 5
    %v3413 = vor.u32 %v3409, %v3412
    %v3414 = vrot.slane %v3413, 4
    %v3416 = vshll.u32 %v1868, 16
    %v3418 = vrot.slane %v3416, 5
    %v3419 = vsel %vm1875, %v3414, %v3418
    %v3420 = vshrl.u32 %v1868, 16
    %v3422 = vrot.slane %v3420, 4
    %v3423 = vor.u32 %v3422, %v3418
    %v3424 = vrot.slane %v3423, 4
    %v3426 = vshll.u32 %v1869, 16
    %v3428 = vrot.slane %v3426, 5
    %v3429 = vsel %vm1875, %v3424, %v3428
    %s3430 = scalar_lea.vmem %s1, 512
    %v3431 = vld [vmem:[%s3430] sm:$0xf]
    %v3432 = vld [vmem:[%s3430 + $0x4] sm:$0xf]
    %v3433 = vld [vmem:[%s3430 + $0x8] sm:$0xf]
    %v3434 = vld [vmem:[%s3430 + $0xc] sm:$0xf]
    %v3435 = vld [vmem:[%s3430 + $0x10] sm:$0xf]
    %v3436 = vld [vmem:[%s3430 + $0x14] sm:$0xf]
    %v3437 = vld [vmem:[%s3430 + $0x18] sm:$0xf]
    %v3438 = vld [vmem:[%s3430 + $0x1c] sm:$0xf]
    %v3439 = vld [vmem:[%s3430 + $0x20] sm:$0xf]
    %v3440 = vld [vmem:[%s3430 + $0x24] sm:$0xf]
    %v3441 = vld [vmem:[%s3430 + $0x28] sm:$0xf]
    %v3442 = vld [vmem:[%s3430 + $0x2c] sm:$0xf]
    %v3443 = vld [vmem:[%s3430 + $0x30] sm:$0xf]
    %v3444 = vld [vmem:[%s3430 + $0x34] sm:$0xf]
    %v3445 = vld [vmem:[%s3430 + $0x38] sm:$0xf]
    %v3446 = vld [vmem:[%s3430 + $0x3c] sm:$0xf]
    %v3447 = vld [vmem:[%s3430 + $0x40] sm:$0xf]
    %v3448 = vld [vmem:[%s3430 + $0x44] sm:$0xf]
    %v3449 = vld [vmem:[%s3430 + $0x48] sm:$0xf]
    %v3450 = vld [vmem:[%s3430 + $0x4c] sm:$0xf]
    %v3451 = vld [vmem:[%s3430 + $0x50] sm:$0xf]
    %v3452 = vld [vmem:[%s3430 + $0x54] sm:$0xf]
    %v3453 = vld [vmem:[%s3430 + $0x58] sm:$0xf]
    %v3454 = vld [vmem:[%s3430 + $0x5c] sm:$0xf]
    %v3455 = vld [vmem:[%s3430 + $0x60] sm:$0xf]
    %v3456 = vld [vmem:[%s3430 + $0x64] sm:$0xf]
    %v3457 = vld [vmem:[%s3430 + $0x68] sm:$0xf]
    %v3458 = vld [vmem:[%s3430 + $0x6c] sm:$0xf]
    %v3459 = vld [vmem:[%s3430 + $0x70] sm:$0xf]
    %v3460 = vld [vmem:[%s3430 + $0x74] sm:$0xf]
    %v3461 = vld [vmem:[%s3430 + $0x78] sm:$0xf]
    %v3462 = vld [vmem:[%s3430 + $0x7c] sm:$0xf]
    %v3463 = vunpack.c.l.b16 %v3395
    %v3464 = vunpack.c.h.b16 %v3395
    %v3465 = vunpack.c.l.b16 %v3405
    %v3466 = vunpack.c.h.b16 %v3405
    %v3467 = vunpack.c.l.b16 %v3419
    %v3468 = vunpack.c.h.b16 %v3419
    %v3469 = vunpack.c.l.b16 %v3429
    %v3470 = vunpack.c.h.b16 %v3429
    %v3471 = vpack.c.b16 %v3465, %v3463
    %v3472 = vpack.c.b16 %v3466, %v3464
    %v3473 = vpack.c.b16 %v3469, %v3467
    %v3474 = vpack.c.b16 %v3470, %v3468
    %v3511 = vunpack.c.l.b16 %v3431
    %v3512 = vunpack.c.l.b16 %v3432
    %v3513 = vunpack.c.l.b16 %v3433
    %v3514 = vunpack.c.l.b16 %v3434
    %v3515 = vunpack.c.l.b16 %v3435
    %v3516 = vunpack.c.l.b16 %v3436
    %v3517 = vunpack.c.l.b16 %v3437
    %v3518 = vunpack.c.l.b16 %v3438
    %v3519 = vunpack.c.l.b16 %v3439
    %v3520 = vunpack.c.l.b16 %v3440
    %v3521 = vunpack.c.l.b16 %v3441
    %v3522 = vunpack.c.l.b16 %v3442
    %v3523 = vunpack.c.l.b16 %v3443
    %v3524 = vunpack.c.l.b16 %v3444
    %v3525 = vunpack.c.l.b16 %v3445
    %v3526 = vunpack.c.l.b16 %v3446
    %v3527 = vunpack.c.l.b16 %v3447
    %v3528 = vunpack.c.l.b16 %v3448
    %v3529 = vunpack.c.l.b16 %v3449
    %v3530 = vunpack.c.l.b16 %v3450
    %v3531 = vunpack.c.l.b16 %v3451
    %v3532 = vunpack.c.l.b16 %v3452
    %v3533 = vunpack.c.l.b16 %v3453
    %v3534 = vunpack.c.l.b16 %v3454
    %v3535 = vunpack.c.l.b16 %v3455
    %v3536 = vunpack.c.l.b16 %v3456
    %v3537 = vunpack.c.l.b16 %v3457
    %v3538 = vunpack.c.l.b16 %v3458
    %v3539 = vunpack.c.l.b16 %v3459
    %v3540 = vunpack.c.l.b16 %v3460
    %v3541 = vunpack.c.l.b16 %v3461
    %v3542 = vunpack.c.l.b16 %v3462
    %v3543 = vpack.c.b16 %v3512, %v3511
    %v3544 = vpack.c.b16 %v3514, %v3513
    %v3545 = vpack.c.b16 %v3516, %v3515
    %v3546 = vpack.c.b16 %v3518, %v3517
    %v3547 = vpack.c.b16 %v3520, %v3519
    %v3548 = vpack.c.b16 %v3522, %v3521
    %v3549 = vpack.c.b16 %v3524, %v3523
    %v3550 = vpack.c.b16 %v3526, %v3525
    %v3551 = vpack.c.b16 %v3528, %v3527
    %v3552 = vpack.c.b16 %v3530, %v3529
    %v3553 = vpack.c.b16 %v3532, %v3531
    %v3554 = vpack.c.b16 %v3534, %v3533
    %v3555 = vpack.c.b16 %v3536, %v3535
    %v3556 = vpack.c.b16 %v3538, %v3537
    %v3557 = vpack.c.b16 %v3540, %v3539
    %v3558 = vpack.c.b16 %v3542, %v3541
    %3575 = vmatprep.subr.bf16.mxu0 0
    %3576 = vmatpush1.bf16.msra.mxu0 %v3543
    %3577 = vmatprep.subr.bf16.mxu0 0
    %3578 = vmatpush1.bf16.msra.mxu0 %v3544
    %3579 = vmatprep.subr.bf16.mxu0 0
    %3580 = vmatpush1.bf16.msra.mxu0 %v3545
    %3581 = vmatprep.subr.bf16.mxu0 0
    %3582 = vmatpush1.bf16.msra.mxu0 %v3546
    %3583 = vmatprep.subr.bf16.mxu0 0
    %3584 = vmatpush1.bf16.msra.mxu0 %v3547
    %3585 = vmatprep.subr.bf16.mxu0 0
    %3586 = vmatpush1.bf16.msra.mxu0 %v3548
    %3587 = vmatprep.subr.bf16.mxu0 0
    %3588 = vmatpush1.bf16.msra.mxu0 %v3549
    %3589 = vmatprep.subr.bf16.mxu0 0
    %3590 = vmatpush1.bf16.msra.mxu0 %v3550
    %3591 = vmatprep.subr.bf16.mxu0 0
    %3592 = vmatpush1.bf16.msra.mxu0 %v3551
    %3593 = vmatprep.subr.bf16.mxu0 0
    %3594 = vmatpush1.bf16.msra.mxu0 %v3552
    %3595 = vmatprep.subr.bf16.mxu0 0
    %3596 = vmatpush1.bf16.msra.mxu0 %v3553
    %3597 = vmatprep.subr.bf16.mxu0 0
    %3598 = vmatpush1.bf16.msra.mxu0 %v3554
    %3599 = vmatprep.subr.bf16.mxu0 0
    %3600 = vmatpush1.bf16.msra.mxu0 %v3555
    %3601 = vmatprep.subr.bf16.mxu0 0
    %3602 = vmatpush1.bf16.msra.mxu0 %v3556
    %3603 = vmatprep.subr.bf16.mxu0 0
    %3604 = vmatpush1.bf16.msra.mxu0 %v3557
    %3605 = vmatprep.subr.bf16.mxu0 0
    %3606 = vmatpush1.bf16.msra.mxu0 %v3558
    %3607 = vmatprep.mubr.bf16.mxu0 %v2808
    %3608 = vmatmul.mubr.bf16.gmra.mrb[0].mxu0 %v2807
    %v3609 = vpop.f32.mrb[0].mxu0
    %v3610 = vadd.f32 0.0, %v3609
    %v3611 = vpop.f32.mrb[0].mxu0
    %v3612 = vpop.f32.mrb[0].mxu0
    %v3613 = vadd.f32 0.0, %v3612
    %v3614 = vpop.f32.mrb[0].mxu0
    %3615 = vmatprep.mubr.bf16.mxu0 %v2810
    %3616 = vmatmul.mubr.bf16.gmra.mrb[0].mxu0 %v2809
    %v3617 = vpop.f32.mrb[0].mxu0
    %v3618 = vadd.f32 0.0, %v3617
    %v3619 = vpop.f32.mrb[0].mxu0
    %v3620 = vpop.f32.mrb[0].mxu0
    %v3621 = vadd.f32 0.0, %v3620
    %v3622 = vpop.f32.mrb[0].mxu0
    %3623 = vmatprep.mubr.bf16.mxu0 %v2812
    %3624 = vmatmul.mubr.bf16.gmra.mrb[0].mxu0 %v2811
    %v3625 = vpop.f32.mrb[0].mxu0
    %v3626 = vadd.f32 0.0, %v3625
    %v3627 = vpop.f32.mrb[0].mxu0
    %v3628 = vpop.f32.mrb[0].mxu0
    %v3629 = vadd.f32 0.0, %v3628
    %v3630 = vpop.f32.mrb[0].mxu0
    %3631 = vmatprep.mubr.bf16.mxu0 %v2814
    %3632 = vmatmul.mubr.bf16.gmra.mrb[0].mxu0 %v2813
    %v3633 = vpop.f32.mrb[0].mxu0
    %v3634 = vadd.f32 0.0, %v3633
    %v3635 = vpop.f32.mrb[0].mxu0
    %v3636 = vpop.f32.mrb[0].mxu0
    %v3637 = vadd.f32 0.0, %v3636
    %v3638 = vpop.f32.mrb[0].mxu0
    %3639 = vmatprep.mubr.bf16.mxu0 %v2816
    %3640 = vmatmul.mubr.bf16.gmra.mrb[0].mxu0 %v2815
    %v3641 = vpop.f32.mrb[0].mxu0
    %v3642 = vadd.f32 0.0, %v3641
    %v3643 = vpop.f32.mrb[0].mxu0
    %v3644 = vpop.f32.mrb[0].mxu0
    %v3645 = vadd.f32 0.0, %v3644
    %v3646 = vpop.f32.mrb[0].mxu0
    %3647 = vmatprep.mubr.bf16.mxu0 %v2818
    %3648 = vmatmul.mubr.bf16.gmra.mrb[0].mxu0 %v2817
    %v3649 = vpop.f32.mrb[0].mxu0
    %v3650 = vadd.f32 0.0, %v3649
    %v3651 = vpop.f32.mrb[0].mxu0
    %v3652 = vpop.f32.mrb[0].mxu0
    %v3653 = vadd.f32 0.0, %v3652
    %v3654 = vpop.f32.mrb[0].mxu0
    %3655 = vmatprep.mubr.bf16.mxu0 %v2820
    %3656 = vmatmul.mubr.bf16.gmra.mrb[0].mxu0 %v2819
    %v3657 = vpop.f32.mrb[0].mxu0
    %v3658 = vadd.f32 0.0, %v3657
    %v3659 = vpop.f32.mrb[0].mxu0
    %v3660 = vpop.f32.mrb[0].mxu0
    %v3661 = vadd.f32 0.0, %v3660
    %v3662 = vpop.f32.mrb[0].mxu0
    %3663 = vmatprep.mubr.bf16.mxu0 %v2822
    %3664 = vmatmul.mubr.bf16.gmra.mrb[0].mxu0 %v2821
    %v3665 = vpop.f32.mrb[0].mxu0
    %v3666 = vadd.f32 0.0, %v3665
    %v3667 = vpop.f32.mrb[0].mxu0
    %v3668 = vpop.f32.mrb[0].mxu0
    %v3669 = vadd.f32 0.0, %v3668
    %v3670 = vpop.f32.mrb[0].mxu0
    %3671 = vmatprep.mubr.bf16.mxu0 %v2824
    %3672 = vmatmul.mubr.bf16.gmra.mrb[0].mxu0 %v2823
    %v3673 = vpop.f32.mrb[0].mxu0
    %v3674 = vadd.f32 0.0, %v3673
    %v3675 = vpop.f32.mrb[0].mxu0
    %v3676 = vpop.f32.mrb[0].mxu0
    %v3677 = vadd.f32 0.0, %v3676
    %v3678 = vpop.f32.mrb[0].mxu0
    %3679 = vmatprep.mubr.bf16.mxu0 %v2826
    %3680 = vmatmul.mubr.bf16.gmra.mrb[0].mxu0 %v2825
    %v3681 = vpop.f32.mrb[0].mxu0
    %v3682 = vadd.f32 0.0, %v3681
    %v3683 = vpop.f32.mrb[0].mxu0
    %v3684 = vpop.f32.mrb[0].mxu0
    %v3685 = vadd.f32 0.0, %v3684
    %v3686 = vpop.f32.mrb[0].mxu0
    %3687 = vmatprep.mubr.bf16.mxu0 %v2828
    %3688 = vmatmul.mubr.bf16.gmra.mrb[0].mxu0 %v2827
    %v3689 = vpop.f32.mrb[0].mxu0
    %v3690 = vadd.f32 0.0, %v3689
    %v3691 = vpop.f32.mrb[0].mxu0
    %v3692 = vpop.f32.mrb[0].mxu0
    %v3693 = vadd.f32 0.0, %v3692
    %v3694 = vpop.f32.mrb[0].mxu0
    %3695 = vmatprep.mubr.bf16.mxu0 %v2830
    %3696 = vmatmul.mubr.bf16.gmra.mrb[0].mxu0 %v2829
    %v3697 = vpop.f32.mrb[0].mxu0
    %v3698 = vadd.f32 0.0, %v3697
    %v3699 = vpop.f32.mrb[0].mxu0
    %v3700 = vpop.f32.mrb[0].mxu0
    %v3701 = vadd.f32 0.0, %v3700
    %v3702 = vpop.f32.mrb[0].mxu0
    %3703 = vmatprep.mubr.bf16.mxu0 %v2832
    %3704 = vmatmul.mubr.bf16.gmra.mrb[0].mxu0 %v2831
    %v3705 = vpop.f32.mrb[0].mxu0
    %v3706 = vadd.f32 0.0, %v3705
    %v3707 = vpop.f32.mrb[0].mxu0
    %v3708 = vpop.f32.mrb[0].mxu0
    %v3709 = vadd.f32 0.0, %v3708
    %v3710 = vpop.f32.mrb[0].mxu0
    %3711 = vmatprep.mubr.bf16.mxu0 %v2834
    %3712 = vmatmul.mubr.bf16.gmra.mrb[0].mxu0 %v2833
    %v3713 = vpop.f32.mrb[0].mxu0
    %v3714 = vadd.f32 0.0, %v3713
    %v3715 = vpop.f32.mrb[0].mxu0
    %v3716 = vpop.f32.mrb[0].mxu0
    %v3717 = vadd.f32 0.0, %v3716
    %v3718 = vpop.f32.mrb[0].mxu0
    %3719 = vmatprep.mubr.bf16.mxu0 %v2836
    %3720 = vmatmul.mubr.bf16.gmra.mrb[0].mxu0 %v2835
    %v3721 = vpop.f32.mrb[0].mxu0
    %v3722 = vadd.f32 0.0, %v3721
    %v3723 = vpop.f32.mrb[0].mxu0
    %v3724 = vpop.f32.mrb[0].mxu0
    %v3725 = vadd.f32 0.0, %v3724
    %v3726 = vpop.f32.mrb[0].mxu0
    %3727 = vmatprep.mubr.bf16.mxu0 %v3472
    %3728 = vmatmul.mubr.bf16.gmra.mrb[0].mxu0 %v3471
    %v3729 = vpop.f32.mrb[0].mxu0
    %v3730 = vadd.f32 0.0, %v3729
    %v3731 = vpop.f32.mrb[0].mxu0
    %v3732 = vpop.f32.mrb[0].mxu0
    %v3733 = vadd.f32 0.0, %v3732
    %v3734 = vpop.f32.mrb[0].mxu0
    %3735 = vmatprep.mubr.bf16.mxu0 %v2840
    %3736 = vmatmul.mubr.bf16.gmra.mrb[0].mxu0 %v2839
    %v3737 = vpop.f32.mrb[0].mxu0
    %v3738 = vadd.f32 0.0, %v3737
    %v3739 = vpop.f32.mrb[0].mxu0
    %v3740 = vpop.f32.mrb[0].mxu0
    %v3741 = vadd.f32 0.0, %v3740
    %v3742 = vpop.f32.mrb[0].mxu0
    %3743 = vmatprep.mubr.bf16.mxu0 %v2842
    %3744 = vmatmul.mubr.bf16.gmra.mrb[0].mxu0 %v2841
    %v3745 = vpop.f32.mrb[0].mxu0
    %v3746 = vadd.f32 0.0, %v3745
    %v3747 = vpop.f32.mrb[0].mxu0
    %v3748 = vpop.f32.mrb[0].mxu0
    %v3749 = vadd.f32 0.0, %v3748
    %v3750 = vpop.f32.mrb[0].mxu0
    %3751 = vmatprep.mubr.bf16.mxu0 %v2844
    %3752 = vmatmul.mubr.bf16.gmra.mrb[0].mxu0 %v2843
    %v3753 = vpop.f32.mrb[0].mxu0
    %v3754 = vadd.f32 0.0, %v3753
    %v3755 = vpop.f32.mrb[0].mxu0
    %v3756 = vpop.f32.mrb[0].mxu0
    %v3757 = vadd.f32 0.0, %v3756
    %v3758 = vpop.f32.mrb[0].mxu0
    %3759 = vmatprep.mubr.bf16.mxu0 %v2846
    %3760 = vmatmul.mubr.bf16.gmra.mrb[0].mxu0 %v2845
    %v3761 = vpop.f32.mrb[0].mxu0
    %v3762 = vadd.f32 0.0, %v3761
    %v3763 = vpop.f32.mrb[0].mxu0
    %v3764 = vpop.f32.mrb[0].mxu0
    %v3765 = vadd.f32 0.0, %v3764
    %v3766 = vpop.f32.mrb[0].mxu0
    %3767 = vmatprep.mubr.bf16.mxu0 %v2848
    %3768 = vmatmul.mubr.bf16.gmra.mrb[0].mxu0 %v2847
    %v3769 = vpop.f32.mrb[0].mxu0
    %v3770 = vadd.f32 0.0, %v3769
    %v3771 = vpop.f32.mrb[0].mxu0
    %v3772 = vpop.f32.mrb[0].mxu0
    %v3773 = vadd.f32 0.0, %v3772
    %v3774 = vpop.f32.mrb[0].mxu0
    %3775 = vmatprep.mubr.bf16.mxu0 %v2850
    %3776 = vmatmul.mubr.bf16.gmra.mrb[0].mxu0 %v2849
    %v3777 = vpop.f32.mrb[0].mxu0
    %v3778 = vadd.f32 0.0, %v3777
    %v3779 = vpop.f32.mrb[0].mxu0
    %v3780 = vpop.f32.mrb[0].mxu0
    %v3781 = vadd.f32 0.0, %v3780
    %v3782 = vpop.f32.mrb[0].mxu0
    %3783 = vmatprep.mubr.bf16.mxu0 %v2852
    %3784 = vmatmul.mubr.bf16.gmra.mrb[0].mxu0 %v2851
    %v3785 = vpop.f32.mrb[0].mxu0
    %v3786 = vadd.f32 0.0, %v3785
    %v3787 = vpop.f32.mrb[0].mxu0
    %v3788 = vpop.f32.mrb[0].mxu0
    %v3789 = vadd.f32 0.0, %v3788
    %v3790 = vpop.f32.mrb[0].mxu0
    %3791 = vmatprep.mubr.bf16.mxu0 %v2854
    %3792 = vmatmul.mubr.bf16.gmra.mrb[0].mxu0 %v2853
    %v3793 = vpop.f32.mrb[0].mxu0
    %v3794 = vadd.f32 0.0, %v3793
    %v3795 = vpop.f32.mrb[0].mxu0
    %v3796 = vpop.f32.mrb[0].mxu0
    %v3797 = vadd.f32 0.0, %v3796
    %v3798 = vpop.f32.mrb[0].mxu0
    %3799 = vmatprep.mubr.bf16.mxu0 %v2856
    %3800 = vmatmul.mubr.bf16.gmra.mrb[0].mxu0 %v2855
    %v3801 = vpop.f32.mrb[0].mxu0
    %v3802 = vadd.f32 0.0, %v3801
    %v3803 = vpop.f32.mrb[0].mxu0
    %v3804 = vpop.f32.mrb[0].mxu0
    %v3805 = vadd.f32 0.0, %v3804
    %v3806 = vpop.f32.mrb[0].mxu0
    %3807 = vmatprep.mubr.bf16.mxu0 %v2858
    %3808 = vmatmul.mubr.bf16.gmra.mrb[0].mxu0 %v2857
    %v3809 = vpop.f32.mrb[0].mxu0
    %v3810 = vadd.f32 0.0, %v3809
    %v3811 = vpop.f32.mrb[0].mxu0
    %v3812 = vpop.f32.mrb[0].mxu0
    %v3813 = vadd.f32 0.0, %v3812
    %v3814 = vpop.f32.mrb[0].mxu0
    %3815 = vmatprep.mubr.bf16.mxu0 %v2860
    %3816 = vmatmul.mubr.bf16.gmra.mrb[0].mxu0 %v2859
    %v3817 = vpop.f32.mrb[0].mxu0
    %v3818 = vadd.f32 0.0, %v3817
    %v3819 = vpop.f32.mrb[0].mxu0
    %v3820 = vpop.f32.mrb[0].mxu0
    %v3821 = vadd.f32 0.0, %v3820
    %v3822 = vpop.f32.mrb[0].mxu0
    %3823 = vmatprep.mubr.bf16.mxu0 %v2862
    %3824 = vmatmul.mubr.bf16.gmra.mrb[0].mxu0 %v2861
    %v3825 = vpop.f32.mrb[0].mxu0
    %v3826 = vadd.f32 0.0, %v3825
    %v3827 = vpop.f32.mrb[0].mxu0
    %v3828 = vpop.f32.mrb[0].mxu0
    %v3829 = vadd.f32 0.0, %v3828
    %v3830 = vpop.f32.mrb[0].mxu0
    %3831 = vmatprep.mubr.bf16.mxu0 %v2864
    %3832 = vmatmul.mubr.bf16.gmra.mrb[0].mxu0 %v2863
    %v3833 = vpop.f32.mrb[0].mxu0
    %v3834 = vadd.f32 0.0, %v3833
    %v3835 = vpop.f32.mrb[0].mxu0
    %v3836 = vpop.f32.mrb[0].mxu0
    %v3837 = vadd.f32 0.0, %v3836
    %v3838 = vpop.f32.mrb[0].mxu0
    %3839 = vmatprep.mubr.bf16.mxu0 %v2866
    %3840 = vmatmul.mubr.bf16.gmra.mrb[0].mxu0 %v2865
    %v3841 = vpop.f32.mrb[0].mxu0
    %v3842 = vadd.f32 0.0, %v3841
    %v3843 = vpop.f32.mrb[0].mxu0
    %v3844 = vpop.f32.mrb[0].mxu0
    %v3845 = vadd.f32 0.0, %v3844
    %v3846 = vpop.f32.mrb[0].mxu0
    %3847 = vmatprep.mubr.bf16.mxu0 %v2868
    %3848 = vmatmul.mubr.bf16.gmra.mrb[0].mxu0 %v2867
    %v3849 = vpop.f32.mrb[0].mxu0
    %v3850 = vadd.f32 0.0, %v3849
    %v3851 = vpop.f32.mrb[0].mxu0
    %v3852 = vpop.f32.mrb[0].mxu0
    %v3853 = vadd.f32 0.0, %v3852
    %v3854 = vpop.f32.mrb[0].mxu0
    %3855 = vmatprep.mubr.bf16.mxu0 %v3474
    %3856 = vmatmul.mubr.bf16.gmra.mrb[0].mxu0 %v3473
    %v3857 = vpop.f32.mrb[0].mxu0
    %v3858 = vadd.f32 0.0, %v3857
    %v3859 = vpop.f32.mrb[0].mxu0
    %v3860 = vpop.f32.mrb[0].mxu0
    %v3861 = vadd.f32 0.0, %v3860
    %v3862 = vpop.f32.mrb[0].mxu0
    %3863 = vdwg.mxu0
    %v3864 = vadd.f32 %v3318, %v3610
    %v3865 = vadd.f32 %v3319, %v3613
    %v3866 = vadd.f32 %v3320, %v3618
    %v3867 = vadd.f32 %v3321, %v3621
    %v3868 = vadd.f32 %v3322, %v3626
    %v3869 = vadd.f32 %v3323, %v3629
    %v3870 = vadd.f32 %v3324, %v3634
    %v3871 = vadd.f32 %v3325, %v3637
    %v3872 = vadd.f32 %v3326, %v3642
    %v3873 = vadd.f32 %v3327, %v3645
    %v3874 = vadd.f32 %v3328, %v3650
    %v3875 = vadd.f32 %v3329, %v3653
    %v3876 = vadd.f32 %v3330, %v3658
    %v3877 = vadd.f32 %v3331, %v3661
    %v3878 = vadd.f32 %v3332, %v3666
    %v3879 = vadd.f32 %v3333, %v3669
    %v3880 = vadd.f32 %v3334, %v3674
    %v3881 = vadd.f32 %v3335, %v3677
    %v3882 = vadd.f32 %v3336, %v3682
    %v3883 = vadd.f32 %v3337, %v3685
    %v3884 = vadd.f32 %v3338, %v3690
    %v3885 = vadd.f32 %v3339, %v3693
    %v3886 = vadd.f32 %v3340, %v3698
    %v3887 = vadd.f32 %v3341, %v3701
    %v3888 = vadd.f32 %v3342, %v3706
    %v3889 = vadd.f32 %v3343, %v3709
    %v3890 = vadd.f32 %v3344, %v3714
    %v3891 = vadd.f32 %v3345, %v3717
    %v3892 = vadd.f32 %v3346, %v3722
    %v3893 = vadd.f32 %v3347, %v3725
    %v3894 = vadd.f32 %v3348, %v3730
    %v3895 = vadd.f32 %v3349, %v3733
    %v3896 = vadd.f32 %v3350, %v3738
    %v3897 = vadd.f32 %v3351, %v3741
    %v3898 = vadd.f32 %v3352, %v3746
    %v3899 = vadd.f32 %v3353, %v3749
    %v3900 = vadd.f32 %v3354, %v3754
    %v3901 = vadd.f32 %v3355, %v3757
    %v3902 = vadd.f32 %v3356, %v3762
    %v3903 = vadd.f32 %v3357, %v3765
    %v3904 = vadd.f32 %v3358, %v3770
    %v3905 = vadd.f32 %v3359, %v3773
    %v3906 = vadd.f32 %v3360, %v3778
    %v3907 = vadd.f32 %v3361, %v3781
    %v3908 = vadd.f32 %v3362, %v3786
    %v3909 = vadd.f32 %v3363, %v3789
    %v3910 = vadd.f32 %v3364, %v3794
    %v3911 = vadd.f32 %v3365, %v3797
    %v3912 = vadd.f32 %v3366, %v3802
    %v3913 = vadd.f32 %v3367, %v3805
    %v3914 = vadd.f32 %v3368, %v3810
    %v3915 = vadd.f32 %v3369, %v3813
    %v3916 = vadd.f32 %v3370, %v3818
    %v3917 = vadd.f32 %v3371, %v3821
    %v3918 = vadd.f32 %v3372, %v3826
    %v3919 = vadd.f32 %v3373, %v3829
    %v3920 = vadd.f32 %v3374, %v3834
    %v3921 = vadd.f32 %v3375, %v3837
    %v3922 = vadd.f32 %v3376, %v3842
    %v3923 = vadd.f32 %v3377, %v3845
    %v3924 = vadd.f32 %v3378, %v3850
    %v3925 = vadd.f32 %v3379, %v3853
    %v3926 = vadd.f32 %v3380, %v3858
    %v3927 = vadd.f32 %v3381, %v3861
    %v3929 = vshrl.u32 %v1816, 16
    %v3931 = vrot.slane %v3929, 4
    %v3932 = vshll.u32 %v1816, 16
    %v3934 = vrot.slane %v3932, 5
    %v3935 = vor.u32 %v3931, %v3934
    %v3936 = vrot.slane %v3935, 4
    %v3938 = vshll.u32 %v1817, 16
    %v3940 = vrot.slane %v3938, 5
    %v3941 = vsel %vm1875, %v3936, %v3940
    %v3942 = vshrl.u32 %v1817, 16
    %v3944 = vrot.slane %v3942, 4
    %v3945 = vor.u32 %v3944, %v3940
    %v3946 = vrot.slane %v3945, 4
    %v3948 = vshll.u32 %v1818, 16
    %v3950 = vrot.slane %v3948, 5
    %v3951 = vsel %vm1875, %v3946, %v3950
    %v3953 = vshrl.u32 %v1870, 16
    %v3955 = vrot.slane %v3953, 4
    %v3956 = vshll.u32 %v1870, 16
    %v3958 = vrot.slane %v3956, 5
    %v3959 = vor.u32 %v3955, %v3958
    %v3960 = vrot.slane %v3959, 4
    %v3962 = vshll.u32 %v1871, 16
    %v3964 = vrot.slane %v3962, 5
    %v3965 = vsel %vm1875, %v3960, %v3964
    %v3966 = vshrl.u32 %v1871, 16
    %v3968 = vrot.slane %v3966, 4
    %v3969 = vor.u32 %v3968, %v3964
    %v3970 = vrot.slane %v3969, 4
    %v3972 = vshll.u32 %v1872, 16
    %v3974 = vrot.slane %v3972, 5
    %v3975 = vsel %vm1875, %v3970, %v3974
    %s3976 = scalar_lea.vmem %s1, 896
    %v3977 = vld [vmem:[%s3976] sm:$0xf]
    %v3978 = vld [vmem:[%s3976 + $0x4] sm:$0xf]
    %v3979 = vld [vmem:[%s3976 + $0x8] sm:$0xf]
    %v3980 = vld [vmem:[%s3976 + $0xc] sm:$0xf]
    %v3981 = vld [vmem:[%s3976 + $0x10] sm:$0xf]
    %v3982 = vld [vmem:[%s3976 + $0x14] sm:$0xf]
    %v3983 = vld [vmem:[%s3976 + $0x18] sm:$0xf]
    %v3984 = vld [vmem:[%s3976 + $0x1c] sm:$0xf]
    %v3985 = vld [vmem:[%s3976 + $0x20] sm:$0xf]
    %v3986 = vld [vmem:[%s3976 + $0x24] sm:$0xf]
    %v3987 = vld [vmem:[%s3976 + $0x28] sm:$0xf]
    %v3988 = vld [vmem:[%s3976 + $0x2c] sm:$0xf]
    %v3989 = vld [vmem:[%s3976 + $0x30] sm:$0xf]
    %v3990 = vld [vmem:[%s3976 + $0x34] sm:$0xf]
    %v3991 = vld [vmem:[%s3976 + $0x38] sm:$0xf]
    %v3992 = vld [vmem:[%s3976 + $0x3c] sm:$0xf]
    %v3993 = vld [vmem:[%s3976 + $0x40] sm:$0xf]
    %v3994 = vld [vmem:[%s3976 + $0x44] sm:$0xf]
    %v3995 = vld [vmem:[%s3976 + $0x48] sm:$0xf]
    %v3996 = vld [vmem:[%s3976 + $0x4c] sm:$0xf]
    %v3997 = vld [vmem:[%s3976 + $0x50] sm:$0xf]
    %v3998 = vld [vmem:[%s3976 + $0x54] sm:$0xf]
    %v3999 = vld [vmem:[%s3976 + $0x58] sm:$0xf]
    %v4000 = vld [vmem:[%s3976 + $0x5c] sm:$0xf]
    %v4001 = vld [vmem:[%s3976 + $0x60] sm:$0xf]
    %v4002 = vld [vmem:[%s3976 + $0x64] sm:$0xf]
    %v4003 = vld [vmem:[%s3976 + $0x68] sm:$0xf]
    %v4004 = vld [vmem:[%s3976 + $0x6c] sm:$0xf]
    %v4005 = vld [vmem:[%s3976 + $0x70] sm:$0xf]
    %v4006 = vld [vmem:[%s3976 + $0x74] sm:$0xf]
    %v4007 = vld [vmem:[%s3976 + $0x78] sm:$0xf]
    %v4008 = vld [vmem:[%s3976 + $0x7c] sm:$0xf]
    %v4009 = vunpack.c.l.b16 %v3941
    %v4010 = vunpack.c.h.b16 %v3941
    %v4011 = vunpack.c.l.b16 %v3951
    %v4012 = vunpack.c.h.b16 %v3951
    %v4013 = vunpack.c.l.b16 %v3965
    %v4014 = vunpack.c.h.b16 %v3965
    %v4015 = vunpack.c.l.b16 %v3975
    %v4016 = vunpack.c.h.b16 %v3975
    %v4017 = vpack.c.b16 %v4011, %v4009
    %v4018 = vpack.c.b16 %v4012, %v4010
    %v4019 = vpack.c.b16 %v4015, %v4013
    %v4020 = vpack.c.b16 %v4016, %v4014
    %v4057 = vunpack.c.l.b16 %v3977
    %v4058 = vunpack.c.l.b16 %v3978
    %v4059 = vunpack.c.l.b16 %v3979
    %v4060 = vunpack.c.l.b16 %v3980
    %v4061 = vunpack.c.l.b16 %v3981
    %v4062 = vunpack.c.l.b16 %v3982
    %v4063 = vunpack.c.l.b16 %v3983
    %v4064 = vunpack.c.l.b16 %v3984
    %v4065 = vunpack.c.l.b16 %v3985
    %v4066 = vunpack.c.l.b16 %v3986
    %v4067 = vunpack.c.l.b16 %v3987
    %v4068 = vunpack.c.l.b16 %v3988
    %v4069 = vunpack.c.l.b16 %v3989
    %v4070 = vunpack.c.l.b16 %v3990
    %v4071 = vunpack.c.l.b16 %v3991
    %v4072 = vunpack.c.l.b16 %v3992
    %v4073 = vunpack.c.l.b16 %v3993
    %v4074 = vunpack.c.l.b16 %v3994
    %v4075 = vunpack.c.l.b16 %v3995
    %v4076 = vunpack.c.l.b16 %v3996
    %v4077 = vunpack.c.l.b16 %v3997
    %v4078 = vunpack.c.l.b16 %v3998
    %v4079 = vunpack.c.l.b16 %v3999
    %v4080 = vunpack.c.l.b16 %v4000
    %v4081 = vunpack.c.l.b16 %v4001
    %v4082 = vunpack.c.l.b16 %v4002
    %v4083 = vunpack.c.l.b16 %v4003
    %v4084 = vunpack.c.l.b16 %v4004
    %v4085 = vunpack.c.l.b16 %v4005
    %v4086 = vunpack.c.l.b16 %v4006
    %v4087 = vunpack.c.l.b16 %v4007
    %v4088 = vunpack.c.l.b16 %v4008
    %v4089 = vpack.c.b16 %v4058, %v4057
    %v4090 = vpack.c.b16 %v4060, %v4059
    %v4091 = vpack.c.b16 %v4062, %v4061
    %v4092 = vpack.c.b16 %v4064, %v4063
    %v4093 = vpack.c.b16 %v4066, %v4065
    %v4094 = vpack.c.b16 %v4068, %v4067
    %v4095 = vpack.c.b16 %v4070, %v4069
    %v4096 = vpack.c.b16 %v4072, %v4071
    %v4097 = vpack.c.b16 %v4074, %v4073
    %v4098 = vpack.c.b16 %v4076, %v4075
    %v4099 = vpack.c.b16 %v4078, %v4077
    %v4100 = vpack.c.b16 %v4080, %v4079
    %v4101 = vpack.c.b16 %v4082, %v4081
    %v4102 = vpack.c.b16 %v4084, %v4083
    %v4103 = vpack.c.b16 %v4086, %v4085
    %v4104 = vpack.c.b16 %v4088, %v4087
    %4121 = vmatprep.subr.bf16.mxu0 0
    %4122 = vmatpush1.bf16.msra.mxu0 %v4089
    %4123 = vmatprep.subr.bf16.mxu0 0
    %4124 = vmatpush1.bf16.msra.mxu0 %v4090
    %4125 = vmatprep.subr.bf16.mxu0 0
    %4126 = vmatpush1.bf16.msra.mxu0 %v4091
    %4127 = vmatprep.subr.bf16.mxu0 0
    %4128 = vmatpush1.bf16.msra.mxu0 %v4092
    %4129 = vmatprep.subr.bf16.mxu0 0
    %4130 = vmatpush1.bf16.msra.mxu0 %v4093
    %4131 = vmatprep.subr.bf16.mxu0 0
    %4132 = vmatpush1.bf16.msra.mxu0 %v4094
    %4133 = vmatprep.subr.bf16.mxu0 0
    %4134 = vmatpush1.bf16.msra.mxu0 %v4095
    %4135 = vmatprep.subr.bf16.mxu0 0
    %4136 = vmatpush1.bf16.msra.mxu0 %v4096
    %4137 = vmatprep.subr.bf16.mxu0 0
    %4138 = vmatpush1.bf16.msra.mxu0 %v4097
    %4139 = vmatprep.subr.bf16.mxu0 0
    %4140 = vmatpush1.bf16.msra.mxu0 %v4098
    %4141 = vmatprep.subr.bf16.mxu0 0
    %4142 = vmatpush1.bf16.msra.mxu0 %v4099
    %4143 = vmatprep.subr.bf16.mxu0 0
    %4144 = vmatpush1.bf16.msra.mxu0 %v4100
    %4145 = vmatprep.subr.bf16.mxu0 0
    %4146 = vmatpush1.bf16.msra.mxu0 %v4101
    %4147 = vmatprep.subr.bf16.mxu0 0
    %4148 = vmatpush1.bf16.msra.mxu0 %v4102
    %4149 = vmatprep.subr.bf16.mxu0 0
    %4150 = vmatpush1.bf16.msra.mxu0 %v4103
    %4151 = vmatprep.subr.bf16.mxu0 0
    %4152 = vmatpush1.bf16.msra.mxu0 %v4104
    %4153 = vmatprep.mubr.bf16.mxu0 %v2810
    %4154 = vmatmul.mubr.bf16.gmra.mrb[0].mxu0 %v2809
    %v4155 = vpop.f32.mrb[0].mxu0
    %v4156 = vadd.f32 0.0, %v4155
    %v4157 = vpop.f32.mrb[0].mxu0
    %v4158 = vpop.f32.mrb[0].mxu0
    %v4159 = vadd.f32 0.0, %v4158
    %v4160 = vpop.f32.mrb[0].mxu0
    %4161 = vmatprep.mubr.bf16.mxu0 %v2812
    %4162 = vmatmul.mubr.bf16.gmra.mrb[0].mxu0 %v2811
    %v4163 = vpop.f32.mrb[0].mxu0
    %v4164 = vadd.f32 0.0, %v4163
    %v4165 = vpop.f32.mrb[0].mxu0
    %v4166 = vpop.f32.mrb[0].mxu0
    %v4167 = vadd.f32 0.0, %v4166
    %v4168 = vpop.f32.mrb[0].mxu0
    %4169 = vmatprep.mubr.bf16.mxu0 %v2814
    %4170 = vmatmul.mubr.bf16.gmra.mrb[0].mxu0 %v2813
    %v4171 = vpop.f32.mrb[0].mxu0
    %v4172 = vadd.f32 0.0, %v4171
    %v4173 = vpop.f32.mrb[0].mxu0
    %v4174 = vpop.f32.mrb[0].mxu0
    %v4175 = vadd.f32 0.0, %v4174
    %v4176 = vpop.f32.mrb[0].mxu0
    %4177 = vmatprep.mubr.bf16.mxu0 %v2816
    %4178 = vmatmul.mubr.bf16.gmra.mrb[0].mxu0 %v2815
    %v4179 = vpop.f32.mrb[0].mxu0
    %v4180 = vadd.f32 0.0, %v4179
    %v4181 = vpop.f32.mrb[0].mxu0
    %v4182 = vpop.f32.mrb[0].mxu0
    %v4183 = vadd.f32 0.0, %v4182
    %v4184 = vpop.f32.mrb[0].mxu0
    %4185 = vmatprep.mubr.bf16.mxu0 %v2818
    %4186 = vmatmul.mubr.bf16.gmra.mrb[0].mxu0 %v2817
    %v4187 = vpop.f32.mrb[0].mxu0
    %v4188 = vadd.f32 0.0, %v4187
    %v4189 = vpop.f32.mrb[0].mxu0
    %v4190 = vpop.f32.mrb[0].mxu0
    %v4191 = vadd.f32 0.0, %v4190
    %v4192 = vpop.f32.mrb[0].mxu0
    %4193 = vmatprep.mubr.bf16.mxu0 %v2820
    %4194 = vmatmul.mubr.bf16.gmra.mrb[0].mxu0 %v2819
    %v4195 = vpop.f32.mrb[0].mxu0
    %v4196 = vadd.f32 0.0, %v4195
    %v4197 = vpop.f32.mrb[0].mxu0
    %v4198 = vpop.f32.mrb[0].mxu0
    %v4199 = vadd.f32 0.0, %v4198
    %v4200 = vpop.f32.mrb[0].mxu0
    %4201 = vmatprep.mubr.bf16.mxu0 %v2822
    %4202 = vmatmul.mubr.bf16.gmra.mrb[0].mxu0 %v2821
    %v4203 = vpop.f32.mrb[0].mxu0
    %v4204 = vadd.f32 0.0, %v4203
    %v4205 = vpop.f32.mrb[0].mxu0
    %v4206 = vpop.f32.mrb[0].mxu0
    %v4207 = vadd.f32 0.0, %v4206
    %v4208 = vpop.f32.mrb[0].mxu0
    %4209 = vmatprep.mubr.bf16.mxu0 %v2824
    %4210 = vmatmul.mubr.bf16.gmra.mrb[0].mxu0 %v2823
    %v4211 = vpop.f32.mrb[0].mxu0
    %v4212 = vadd.f32 0.0, %v4211
    %v4213 = vpop.f32.mrb[0].mxu0
    %v4214 = vpop.f32.mrb[0].mxu0
    %v4215 = vadd.f32 0.0, %v4214
    %v4216 = vpop.f32.mrb[0].mxu0
    %4217 = vmatprep.mubr.bf16.mxu0 %v2826
    %4218 = vmatmul.mubr.bf16.gmra.mrb[0].mxu0 %v2825
    %v4219 = vpop.f32.mrb[0].mxu0
    %v4220 = vadd.f32 0.0, %v4219
    %v4221 = vpop.f32.mrb[0].mxu0
    %v4222 = vpop.f32.mrb[0].mxu0
    %v4223 = vadd.f32 0.0, %v4222
    %v4224 = vpop.f32.mrb[0].mxu0
    %4225 = vmatprep.mubr.bf16.mxu0 %v2828
    %4226 = vmatmul.mubr.bf16.gmra.mrb[0].mxu0 %v2827
    %v4227 = vpop.f32.mrb[0].mxu0
    %v4228 = vadd.f32 0.0, %v4227
    %v4229 = vpop.f32.mrb[0].mxu0
    %v4230 = vpop.f32.mrb[0].mxu0
    %v4231 = vadd.f32 0.0, %v4230
    %v4232 = vpop.f32.mrb[0].mxu0
    %4233 = vmatprep.mubr.bf16.mxu0 %v2830
    %4234 = vmatmul.mubr.bf16.gmra.mrb[0].mxu0 %v2829
    %v4235 = vpop.f32.mrb[0].mxu0
    %v4236 = vadd.f32 0.0, %v4235
    %v4237 = vpop.f32.mrb[0].mxu0
    %v4238 = vpop.f32.mrb[0].mxu0
    %v4239 = vadd.f32 0.0, %v4238
    %v4240 = vpop.f32.mrb[0].mxu0
    %4241 = vmatprep.mubr.bf16.mxu0 %v2832
    %4242 = vmatmul.mubr.bf16.gmra.mrb[0].mxu0 %v2831
    %v4243 = vpop.f32.mrb[0].mxu0
    %v4244 = vadd.f32 0.0, %v4243
    %v4245 = vpop.f32.mrb[0].mxu0
    %v4246 = vpop.f32.mrb[0].mxu0
    %v4247 = vadd.f32 0.0, %v4246
    %v4248 = vpop.f32.mrb[0].mxu0
    %4249 = vmatprep.mubr.bf16.mxu0 %v2834
    %4250 = vmatmul.mubr.bf16.gmra.mrb[0].mxu0 %v2833
    %v4251 = vpop.f32.mrb[0].mxu0
    %v4252 = vadd.f32 0.0, %v4251
    %v4253 = vpop.f32.mrb[0].mxu0
    %v4254 = vpop.f32.mrb[0].mxu0
    %v4255 = vadd.f32 0.0, %v4254
    %v4256 = vpop.f32.mrb[0].mxu0
    %4257 = vmatprep.mubr.bf16.mxu0 %v2836
    %4258 = vmatmul.mubr.bf16.gmra.mrb[0].mxu0 %v2835
    %v4259 = vpop.f32.mrb[0].mxu0
    %v4260 = vadd.f32 0.0, %v4259
    %v4261 = vpop.f32.mrb[0].mxu0
    %v4262 = vpop.f32.mrb[0].mxu0
    %v4263 = vadd.f32 0.0, %v4262
    %v4264 = vpop.f32.mrb[0].mxu0
    %4265 = vmatprep.mubr.bf16.mxu0 %v3472
    %4266 = vmatmul.mubr.bf16.gmra.mrb[0].mxu0 %v3471
    %v4267 = vpop.f32.mrb[0].mxu0
    %v4268 = vadd.f32 0.0, %v4267
    %v4269 = vpop.f32.mrb[0].mxu0
    %v4270 = vpop.f32.mrb[0].mxu0
    %v4271 = vadd.f32 0.0, %v4270
    %v4272 = vpop.f32.mrb[0].mxu0
    %4273 = vmatprep.mubr.bf16.mxu0 %v4018
    %4274 = vmatmul.mubr.bf16.gmra.mrb[0].mxu0 %v4017
    %v4275 = vpop.f32.mrb[0].mxu0
    %v4276 = vadd.f32 0.0, %v4275
    %v4277 = vpop.f32.mrb[0].mxu0
    %v4278 = vpop.f32.mrb[0].mxu0
    %v4279 = vadd.f32 0.0, %v4278
    %v4280 = vpop.f32.mrb[0].mxu0
    %4281 = vmatprep.mubr.bf16.mxu0 %v2842
    %4282 = vmatmul.mubr.bf16.gmra.mrb[0].mxu0 %v2841
    %v4283 = vpop.f32.mrb[0].mxu0
    %v4284 = vadd.f32 0.0, %v4283
    %v4285 = vpop.f32.mrb[0].mxu0
    %v4286 = vpop.f32.mrb[0].mxu0
    %v4287 = vadd.f32 0.0, %v4286
    %v4288 = vpop.f32.mrb[0].mxu0
    %4289 = vmatprep.mubr.bf16.mxu0 %v2844
    %4290 = vmatmul.mubr.bf16.gmra.mrb[0].mxu0 %v2843
    %v4291 = vpop.f32.mrb[0].mxu0
    %v4292 = vadd.f32 0.0, %v4291
    %v4293 = vpop.f32.mrb[0].mxu0
    %v4294 = vpop.f32.mrb[0].mxu0
    %v4295 = vadd.f32 0.0, %v4294
    %v4296 = vpop.f32.mrb[0].mxu0
    %4297 = vmatprep.mubr.bf16.mxu0 %v2846
    %4298 = vmatmul.mubr.bf16.gmra.mrb[0].mxu0 %v2845
    %v4299 = vpop.f32.mrb[0].mxu0
    %v4300 = vadd.f32 0.0, %v4299
    %v4301 = vpop.f32.mrb[0].mxu0
    %v4302 = vpop.f32.mrb[0].mxu0
    %v4303 = vadd.f32 0.0, %v4302
    %v4304 = vpop.f32.mrb[0].mxu0
    %4305 = vmatprep.mubr.bf16.mxu0 %v2848
    %4306 = vmatmul.mubr.bf16.gmra.mrb[0].mxu0 %v2847
    %v4307 = vpop.f32.mrb[0].mxu0
    %v4308 = vadd.f32 0.0, %v4307
    %v4309 = vpop.f32.mrb[0].mxu0
    %v4310 = vpop.f32.mrb[0].mxu0
    %v4311 = vadd.f32 0.0, %v4310
    %v4312 = vpop.f32.mrb[0].mxu0
    %4313 = vmatprep.mubr.bf16.mxu0 %v2850
    %4314 = vmatmul.mubr.bf16.gmra.mrb[0].mxu0 %v2849
    %v4315 = vpop.f32.mrb[0].mxu0
    %v4316 = vadd.f32 0.0, %v4315
    %v4317 = vpop.f32.mrb[0].mxu0
    %v4318 = vpop.f32.mrb[0].mxu0
    %v4319 = vadd.f32 0.0, %v4318
    %v4320 = vpop.f32.mrb[0].mxu0
    %4321 = vmatprep.mubr.bf16.mxu0 %v2852
    %4322 = vmatmul.mubr.bf16.gmra.mrb[0].mxu0 %v2851
    %v4323 = vpop.f32.mrb[0].mxu0
    %v4324 = vadd.f32 0.0, %v4323
    %v4325 = vpop.f32.mrb[0].mxu0
    %v4326 = vpop.f32.mrb[0].mxu0
    %v4327 = vadd.f32 0.0, %v4326
    %v4328 = vpop.f32.mrb[0].mxu0
    %4329 = vmatprep.mubr.bf16.mxu0 %v2854
    %4330 = vmatmul.mubr.bf16.gmra.mrb[0].mxu0 %v2853
    %v4331 = vpop.f32.mrb[0].mxu0
    %v4332 = vadd.f32 0.0, %v4331
    %v4333 = vpop.f32.mrb[0].mxu0
    %v4334 = vpop.f32.mrb[0].mxu0
    %v4335 = vadd.f32 0.0, %v4334
    %v4336 = vpop.f32.mrb[0].mxu0
    %4337 = vmatprep.mubr.bf16.mxu0 %v2856
    %4338 = vmatmul.mubr.bf16.gmra.mrb[0].mxu0 %v2855
    %v4339 = vpop.f32.mrb[0].mxu0
    %v4340 = vadd.f32 0.0, %v4339
    %v4341 = vpop.f32.mrb[0].mxu0
    %v4342 = vpop.f32.mrb[0].mxu0
    %v4343 = vadd.f32 0.0, %v4342
    %v4344 = vpop.f32.mrb[0].mxu0
    %4345 = vmatprep.mubr.bf16.mxu0 %v2858
    %4346 = vmatmul.mubr.bf16.gmra.mrb[0].mxu0 %v2857
    %v4347 = vpop.f32.mrb[0].mxu0
    %v4348 = vadd.f32 0.0, %v4347
    %v4349 = vpop.f32.mrb[0].mxu0
    %v4350 = vpop.f32.mrb[0].mxu0
    %v4351 = vadd.f32 0.0, %v4350
    %v4352 = vpop.f32.mrb[0].mxu0
    %4353 = vmatprep.mubr.bf16.mxu0 %v2860
    %4354 = vmatmul.mubr.bf16.gmra.mrb[0].mxu0 %v2859
    %v4355 = vpop.f32.mrb[0].mxu0
    %v4356 = vadd.f32 0.0, %v4355
    %v4357 = vpop.f32.mrb[0].mxu0
    %v4358 = vpop.f32.mrb[0].mxu0
    %v4359 = vadd.f32 0.0, %v4358
    %v4360 = vpop.f32.mrb[0].mxu0
    %4361 = vmatprep.mubr.bf16.mxu0 %v2862
    %4362 = vmatmul.mubr.bf16.gmra.mrb[0].mxu0 %v2861
    %v4363 = vpop.f32.mrb[0].mxu0
    %v4364 = vadd.f32 0.0, %v4363
    %v4365 = vpop.f32.mrb[0].mxu0
    %v4366 = vpop.f32.mrb[0].mxu0
    %v4367 = vadd.f32 0.0, %v4366
    %v4368 = vpop.f32.mrb[0].mxu0
    %4369 = vmatprep.mubr.bf16.mxu0 %v2864
    %4370 = vmatmul.mubr.bf16.gmra.mrb[0].mxu0 %v2863
    %v4371 = vpop.f32.mrb[0].mxu0
    %v4372 = vadd.f32 0.0, %v4371
    %v4373 = vpop.f32.mrb[0].mxu0
    %v4374 = vpop.f32.mrb[0].mxu0
    %v4375 = vadd.f32 0.0, %v4374
    %v4376 = vpop.f32.mrb[0].mxu0
    %4377 = vmatprep.mubr.bf16.mxu0 %v2866
    %4378 = vmatmul.mubr.bf16.gmra.mrb[0].mxu0 %v2865
    %v4379 = vpop.f32.mrb[0].mxu0
    %v4380 = vadd.f32 0.0, %v4379
    %v4381 = vpop.f32.mrb[0].mxu0
    %v4382 = vpop.f32.mrb[0].mxu0
    %v4383 = vadd.f32 0.0, %v4382
    %v4384 = vpop.f32.mrb[0].mxu0
    %4385 = vmatprep.mubr.bf16.mxu0 %v2868
    %4386 = vmatmul.mubr.bf16.gmra.mrb[0].mxu0 %v2867
    %v4387 = vpop.f32.mrb[0].mxu0
    %v4388 = vadd.f32 0.0, %v4387
    %v4389 = vpop.f32.mrb[0].mxu0
    %v4390 = vpop.f32.mrb[0].mxu0
    %v4391 = vadd.f32 0.0, %v4390
    %v4392 = vpop.f32.mrb[0].mxu0
    %4393 = vmatprep.mubr.bf16.mxu0 %v3474
    %4394 = vmatmul.mubr.bf16.gmra.mrb[0].mxu0 %v3473
    %v4395 = vpop.f32.mrb[0].mxu0
    %v4396 = vadd.f32 0.0, %v4395
    %v4397 = vpop.f32.mrb[0].mxu0
    %v4398 = vpop.f32.mrb[0].mxu0
    %v4399 = vadd.f32 0.0, %v4398
    %v4400 = vpop.f32.mrb[0].mxu0
    %4401 = vmatprep.mubr.bf16.mxu0 %v4020
    %4402 = vmatmul.mubr.bf16.gmra.mrb[0].mxu0 %v4019
    %v4403 = vpop.f32.mrb[0].mxu0
    %v4404 = vadd.f32 0.0, %v4403
    %v4405 = vpop.f32.mrb[0].mxu0
    %v4406 = vpop.f32.mrb[0].mxu0
    %v4407 = vadd.f32 0.0, %v4406
    %v4408 = vpop.f32.mrb[0].mxu0
    %4409 = vdwg.mxu0
    %v4410 = vadd.f32 %v3864, %v4156
    %v4411 = vadd.f32 %v3865, %v4159
    %v4412 = vadd.f32 %v3866, %v4164
    %v4413 = vadd.f32 %v3867, %v4167
    %v4414 = vadd.f32 %v3868, %v4172
    %v4415 = vadd.f32 %v3869, %v4175
    %v4416 = vadd.f32 %v3870, %v4180
    %v4417 = vadd.f32 %v3871, %v4183
    %v4418 = vadd.f32 %v3872, %v4188
    %v4419 = vadd.f32 %v3873, %v4191
    %v4420 = vadd.f32 %v3874, %v4196
    %v4421 = vadd.f32 %v3875, %v4199
    %v4422 = vadd.f32 %v3876, %v4204
    %v4423 = vadd.f32 %v3877, %v4207
    %v4424 = vadd.f32 %v3878, %v4212
    %v4425 = vadd.f32 %v3879, %v4215
    %v4426 = vadd.f32 %v3880, %v4220
    %v4427 = vadd.f32 %v3881, %v4223
    %v4428 = vadd.f32 %v3882, %v4228
    %v4429 = vadd.f32 %v3883, %v4231
    %v4430 = vadd.f32 %v3884, %v4236
    %v4431 = vadd.f32 %v3885, %v4239
    %v4432 = vadd.f32 %v3886, %v4244
    %v4433 = vadd.f32 %v3887, %v4247
    %v4434 = vadd.f32 %v3888, %v4252
    %v4435 = vadd.f32 %v3889, %v4255
    %v4436 = vadd.f32 %v3890, %v4260
    %v4437 = vadd.f32 %v3891, %v4263
    %v4438 = vadd.f32 %v3892, %v4268
    %v4439 = vadd.f32 %v3893, %v4271
    %v4440 = vadd.f32 %v3894, %v4276
    %v4441 = vadd.f32 %v3895, %v4279
    %v4442 = vadd.f32 %v3896, %v4284
    %v4443 = vadd.f32 %v3897, %v4287
    %v4444 = vadd.f32 %v3898, %v4292
    %v4445 = vadd.f32 %v3899, %v4295
    %v4446 = vadd.f32 %v3900, %v4300
    %v4447 = vadd.f32 %v3901, %v4303
    %v4448 = vadd.f32 %v3902, %v4308
    %v4449 = vadd.f32 %v3903, %v4311
    %v4450 = vadd.f32 %v3904, %v4316
    %v4451 = vadd.f32 %v3905, %v4319
    %v4452 = vadd.f32 %v3906, %v4324
    %v4453 = vadd.f32 %v3907, %v4327
    %v4454 = vadd.f32 %v3908, %v4332
    %v4455 = vadd.f32 %v3909, %v4335
    %v4456 = vadd.f32 %v3910, %v4340
    %v4457 = vadd.f32 %v3911, %v4343
    %v4458 = vadd.f32 %v3912, %v4348
    %v4459 = vadd.f32 %v3913, %v4351
    %v4460 = vadd.f32 %v3914, %v4356
    %v4461 = vadd.f32 %v3915, %v4359
    %v4462 = vadd.f32 %v3916, %v4364
    %v4463 = vadd.f32 %v3917, %v4367
    %v4464 = vadd.f32 %v3918, %v4372
    %v4465 = vadd.f32 %v3919, %v4375
    %v4466 = vadd.f32 %v3920, %v4380
    %v4467 = vadd.f32 %v3921, %v4383
    %v4468 = vadd.f32 %v3922, %v4388
    %v4469 = vadd.f32 %v3923, %v4391
    %v4470 = vadd.f32 %v3924, %v4396
    %v4471 = vadd.f32 %v3925, %v4399
    %v4472 = vadd.f32 %v3926, %v4404
    %v4473 = vadd.f32 %v3927, %v4407
    %v4474 = vld [vmem:[%s0] sm:$0xee]
    %v4475 = vld [vmem:[%s0 + $0x18] sm:$0xee]
    %v4476 = vld [vmem:[%s0 + $0x30] sm:$0xee]
    %v4477 = vld [vmem:[%s0 + $0x48] sm:$0xee]
    %v4478 = vld [vmem:[%s0 + $0x60] sm:$0xee]
    %v4479 = vld [vmem:[%s0 + $0x78] sm:$0xee]
    %v4480 = vld [vmem:[%s0 + $0x90] sm:$0xee]
    %v4481 = vld [vmem:[%s0 + $0xa8] sm:$0xee]
    %v4482 = vld [vmem:[%s0 + $0xc0] sm:$0xee]
    %v4483 = vld [vmem:[%s0 + $0xd8] sm:$0xee]
    %v4484 = vld [vmem:[%s0 + $0xf0] sm:$0xee]
    %v4485 = vld [vmem:[%s0 + $0x108] sm:$0xee]
    %v4486 = vld [vmem:[%s0 + $0x120] sm:$0xee]
    %v4487 = vld [vmem:[%s0 + $0x138] sm:$0xee]
    %v4488 = vld [vmem:[%s0 + $0x150] sm:$0xee]
    %v4489 = vld [vmem:[%s0 + $0x168] sm:$0xee]
    %v4490 = vld [vmem:[%s0 + $0x180] sm:$0xee]
    %v4491 = vld [vmem:[%s0 + $0x198] sm:$0xee]
    %v4492 = vld [vmem:[%s0 + $0x1b0] sm:$0xee]
    %v4493 = vld [vmem:[%s0 + $0x1c8] sm:$0xee]
    %v4494 = vld [vmem:[%s0 + $0x1e0] sm:$0xee]
    %v4495 = vld [vmem:[%s0 + $0x1f8] sm:$0xee]
    %v4496 = vld [vmem:[%s0 + $0x210] sm:$0xee]
    %v4497 = vld [vmem:[%s0 + $0x228] sm:$0xee]
    %v4498 = vld [vmem:[%s0 + $0x240] sm:$0xee]
    %v4499 = vld [vmem:[%s0 + $0x258] sm:$0xee]
    %v4500 = vld [vmem:[%s0 + $0x270] sm:$0xee]
    %v4501 = vld [vmem:[%s0 + $0x288] sm:$0xee]
    %v4502 = vld [vmem:[%s0 + $0x2a0] sm:$0xee]
    %v4503 = vld [vmem:[%s0 + $0x2b8] sm:$0xee]
    %v4504 = vld [vmem:[%s0 + $0x2d0] sm:$0xee]
    %v4505 = vld [vmem:[%s0 + $0x2e8] sm:$0xee]
    %v4506 = vld [vmem:[%s0 + $0x300] sm:$0xee]
    %v4507 = vld [vmem:[%s0 + $0x318] sm:$0xee]
    %v4508 = vld [vmem:[%s0 + $0x330] sm:$0xee]
    %v4509 = vld [vmem:[%s0 + $0x348] sm:$0xee]
    %vm4606 = vcmask 1042432
    %vm4607 = vcmask 1046532
    %vm4608 = vmor %vm4606, %vm4607
    %v4609 = vrot.slane %v4474, 5
    %v4610 = vrot.slane %v4609, 4
    %v4611 = vrot.slane %v1766, 5
    %v4612 = vsel %vm4608, %v4610, %v4611
    %v4613 = vrot.slane %v4611, 4
    %v4614 = vrot.slane %v1767, 5
    %v4615 = vsel %vm4608, %v4613, %v4614
    %v4616 = vrot.slane %v4475, 5
    %v4617 = vrot.slane %v4616, 4
    %v4618 = vrot.slane %v1769, 5
    %v4619 = vsel %vm4608, %v4617, %v4618
    %v4620 = vrot.slane %v4618, 4
    %v4621 = vrot.slane %v1770, 5
    %v4622 = vsel %vm4608, %v4620, %v4621
    %v4623 = vrot.slane %v4476, 5
    %v4624 = vrot.slane %v4623, 4
    %v4625 = vrot.slane %v1772, 5
    %v4626 = vsel %vm4608, %v4624, %v4625
    %v4627 = vrot.slane %v4625, 4
    %v4628 = vrot.slane %v1773, 5
    %v4629 = vsel %vm4608, %v4627, %v4628
    %v4630 = vrot.slane %v4477, 5
    %v4631 = vrot.slane %v4630, 4
    %v4632 = vrot.slane %v1775, 5
    %v4633 = vsel %vm4608, %v4631, %v4632
    %v4634 = vrot.slane %v4632, 4
    %v4635 = vrot.slane %v1776, 5
    %v4636 = vsel %vm4608, %v4634, %v4635
    %v4637 = vrot.slane %v4478, 5
    %v4638 = vrot.slane %v4637, 4
    %v4639 = vrot.slane %v1778, 5
    %v4640 = vsel %vm4608, %v4638, %v4639
    %v4641 = vrot.slane %v4639, 4
    %v4642 = vrot.slane %v1779, 5
    %v4643 = vsel %vm4608, %v4641, %v4642
    %v4644 = vrot.slane %v4479, 5
    %v4645 = vrot.slane %v4644, 4
    %v4646 = vrot.slane %v1781, 5
    %v4647 = vsel %vm4608, %v4645, %v4646
    %v4648 = vrot.slane %v4646, 4
    %v4649 = vrot.slane %v1782, 5
    %v4650 = vsel %vm4608, %v4648, %v4649
    %v4651 = vrot.slane %v4480, 5
    %v4652 = vrot.slane %v4651, 4
    %v4653 = vrot.slane %v1784, 5
    %v4654 = vsel %vm4608, %v4652, %v4653
    %v4655 = vrot.slane %v4653, 4
    %v4656 = vrot.slane %v1785, 5
    %v4657 = vsel %vm4608, %v4655, %v4656
    %v4658 = vrot.slane %v4481, 5
    %v4659 = vrot.slane %v4658, 4
    %v4660 = vrot.slane %v1787, 5
    %v4661 = vsel %vm4608, %v4659, %v4660
    %v4662 = vrot.slane %v4660, 4
    %v4663 = vrot.slane %v1788, 5
    %v4664 = vsel %vm4608, %v4662, %v4663
    %v4665 = vrot.slane %v4482, 5
    %v4666 = vrot.slane %v4665, 4
    %v4667 = vrot.slane %v1790, 5
    %v4668 = vsel %vm4608, %v4666, %v4667
    %v4669 = vrot.slane %v4667, 4
    %v4670 = vrot.slane %v1791, 5
    %v4671 = vsel %vm4608, %v4669, %v4670
    %v4672 = vrot.slane %v4483, 5
    %v4673 = vrot.slane %v4672, 4
    %v4674 = vrot.slane %v1793, 5
    %v4675 = vsel %vm4608, %v4673, %v4674
    %v4676 = vrot.slane %v4674, 4
    %v4677 = vrot.slane %v1794, 5
    %v4678 = vsel %vm4608, %v4676, %v4677
    %v4679 = vrot.slane %v4484, 5
    %v4680 = vrot.slane %v4679, 4
    %v4681 = vrot.slane %v1796, 5
    %v4682 = vsel %vm4608, %v4680, %v4681
    %v4683 = vrot.slane %v4681, 4
    %v4684 = vrot.slane %v1797, 5
    %v4685 = vsel %vm4608, %v4683, %v4684
    %v4686 = vrot.slane %v4485, 5
    %v4687 = vrot.slane %v4686, 4
    %v4688 = vrot.slane %v1799, 5
    %v4689 = vsel %vm4608, %v4687, %v4688
    %v4690 = vrot.slane %v4688, 4
    %v4691 = vrot.slane %v1800, 5
    %v4692 = vsel %vm4608, %v4690, %v4691
    %v4693 = vrot.slane %v4486, 5
    %v4694 = vrot.slane %v4693, 4
    %v4695 = vrot.slane %v1802, 5
    %v4696 = vsel %vm4608, %v4694, %v4695
    %v4697 = vrot.slane %v4695, 4
    %v4698 = vrot.slane %v1803, 5
    %v4699 = vsel %vm4608, %v4697, %v4698
    %v4700 = vrot.slane %v4487, 5
    %v4701 = vrot.slane %v4700, 4
    %v4702 = vrot.slane %v1805, 5
    %v4703 = vsel %vm4608, %v4701, %v4702
    %v4704 = vrot.slane %v4702, 4
    %v4705 = vrot.slane %v1806, 5
    %v4706 = vsel %vm4608, %v4704, %v4705
    %v4707 = vrot.slane %v4488, 5
    %v4708 = vrot.slane %v4707, 4
    %v4709 = vrot.slane %v1808, 5
    %v4710 = vsel %vm4608, %v4708, %v4709
    %v4711 = vrot.slane %v4709, 4
    %v4712 = vrot.slane %v1809, 5
    %v4713 = vsel %vm4608, %v4711, %v4712
    %v4714 = vrot.slane %v4489, 5
    %v4715 = vrot.slane %v4714, 4
    %v4716 = vrot.slane %v1811, 5
    %v4717 = vsel %vm4608, %v4715, %v4716
    %v4718 = vrot.slane %v4716, 4
    %v4719 = vrot.slane %v1812, 5
    %v4720 = vsel %vm4608, %v4718, %v4719
    %v4721 = vrot.slane %v4492, 5
    %v4722 = vrot.slane %v4721, 4
    %v4723 = vrot.slane %v1820, 5
    %v4724 = vsel %vm4608, %v4722, %v4723
    %v4725 = vrot.slane %v4723, 4
    %v4726 = vrot.slane %v1821, 5
    %v4727 = vsel %vm4608, %v4725, %v4726
    %v4728 = vrot.slane %v4493, 5
    %v4729 = vrot.slane %v4728, 4
    %v4730 = vrot.slane %v1823, 5
    %v4731 = vsel %vm4608, %v4729, %v4730
    %v4732 = vrot.slane %v4730, 4
    %v4733 = vrot.slane %v1824, 5
    %v4734 = vsel %vm4608, %v4732, %v4733
    %v4735 = vrot.slane %v4494, 5
    %v4736 = vrot.slane %v4735, 4
    %v4737 = vrot.slane %v1826, 5
    %v4738 = vsel %vm4608, %v4736, %v4737
    %v4739 = vrot.slane %v4737, 4
    %v4740 = vrot.slane %v1827, 5
    %v4741 = vsel %vm4608, %v4739, %v4740
    %v4742 = vrot.slane %v4495, 5
    %v4743 = vrot.slane %v4742, 4
    %v4744 = vrot.slane %v1829, 5
    %v4745 = vsel %vm4608, %v4743, %v4744
    %v4746 = vrot.slane %v4744, 4
    %v4747 = vrot.slane %v1830, 5
    %v4748 = vsel %vm4608, %v4746, %v4747
    %v4749 = vrot.slane %v4496, 5
    %v4750 = vrot.slane %v4749, 4
    %v4751 = vrot.slane %v1832, 5
    %v4752 = vsel %vm4608, %v4750, %v4751
    %v4753 = vrot.slane %v4751, 4
    %v4754 = vrot.slane %v1833, 5
    %v4755 = vsel %vm4608, %v4753, %v4754
    %v4756 = vrot.slane %v4497, 5
    %v4757 = vrot.slane %v4756, 4
    %v4758 = vrot.slane %v1835, 5
    %v4759 = vsel %vm4608, %v4757, %v4758
    %v4760 = vrot.slane %v4758, 4
    %v4761 = vrot.slane %v1836, 5
    %v4762 = vsel %vm4608, %v4760, %v4761
    %v4763 = vrot.slane %v4498, 5
    %v4764 = vrot.slane %v4763, 4
    %v4765 = vrot.slane %v1838, 5
    %v4766 = vsel %vm4608, %v4764, %v4765
    %v4767 = vrot.slane %v4765, 4
    %v4768 = vrot.slane %v1839, 5
    %v4769 = vsel %vm4608, %v4767, %v4768
    %v4770 = vrot.slane %v4499, 5
    %v4771 = vrot.slane %v4770, 4
    %v4772 = vrot.slane %v1841, 5
    %v4773 = vsel %vm4608, %v4771, %v4772
    %v4774 = vrot.slane %v4772, 4
    %v4775 = vrot.slane %v1842, 5
    %v4776 = vsel %vm4608, %v4774, %v4775
    %v4777 = vrot.slane %v4500, 5
    %v4778 = vrot.slane %v4777, 4
    %v4779 = vrot.slane %v1844, 5
    %v4780 = vsel %vm4608, %v4778, %v4779
    %v4781 = vrot.slane %v4779, 4
    %v4782 = vrot.slane %v1845, 5
    %v4783 = vsel %vm4608, %v4781, %v4782
    %v4784 = vrot.slane %v4501, 5
    %v4785 = vrot.slane %v4784, 4
    %v4786 = vrot.slane %v1847, 5
    %v4787 = vsel %vm4608, %v4785, %v4786
    %v4788 = vrot.slane %v4786, 4
    %v4789 = vrot.slane %v1848, 5
    %v4790 = vsel %vm4608, %v4788, %v4789
    %v4791 = vrot.slane %v4502, 5
    %v4792 = vrot.slane %v4791, 4
    %v4793 = vrot.slane %v1850, 5
    %v4794 = vsel %vm4608, %v4792, %v4793
    %v4795 = vrot.slane %v4793, 4
    %v4796 = vrot.slane %v1851, 5
    %v4797 = vsel %vm4608, %v4795, %v4796
    %v4798 = vrot.slane %v4503, 5
    %v4799 = vrot.slane %v4798, 4
    %v4800 = vrot.slane %v1853, 5
    %v4801 = vsel %vm4608, %v4799, %v4800
    %v4802 = vrot.slane %v4800, 4
    %v4803 = vrot.slane %v1854, 5
    %v4804 = vsel %vm4608, %v4802, %v4803
    %v4805 = vrot.slane %v4504, 5
    %v4806 = vrot.slane %v4805, 4
    %v4807 = vrot.slane %v1856, 5
    %v4808 = vsel %vm4608, %v4806, %v4807
    %v4809 = vrot.slane %v4807, 4
    %v4810 = vrot.slane %v1857, 5
    %v4811 = vsel %vm4608, %v4809, %v4810
    %v4812 = vrot.slane %v4505, 5
    %v4813 = vrot.slane %v4812, 4
    %v4814 = vrot.slane %v1859, 5
    %v4815 = vsel %vm4608, %v4813, %v4814
    %v4816 = vrot.slane %v4814, 4
    %v4817 = vrot.slane %v1860, 5
    %v4818 = vsel %vm4608, %v4816, %v4817
    %v4819 = vrot.slane %v4506, 5
    %v4820 = vrot.slane %v4819, 4
    %v4821 = vrot.slane %v1862, 5
    %v4822 = vsel %vm4608, %v4820, %v4821
    %v4823 = vrot.slane %v4821, 4
    %v4824 = vrot.slane %v1863, 5
    %v4825 = vsel %vm4608, %v4823, %v4824
    %v4826 = vrot.slane %v4507, 5
    %v4827 = vrot.slane %v4826, 4
    %v4828 = vrot.slane %v1865, 5
    %v4829 = vsel %vm4608, %v4827, %v4828
    %v4830 = vrot.slane %v4828, 4
    %v4831 = vrot.slane %v1866, 5
    %v4832 = vsel %vm4608, %v4830, %v4831
    %s4833 = scalar_lea.vmem %s1, 256
    %v4834 = vld [vmem:[%s4833] sm:$0xf]
    %v4835 = vld [vmem:[%s4833 + $0x4] sm:$0xf]
    %v4836 = vld [vmem:[%s4833 + $0x8] sm:$0xf]
    %v4837 = vld [vmem:[%s4833 + $0xc] sm:$0xf]
    %v4838 = vld [vmem:[%s4833 + $0x10] sm:$0xf]
    %v4839 = vld [vmem:[%s4833 + $0x14] sm:$0xf]
    %v4840 = vld [vmem:[%s4833 + $0x18] sm:$0xf]
    %v4841 = vld [vmem:[%s4833 + $0x1c] sm:$0xf]
    %v4842 = vld [vmem:[%s4833 + $0x20] sm:$0xf]
    %v4843 = vld [vmem:[%s4833 + $0x24] sm:$0xf]
    %v4844 = vld [vmem:[%s4833 + $0x28] sm:$0xf]
    %v4845 = vld [vmem:[%s4833 + $0x2c] sm:$0xf]
    %v4846 = vld [vmem:[%s4833 + $0x30] sm:$0xf]
    %v4847 = vld [vmem:[%s4833 + $0x34] sm:$0xf]
    %v4848 = vld [vmem:[%s4833 + $0x38] sm:$0xf]
    %v4849 = vld [vmem:[%s4833 + $0x3c] sm:$0xf]
    %v4850 = vld [vmem:[%s4833 + $0x40] sm:$0xf]
    %v4851 = vld [vmem:[%s4833 + $0x44] sm:$0xf]
    %v4852 = vld [vmem:[%s4833 + $0x48] sm:$0xf]
    %v4853 = vld [vmem:[%s4833 + $0x4c] sm:$0xf]
    %v4854 = vld [vmem:[%s4833 + $0x50] sm:$0xf]
    %v4855 = vld [vmem:[%s4833 + $0x54] sm:$0xf]
    %v4856 = vld [vmem:[%s4833 + $0x58] sm:$0xf]
    %v4857 = vld [vmem:[%s4833 + $0x5c] sm:$0xf]
    %v4858 = vld [vmem:[%s4833 + $0x60] sm:$0xf]
    %v4859 = vld [vmem:[%s4833 + $0x64] sm:$0xf]
    %v4860 = vld [vmem:[%s4833 + $0x68] sm:$0xf]
    %v4861 = vld [vmem:[%s4833 + $0x6c] sm:$0xf]
    %v4862 = vld [vmem:[%s4833 + $0x70] sm:$0xf]
    %v4863 = vld [vmem:[%s4833 + $0x74] sm:$0xf]
    %v4864 = vld [vmem:[%s4833 + $0x78] sm:$0xf]
    %v4865 = vld [vmem:[%s4833 + $0x7c] sm:$0xf]
    %v4866 = vunpack.c.l.b16 %v4612
    %v4867 = vunpack.c.h.b16 %v4612
    %v4868 = vunpack.c.l.b16 %v4615
    %v4869 = vunpack.c.h.b16 %v4615
    %v4870 = vunpack.c.l.b16 %v4619
    %v4871 = vunpack.c.h.b16 %v4619
    %v4872 = vunpack.c.l.b16 %v4622
    %v4873 = vunpack.c.h.b16 %v4622
    %v4874 = vunpack.c.l.b16 %v4626
    %v4875 = vunpack.c.h.b16 %v4626
    %v4876 = vunpack.c.l.b16 %v4629
    %v4877 = vunpack.c.h.b16 %v4629
    %v4878 = vunpack.c.l.b16 %v4633
    %v4879 = vunpack.c.h.b16 %v4633
    %v4880 = vunpack.c.l.b16 %v4636
    %v4881 = vunpack.c.h.b16 %v4636
    %v4882 = vunpack.c.l.b16 %v4640
    %v4883 = vunpack.c.h.b16 %v4640
    %v4884 = vunpack.c.l.b16 %v4643
    %v4885 = vunpack.c.h.b16 %v4643
    %v4886 = vunpack.c.l.b16 %v4647
    %v4887 = vunpack.c.h.b16 %v4647
    %v4888 = vunpack.c.l.b16 %v4650
    %v4889 = vunpack.c.h.b16 %v4650
    %v4890 = vunpack.c.l.b16 %v4654
    %v4891 = vunpack.c.h.b16 %v4654
    %v4892 = vunpack.c.l.b16 %v4657
    %v4893 = vunpack.c.h.b16 %v4657
    %v4894 = vunpack.c.l.b16 %v4661
    %v4895 = vunpack.c.h.b16 %v4661
    %v4896 = vunpack.c.l.b16 %v4664
    %v4897 = vunpack.c.h.b16 %v4664
    %v4898 = vunpack.c.l.b16 %v4668
    %v4899 = vunpack.c.h.b16 %v4668
    %v4900 = vunpack.c.l.b16 %v4671
    %v4901 = vunpack.c.h.b16 %v4671
    %v4902 = vunpack.c.l.b16 %v4675
    %v4903 = vunpack.c.h.b16 %v4675
    %v4904 = vunpack.c.l.b16 %v4678
    %v4905 = vunpack.c.h.b16 %v4678
    %v4906 = vunpack.c.l.b16 %v4682
    %v4907 = vunpack.c.h.b16 %v4682
    %v4908 = vunpack.c.l.b16 %v4685
    %v4909 = vunpack.c.h.b16 %v4685
    %v4910 = vunpack.c.l.b16 %v4689
    %v4911 = vunpack.c.h.b16 %v4689
    %v4912 = vunpack.c.l.b16 %v4692
    %v4913 = vunpack.c.h.b16 %v4692
    %v4914 = vunpack.c.l.b16 %v4696
    %v4915 = vunpack.c.h.b16 %v4696
    %v4916 = vunpack.c.l.b16 %v4699
    %v4917 = vunpack.c.h.b16 %v4699
    %v4918 = vunpack.c.l.b16 %v4703
    %v4919 = vunpack.c.h.b16 %v4703
    %v4920 = vunpack.c.l.b16 %v4706
    %v4921 = vunpack.c.h.b16 %v4706
    %v4922 = vunpack.c.l.b16 %v4710
    %v4923 = vunpack.c.h.b16 %v4710
    %v4924 = vunpack.c.l.b16 %v4713
    %v4925 = vunpack.c.h.b16 %v4713
    %v4926 = vunpack.c.l.b16 %v4717
    %v4927 = vunpack.c.h.b16 %v4717
    %v4928 = vunpack.c.l.b16 %v4720
    %v4929 = vunpack.c.h.b16 %v4720
    %v4930 = vunpack.c.l.b16 %v4724
    %v4931 = vunpack.c.h.b16 %v4724
    %v4932 = vunpack.c.l.b16 %v4727
    %v4933 = vunpack.c.h.b16 %v4727
    %v4934 = vunpack.c.l.b16 %v4731
    %v4935 = vunpack.c.h.b16 %v4731
    %v4936 = vunpack.c.l.b16 %v4734
    %v4937 = vunpack.c.h.b16 %v4734
    %v4938 = vunpack.c.l.b16 %v4738
    %v4939 = vunpack.c.h.b16 %v4738
    %v4940 = vunpack.c.l.b16 %v4741
    %v4941 = vunpack.c.h.b16 %v4741
    %v4942 = vunpack.c.l.b16 %v4745
    %v4943 = vunpack.c.h.b16 %v4745
    %v4944 = vunpack.c.l.b16 %v4748
    %v4945 = vunpack.c.h.b16 %v4748
    %v4946 = vunpack.c.l.b16 %v4752
    %v4947 = vunpack.c.h.b16 %v4752
    %v4948 = vunpack.c.l.b16 %v4755
    %v4949 = vunpack.c.h.b16 %v4755
    %v4950 = vunpack.c.l.b16 %v4759
    %v4951 = vunpack.c.h.b16 %v4759
    %v4952 = vunpack.c.l.b16 %v4762
    %v4953 = vunpack.c.h.b16 %v4762
    %v4954 = vunpack.c.l.b16 %v4766
    %v4955 = vunpack.c.h.b16 %v4766
    %v4956 = vunpack.c.l.b16 %v4769
    %v4957 = vunpack.c.h.b16 %v4769
    %v4958 = vunpack.c.l.b16 %v4773
    %v4959 = vunpack.c.h.b16 %v4773
    %v4960 = vunpack.c.l.b16 %v4776
    %v4961 = vunpack.c.h.b16 %v4776
    %v4962 = vunpack.c.l.b16 %v4780
    %v4963 = vunpack.c.h.b16 %v4780
    %v4964 = vunpack.c.l.b16 %v4783
    %v4965 = vunpack.c.h.b16 %v4783
    %v4966 = vunpack.c.l.b16 %v4787
    %v4967 = vunpack.c.h.b16 %v4787
    %v4968 = vunpack.c.l.b16 %v4790
    %v4969 = vunpack.c.h.b16 %v4790
    %v4970 = vunpack.c.l.b16 %v4794
    %v4971 = vunpack.c.h.b16 %v4794
    %v4972 = vunpack.c.l.b16 %v4797
    %v4973 = vunpack.c.h.b16 %v4797
    %v4974 = vunpack.c.l.b16 %v4801
    %v4975 = vunpack.c.h.b16 %v4801
    %v4976 = vunpack.c.l.b16 %v4804
    %v4977 = vunpack.c.h.b16 %v4804
    %v4978 = vunpack.c.l.b16 %v4808
    %v4979 = vunpack.c.h.b16 %v4808
    %v4980 = vunpack.c.l.b16 %v4811
    %v4981 = vunpack.c.h.b16 %v4811
    %v4982 = vunpack.c.l.b16 %v4815
    %v4983 = vunpack.c.h.b16 %v4815
    %v4984 = vunpack.c.l.b16 %v4818
    %v4985 = vunpack.c.h.b16 %v4818
    %v4986 = vunpack.c.l.b16 %v4822
    %v4987 = vunpack.c.h.b16 %v4822
    %v4988 = vunpack.c.l.b16 %v4825
    %v4989 = vunpack.c.h.b16 %v4825
    %v4990 = vunpack.c.l.b16 %v4829
    %v4991 = vunpack.c.h.b16 %v4829
    %v4992 = vunpack.c.l.b16 %v4832
    %v4993 = vunpack.c.h.b16 %v4832
    %v4994 = vpack.c.b16 %v4868, %v4866
    %v4995 = vpack.c.b16 %v4869, %v4867
    %v4996 = vpack.c.b16 %v4872, %v4870
    %v4997 = vpack.c.b16 %v4873, %v4871
    %v4998 = vpack.c.b16 %v4876, %v4874
    %v4999 = vpack.c.b16 %v4877, %v4875
    %v5000 = vpack.c.b16 %v4880, %v4878
    %v5001 = vpack.c.b16 %v4881, %v4879
    %v5002 = vpack.c.b16 %v4884, %v4882
    %v5003 = vpack.c.b16 %v4885, %v4883
    %v5004 = vpack.c.b16 %v4888, %v4886
    %v5005 = vpack.c.b16 %v4889, %v4887
    %v5006 = vpack.c.b16 %v4892, %v4890
    %v5007 = vpack.c.b16 %v4893, %v4891
    %v5008 = vpack.c.b16 %v4896, %v4894
    %v5009 = vpack.c.b16 %v4897, %v4895
    %v5010 = vpack.c.b16 %v4900, %v4898
    %v5011 = vpack.c.b16 %v4901, %v4899
    %v5012 = vpack.c.b16 %v4904, %v4902
    %v5013 = vpack.c.b16 %v4905, %v4903
    %v5014 = vpack.c.b16 %v4908, %v4906
    %v5015 = vpack.c.b16 %v4909, %v4907
    %v5016 = vpack.c.b16 %v4912, %v4910
    %v5017 = vpack.c.b16 %v4913, %v4911
    %v5018 = vpack.c.b16 %v4916, %v4914
    %v5019 = vpack.c.b16 %v4917, %v4915
    %v5020 = vpack.c.b16 %v4920, %v4918
    %v5021 = vpack.c.b16 %v4921, %v4919
    %v5022 = vpack.c.b16 %v4924, %v4922
    %v5023 = vpack.c.b16 %v4925, %v4923
    %v5024 = vpack.c.b16 %v4928, %v4926
    %v5025 = vpack.c.b16 %v4929, %v4927
    %v5026 = vpack.c.b16 %v4932, %v4930
    %v5027 = vpack.c.b16 %v4933, %v4931
    %v5028 = vpack.c.b16 %v4936, %v4934
    %v5029 = vpack.c.b16 %v4937, %v4935
    %v5030 = vpack.c.b16 %v4940, %v4938
    %v5031 = vpack.c.b16 %v4941, %v4939
    %v5032 = vpack.c.b16 %v4944, %v4942
    %v5033 = vpack.c.b16 %v4945, %v4943
    %v5034 = vpack.c.b16 %v4948, %v4946
    %v5035 = vpack.c.b16 %v4949, %v4947
    %v5036 = vpack.c.b16 %v4952, %v4950
    %v5037 = vpack.c.b16 %v4953, %v4951
    %v5038 = vpack.c.b16 %v4956, %v4954
    %v5039 = vpack.c.b16 %v4957, %v4955
    %v5040 = vpack.c.b16 %v4960, %v4958
    %v5041 = vpack.c.b16 %v4961, %v4959
    %v5042 = vpack.c.b16 %v4964, %v4962
    %v5043 = vpack.c.b16 %v4965, %v4963
    %v5044 = vpack.c.b16 %v4968, %v4966
    %v5045 = vpack.c.b16 %v4969, %v4967
    %v5046 = vpack.c.b16 %v4972, %v4970
    %v5047 = vpack.c.b16 %v4973, %v4971
    %v5048 = vpack.c.b16 %v4976, %v4974
    %v5049 = vpack.c.b16 %v4977, %v4975
    %v5050 = vpack.c.b16 %v4980, %v4978
    %v5051 = vpack.c.b16 %v4981, %v4979
    %v5052 = vpack.c.b16 %v4984, %v4982
    %v5053 = vpack.c.b16 %v4985, %v4983
    %v5054 = vpack.c.b16 %v4988, %v4986
    %v5055 = vpack.c.b16 %v4989, %v4987
    %v5056 = vpack.c.b16 %v4992, %v4990
    %v5057 = vpack.c.b16 %v4993, %v4991
    %v5154 = vunpack.c.l.b16 %v4834
    %v5155 = vunpack.c.l.b16 %v4835
    %v5156 = vunpack.c.l.b16 %v4836
    %v5157 = vunpack.c.l.b16 %v4837
    %v5158 = vunpack.c.l.b16 %v4838
    %v5159 = vunpack.c.l.b16 %v4839
    %v5160 = vunpack.c.l.b16 %v4840
    %v5161 = vunpack.c.l.b16 %v4841
    %v5162 = vunpack.c.l.b16 %v4842
    %v5163 = vunpack.c.l.b16 %v4843
    %v5164 = vunpack.c.l.b16 %v4844
    %v5165 = vunpack.c.l.b16 %v4845
    %v5166 = vunpack.c.l.b16 %v4846
    %v5167 = vunpack.c.l.b16 %v4847
    %v5168 = vunpack.c.l.b16 %v4848
    %v5169 = vunpack.c.l.b16 %v4849
    %v5170 = vunpack.c.l.b16 %v4850
    %v5171 = vunpack.c.l.b16 %v4851
    %v5172 = vunpack.c.l.b16 %v4852
    %v5173 = vunpack.c.l.b16 %v4853
    %v5174 = vunpack.c.l.b16 %v4854
    %v5175 = vunpack.c.l.b16 %v4855
    %v5176 = vunpack.c.l.b16 %v4856
    %v5177 = vunpack.c.l.b16 %v4857
    %v5178 = vunpack.c.l.b16 %v4858
    %v5179 = vunpack.c.l.b16 %v4859
    %v5180 = vunpack.c.l.b16 %v4860
    %v5181 = vunpack.c.l.b16 %v4861
    %v5182 = vunpack.c.l.b16 %v4862
    %v5183 = vunpack.c.l.b16 %v4863
    %v5184 = vunpack.c.l.b16 %v4864
    %v5185 = vunpack.c.l.b16 %v4865
    %v5186 = vpack.c.b16 %v5155, %v5154
    %v5187 = vpack.c.b16 %v5157, %v5156
    %v5188 = vpack.c.b16 %v5159, %v5158
    %v5189 = vpack.c.b16 %v5161, %v5160
    %v5190 = vpack.c.b16 %v5163, %v5162
    %v5191 = vpack.c.b16 %v5165, %v5164
    %v5192 = vpack.c.b16 %v5167, %v5166
    %v5193 = vpack.c.b16 %v5169, %v5168
    %v5194 = vpack.c.b16 %v5171, %v5170
    %v5195 = vpack.c.b16 %v5173, %v5172
    %v5196 = vpack.c.b16 %v5175, %v5174
    %v5197 = vpack.c.b16 %v5177, %v5176
    %v5198 = vpack.c.b16 %v5179, %v5178
    %v5199 = vpack.c.b16 %v5181, %v5180
    %v5200 = vpack.c.b16 %v5183, %v5182
    %v5201 = vpack.c.b16 %v5185, %v5184
    %5218 = vmatprep.subr.bf16.mxu0 0
    %5219 = vmatpush1.bf16.msra.mxu0 %v5186
    %5220 = vmatprep.subr.bf16.mxu0 0
    %5221 = vmatpush1.bf16.msra.mxu0 %v5187
    %5222 = vmatprep.subr.bf16.mxu0 0
    %5223 = vmatpush1.bf16.msra.mxu0 %v5188
    %5224 = vmatprep.subr.bf16.mxu0 0
    %5225 = vmatpush1.bf16.msra.mxu0 %v5189
    %5226 = vmatprep.subr.bf16.mxu0 0
    %5227 = vmatpush1.bf16.msra.mxu0 %v5190
    %5228 = vmatprep.subr.bf16.mxu0 0
    %5229 = vmatpush1.bf16.msra.mxu0 %v5191
    %5230 = vmatprep.subr.bf16.mxu0 0
    %5231 = vmatpush1.bf16.msra.mxu0 %v5192
    %5232 = vmatprep.subr.bf16.mxu0 0
    %5233 = vmatpush1.bf16.msra.mxu0 %v5193
    %5234 = vmatprep.subr.bf16.mxu0 0
    %5235 = vmatpush1.bf16.msra.mxu0 %v5194
    %5236 = vmatprep.subr.bf16.mxu0 0
    %5237 = vmatpush1.bf16.msra.mxu0 %v5195
    %5238 = vmatprep.subr.bf16.mxu0 0
    %5239 = vmatpush1.bf16.msra.mxu0 %v5196
    %5240 = vmatprep.subr.bf16.mxu0 0
    %5241 = vmatpush1.bf16.msra.mxu0 %v5197
    %5242 = vmatprep.subr.bf16.mxu0 0
    %5243 = vmatpush1.bf16.msra.mxu0 %v5198
    %5244 = vmatprep.subr.bf16.mxu0 0
    %5245 = vmatpush1.bf16.msra.mxu0 %v5199
    %5246 = vmatprep.subr.bf16.mxu0 0
    %5247 = vmatpush1.bf16.msra.mxu0 %v5200
    %5248 = vmatprep.subr.bf16.mxu0 0
    %5249 = vmatpush1.bf16.msra.mxu0 %v5201
    %5250 = vmatprep.mubr.bf16.mxu0 %v4995
    %5251 = vmatmul.mubr.bf16.gmra.mrb[0].mxu0 %v4994
    %v5252 = vpop.f32.mrb[0].mxu0
    %v5253 = vadd.f32 0.0, %v5252
    %v5254 = vpop.f32.mrb[0].mxu0
    %v5255 = vpop.f32.mrb[0].mxu0
    %v5256 = vadd.f32 0.0, %v5255
    %v5257 = vpop.f32.mrb[0].mxu0
    %5258 = vmatprep.mubr.bf16.mxu0 %v4997
    %5259 = vmatmul.mubr.bf16.gmra.mrb[0].mxu0 %v4996
    %v5260 = vpop.f32.mrb[0].mxu0
    %v5261 = vadd.f32 0.0, %v5260
    %v5262 = vpop.f32.mrb[0].mxu0
    %v5263 = vpop.f32.mrb[0].mxu0
    %v5264 = vadd.f32 0.0, %v5263
    %v5265 = vpop.f32.mrb[0].mxu0
    %5266 = vmatprep.mubr.bf16.mxu0 %v4999
    %5267 = vmatmul.mubr.bf16.gmra.mrb[0].mxu0 %v4998
    %v5268 = vpop.f32.mrb[0].mxu0
    %v5269 = vadd.f32 0.0, %v5268
    %v5270 = vpop.f32.mrb[0].mxu0
    %v5271 = vpop.f32.mrb[0].mxu0
    %v5272 = vadd.f32 0.0, %v5271
    %v5273 = vpop.f32.mrb[0].mxu0
    %5274 = vmatprep.mubr.bf16.mxu0 %v5001
    %5275 = vmatmul.mubr.bf16.gmra.mrb[0].mxu0 %v5000
    %v5276 = vpop.f32.mrb[0].mxu0
    %v5277 = vadd.f32 0.0, %v5276
    %v5278 = vpop.f32.mrb[0].mxu0
    %v5279 = vpop.f32.mrb[0].mxu0
    %v5280 = vadd.f32 0.0, %v5279
    %v5281 = vpop.f32.mrb[0].mxu0
    %5282 = vmatprep.mubr.bf16.mxu0 %v5003
    %5283 = vmatmul.mubr.bf16.gmra.mrb[0].mxu0 %v5002
    %v5284 = vpop.f32.mrb[0].mxu0
    %v5285 = vadd.f32 0.0, %v5284
    %v5286 = vpop.f32.mrb[0].mxu0
    %v5287 = vpop.f32.mrb[0].mxu0
    %v5288 = vadd.f32 0.0, %v5287
    %v5289 = vpop.f32.mrb[0].mxu0
    %5290 = vmatprep.mubr.bf16.mxu0 %v5005
    %5291 = vmatmul.mubr.bf16.gmra.mrb[0].mxu0 %v5004
    %v5292 = vpop.f32.mrb[0].mxu0
    %v5293 = vadd.f32 0.0, %v5292
    %v5294 = vpop.f32.mrb[0].mxu0
    %v5295 = vpop.f32.mrb[0].mxu0
    %v5296 = vadd.f32 0.0, %v5295
    %v5297 = vpop.f32.mrb[0].mxu0
    %5298 = vmatprep.mubr.bf16.mxu0 %v5007
    %5299 = vmatmul.mubr.bf16.gmra.mrb[0].mxu0 %v5006
    %v5300 = vpop.f32.mrb[0].mxu0
    %v5301 = vadd.f32 0.0, %v5300
    %v5302 = vpop.f32.mrb[0].mxu0
    %v5303 = vpop.f32.mrb[0].mxu0
    %v5304 = vadd.f32 0.0, %v5303
    %v5305 = vpop.f32.mrb[0].mxu0
    %5306 = vmatprep.mubr.bf16.mxu0 %v5009
    %5307 = vmatmul.mubr.bf16.gmra.mrb[0].mxu0 %v5008
    %v5308 = vpop.f32.mrb[0].mxu0
    %v5309 = vadd.f32 0.0, %v5308
    %v5310 = vpop.f32.mrb[0].mxu0
    %v5311 = vpop.f32.mrb[0].mxu0
    %v5312 = vadd.f32 0.0, %v5311
    %v5313 = vpop.f32.mrb[0].mxu0
    %5314 = vmatprep.mubr.bf16.mxu0 %v5011
    %5315 = vmatmul.mubr.bf16.gmra.mrb[0].mxu0 %v5010
    %v5316 = vpop.f32.mrb[0].mxu0
    %v5317 = vadd.f32 0.0, %v5316
    %v5318 = vpop.f32.mrb[0].mxu0
    %v5319 = vpop.f32.mrb[0].mxu0
    %v5320 = vadd.f32 0.0, %v5319
    %v5321 = vpop.f32.mrb[0].mxu0
    %5322 = vmatprep.mubr.bf16.mxu0 %v5013
    %5323 = vmatmul.mubr.bf16.gmra.mrb[0].mxu0 %v5012
    %v5324 = vpop.f32.mrb[0].mxu0
    %v5325 = vadd.f32 0.0, %v5324
    %v5326 = vpop.f32.mrb[0].mxu0
    %v5327 = vpop.f32.mrb[0].mxu0
    %v5328 = vadd.f32 0.0, %v5327
    %v5329 = vpop.f32.mrb[0].mxu0
    %5330 = vmatprep.mubr.bf16.mxu0 %v5015
    %5331 = vmatmul.mubr.bf16.gmra.mrb[0].mxu0 %v5014
    %v5332 = vpop.f32.mrb[0].mxu0
    %v5333 = vadd.f32 0.0, %v5332
    %v5334 = vpop.f32.mrb[0].mxu0
    %v5335 = vpop.f32.mrb[0].mxu0
    %v5336 = vadd.f32 0.0, %v5335
    %v5337 = vpop.f32.mrb[0].mxu0
    %5338 = vmatprep.mubr.bf16.mxu0 %v5017
    %5339 = vmatmul.mubr.bf16.gmra.mrb[0].mxu0 %v5016
    %v5340 = vpop.f32.mrb[0].mxu0
    %v5341 = vadd.f32 0.0, %v5340
    %v5342 = vpop.f32.mrb[0].mxu0
    %v5343 = vpop.f32.mrb[0].mxu0
    %v5344 = vadd.f32 0.0, %v5343
    %v5345 = vpop.f32.mrb[0].mxu0
    %5346 = vmatprep.mubr.bf16.mxu0 %v5019
    %5347 = vmatmul.mubr.bf16.gmra.mrb[0].mxu0 %v5018
    %v5348 = vpop.f32.mrb[0].mxu0
    %v5349 = vadd.f32 0.0, %v5348
    %v5350 = vpop.f32.mrb[0].mxu0
    %v5351 = vpop.f32.mrb[0].mxu0
    %v5352 = vadd.f32 0.0, %v5351
    %v5353 = vpop.f32.mrb[0].mxu0
    %5354 = vmatprep.mubr.bf16.mxu0 %v5021
    %5355 = vmatmul.mubr.bf16.gmra.mrb[0].mxu0 %v5020
    %v5356 = vpop.f32.mrb[0].mxu0
    %v5357 = vadd.f32 0.0, %v5356
    %v5358 = vpop.f32.mrb[0].mxu0
    %v5359 = vpop.f32.mrb[0].mxu0
    %v5360 = vadd.f32 0.0, %v5359
    %v5361 = vpop.f32.mrb[0].mxu0
    %5362 = vmatprep.mubr.bf16.mxu0 %v5023
    %5363 = vmatmul.mubr.bf16.gmra.mrb[0].mxu0 %v5022
    %v5364 = vpop.f32.mrb[0].mxu0
    %v5365 = vadd.f32 0.0, %v5364
    %v5366 = vpop.f32.mrb[0].mxu0
    %v5367 = vpop.f32.mrb[0].mxu0
    %v5368 = vadd.f32 0.0, %v5367
    %v5369 = vpop.f32.mrb[0].mxu0
    %5370 = vmatprep.mubr.bf16.mxu0 %v5025
    %5371 = vmatmul.mubr.bf16.gmra.mrb[0].mxu0 %v5024
    %v5372 = vpop.f32.mrb[0].mxu0
    %v5373 = vadd.f32 0.0, %v5372
    %v5374 = vpop.f32.mrb[0].mxu0
    %v5375 = vpop.f32.mrb[0].mxu0
    %v5376 = vadd.f32 0.0, %v5375
    %v5377 = vpop.f32.mrb[0].mxu0
    %5378 = vmatprep.mubr.bf16.mxu0 %v5027
    %5379 = vmatmul.mubr.bf16.gmra.mrb[0].mxu0 %v5026
    %v5380 = vpop.f32.mrb[0].mxu0
    %v5381 = vadd.f32 0.0, %v5380
    %v5382 = vpop.f32.mrb[0].mxu0
    %v5383 = vpop.f32.mrb[0].mxu0
    %v5384 = vadd.f32 0.0, %v5383
    %v5385 = vpop.f32.mrb[0].mxu0
    %5386 = vmatprep.mubr.bf16.mxu0 %v5029
    %5387 = vmatmul.mubr.bf16.gmra.mrb[0].mxu0 %v5028
    %v5388 = vpop.f32.mrb[0].mxu0
    %v5389 = vadd.f32 0.0, %v5388
    %v5390 = vpop.f32.mrb[0].mxu0
    %v5391 = vpop.f32.mrb[0].mxu0
    %v5392 = vadd.f32 0.0, %v5391
    %v5393 = vpop.f32.mrb[0].mxu0
    %5394 = vmatprep.mubr.bf16.mxu0 %v5031
    %5395 = vmatmul.mubr.bf16.gmra.mrb[0].mxu0 %v5030
    %v5396 = vpop.f32.mrb[0].mxu0
    %v5397 = vadd.f32 0.0, %v5396
    %v5398 = vpop.f32.mrb[0].mxu0
    %v5399 = vpop.f32.mrb[0].mxu0
    %v5400 = vadd.f32 0.0, %v5399
    %v5401 = vpop.f32.mrb[0].mxu0
    %5402 = vmatprep.mubr.bf16.mxu0 %v5033
    %5403 = vmatmul.mubr.bf16.gmra.mrb[0].mxu0 %v5032
    %v5404 = vpop.f32.mrb[0].mxu0
    %v5405 = vadd.f32 0.0, %v5404
    %v5406 = vpop.f32.mrb[0].mxu0
    %v5407 = vpop.f32.mrb[0].mxu0
    %v5408 = vadd.f32 0.0, %v5407
    %v5409 = vpop.f32.mrb[0].mxu0
    %5410 = vmatprep.mubr.bf16.mxu0 %v5035
    %5411 = vmatmul.mubr.bf16.gmra.mrb[0].mxu0 %v5034
    %v5412 = vpop.f32.mrb[0].mxu0
    %v5413 = vadd.f32 0.0, %v5412
    %v5414 = vpop.f32.mrb[0].mxu0
    %v5415 = vpop.f32.mrb[0].mxu0
    %v5416 = vadd.f32 0.0, %v5415
    %v5417 = vpop.f32.mrb[0].mxu0
    %5418 = vmatprep.mubr.bf16.mxu0 %v5037
    %5419 = vmatmul.mubr.bf16.gmra.mrb[0].mxu0 %v5036
    %v5420 = vpop.f32.mrb[0].mxu0
    %v5421 = vadd.f32 0.0, %v5420
    %v5422 = vpop.f32.mrb[0].mxu0
    %v5423 = vpop.f32.mrb[0].mxu0
    %v5424 = vadd.f32 0.0, %v5423
    %v5425 = vpop.f32.mrb[0].mxu0
    %5426 = vmatprep.mubr.bf16.mxu0 %v5039
    %5427 = vmatmul.mubr.bf16.gmra.mrb[0].mxu0 %v5038
    %v5428 = vpop.f32.mrb[0].mxu0
    %v5429 = vadd.f32 0.0, %v5428
    %v5430 = vpop.f32.mrb[0].mxu0
    %v5431 = vpop.f32.mrb[0].mxu0
    %v5432 = vadd.f32 0.0, %v5431
    %v5433 = vpop.f32.mrb[0].mxu0
    %5434 = vmatprep.mubr.bf16.mxu0 %v5041
    %5435 = vmatmul.mubr.bf16.gmra.mrb[0].mxu0 %v5040
    %v5436 = vpop.f32.mrb[0].mxu0
    %v5437 = vadd.f32 0.0, %v5436
    %v5438 = vpop.f32.mrb[0].mxu0
    %v5439 = vpop.f32.mrb[0].mxu0
    %v5440 = vadd.f32 0.0, %v5439
    %v5441 = vpop.f32.mrb[0].mxu0
    %5442 = vmatprep.mubr.bf16.mxu0 %v5043
    %5443 = vmatmul.mubr.bf16.gmra.mrb[0].mxu0 %v5042
    %v5444 = vpop.f32.mrb[0].mxu0
    %v5445 = vadd.f32 0.0, %v5444
    %v5446 = vpop.f32.mrb[0].mxu0
    %v5447 = vpop.f32.mrb[0].mxu0
    %v5448 = vadd.f32 0.0, %v5447
    %v5449 = vpop.f32.mrb[0].mxu0
    %5450 = vmatprep.mubr.bf16.mxu0 %v5045
    %5451 = vmatmul.mubr.bf16.gmra.mrb[0].mxu0 %v5044
    %v5452 = vpop.f32.mrb[0].mxu0
    %v5453 = vadd.f32 0.0, %v5452
    %v5454 = vpop.f32.mrb[0].mxu0
    %v5455 = vpop.f32.mrb[0].mxu0
    %v5456 = vadd.f32 0.0, %v5455
    %v5457 = vpop.f32.mrb[0].mxu0
    %5458 = vmatprep.mubr.bf16.mxu0 %v5047
    %5459 = vmatmul.mubr.bf16.gmra.mrb[0].mxu0 %v5046
    %v5460 = vpop.f32.mrb[0].mxu0
    %v5461 = vadd.f32 0.0, %v5460
    %v5462 = vpop.f32.mrb[0].mxu0
    %v5463 = vpop.f32.mrb[0].mxu0
    %v5464 = vadd.f32 0.0, %v5463
    %v5465 = vpop.f32.mrb[0].mxu0
    %5466 = vmatprep.mubr.bf16.mxu0 %v5049
    %5467 = vmatmul.mubr.bf16.gmra.mrb[0].mxu0 %v5048
    %v5468 = vpop.f32.mrb[0].mxu0
    %v5469 = vadd.f32 0.0, %v5468
    %v5470 = vpop.f32.mrb[0].mxu0
    %v5471 = vpop.f32.mrb[0].mxu0
    %v5472 = vadd.f32 0.0, %v5471
    %v5473 = vpop.f32.mrb[0].mxu0
    %5474 = vmatprep.mubr.bf16.mxu0 %v5051
    %5475 = vmatmul.mubr.bf16.gmra.mrb[0].mxu0 %v5050
    %v5476 = vpop.f32.mrb[0].mxu0
    %v5477 = vadd.f32 0.0, %v5476
    %v5478 = vpop.f32.mrb[0].mxu0
    %v5479 = vpop.f32.mrb[0].mxu0
    %v5480 = vadd.f32 0.0, %v5479
    %v5481 = vpop.f32.mrb[0].mxu0
    %5482 = vmatprep.mubr.bf16.mxu0 %v5053
    %5483 = vmatmul.mubr.bf16.gmra.mrb[0].mxu0 %v5052
    %v5484 = vpop.f32.mrb[0].mxu0
    %v5485 = vadd.f32 0.0, %v5484
    %v5486 = vpop.f32.mrb[0].mxu0
    %v5487 = vpop.f32.mrb[0].mxu0
    %v5488 = vadd.f32 0.0, %v5487
    %v5489 = vpop.f32.mrb[0].mxu0
    %5490 = vmatprep.mubr.bf16.mxu0 %v5055
    %5491 = vmatmul.mubr.bf16.gmra.mrb[0].mxu0 %v5054
    %v5492 = vpop.f32.mrb[0].mxu0
    %v5493 = vadd.f32 0.0, %v5492
    %v5494 = vpop.f32.mrb[0].mxu0
    %v5495 = vpop.f32.mrb[0].mxu0
    %v5496 = vadd.f32 0.0, %v5495
    %v5497 = vpop.f32.mrb[0].mxu0
    %5498 = vmatprep.mubr.bf16.mxu0 %v5057
    %5499 = vmatmul.mubr.bf16.gmra.mrb[0].mxu0 %v5056
    %v5500 = vpop.f32.mrb[0].mxu0
    %v5501 = vadd.f32 0.0, %v5500
    %v5502 = vpop.f32.mrb[0].mxu0
    %v5503 = vpop.f32.mrb[0].mxu0
    %v5504 = vadd.f32 0.0, %v5503
    %v5505 = vpop.f32.mrb[0].mxu0
    %5506 = vdwg.mxu0
    %v5507 = vadd.f32 %v4410, %v5253
    %v5508 = vadd.f32 %v4411, %v5256
    %v5509 = vadd.f32 %v4412, %v5261
    %v5510 = vadd.f32 %v4413, %v5264
    %v5511 = vadd.f32 %v4414, %v5269
    %v5512 = vadd.f32 %v4415, %v5272
    %v5513 = vadd.f32 %v4416, %v5277
    %v5514 = vadd.f32 %v4417, %v5280
    %v5515 = vadd.f32 %v4418, %v5285
    %v5516 = vadd.f32 %v4419, %v5288
    %v5517 = vadd.f32 %v4420, %v5293
    %v5518 = vadd.f32 %v4421, %v5296
    %v5519 = vadd.f32 %v4422, %v5301
    %v5520 = vadd.f32 %v4423, %v5304
    %v5521 = vadd.f32 %v4424, %v5309
    %v5522 = vadd.f32 %v4425, %v5312
    %v5523 = vadd.f32 %v4426, %v5317
    %v5524 = vadd.f32 %v4427, %v5320
    %v5525 = vadd.f32 %v4428, %v5325
    %v5526 = vadd.f32 %v4429, %v5328
    %v5527 = vadd.f32 %v4430, %v5333
    %v5528 = vadd.f32 %v4431, %v5336
    %v5529 = vadd.f32 %v4432, %v5341
    %v5530 = vadd.f32 %v4433, %v5344
    %v5531 = vadd.f32 %v4434, %v5349
    %v5532 = vadd.f32 %v4435, %v5352
    %v5533 = vadd.f32 %v4436, %v5357
    %v5534 = vadd.f32 %v4437, %v5360
    %v5535 = vadd.f32 %v4438, %v5365
    %v5536 = vadd.f32 %v4439, %v5368
    %v5537 = vadd.f32 %v4440, %v5373
    %v5538 = vadd.f32 %v4441, %v5376
    %v5539 = vadd.f32 %v4442, %v5381
    %v5540 = vadd.f32 %v4443, %v5384
    %v5541 = vadd.f32 %v4444, %v5389
    %v5542 = vadd.f32 %v4445, %v5392
    %v5543 = vadd.f32 %v4446, %v5397
    %v5544 = vadd.f32 %v4447, %v5400
    %v5545 = vadd.f32 %v4448, %v5405
    %v5546 = vadd.f32 %v4449, %v5408
    %v5547 = vadd.f32 %v4450, %v5413
    %v5548 = vadd.f32 %v4451, %v5416
    %v5549 = vadd.f32 %v4452, %v5421
    %v5550 = vadd.f32 %v4453, %v5424
    %v5551 = vadd.f32 %v4454, %v5429
    %v5552 = vadd.f32 %v4455, %v5432
    %v5553 = vadd.f32 %v4456, %v5437
    %v5554 = vadd.f32 %v4457, %v5440
    %v5555 = vadd.f32 %v4458, %v5445
    %v5556 = vadd.f32 %v4459, %v5448
    %v5557 = vadd.f32 %v4460, %v5453
    %v5558 = vadd.f32 %v4461, %v5456
    %v5559 = vadd.f32 %v4462, %v5461
    %v5560 = vadd.f32 %v4463, %v5464
    %v5561 = vadd.f32 %v4464, %v5469
    %v5562 = vadd.f32 %v4465, %v5472
    %v5563 = vadd.f32 %v4466, %v5477
    %v5564 = vadd.f32 %v4467, %v5480
    %v5565 = vadd.f32 %v4468, %v5485
    %v5566 = vadd.f32 %v4469, %v5488
    %v5567 = vadd.f32 %v4470, %v5493
    %v5568 = vadd.f32 %v4471, %v5496
    %v5569 = vadd.f32 %v4472, %v5501
    %v5570 = vadd.f32 %v4473, %v5504
    %v5577 = vrot.slane %v4490, 5
    %v5578 = vrot.slane %v5577, 4
    %v5579 = vrot.slane %v1814, 5
    %v5580 = vsel %vm4608, %v5578, %v5579
    %v5581 = vrot.slane %v5579, 4
    %v5582 = vrot.slane %v1815, 5
    %v5583 = vsel %vm4608, %v5581, %v5582
    %v5584 = vrot.slane %v4508, 5
    %v5585 = vrot.slane %v5584, 4
    %v5586 = vrot.slane %v1868, 5
    %v5587 = vsel %vm4608, %v5585, %v5586
    %v5588 = vrot.slane %v5586, 4
    %v5589 = vrot.slane %v1869, 5
    %v5590 = vsel %vm4608, %v5588, %v5589
    %s5591 = scalar_lea.vmem %s1, 640
    %v5592 = vld [vmem:[%s5591] sm:$0xf]
    %v5593 = vld [vmem:[%s5591 + $0x4] sm:$0xf]
    %v5594 = vld [vmem:[%s5591 + $0x8] sm:$0xf]
    %v5595 = vld [vmem:[%s5591 + $0xc] sm:$0xf]
    %v5596 = vld [vmem:[%s5591 + $0x10] sm:$0xf]
    %v5597 = vld [vmem:[%s5591 + $0x14] sm:$0xf]
    %v5598 = vld [vmem:[%s5591 + $0x18] sm:$0xf]
    %v5599 = vld [vmem:[%s5591 + $0x1c] sm:$0xf]
    %v5600 = vld [vmem:[%s5591 + $0x20] sm:$0xf]
    %v5601 = vld [vmem:[%s5591 + $0x24] sm:$0xf]
    %v5602 = vld [vmem:[%s5591 + $0x28] sm:$0xf]
    %v5603 = vld [vmem:[%s5591 + $0x2c] sm:$0xf]
    %v5604 = vld [vmem:[%s5591 + $0x30] sm:$0xf]
    %v5605 = vld [vmem:[%s5591 + $0x34] sm:$0xf]
    %v5606 = vld [vmem:[%s5591 + $0x38] sm:$0xf]
    %v5607 = vld [vmem:[%s5591 + $0x3c] sm:$0xf]
    %v5608 = vld [vmem:[%s5591 + $0x40] sm:$0xf]
    %v5609 = vld [vmem:[%s5591 + $0x44] sm:$0xf]
    %v5610 = vld [vmem:[%s5591 + $0x48] sm:$0xf]
    %v5611 = vld [vmem:[%s5591 + $0x4c] sm:$0xf]
    %v5612 = vld [vmem:[%s5591 + $0x50] sm:$0xf]
    %v5613 = vld [vmem:[%s5591 + $0x54] sm:$0xf]
    %v5614 = vld [vmem:[%s5591 + $0x58] sm:$0xf]
    %v5615 = vld [vmem:[%s5591 + $0x5c] sm:$0xf]
    %v5616 = vld [vmem:[%s5591 + $0x60] sm:$0xf]
    %v5617 = vld [vmem:[%s5591 + $0x64] sm:$0xf]
    %v5618 = vld [vmem:[%s5591 + $0x68] sm:$0xf]
    %v5619 = vld [vmem:[%s5591 + $0x6c] sm:$0xf]
    %v5620 = vld [vmem:[%s5591 + $0x70] sm:$0xf]
    %v5621 = vld [vmem:[%s5591 + $0x74] sm:$0xf]
    %v5622 = vld [vmem:[%s5591 + $0x78] sm:$0xf]
    %v5623 = vld [vmem:[%s5591 + $0x7c] sm:$0xf]
    %v5624 = vunpack.c.l.b16 %v5580
    %v5625 = vunpack.c.h.b16 %v5580
    %v5626 = vunpack.c.l.b16 %v5583
    %v5627 = vunpack.c.h.b16 %v5583
    %v5628 = vunpack.c.l.b16 %v5587
    %v5629 = vunpack.c.h.b16 %v5587
    %v5630 = vunpack.c.l.b16 %v5590
    %v5631 = vunpack.c.h.b16 %v5590
    %v5632 = vpack.c.b16 %v5626, %v5624
    %v5633 = vpack.c.b16 %v5627, %v5625
    %v5634 = vpack.c.b16 %v5630, %v5628
    %v5635 = vpack.c.b16 %v5631, %v5629
    %v5672 = vunpack.c.l.b16 %v5592
    %v5673 = vunpack.c.l.b16 %v5593
    %v5674 = vunpack.c.l.b16 %v5594
    %v5675 = vunpack.c.l.b16 %v5595
    %v5676 = vunpack.c.l.b16 %v5596
    %v5677 = vunpack.c.l.b16 %v5597
    %v5678 = vunpack.c.l.b16 %v5598
    %v5679 = vunpack.c.l.b16 %v5599
    %v5680 = vunpack.c.l.b16 %v5600
    %v5681 = vunpack.c.l.b16 %v5601
    %v5682 = vunpack.c.l.b16 %v5602
    %v5683 = vunpack.c.l.b16 %v5603
    %v5684 = vunpack.c.l.b16 %v5604
    %v5685 = vunpack.c.l.b16 %v5605
    %v5686 = vunpack.c.l.b16 %v5606
    %v5687 = vunpack.c.l.b16 %v5607
    %v5688 = vunpack.c.l.b16 %v5608
    %v5689 = vunpack.c.l.b16 %v5609
    %v5690 = vunpack.c.l.b16 %v5610
    %v5691 = vunpack.c.l.b16 %v5611
    %v5692 = vunpack.c.l.b16 %v5612
    %v5693 = vunpack.c.l.b16 %v5613
    %v5694 = vunpack.c.l.b16 %v5614
    %v5695 = vunpack.c.l.b16 %v5615
    %v5696 = vunpack.c.l.b16 %v5616
    %v5697 = vunpack.c.l.b16 %v5617
    %v5698 = vunpack.c.l.b16 %v5618
    %v5699 = vunpack.c.l.b16 %v5619
    %v5700 = vunpack.c.l.b16 %v5620
    %v5701 = vunpack.c.l.b16 %v5621
    %v5702 = vunpack.c.l.b16 %v5622
    %v5703 = vunpack.c.l.b16 %v5623
    %v5704 = vpack.c.b16 %v5673, %v5672
    %v5705 = vpack.c.b16 %v5675, %v5674
    %v5706 = vpack.c.b16 %v5677, %v5676
    %v5707 = vpack.c.b16 %v5679, %v5678
    %v5708 = vpack.c.b16 %v5681, %v5680
    %v5709 = vpack.c.b16 %v5683, %v5682
    %v5710 = vpack.c.b16 %v5685, %v5684
    %v5711 = vpack.c.b16 %v5687, %v5686
    %v5712 = vpack.c.b16 %v5689, %v5688
    %v5713 = vpack.c.b16 %v5691, %v5690
    %v5714 = vpack.c.b16 %v5693, %v5692
    %v5715 = vpack.c.b16 %v5695, %v5694
    %v5716 = vpack.c.b16 %v5697, %v5696
    %v5717 = vpack.c.b16 %v5699, %v5698
    %v5718 = vpack.c.b16 %v5701, %v5700
    %v5719 = vpack.c.b16 %v5703, %v5702
    %5736 = vmatprep.subr.bf16.mxu0 0
    %5737 = vmatpush1.bf16.msra.mxu0 %v5704
    %5738 = vmatprep.subr.bf16.mxu0 0
    %5739 = vmatpush1.bf16.msra.mxu0 %v5705
    %5740 = vmatprep.subr.bf16.mxu0 0
    %5741 = vmatpush1.bf16.msra.mxu0 %v5706
    %5742 = vmatprep.subr.bf16.mxu0 0
    %5743 = vmatpush1.bf16.msra.mxu0 %v5707
    %5744 = vmatprep.subr.bf16.mxu0 0
    %5745 = vmatpush1.bf16.msra.mxu0 %v5708
    %5746 = vmatprep.subr.bf16.mxu0 0
    %5747 = vmatpush1.bf16.msra.mxu0 %v5709
    %5748 = vmatprep.subr.bf16.mxu0 0
    %5749 = vmatpush1.bf16.msra.mxu0 %v5710
    %5750 = vmatprep.subr.bf16.mxu0 0
    %5751 = vmatpush1.bf16.msra.mxu0 %v5711
    %5752 = vmatprep.subr.bf16.mxu0 0
    %5753 = vmatpush1.bf16.msra.mxu0 %v5712
    %5754 = vmatprep.subr.bf16.mxu0 0
    %5755 = vmatpush1.bf16.msra.mxu0 %v5713
    %5756 = vmatprep.subr.bf16.mxu0 0
    %5757 = vmatpush1.bf16.msra.mxu0 %v5714
    %5758 = vmatprep.subr.bf16.mxu0 0
    %5759 = vmatpush1.bf16.msra.mxu0 %v5715
    %5760 = vmatprep.subr.bf16.mxu0 0
    %5761 = vmatpush1.bf16.msra.mxu0 %v5716
    %5762 = vmatprep.subr.bf16.mxu0 0
    %5763 = vmatpush1.bf16.msra.mxu0 %v5717
    %5764 = vmatprep.subr.bf16.mxu0 0
    %5765 = vmatpush1.bf16.msra.mxu0 %v5718
    %5766 = vmatprep.subr.bf16.mxu0 0
    %5767 = vmatpush1.bf16.msra.mxu0 %v5719
    %5768 = vmatprep.mubr.bf16.mxu0 %v4997
    %5769 = vmatmul.mubr.bf16.gmra.mrb[0].mxu0 %v4996
    %v5770 = vpop.f32.mrb[0].mxu0
    %v5771 = vadd.f32 0.0, %v5770
    %v5772 = vpop.f32.mrb[0].mxu0
    %v5773 = vpop.f32.mrb[0].mxu0
    %v5774 = vadd.f32 0.0, %v5773
    %v5775 = vpop.f32.mrb[0].mxu0
    %5776 = vmatprep.mubr.bf16.mxu0 %v4999
    %5777 = vmatmul.mubr.bf16.gmra.mrb[0].mxu0 %v4998
    %v5778 = vpop.f32.mrb[0].mxu0
    %v5779 = vadd.f32 0.0, %v5778
    %v5780 = vpop.f32.mrb[0].mxu0
    %v5781 = vpop.f32.mrb[0].mxu0
    %v5782 = vadd.f32 0.0, %v5781
    %v5783 = vpop.f32.mrb[0].mxu0
    %5784 = vmatprep.mubr.bf16.mxu0 %v5001
    %5785 = vmatmul.mubr.bf16.gmra.mrb[0].mxu0 %v5000
    %v5786 = vpop.f32.mrb[0].mxu0
    %v5787 = vadd.f32 0.0, %v5786
    %v5788 = vpop.f32.mrb[0].mxu0
    %v5789 = vpop.f32.mrb[0].mxu0
    %v5790 = vadd.f32 0.0, %v5789
    %v5791 = vpop.f32.mrb[0].mxu0
    %5792 = vmatprep.mubr.bf16.mxu0 %v5003
    %5793 = vmatmul.mubr.bf16.gmra.mrb[0].mxu0 %v5002
    %v5794 = vpop.f32.mrb[0].mxu0
    %v5795 = vadd.f32 0.0, %v5794
    %v5796 = vpop.f32.mrb[0].mxu0
    %v5797 = vpop.f32.mrb[0].mxu0
    %v5798 = vadd.f32 0.0, %v5797
    %v5799 = vpop.f32.mrb[0].mxu0
    %5800 = vmatprep.mubr.bf16.mxu0 %v5005
    %5801 = vmatmul.mubr.bf16.gmra.mrb[0].mxu0 %v5004
    %v5802 = vpop.f32.mrb[0].mxu0
    %v5803 = vadd.f32 0.0, %v5802
    %v5804 = vpop.f32.mrb[0].mxu0
    %v5805 = vpop.f32.mrb[0].mxu0
    %v5806 = vadd.f32 0.0, %v5805
    %v5807 = vpop.f32.mrb[0].mxu0
    %5808 = vmatprep.mubr.bf16.mxu0 %v5007
    %5809 = vmatmul.mubr.bf16.gmra.mrb[0].mxu0 %v5006
    %v5810 = vpop.f32.mrb[0].mxu0
    %v5811 = vadd.f32 0.0, %v5810
    %v5812 = vpop.f32.mrb[0].mxu0
    %v5813 = vpop.f32.mrb[0].mxu0
    %v5814 = vadd.f32 0.0, %v5813
    %v5815 = vpop.f32.mrb[0].mxu0
    %5816 = vmatprep.mubr.bf16.mxu0 %v5009
    %5817 = vmatmul.mubr.bf16.gmra.mrb[0].mxu0 %v5008
    %v5818 = vpop.f32.mrb[0].mxu0
    %v5819 = vadd.f32 0.0, %v5818
    %v5820 = vpop.f32.mrb[0].mxu0
    %v5821 = vpop.f32.mrb[0].mxu0
    %v5822 = vadd.f32 0.0, %v5821
    %v5823 = vpop.f32.mrb[0].mxu0
    %5824 = vmatprep.mubr.bf16.mxu0 %v5011
    %5825 = vmatmul.mubr.bf16.gmra.mrb[0].mxu0 %v5010
    %v5826 = vpop.f32.mrb[0].mxu0
    %v5827 = vadd.f32 0.0, %v5826
    %v5828 = vpop.f32.mrb[0].mxu0
    %v5829 = vpop.f32.mrb[0].mxu0
    %v5830 = vadd.f32 0.0, %v5829
    %v5831 = vpop.f32.mrb[0].mxu0
    %5832 = vmatprep.mubr.bf16.mxu0 %v5013
    %5833 = vmatmul.mubr.bf16.gmra.mrb[0].mxu0 %v5012
    %v5834 = vpop.f32.mrb[0].mxu0
    %v5835 = vadd.f32 0.0, %v5834
    %v5836 = vpop.f32.mrb[0].mxu0
    %v5837 = vpop.f32.mrb[0].mxu0
    %v5838 = vadd.f32 0.0, %v5837
    %v5839 = vpop.f32.mrb[0].mxu0
    %5840 = vmatprep.mubr.bf16.mxu0 %v5015
    %5841 = vmatmul.mubr.bf16.gmra.mrb[0].mxu0 %v5014
    %v5842 = vpop.f32.mrb[0].mxu0
    %v5843 = vadd.f32 0.0, %v5842
    %v5844 = vpop.f32.mrb[0].mxu0
    %v5845 = vpop.f32.mrb[0].mxu0
    %v5846 = vadd.f32 0.0, %v5845
    %v5847 = vpop.f32.mrb[0].mxu0
    %5848 = vmatprep.mubr.bf16.mxu0 %v5017
    %5849 = vmatmul.mubr.bf16.gmra.mrb[0].mxu0 %v5016
    %v5850 = vpop.f32.mrb[0].mxu0
    %v5851 = vadd.f32 0.0, %v5850
    %v5852 = vpop.f32.mrb[0].mxu0
    %v5853 = vpop.f32.mrb[0].mxu0
    %v5854 = vadd.f32 0.0, %v5853
    %v5855 = vpop.f32.mrb[0].mxu0
    %5856 = vmatprep.mubr.bf16.mxu0 %v5019
    %5857 = vmatmul.mubr.bf16.gmra.mrb[0].mxu0 %v5018
    %v5858 = vpop.f32.mrb[0].mxu0
    %v5859 = vadd.f32 0.0, %v5858
    %v5860 = vpop.f32.mrb[0].mxu0
    %v5861 = vpop.f32.mrb[0].mxu0
    %v5862 = vadd.f32 0.0, %v5861
    %v5863 = vpop.f32.mrb[0].mxu0
    %5864 = vmatprep.mubr.bf16.mxu0 %v5021
    %5865 = vmatmul.mubr.bf16.gmra.mrb[0].mxu0 %v5020
    %v5866 = vpop.f32.mrb[0].mxu0
    %v5867 = vadd.f32 0.0, %v5866
    %v5868 = vpop.f32.mrb[0].mxu0
    %v5869 = vpop.f32.mrb[0].mxu0
    %v5870 = vadd.f32 0.0, %v5869
    %v5871 = vpop.f32.mrb[0].mxu0
    %5872 = vmatprep.mubr.bf16.mxu0 %v5023
    %5873 = vmatmul.mubr.bf16.gmra.mrb[0].mxu0 %v5022
    %v5874 = vpop.f32.mrb[0].mxu0
    %v5875 = vadd.f32 0.0, %v5874
    %v5876 = vpop.f32.mrb[0].mxu0
    %v5877 = vpop.f32.mrb[0].mxu0
    %v5878 = vadd.f32 0.0, %v5877
    %v5879 = vpop.f32.mrb[0].mxu0
    %5880 = vmatprep.mubr.bf16.mxu0 %v5025
    %5881 = vmatmul.mubr.bf16.gmra.mrb[0].mxu0 %v5024
    %v5882 = vpop.f32.mrb[0].mxu0
    %v5883 = vadd.f32 0.0, %v5882
    %v5884 = vpop.f32.mrb[0].mxu0
    %v5885 = vpop.f32.mrb[0].mxu0
    %v5886 = vadd.f32 0.0, %v5885
    %v5887 = vpop.f32.mrb[0].mxu0
    %5888 = vmatprep.mubr.bf16.mxu0 %v5633
    %5889 = vmatmul.mubr.bf16.gmra.mrb[0].mxu0 %v5632
    %v5890 = vpop.f32.mrb[0].mxu0
    %v5891 = vadd.f32 0.0, %v5890
    %v5892 = vpop.f32.mrb[0].mxu0
    %v5893 = vpop.f32.mrb[0].mxu0
    %v5894 = vadd.f32 0.0, %v5893
    %v5895 = vpop.f32.mrb[0].mxu0
    %5896 = vmatprep.mubr.bf16.mxu0 %v5029
    %5897 = vmatmul.mubr.bf16.gmra.mrb[0].mxu0 %v5028
    %v5898 = vpop.f32.mrb[0].mxu0
    %v5899 = vadd.f32 0.0, %v5898
    %v5900 = vpop.f32.mrb[0].mxu0
    %v5901 = vpop.f32.mrb[0].mxu0
    %v5902 = vadd.f32 0.0, %v5901
    %v5903 = vpop.f32.mrb[0].mxu0
    %5904 = vmatprep.mubr.bf16.mxu0 %v5031
    %5905 = vmatmul.mubr.bf16.gmra.mrb[0].mxu0 %v5030
    %v5906 = vpop.f32.mrb[0].mxu0
    %v5907 = vadd.f32 0.0, %v5906
    %v5908 = vpop.f32.mrb[0].mxu0
    %v5909 = vpop.f32.mrb[0].mxu0
    %v5910 = vadd.f32 0.0, %v5909
    %v5911 = vpop.f32.mrb[0].mxu0
    %5912 = vmatprep.mubr.bf16.mxu0 %v5033
    %5913 = vmatmul.mubr.bf16.gmra.mrb[0].mxu0 %v5032
    %v5914 = vpop.f32.mrb[0].mxu0
    %v5915 = vadd.f32 0.0, %v5914
    %v5916 = vpop.f32.mrb[0].mxu0
    %v5917 = vpop.f32.mrb[0].mxu0
    %v5918 = vadd.f32 0.0, %v5917
    %v5919 = vpop.f32.mrb[0].mxu0
    %5920 = vmatprep.mubr.bf16.mxu0 %v5035
    %5921 = vmatmul.mubr.bf16.gmra.mrb[0].mxu0 %v5034
    %v5922 = vpop.f32.mrb[0].mxu0
    %v5923 = vadd.f32 0.0, %v5922
    %v5924 = vpop.f32.mrb[0].mxu0
    %v5925 = vpop.f32.mrb[0].mxu0
    %v5926 = vadd.f32 0.0, %v5925
    %v5927 = vpop.f32.mrb[0].mxu0
    %5928 = vmatprep.mubr.bf16.mxu0 %v5037
    %5929 = vmatmul.mubr.bf16.gmra.mrb[0].mxu0 %v5036
    %v5930 = vpop.f32.mrb[0].mxu0
    %v5931 = vadd.f32 0.0, %v5930
    %v5932 = vpop.f32.mrb[0].mxu0
    %v5933 = vpop.f32.mrb[0].mxu0
    %v5934 = vadd.f32 0.0, %v5933
    %v5935 = vpop.f32.mrb[0].mxu0
    %5936 = vmatprep.mubr.bf16.mxu0 %v5039
    %5937 = vmatmul.mubr.bf16.gmra.mrb[0].mxu0 %v5038
    %v5938 = vpop.f32.mrb[0].mxu0
    %v5939 = vadd.f32 0.0, %v5938
    %v5940 = vpop.f32.mrb[0].mxu0
    %v5941 = vpop.f32.mrb[0].mxu0
    %v5942 = vadd.f32 0.0, %v5941
    %v5943 = vpop.f32.mrb[0].mxu0
    %5944 = vmatprep.mubr.bf16.mxu0 %v5041
    %5945 = vmatmul.mubr.bf16.gmra.mrb[0].mxu0 %v5040
    %v5946 = vpop.f32.mrb[0].mxu0
    %v5947 = vadd.f32 0.0, %v5946
    %v5948 = vpop.f32.mrb[0].mxu0
    %v5949 = vpop.f32.mrb[0].mxu0
    %v5950 = vadd.f32 0.0, %v5949
    %v5951 = vpop.f32.mrb[0].mxu0
    %5952 = vmatprep.mubr.bf16.mxu0 %v5043
    %5953 = vmatmul.mubr.bf16.gmra.mrb[0].mxu0 %v5042
    %v5954 = vpop.f32.mrb[0].mxu0
    %v5955 = vadd.f32 0.0, %v5954
    %v5956 = vpop.f32.mrb[0].mxu0
    %v5957 = vpop.f32.mrb[0].mxu0
    %v5958 = vadd.f32 0.0, %v5957
    %v5959 = vpop.f32.mrb[0].mxu0
    %5960 = vmatprep.mubr.bf16.mxu0 %v5045
    %5961 = vmatmul.mubr.bf16.gmra.mrb[0].mxu0 %v5044
    %v5962 = vpop.f32.mrb[0].mxu0
    %v5963 = vadd.f32 0.0, %v5962
    %v5964 = vpop.f32.mrb[0].mxu0
    %v5965 = vpop.f32.mrb[0].mxu0
    %v5966 = vadd.f32 0.0, %v5965
    %v5967 = vpop.f32.mrb[0].mxu0
    %5968 = vmatprep.mubr.bf16.mxu0 %v5047
    %5969 = vmatmul.mubr.bf16.gmra.mrb[0].mxu0 %v5046
    %v5970 = vpop.f32.mrb[0].mxu0
    %v5971 = vadd.f32 0.0, %v5970
    %v5972 = vpop.f32.mrb[0].mxu0
    %v5973 = vpop.f32.mrb[0].mxu0
    %v5974 = vadd.f32 0.0, %v5973
    %v5975 = vpop.f32.mrb[0].mxu0
    %5976 = vmatprep.mubr.bf16.mxu0 %v5049
    %5977 = vmatmul.mubr.bf16.gmra.mrb[0].mxu0 %v5048
    %v5978 = vpop.f32.mrb[0].mxu0
    %v5979 = vadd.f32 0.0, %v5978
    %v5980 = vpop.f32.mrb[0].mxu0
    %v5981 = vpop.f32.mrb[0].mxu0
    %v5982 = vadd.f32 0.0, %v5981
    %v5983 = vpop.f32.mrb[0].mxu0
    %5984 = vmatprep.mubr.bf16.mxu0 %v5051
    %5985 = vmatmul.mubr.bf16.gmra.mrb[0].mxu0 %v5050
    %v5986 = vpop.f32.mrb[0].mxu0
    %v5987 = vadd.f32 0.0, %v5986
    %v5988 = vpop.f32.mrb[0].mxu0
    %v5989 = vpop.f32.mrb[0].mxu0
    %v5990 = vadd.f32 0.0, %v5989
    %v5991 = vpop.f32.mrb[0].mxu0
    %5992 = vmatprep.mubr.bf16.mxu0 %v5053
    %5993 = vmatmul.mubr.bf16.gmra.mrb[0].mxu0 %v5052
    %v5994 = vpop.f32.mrb[0].mxu0
    %v5995 = vadd.f32 0.0, %v5994
    %v5996 = vpop.f32.mrb[0].mxu0
    %v5997 = vpop.f32.mrb[0].mxu0
    %v5998 = vadd.f32 0.0, %v5997
    %v5999 = vpop.f32.mrb[0].mxu0
    %6000 = vmatprep.mubr.bf16.mxu0 %v5055
    %6001 = vmatmul.mubr.bf16.gmra.mrb[0].mxu0 %v5054
    %v6002 = vpop.f32.mrb[0].mxu0
    %v6003 = vadd.f32 0.0, %v6002
    %v6004 = vpop.f32.mrb[0].mxu0
    %v6005 = vpop.f32.mrb[0].mxu0
    %v6006 = vadd.f32 0.0, %v6005
    %v6007 = vpop.f32.mrb[0].mxu0
    %6008 = vmatprep.mubr.bf16.mxu0 %v5057
    %6009 = vmatmul.mubr.bf16.gmra.mrb[0].mxu0 %v5056
    %v6010 = vpop.f32.mrb[0].mxu0
    %v6011 = vadd.f32 0.0, %v6010
    %v6012 = vpop.f32.mrb[0].mxu0
    %v6013 = vpop.f32.mrb[0].mxu0
    %v6014 = vadd.f32 0.0, %v6013
    %v6015 = vpop.f32.mrb[0].mxu0
    %6016 = vmatprep.mubr.bf16.mxu0 %v5635
    %6017 = vmatmul.mubr.bf16.gmra.mrb[0].mxu0 %v5634
    %v6018 = vpop.f32.mrb[0].mxu0
    %v6019 = vadd.f32 0.0, %v6018
    %v6020 = vpop.f32.mrb[0].mxu0
    %v6021 = vpop.f32.mrb[0].mxu0
    %v6022 = vadd.f32 0.0, %v6021
    %v6023 = vpop.f32.mrb[0].mxu0
    %6024 = vdwg.mxu0
    %v6025 = vadd.f32 %v5507, %v5771
    %v6026 = vadd.f32 %v5508, %v5774
    %v6027 = vadd.f32 %v5509, %v5779
    %v6028 = vadd.f32 %v5510, %v5782
    %v6029 = vadd.f32 %v5511, %v5787
    %v6030 = vadd.f32 %v5512, %v5790
    %v6031 = vadd.f32 %v5513, %v5795
    %v6032 = vadd.f32 %v5514, %v5798
    %v6033 = vadd.f32 %v5515, %v5803
    %v6034 = vadd.f32 %v5516, %v5806
    %v6035 = vadd.f32 %v5517, %v5811
    %v6036 = vadd.f32 %v5518, %v5814
    %v6037 = vadd.f32 %v5519, %v5819
    %v6038 = vadd.f32 %v5520, %v5822
    %v6039 = vadd.f32 %v5521, %v5827
    %v6040 = vadd.f32 %v5522, %v5830
    %v6041 = vadd.f32 %v5523, %v5835
    %v6042 = vadd.f32 %v5524, %v5838
    %v6043 = vadd.f32 %v5525, %v5843
    %v6044 = vadd.f32 %v5526, %v5846
    %v6045 = vadd.f32 %v5527, %v5851
    %v6046 = vadd.f32 %v5528, %v5854
    %v6047 = vadd.f32 %v5529, %v5859
    %v6048 = vadd.f32 %v5530, %v5862
    %v6049 = vadd.f32 %v5531, %v5867
    %v6050 = vadd.f32 %v5532, %v5870
    %v6051 = vadd.f32 %v5533, %v5875
    %v6052 = vadd.f32 %v5534, %v5878
    %v6053 = vadd.f32 %v5535, %v5883
    %v6054 = vadd.f32 %v5536, %v5886
    %v6055 = vadd.f32 %v5537, %v5891
    %v6056 = vadd.f32 %v5538, %v5894
    %v6057 = vadd.f32 %v5539, %v5899
    %v6058 = vadd.f32 %v5540, %v5902
    %v6059 = vadd.f32 %v5541, %v5907
    %v6060 = vadd.f32 %v5542, %v5910
    %v6061 = vadd.f32 %v5543, %v5915
    %v6062 = vadd.f32 %v5544, %v5918
    %v6063 = vadd.f32 %v5545, %v5923
    %v6064 = vadd.f32 %v5546, %v5926
    %v6065 = vadd.f32 %v5547, %v5931
    %v6066 = vadd.f32 %v5548, %v5934
    %v6067 = vadd.f32 %v5549, %v5939
    %v6068 = vadd.f32 %v5550, %v5942
    %v6069 = vadd.f32 %v5551, %v5947
    %v6070 = vadd.f32 %v5552, %v5950
    %v6071 = vadd.f32 %v5553, %v5955
    %v6072 = vadd.f32 %v5554, %v5958
    %v6073 = vadd.f32 %v5555, %v5963
    %v6074 = vadd.f32 %v5556, %v5966
    %v6075 = vadd.f32 %v5557, %v5971
    %v6076 = vadd.f32 %v5558, %v5974
    %v6077 = vadd.f32 %v5559, %v5979
    %v6078 = vadd.f32 %v5560, %v5982
    %v6079 = vadd.f32 %v5561, %v5987
    %v6080 = vadd.f32 %v5562, %v5990
    %v6081 = vadd.f32 %v5563, %v5995
    %v6082 = vadd.f32 %v5564, %v5998
    %v6083 = vadd.f32 %v5565, %v6003
    %v6084 = vadd.f32 %v5566, %v6006
    %v6085 = vadd.f32 %v5567, %v6011
    %v6086 = vadd.f32 %v5568, %v6014
    %v6087 = vadd.f32 %v5569, %v6019
    %v6088 = vadd.f32 %v5570, %v6022
    %v6095 = vrot.slane %v4491, 5
    %v6096 = vrot.slane %v6095, 4
    %v6097 = vrot.slane %v1817, 5
    %v6098 = vsel %vm4608, %v6096, %v6097
    %v6099 = vrot.slane %v6097, 4
    %v6100 = vrot.slane %v1818, 5
    %v6101 = vsel %vm4608, %v6099, %v6100
    %v6102 = vrot.slane %v4509, 5
    %v6103 = vrot.slane %v6102, 4
    %v6104 = vrot.slane %v1871, 5
    %v6105 = vsel %vm4608, %v6103, %v6104
    %v6106 = vrot.slane %v6104, 4
    %v6107 = vrot.slane %v1872, 5
    %v6108 = vsel %vm4608, %v6106, %v6107
    %s6109 = scalar_lea.vmem %s1, 1024
    %v6110 = vld [vmem:[%s6109] sm:$0xf]
    %v6111 = vld [vmem:[%s6109 + $0x4] sm:$0xf]
    %v6112 = vld [vmem:[%s6109 + $0x8] sm:$0xf]
    %v6113 = vld [vmem:[%s6109 + $0xc] sm:$0xf]
    %v6114 = vld [vmem:[%s6109 + $0x10] sm:$0xf]
    %v6115 = vld [vmem:[%s6109 + $0x14] sm:$0xf]
    %v6116 = vld [vmem:[%s6109 + $0x18] sm:$0xf]
    %v6117 = vld [vmem:[%s6109 + $0x1c] sm:$0xf]
    %v6118 = vld [vmem:[%s6109 + $0x20] sm:$0xf]
    %v6119 = vld [vmem:[%s6109 + $0x24] sm:$0xf]
    %v6120 = vld [vmem:[%s6109 + $0x28] sm:$0xf]
    %v6121 = vld [vmem:[%s6109 + $0x2c] sm:$0xf]
    %v6122 = vld [vmem:[%s6109 + $0x30] sm:$0xf]
    %v6123 = vld [vmem:[%s6109 + $0x34] sm:$0xf]
    %v6124 = vld [vmem:[%s6109 + $0x38] sm:$0xf]
    %v6125 = vld [vmem:[%s6109 + $0x3c] sm:$0xf]
    %v6126 = vld [vmem:[%s6109 + $0x40] sm:$0xf]
    %v6127 = vld [vmem:[%s6109 + $0x44] sm:$0xf]
    %v6128 = vld [vmem:[%s6109 + $0x48] sm:$0xf]
    %v6129 = vld [vmem:[%s6109 + $0x4c] sm:$0xf]
    %v6130 = vld [vmem:[%s6109 + $0x50] sm:$0xf]
    %v6131 = vld [vmem:[%s6109 + $0x54] sm:$0xf]
    %v6132 = vld [vmem:[%s6109 + $0x58] sm:$0xf]
    %v6133 = vld [vmem:[%s6109 + $0x5c] sm:$0xf]
    %v6134 = vld [vmem:[%s6109 + $0x60] sm:$0xf]
    %v6135 = vld [vmem:[%s6109 + $0x64] sm:$0xf]
    %v6136 = vld [vmem:[%s6109 + $0x68] sm:$0xf]
    %v6137 = vld [vmem:[%s6109 + $0x6c] sm:$0xf]
    %v6138 = vld [vmem:[%s6109 + $0x70] sm:$0xf]
    %v6139 = vld [vmem:[%s6109 + $0x74] sm:$0xf]
    %v6140 = vld [vmem:[%s6109 + $0x78] sm:$0xf]
    %v6141 = vld [vmem:[%s6109 + $0x7c] sm:$0xf]
    %v6142 = vunpack.c.l.b16 %v6098
    %v6143 = vunpack.c.h.b16 %v6098
    %v6144 = vunpack.c.l.b16 %v6101
    %v6145 = vunpack.c.h.b16 %v6101
    %v6146 = vunpack.c.l.b16 %v6105
    %v6147 = vunpack.c.h.b16 %v6105
    %v6148 = vunpack.c.l.b16 %v6108
    %v6149 = vunpack.c.h.b16 %v6108
    %v6150 = vpack.c.b16 %v6144, %v6142
    %v6151 = vpack.c.b16 %v6145, %v6143
    %v6152 = vpack.c.b16 %v6148, %v6146
    %v6153 = vpack.c.b16 %v6149, %v6147
    %v6190 = vunpack.c.l.b16 %v6110
    %v6191 = vunpack.c.l.b16 %v6111
    %v6192 = vunpack.c.l.b16 %v6112
    %v6193 = vunpack.c.l.b16 %v6113
    %v6194 = vunpack.c.l.b16 %v6114
    %v6195 = vunpack.c.l.b16 %v6115
    %v6196 = vunpack.c.l.b16 %v6116
    %v6197 = vunpack.c.l.b16 %v6117
    %v6198 = vunpack.c.l.b16 %v6118
    %v6199 = vunpack.c.l.b16 %v6119
    %v6200 = vunpack.c.l.b16 %v6120
    %v6201 = vunpack.c.l.b16 %v6121
    %v6202 = vunpack.c.l.b16 %v6122
    %v6203 = vunpack.c.l.b16 %v6123
    %v6204 = vunpack.c.l.b16 %v6124
    %v6205 = vunpack.c.l.b16 %v6125
    %v6206 = vunpack.c.l.b16 %v6126
    %v6207 = vunpack.c.l.b16 %v6127
    %v6208 = vunpack.c.l.b16 %v6128
    %v6209 = vunpack.c.l.b16 %v6129
    %v6210 = vunpack.c.l.b16 %v6130
    %v6211 = vunpack.c.l.b16 %v6131
    %v6212 = vunpack.c.l.b16 %v6132
    %v6213 = vunpack.c.l.b16 %v6133
    %v6214 = vunpack.c.l.b16 %v6134
    %v6215 = vunpack.c.l.b16 %v6135
    %v6216 = vunpack.c.l.b16 %v6136
    %v6217 = vunpack.c.l.b16 %v6137
    %v6218 = vunpack.c.l.b16 %v6138
    %v6219 = vunpack.c.l.b16 %v6139
    %v6220 = vunpack.c.l.b16 %v6140
    %v6221 = vunpack.c.l.b16 %v6141
    %v6222 = vpack.c.b16 %v6191, %v6190
    %v6223 = vpack.c.b16 %v6193, %v6192
    %v6224 = vpack.c.b16 %v6195, %v6194
    %v6225 = vpack.c.b16 %v6197, %v6196
    %v6226 = vpack.c.b16 %v6199, %v6198
    %v6227 = vpack.c.b16 %v6201, %v6200
    %v6228 = vpack.c.b16 %v6203, %v6202
    %v6229 = vpack.c.b16 %v6205, %v6204
    %v6230 = vpack.c.b16 %v6207, %v6206
    %v6231 = vpack.c.b16 %v6209, %v6208
    %v6232 = vpack.c.b16 %v6211, %v6210
    %v6233 = vpack.c.b16 %v6213, %v6212
    %v6234 = vpack.c.b16 %v6215, %v6214
    %v6235 = vpack.c.b16 %v6217, %v6216
    %v6236 = vpack.c.b16 %v6219, %v6218
    %v6237 = vpack.c.b16 %v6221, %v6220
    %6254 = vmatprep.subr.bf16.mxu0 0
    %6255 = vmatpush1.bf16.msra.mxu0 %v6222
    %6256 = vmatprep.subr.bf16.mxu0 0
    %6257 = vmatpush1.bf16.msra.mxu0 %v6223
    %6258 = vmatprep.subr.bf16.mxu0 0
    %6259 = vmatpush1.bf16.msra.mxu0 %v6224
    %6260 = vmatprep.subr.bf16.mxu0 0
    %6261 = vmatpush1.bf16.msra.mxu0 %v6225
    %6262 = vmatprep.subr.bf16.mxu0 0
    %6263 = vmatpush1.bf16.msra.mxu0 %v6226
    %6264 = vmatprep.subr.bf16.mxu0 0
    %6265 = vmatpush1.bf16.msra.mxu0 %v6227
    %6266 = vmatprep.subr.bf16.mxu0 0
    %6267 = vmatpush1.bf16.msra.mxu0 %v6228
    %6268 = vmatprep.subr.bf16.mxu0 0
    %6269 = vmatpush1.bf16.msra.mxu0 %v6229
    %6270 = vmatprep.subr.bf16.mxu0 0
    %6271 = vmatpush1.bf16.msra.mxu0 %v6230
    %6272 = vmatprep.subr.bf16.mxu0 0
    %6273 = vmatpush1.bf16.msra.mxu0 %v6231
    %6274 = vmatprep.subr.bf16.mxu0 0
    %6275 = vmatpush1.bf16.msra.mxu0 %v6232
    %6276 = vmatprep.subr.bf16.mxu0 0
    %6277 = vmatpush1.bf16.msra.mxu0 %v6233
    %6278 = vmatprep.subr.bf16.mxu0 0
    %6279 = vmatpush1.bf16.msra.mxu0 %v6234
    %6280 = vmatprep.subr.bf16.mxu0 0
    %6281 = vmatpush1.bf16.msra.mxu0 %v6235
    %6282 = vmatprep.subr.bf16.mxu0 0
    %6283 = vmatpush1.bf16.msra.mxu0 %v6236
    %6284 = vmatprep.subr.bf16.mxu0 0
    %6285 = vmatpush1.bf16.msra.mxu0 %v6237
    %6286 = vmatprep.mubr.bf16.mxu0 %v4999
    %6287 = vmatmul.mubr.bf16.gmra.mrb[0].mxu0 %v4998
    %v6288 = vpop.f32.mrb[0].mxu0
    %v6289 = vadd.f32 0.0, %v6288
    %v6290 = vpop.f32.mrb[0].mxu0
    %v6291 = vpop.f32.mrb[0].mxu0
    %v6292 = vadd.f32 0.0, %v6291
    %v6293 = vpop.f32.mrb[0].mxu0
    %6294 = vmatprep.mubr.bf16.mxu0 %v5001
    %6295 = vmatmul.mubr.bf16.gmra.mrb[0].mxu0 %v5000
    %v6296 = vpop.f32.mrb[0].mxu0
    %v6297 = vadd.f32 0.0, %v6296
    %v6298 = vpop.f32.mrb[0].mxu0
    %v6299 = vpop.f32.mrb[0].mxu0
    %v6300 = vadd.f32 0.0, %v6299
    %v6301 = vpop.f32.mrb[0].mxu0
    %6302 = vmatprep.mubr.bf16.mxu0 %v5003
    %6303 = vmatmul.mubr.bf16.gmra.mrb[0].mxu0 %v5002
    %v6304 = vpop.f32.mrb[0].mxu0
    %v6305 = vadd.f32 0.0, %v6304
    %v6306 = vpop.f32.mrb[0].mxu0
    %v6307 = vpop.f32.mrb[0].mxu0
    %v6308 = vadd.f32 0.0, %v6307
    %v6309 = vpop.f32.mrb[0].mxu0
    %6310 = vmatprep.mubr.bf16.mxu0 %v5005
    %6311 = vmatmul.mubr.bf16.gmra.mrb[0].mxu0 %v5004
    %v6312 = vpop.f32.mrb[0].mxu0
    %v6313 = vadd.f32 0.0, %v6312
    %v6314 = vpop.f32.mrb[0].mxu0
    %v6315 = vpop.f32.mrb[0].mxu0
    %v6316 = vadd.f32 0.0, %v6315
    %v6317 = vpop.f32.mrb[0].mxu0
    %6318 = vmatprep.mubr.bf16.mxu0 %v5007
    %6319 = vmatmul.mubr.bf16.gmra.mrb[0].mxu0 %v5006
    %v6320 = vpop.f32.mrb[0].mxu0
    %v6321 = vadd.f32 0.0, %v6320
    %v6322 = vpop.f32.mrb[0].mxu0
    %v6323 = vpop.f32.mrb[0].mxu0
    %v6324 = vadd.f32 0.0, %v6323
    %v6325 = vpop.f32.mrb[0].mxu0
    %6326 = vmatprep.mubr.bf16.mxu0 %v5009
    %6327 = vmatmul.mubr.bf16.gmra.mrb[0].mxu0 %v5008
    %v6328 = vpop.f32.mrb[0].mxu0
    %v6329 = vadd.f32 0.0, %v6328
    %v6330 = vpop.f32.mrb[0].mxu0
    %v6331 = vpop.f32.mrb[0].mxu0
    %v6332 = vadd.f32 0.0, %v6331
    %v6333 = vpop.f32.mrb[0].mxu0
    %6334 = vmatprep.mubr.bf16.mxu0 %v5011
    %6335 = vmatmul.mubr.bf16.gmra.mrb[0].mxu0 %v5010
    %v6336 = vpop.f32.mrb[0].mxu0
    %v6337 = vadd.f32 0.0, %v6336
    %v6338 = vpop.f32.mrb[0].mxu0
    %v6339 = vpop.f32.mrb[0].mxu0
    %v6340 = vadd.f32 0.0, %v6339
    %v6341 = vpop.f32.mrb[0].mxu0
    %6342 = vmatprep.mubr.bf16.mxu0 %v5013
    %6343 = vmatmul.mubr.bf16.gmra.mrb[0].mxu0 %v5012
    %v6344 = vpop.f32.mrb[0].mxu0
    %v6345 = vadd.f32 0.0, %v6344
    %v6346 = vpop.f32.mrb[0].mxu0
    %v6347 = vpop.f32.mrb[0].mxu0
    %v6348 = vadd.f32 0.0, %v6347
    %v6349 = vpop.f32.mrb[0].mxu0
    %6350 = vmatprep.mubr.bf16.mxu0 %v5015
    %6351 = vmatmul.mubr.bf16.gmra.mrb[0].mxu0 %v5014
    %v6352 = vpop.f32.mrb[0].mxu0
    %v6353 = vadd.f32 0.0, %v6352
    %v6354 = vpop.f32.mrb[0].mxu0
    %v6355 = vpop.f32.mrb[0].mxu0
    %v6356 = vadd.f32 0.0, %v6355
    %v6357 = vpop.f32.mrb[0].mxu0
    %6358 = vmatprep.mubr.bf16.mxu0 %v5017
    %6359 = vmatmul.mubr.bf16.gmra.mrb[0].mxu0 %v5016
    %v6360 = vpop.f32.mrb[0].mxu0
    %v6361 = vadd.f32 0.0, %v6360
    %v6362 = vpop.f32.mrb[0].mxu0
    %v6363 = vpop.f32.mrb[0].mxu0
    %v6364 = vadd.f32 0.0, %v6363
    %v6365 = vpop.f32.mrb[0].mxu0
    %6366 = vmatprep.mubr.bf16.mxu0 %v5019
    %6367 = vmatmul.mubr.bf16.gmra.mrb[0].mxu0 %v5018
    %v6368 = vpop.f32.mrb[0].mxu0
    %v6369 = vadd.f32 0.0, %v6368
    %v6370 = vpop.f32.mrb[0].mxu0
    %v6371 = vpop.f32.mrb[0].mxu0
    %v6372 = vadd.f32 0.0, %v6371
    %v6373 = vpop.f32.mrb[0].mxu0
    %6374 = vmatprep.mubr.bf16.mxu0 %v5021
    %6375 = vmatmul.mubr.bf16.gmra.mrb[0].mxu0 %v5020
    %v6376 = vpop.f32.mrb[0].mxu0
    %v6377 = vadd.f32 0.0, %v6376
    %v6378 = vpop.f32.mrb[0].mxu0
    %v6379 = vpop.f32.mrb[0].mxu0
    %v6380 = vadd.f32 0.0, %v6379
    %v6381 = vpop.f32.mrb[0].mxu0
    %6382 = vmatprep.mubr.bf16.mxu0 %v5023
    %6383 = vmatmul.mubr.bf16.gmra.mrb[0].mxu0 %v5022
    %v6384 = vpop.f32.mrb[0].mxu0
    %v6385 = vadd.f32 0.0, %v6384
    %v6386 = vpop.f32.mrb[0].mxu0
    %v6387 = vpop.f32.mrb[0].mxu0
    %v6388 = vadd.f32 0.0, %v6387
    %v6389 = vpop.f32.mrb[0].mxu0
    %6390 = vmatprep.mubr.bf16.mxu0 %v5025
    %6391 = vmatmul.mubr.bf16.gmra.mrb[0].mxu0 %v5024
    %v6392 = vpop.f32.mrb[0].mxu0
    %v6393 = vadd.f32 0.0, %v6392
    %v6394 = vpop.f32.mrb[0].mxu0
    %v6395 = vpop.f32.mrb[0].mxu0
    %v6396 = vadd.f32 0.0, %v6395
    %v6397 = vpop.f32.mrb[0].mxu0
    %6398 = vmatprep.mubr.bf16.mxu0 %v5633
    %6399 = vmatmul.mubr.bf16.gmra.mrb[0].mxu0 %v5632
    %v6400 = vpop.f32.mrb[0].mxu0
    %v6401 = vadd.f32 0.0, %v6400
    %v6402 = vpop.f32.mrb[0].mxu0
    %v6403 = vpop.f32.mrb[0].mxu0
    %v6404 = vadd.f32 0.0, %v6403
    %v6405 = vpop.f32.mrb[0].mxu0
    %6406 = vmatprep.mubr.bf16.mxu0 %v6151
    %6407 = vmatmul.mubr.bf16.gmra.mrb[0].mxu0 %v6150
    %v6408 = vpop.f32.mrb[0].mxu0
    %v6409 = vadd.f32 0.0, %v6408
    %v6410 = vpop.f32.mrb[0].mxu0
    %v6411 = vpop.f32.mrb[0].mxu0
    %v6412 = vadd.f32 0.0, %v6411
    %v6413 = vpop.f32.mrb[0].mxu0
    %6414 = vmatprep.mubr.bf16.mxu0 %v5031
    %6415 = vmatmul.mubr.bf16.gmra.mrb[0].mxu0 %v5030
    %v6416 = vpop.f32.mrb[0].mxu0
    %v6417 = vadd.f32 0.0, %v6416
    %v6418 = vpop.f32.mrb[0].mxu0
    %v6419 = vpop.f32.mrb[0].mxu0
    %v6420 = vadd.f32 0.0, %v6419
    %v6421 = vpop.f32.mrb[0].mxu0
    %6422 = vmatprep.mubr.bf16.mxu0 %v5033
    %6423 = vmatmul.mubr.bf16.gmra.mrb[0].mxu0 %v5032
    %v6424 = vpop.f32.mrb[0].mxu0
    %v6425 = vadd.f32 0.0, %v6424
    %v6426 = vpop.f32.mrb[0].mxu0
    %v6427 = vpop.f32.mrb[0].mxu0
    %v6428 = vadd.f32 0.0, %v6427
    %v6429 = vpop.f32.mrb[0].mxu0
    %6430 = vmatprep.mubr.bf16.mxu0 %v5035
    %6431 = vmatmul.mubr.bf16.gmra.mrb[0].mxu0 %v5034
    %v6432 = vpop.f32.mrb[0].mxu0
    %v6433 = vadd.f32 0.0, %v6432
    %v6434 = vpop.f32.mrb[0].mxu0
    %v6435 = vpop.f32.mrb[0].mxu0
    %v6436 = vadd.f32 0.0, %v6435
    %v6437 = vpop.f32.mrb[0].mxu0
    %6438 = vmatprep.mubr.bf16.mxu0 %v5037
    %6439 = vmatmul.mubr.bf16.gmra.mrb[0].mxu0 %v5036
    %v6440 = vpop.f32.mrb[0].mxu0
    %v6441 = vadd.f32 0.0, %v6440
    %v6442 = vpop.f32.mrb[0].mxu0
    %v6443 = vpop.f32.mrb[0].mxu0
    %v6444 = vadd.f32 0.0, %v6443
    %v6445 = vpop.f32.mrb[0].mxu0
    %6446 = vmatprep.mubr.bf16.mxu0 %v5039
    %6447 = vmatmul.mubr.bf16.gmra.mrb[0].mxu0 %v5038
    %v6448 = vpop.f32.mrb[0].mxu0
    %v6449 = vadd.f32 0.0, %v6448
    %v6450 = vpop.f32.mrb[0].mxu0
    %v6451 = vpop.f32.mrb[0].mxu0
    %v6452 = vadd.f32 0.0, %v6451
    %v6453 = vpop.f32.mrb[0].mxu0
    %6454 = vmatprep.mubr.bf16.mxu0 %v5041
    %6455 = vmatmul.mubr.bf16.gmra.mrb[0].mxu0 %v5040
    %v6456 = vpop.f32.mrb[0].mxu0
    %v6457 = vadd.f32 0.0, %v6456
    %v6458 = vpop.f32.mrb[0].mxu0
    %v6459 = vpop.f32.mrb[0].mxu0
    %v6460 = vadd.f32 0.0, %v6459
    %v6461 = vpop.f32.mrb[0].mxu0
    %6462 = vmatprep.mubr.bf16.mxu0 %v5043
    %6463 = vmatmul.mubr.bf16.gmra.mrb[0].mxu0 %v5042
    %v6464 = vpop.f32.mrb[0].mxu0
    %v6465 = vadd.f32 0.0, %v6464
    %v6466 = vpop.f32.mrb[0].mxu0
    %v6467 = vpop.f32.mrb[0].mxu0
    %v6468 = vadd.f32 0.0, %v6467
    %v6469 = vpop.f32.mrb[0].mxu0
    %6470 = vmatprep.mubr.bf16.mxu0 %v5045
    %6471 = vmatmul.mubr.bf16.gmra.mrb[0].mxu0 %v5044
    %v6472 = vpop.f32.mrb[0].mxu0
    %v6473 = vadd.f32 0.0, %v6472
    %v6474 = vpop.f32.mrb[0].mxu0
    %v6475 = vpop.f32.mrb[0].mxu0
    %v6476 = vadd.f32 0.0, %v6475
    %v6477 = vpop.f32.mrb[0].mxu0
    %6478 = vmatprep.mubr.bf16.mxu0 %v5047
    %6479 = vmatmul.mubr.bf16.gmra.mrb[0].mxu0 %v5046
    %v6480 = vpop.f32.mrb[0].mxu0
    %v6481 = vadd.f32 0.0, %v6480
    %v6482 = vpop.f32.mrb[0].mxu0
    %v6483 = vpop.f32.mrb[0].mxu0
    %v6484 = vadd.f32 0.0, %v6483
    %v6485 = vpop.f32.mrb[0].mxu0
    %6486 = vmatprep.mubr.bf16.mxu0 %v5049
    %6487 = vmatmul.mubr.bf16.gmra.mrb[0].mxu0 %v5048
    %v6488 = vpop.f32.mrb[0].mxu0
    %v6489 = vadd.f32 0.0, %v6488
    %v6490 = vpop.f32.mrb[0].mxu0
    %v6491 = vpop.f32.mrb[0].mxu0
    %v6492 = vadd.f32 0.0, %v6491
    %v6493 = vpop.f32.mrb[0].mxu0
    %6494 = vmatprep.mubr.bf16.mxu0 %v5051
    %6495 = vmatmul.mubr.bf16.gmra.mrb[0].mxu0 %v5050
    %v6496 = vpop.f32.mrb[0].mxu0
    %v6497 = vadd.f32 0.0, %v6496
    %v6498 = vpop.f32.mrb[0].mxu0
    %v6499 = vpop.f32.mrb[0].mxu0
    %v6500 = vadd.f32 0.0, %v6499
    %v6501 = vpop.f32.mrb[0].mxu0
    %6502 = vmatprep.mubr.bf16.mxu0 %v5053
    %6503 = vmatmul.mubr.bf16.gmra.mrb[0].mxu0 %v5052
    %v6504 = vpop.f32.mrb[0].mxu0
    %v6505 = vadd.f32 0.0, %v6504
    %v6506 = vpop.f32.mrb[0].mxu0
    %v6507 = vpop.f32.mrb[0].mxu0
    %v6508 = vadd.f32 0.0, %v6507
    %v6509 = vpop.f32.mrb[0].mxu0
    %6510 = vmatprep.mubr.bf16.mxu0 %v5055
    %6511 = vmatmul.mubr.bf16.gmra.mrb[0].mxu0 %v5054
    %v6512 = vpop.f32.mrb[0].mxu0
    %v6513 = vadd.f32 0.0, %v6512
    %v6514 = vpop.f32.mrb[0].mxu0
    %v6515 = vpop.f32.mrb[0].mxu0
    %v6516 = vadd.f32 0.0, %v6515
    %v6517 = vpop.f32.mrb[0].mxu0
    %6518 = vmatprep.mubr.bf16.mxu0 %v5057
    %6519 = vmatmul.mubr.bf16.gmra.mrb[0].mxu0 %v5056
    %v6520 = vpop.f32.mrb[0].mxu0
    %v6521 = vadd.f32 0.0, %v6520
    %v6522 = vpop.f32.mrb[0].mxu0
    %v6523 = vpop.f32.mrb[0].mxu0
    %v6524 = vadd.f32 0.0, %v6523
    %v6525 = vpop.f32.mrb[0].mxu0
    %6526 = vmatprep.mubr.bf16.mxu0 %v5635
    %6527 = vmatmul.mubr.bf16.gmra.mrb[0].mxu0 %v5634
    %v6528 = vpop.f32.mrb[0].mxu0
    %v6529 = vadd.f32 0.0, %v6528
    %v6530 = vpop.f32.mrb[0].mxu0
    %v6531 = vpop.f32.mrb[0].mxu0
    %v6532 = vadd.f32 0.0, %v6531
    %v6533 = vpop.f32.mrb[0].mxu0
    %6534 = vmatprep.mubr.bf16.mxu0 %v6153
    %6535 = vmatmul.mubr.bf16.gmra.mrb[0].mxu0 %v6152
    %v6536 = vpop.f32.mrb[0].mxu0
    %v6537 = vadd.f32 0.0, %v6536
    %v6538 = vpop.f32.mrb[0].mxu0
    %v6539 = vpop.f32.mrb[0].mxu0
    %v6540 = vadd.f32 0.0, %v6539
    %v6541 = vpop.f32.mrb[0].mxu0
    %6542 = vdwg.mxu0
    %v6543 = vadd.f32 %v6025, %v6289
    %v6544 = vadd.f32 %v6026, %v6292
    %v6545 = vadd.f32 %v6027, %v6297
    %v6546 = vadd.f32 %v6028, %v6300
    %v6547 = vadd.f32 %v6029, %v6305
    %v6548 = vadd.f32 %v6030, %v6308
    %v6549 = vadd.f32 %v6031, %v6313
    %v6550 = vadd.f32 %v6032, %v6316
    %v6551 = vadd.f32 %v6033, %v6321
    %v6552 = vadd.f32 %v6034, %v6324
    %v6553 = vadd.f32 %v6035, %v6329
    %v6554 = vadd.f32 %v6036, %v6332
    %v6555 = vadd.f32 %v6037, %v6337
    %v6556 = vadd.f32 %v6038, %v6340
    %v6557 = vadd.f32 %v6039, %v6345
    %v6558 = vadd.f32 %v6040, %v6348
    %v6559 = vadd.f32 %v6041, %v6353
    %v6560 = vadd.f32 %v6042, %v6356
    %v6561 = vadd.f32 %v6043, %v6361
    %v6562 = vadd.f32 %v6044, %v6364
    %v6563 = vadd.f32 %v6045, %v6369
    %v6564 = vadd.f32 %v6046, %v6372
    %v6565 = vadd.f32 %v6047, %v6377
    %v6566 = vadd.f32 %v6048, %v6380
    %v6567 = vadd.f32 %v6049, %v6385
    %v6568 = vadd.f32 %v6050, %v6388
    %v6569 = vadd.f32 %v6051, %v6393
    %v6570 = vadd.f32 %v6052, %v6396
    %v6571 = vadd.f32 %v6053, %v6401
    %v6572 = vadd.f32 %v6054, %v6404
    %v6573 = vadd.f32 %v6055, %v6409
    %v6574 = vadd.f32 %v6056, %v6412
    %v6575 = vadd.f32 %v6057, %v6417
    %v6576 = vadd.f32 %v6058, %v6420
    %v6577 = vadd.f32 %v6059, %v6425
    %v6578 = vadd.f32 %v6060, %v6428
    %v6579 = vadd.f32 %v6061, %v6433
    %v6580 = vadd.f32 %v6062, %v6436
    %v6581 = vadd.f32 %v6063, %v6441
    %v6582 = vadd.f32 %v6064, %v6444
    %v6583 = vadd.f32 %v6065, %v6449
    %v6584 = vadd.f32 %v6066, %v6452
    %v6585 = vadd.f32 %v6067, %v6457
    %v6586 = vadd.f32 %v6068, %v6460
    %v6587 = vadd.f32 %v6069, %v6465
    %v6588 = vadd.f32 %v6070, %v6468
    %v6589 = vadd.f32 %v6071, %v6473
    %v6590 = vadd.f32 %v6072, %v6476
    %v6591 = vadd.f32 %v6073, %v6481
    %v6592 = vadd.f32 %v6074, %v6484
    %v6593 = vadd.f32 %v6075, %v6489
    %v6594 = vadd.f32 %v6076, %v6492
    %v6595 = vadd.f32 %v6077, %v6497
    %v6596 = vadd.f32 %v6078, %v6500
    %v6597 = vadd.f32 %v6079, %v6505
    %v6598 = vadd.f32 %v6080, %v6508
    %v6599 = vadd.f32 %v6081, %v6513
    %v6600 = vadd.f32 %v6082, %v6516
    %v6601 = vadd.f32 %v6083, %v6521
    %v6602 = vadd.f32 %v6084, %v6524
    %v6603 = vadd.f32 %v6085, %v6529
    %v6604 = vadd.f32 %v6086, %v6532
    %v6605 = vadd.f32 %v6087, %v6537
    %v6606 = vadd.f32 %v6088, %v6540
    %v6607 = vld [vmem:[%s2] sm:$0x1]
    %v6609 = vlaneseq
    %v6610 = vshrl.u32 %v6609, 7
    %v6611 = vsub.s32 0, %v6610
    %v6612 = vrot.slane %v6607, %v6611
    %v6614 = vadd.f32 %v6543, %v6612
    %v6615 = vadd.f32 %v6544, %v6612
    %v6616 = vadd.f32 %v6545, %v6612
    %v6617 = vadd.f32 %v6546, %v6612
    %v6618 = vadd.f32 %v6547, %v6612
    %v6619 = vadd.f32 %v6548, %v6612
    %v6620 = vadd.f32 %v6549, %v6612
    %v6621 = vadd.f32 %v6550, %v6612
    %v6622 = vadd.f32 %v6551, %v6612
    %v6623 = vadd.f32 %v6552, %v6612
    %v6624 = vadd.f32 %v6553, %v6612
    %v6625 = vadd.f32 %v6554, %v6612
    %v6626 = vadd.f32 %v6555, %v6612
    %v6627 = vadd.f32 %v6556, %v6612
    %v6628 = vadd.f32 %v6557, %v6612
    %v6629 = vadd.f32 %v6558, %v6612
    %v6630 = vadd.f32 %v6559, %v6612
    %v6631 = vadd.f32 %v6560, %v6612
    %v6632 = vadd.f32 %v6561, %v6612
    %v6633 = vadd.f32 %v6562, %v6612
    %v6634 = vadd.f32 %v6563, %v6612
    %v6635 = vadd.f32 %v6564, %v6612
    %v6636 = vadd.f32 %v6565, %v6612
    %v6637 = vadd.f32 %v6566, %v6612
    %v6638 = vadd.f32 %v6567, %v6612
    %v6639 = vadd.f32 %v6568, %v6612
    %v6640 = vadd.f32 %v6569, %v6612
    %v6641 = vadd.f32 %v6570, %v6612
    %v6642 = vadd.f32 %v6571, %v6612
    %v6643 = vadd.f32 %v6572, %v6612
    %v6644 = vadd.f32 %v6573, %v6612
    %v6645 = vadd.f32 %v6574, %v6612
    %v6646 = vadd.f32 %v6575, %v6612
    %v6647 = vadd.f32 %v6576, %v6612
    %v6648 = vadd.f32 %v6577, %v6612
    %v6649 = vadd.f32 %v6578, %v6612
    %v6650 = vadd.f32 %v6579, %v6612
    %v6651 = vadd.f32 %v6580, %v6612
    %v6652 = vadd.f32 %v6581, %v6612
    %v6653 = vadd.f32 %v6582, %v6612
    %v6654 = vadd.f32 %v6583, %v6612
    %v6655 = vadd.f32 %v6584, %v6612
    %v6656 = vadd.f32 %v6585, %v6612
    %v6657 = vadd.f32 %v6586, %v6612
    %v6658 = vadd.f32 %v6587, %v6612
    %v6659 = vadd.f32 %v6588, %v6612
    %v6660 = vadd.f32 %v6589, %v6612
    %v6661 = vadd.f32 %v6590, %v6612
    %v6662 = vadd.f32 %v6591, %v6612
    %v6663 = vadd.f32 %v6592, %v6612
    %v6664 = vadd.f32 %v6593, %v6612
    %v6665 = vadd.f32 %v6594, %v6612
    %v6666 = vadd.f32 %v6595, %v6612
    %v6667 = vadd.f32 %v6596, %v6612
    %v6668 = vadd.f32 %v6597, %v6612
    %v6669 = vadd.f32 %v6598, %v6612
    %v6670 = vadd.f32 %v6599, %v6612
    %v6671 = vadd.f32 %v6600, %v6612
    %v6672 = vadd.f32 %v6601, %v6612
    %v6673 = vadd.f32 %v6602, %v6612
    %v6674 = vadd.f32 %v6603, %v6612
    %v6675 = vadd.f32 %v6604, %v6612
    %v6676 = vadd.f32 %v6605, %v6612
    %v6677 = vadd.f32 %v6606, %v6612
    %v6678 = vxor.u32 %v6614, 2147483648
    %v6679 = vxor.u32 %v6615, 2147483648
    %v6680 = vxor.u32 %v6616, 2147483648
    %v6681 = vxor.u32 %v6617, 2147483648
    %v6682 = vxor.u32 %v6618, 2147483648
    %v6683 = vxor.u32 %v6619, 2147483648
    %v6684 = vxor.u32 %v6620, 2147483648
    %v6685 = vxor.u32 %v6621, 2147483648
    %v6686 = vxor.u32 %v6622, 2147483648
    %v6687 = vxor.u32 %v6623, 2147483648
    %v6688 = vxor.u32 %v6624, 2147483648
    %v6689 = vxor.u32 %v6625, 2147483648
    %v6690 = vxor.u32 %v6626, 2147483648
    %v6691 = vxor.u32 %v6627, 2147483648
    %v6692 = vxor.u32 %v6628, 2147483648
    %v6693 = vxor.u32 %v6629, 2147483648
    %v6694 = vxor.u32 %v6630, 2147483648
    %v6695 = vxor.u32 %v6631, 2147483648
    %v6696 = vxor.u32 %v6632, 2147483648
    %v6697 = vxor.u32 %v6633, 2147483648
    %v6698 = vxor.u32 %v6634, 2147483648
    %v6699 = vxor.u32 %v6635, 2147483648
    %v6700 = vxor.u32 %v6636, 2147483648
    %v6701 = vxor.u32 %v6637, 2147483648
    %v6702 = vxor.u32 %v6638, 2147483648
    %v6703 = vxor.u32 %v6639, 2147483648
    %v6704 = vxor.u32 %v6640, 2147483648
    %v6705 = vxor.u32 %v6641, 2147483648
    %v6706 = vxor.u32 %v6642, 2147483648
    %v6707 = vxor.u32 %v6643, 2147483648
    %v6708 = vxor.u32 %v6644, 2147483648
    %v6709 = vxor.u32 %v6645, 2147483648
    %v6710 = vxor.u32 %v6646, 2147483648
    %v6711 = vxor.u32 %v6647, 2147483648
    %v6712 = vxor.u32 %v6648, 2147483648
    %v6713 = vxor.u32 %v6649, 2147483648
    %v6714 = vxor.u32 %v6650, 2147483648
    %v6715 = vxor.u32 %v6651, 2147483648
    %v6716 = vxor.u32 %v6652, 2147483648
    %v6717 = vxor.u32 %v6653, 2147483648
    %v6718 = vxor.u32 %v6654, 2147483648
    %v6719 = vxor.u32 %v6655, 2147483648
    %v6720 = vxor.u32 %v6656, 2147483648
    %v6721 = vxor.u32 %v6657, 2147483648
    %v6722 = vxor.u32 %v6658, 2147483648
    %v6723 = vxor.u32 %v6659, 2147483648
    %v6724 = vxor.u32 %v6660, 2147483648
    %v6725 = vxor.u32 %v6661, 2147483648
    %v6726 = vxor.u32 %v6662, 2147483648
    %v6727 = vxor.u32 %v6663, 2147483648
    %v6728 = vxor.u32 %v6664, 2147483648
    %v6729 = vxor.u32 %v6665, 2147483648
    %v6730 = vxor.u32 %v6666, 2147483648
    %v6731 = vxor.u32 %v6667, 2147483648
    %v6732 = vxor.u32 %v6668, 2147483648
    %v6733 = vxor.u32 %v6669, 2147483648
    %v6734 = vxor.u32 %v6670, 2147483648
    %v6735 = vxor.u32 %v6671, 2147483648
    %v6736 = vxor.u32 %v6672, 2147483648
    %v6737 = vxor.u32 %v6673, 2147483648
    %v6738 = vxor.u32 %v6674, 2147483648
    %v6739 = vxor.u32 %v6675, 2147483648
    %v6740 = vxor.u32 %v6676, 2147483648
    %v6741 = vxor.u32 %v6677, 2147483648
    %v6742 = vmul.f32 %v6678, 1.442695
    %v6743 = vpow.pop %v6742
    %v6744 = vmul.f32 %v6679, 1.442695
    %v6745 = vpow.pop %v6744
    %v6746 = vmul.f32 %v6680, 1.442695
    %v6747 = vpow.pop %v6746
    %v6748 = vmul.f32 %v6681, 1.442695
    %v6749 = vpow.pop %v6748
    %v6750 = vmul.f32 %v6682, 1.442695
    %v6751 = vpow.pop %v6750
    %v6752 = vmul.f32 %v6683, 1.442695
    %v6753 = vpow.pop %v6752
    %v6754 = vmul.f32 %v6684, 1.442695
    %v6755 = vpow.pop %v6754
    %v6756 = vmul.f32 %v6685, 1.442695
    %v6757 = vpow.pop %v6756
    %v6758 = vmul.f32 %v6686, 1.442695
    %v6759 = vpow.pop %v6758
    %v6760 = vmul.f32 %v6687, 1.442695
    %v6761 = vpow.pop %v6760
    %v6762 = vmul.f32 %v6688, 1.442695
    %v6763 = vpow.pop %v6762
    %v6764 = vmul.f32 %v6689, 1.442695
    %v6765 = vpow.pop %v6764
    %v6766 = vmul.f32 %v6690, 1.442695
    %v6767 = vpow.pop %v6766
    %v6768 = vmul.f32 %v6691, 1.442695
    %v6769 = vpow.pop %v6768
    %v6770 = vmul.f32 %v6692, 1.442695
    %v6771 = vpow.pop %v6770
    %v6772 = vmul.f32 %v6693, 1.442695
    %v6773 = vpow.pop %v6772
    %v6774 = vmul.f32 %v6694, 1.442695
    %v6775 = vpow.pop %v6774
    %v6776 = vmul.f32 %v6695, 1.442695
    %v6777 = vpow.pop %v6776
    %v6778 = vmul.f32 %v6696, 1.442695
    %v6779 = vpow.pop %v6778
    %v6780 = vmul.f32 %v6697, 1.442695
    %v6781 = vpow.pop %v6780
    %v6782 = vmul.f32 %v6698, 1.442695
    %v6783 = vpow.pop %v6782
    %v6784 = vmul.f32 %v6699, 1.442695
    %v6785 = vpow.pop %v6784
    %v6786 = vmul.f32 %v6700, 1.442695
    %v6787 = vpow.pop %v6786
    %v6788 = vmul.f32 %v6701, 1.442695
    %v6789 = vpow.pop %v6788
    %v6790 = vmul.f32 %v6702, 1.442695
    %v6791 = vpow.pop %v6790
    %v6792 = vmul.f32 %v6703, 1.442695
    %v6793 = vpow.pop %v6792
    %v6794 = vmul.f32 %v6704, 1.442695
    %v6795 = vpow.pop %v6794
    %v6796 = vmul.f32 %v6705, 1.442695
    %v6797 = vpow.pop %v6796
    %v6798 = vmul.f32 %v6706, 1.442695
    %v6799 = vpow.pop %v6798
    %v6800 = vmul.f32 %v6707, 1.442695
    %v6801 = vpow.pop %v6800
    %v6802 = vmul.f32 %v6708, 1.442695
    %v6803 = vpow.pop %v6802
    %v6804 = vmul.f32 %v6709, 1.442695
    %v6805 = vpow.pop %v6804
    %v6806 = vmul.f32 %v6710, 1.442695
    %v6807 = vpow.pop %v6806
    %v6808 = vmul.f32 %v6711, 1.442695
    %v6809 = vpow.pop %v6808
    %v6810 = vmul.f32 %v6712, 1.442695
    %v6811 = vpow.pop %v6810
    %v6812 = vmul.f32 %v6713, 1.442695
    %v6813 = vpow.pop %v6812
    %v6814 = vmul.f32 %v6714, 1.442695
    %v6815 = vpow.pop %v6814
    %v6816 = vmul.f32 %v6715, 1.442695
    %v6817 = vpow.pop %v6816
    %v6818 = vmul.f32 %v6716, 1.442695
    %v6819 = vpow.pop %v6818
    %v6820 = vmul.f32 %v6717, 1.442695
    %v6821 = vpow.pop %v6820
    %v6822 = vmul.f32 %v6718, 1.442695
    %v6823 = vpow.pop %v6822
    %v6824 = vmul.f32 %v6719, 1.442695
    %v6825 = vpow.pop %v6824
    %v6826 = vmul.f32 %v6720, 1.442695
    %v6827 = vpow.pop %v6826
    %v6828 = vmul.f32 %v6721, 1.442695
    %v6829 = vpow.pop %v6828
    %v6830 = vmul.f32 %v6722, 1.442695
    %v6831 = vpow.pop %v6830
    %v6832 = vmul.f32 %v6723, 1.442695
    %v6833 = vpow.pop %v6832
    %v6834 = vmul.f32 %v6724, 1.442695
    %v6835 = vpow.pop %v6834
    %v6836 = vmul.f32 %v6725, 1.442695
    %v6837 = vpow.pop %v6836
    %v6838 = vmul.f32 %v6726, 1.442695
    %v6839 = vpow.pop %v6838
    %v6840 = vmul.f32 %v6727, 1.442695
    %v6841 = vpow.pop %v6840
    %v6842 = vmul.f32 %v6728, 1.442695
    %v6843 = vpow.pop %v6842
    %v6844 = vmul.f32 %v6729, 1.442695
    %v6845 = vpow.pop %v6844
    %v6846 = vmul.f32 %v6730, 1.442695
    %v6847 = vpow.pop %v6846
    %v6848 = vmul.f32 %v6731, 1.442695
    %v6849 = vpow.pop %v6848
    %v6850 = vmul.f32 %v6732, 1.442695
    %v6851 = vpow.pop %v6850
    %v6852 = vmul.f32 %v6733, 1.442695
    %v6853 = vpow.pop %v6852
    %v6854 = vmul.f32 %v6734, 1.442695
    %v6855 = vpow.pop %v6854
    %v6856 = vmul.f32 %v6735, 1.442695
    %v6857 = vpow.pop %v6856
    %v6858 = vmul.f32 %v6736, 1.442695
    %v6859 = vpow.pop %v6858
    %v6860 = vmul.f32 %v6737, 1.442695
    %v6861 = vpow.pop %v6860
    %v6862 = vmul.f32 %v6738, 1.442695
    %v6863 = vpow.pop %v6862
    %v6864 = vmul.f32 %v6739, 1.442695
    %v6865 = vpow.pop %v6864
    %v6866 = vmul.f32 %v6740, 1.442695
    %v6867 = vpow.pop %v6866
    %v6868 = vmul.f32 %v6741, 1.442695
    %v6869 = vpow.pop %v6868
    %v6870 = vadd.f32 %v6743, 1.0
    %v6871 = vadd.f32 %v6745, 1.0
    %v6872 = vadd.f32 %v6747, 1.0
    %v6873 = vadd.f32 %v6749, 1.0
    %v6874 = vadd.f32 %v6751, 1.0
    %v6875 = vadd.f32 %v6753, 1.0
    %v6876 = vadd.f32 %v6755, 1.0
    %v6877 = vadd.f32 %v6757, 1.0
    %v6878 = vadd.f32 %v6759, 1.0
    %v6879 = vadd.f32 %v6761, 1.0
    %v6880 = vadd.f32 %v6763, 1.0
    %v6881 = vadd.f32 %v6765, 1.0
    %v6882 = vadd.f32 %v6767, 1.0
    %v6883 = vadd.f32 %v6769, 1.0
    %v6884 = vadd.f32 %v6771, 1.0
    %v6885 = vadd.f32 %v6773, 1.0
    %v6886 = vadd.f32 %v6775, 1.0
    %v6887 = vadd.f32 %v6777, 1.0
    %v6888 = vadd.f32 %v6779, 1.0
    %v6889 = vadd.f32 %v6781, 1.0
    %v6890 = vadd.f32 %v6783, 1.0
    %v6891 = vadd.f32 %v6785, 1.0
    %v6892 = vadd.f32 %v6787, 1.0
    %v6893 = vadd.f32 %v6789, 1.0
    %v6894 = vadd.f32 %v6791, 1.0
    %v6895 = vadd.f32 %v6793, 1.0
    %v6896 = vadd.f32 %v6795, 1.0
    %v6897 = vadd.f32 %v6797, 1.0
    %v6898 = vadd.f32 %v6799, 1.0
    %v6899 = vadd.f32 %v6801, 1.0
    %v6900 = vadd.f32 %v6803, 1.0
    %v6901 = vadd.f32 %v6805, 1.0
    %v6902 = vadd.f32 %v6807, 1.0
    %v6903 = vadd.f32 %v6809, 1.0
    %v6904 = vadd.f32 %v6811, 1.0
    %v6905 = vadd.f32 %v6813, 1.0
    %v6906 = vadd.f32 %v6815, 1.0
    %v6907 = vadd.f32 %v6817, 1.0
    %v6908 = vadd.f32 %v6819, 1.0
    %v6909 = vadd.f32 %v6821, 1.0
    %v6910 = vadd.f32 %v6823, 1.0
    %v6911 = vadd.f32 %v6825, 1.0
    %v6912 = vadd.f32 %v6827, 1.0
    %v6913 = vadd.f32 %v6829, 1.0
    %v6914 = vadd.f32 %v6831, 1.0
    %v6915 = vadd.f32 %v6833, 1.0
    %v6916 = vadd.f32 %v6835, 1.0
    %v6917 = vadd.f32 %v6837, 1.0
    %v6918 = vadd.f32 %v6839, 1.0
    %v6919 = vadd.f32 %v6841, 1.0
    %v6920 = vadd.f32 %v6843, 1.0
    %v6921 = vadd.f32 %v6845, 1.0
    %v6922 = vadd.f32 %v6847, 1.0
    %v6923 = vadd.f32 %v6849, 1.0
    %v6924 = vadd.f32 %v6851, 1.0
    %v6925 = vadd.f32 %v6853, 1.0
    %v6926 = vadd.f32 %v6855, 1.0
    %v6927 = vadd.f32 %v6857, 1.0
    %v6928 = vadd.f32 %v6859, 1.0
    %v6929 = vadd.f32 %v6861, 1.0
    %v6930 = vadd.f32 %v6863, 1.0
    %v6931 = vadd.f32 %v6865, 1.0
    %v6932 = vadd.f32 %v6867, 1.0
    %v6933 = vadd.f32 %v6869, 1.0
    %v6934 = vrcp.pop %v6870
    %v6935 = vmul.f32 1.0, %v6934
    %v6936 = vrcp.pop %v6871
    %v6937 = vmul.f32 1.0, %v6936
    %v6938 = vrcp.pop %v6872
    %v6939 = vmul.f32 1.0, %v6938
    %v6940 = vrcp.pop %v6873
    %v6941 = vmul.f32 1.0, %v6940
    %v6942 = vrcp.pop %v6874
    %v6943 = vmul.f32 1.0, %v6942
    %v6944 = vrcp.pop %v6875
    %v6945 = vmul.f32 1.0, %v6944
    %v6946 = vrcp.pop %v6876
    %v6947 = vmul.f32 1.0, %v6946
    %v6948 = vrcp.pop %v6877
    %v6949 = vmul.f32 1.0, %v6948
    %v6950 = vrcp.pop %v6878
    %v6951 = vmul.f32 1.0, %v6950
    %v6952 = vrcp.pop %v6879
    %v6953 = vmul.f32 1.0, %v6952
    %v6954 = vrcp.pop %v6880
    %v6955 = vmul.f32 1.0, %v6954
    %v6956 = vrcp.pop %v6881
    %v6957 = vmul.f32 1.0, %v6956
    %v6958 = vrcp.pop %v6882
    %v6959 = vmul.f32 1.0, %v6958
    %v6960 = vrcp.pop %v6883
    %v6961 = vmul.f32 1.0, %v6960
    %v6962 = vrcp.pop %v6884
    %v6963 = vmul.f32 1.0, %v6962
    %v6964 = vrcp.pop %v6885
    %v6965 = vmul.f32 1.0, %v6964
    %v6966 = vrcp.pop %v6886
    %v6967 = vmul.f32 1.0, %v6966
    %v6968 = vrcp.pop %v6887
    %v6969 = vmul.f32 1.0, %v6968
    %v6970 = vrcp.pop %v6888
    %v6971 = vmul.f32 1.0, %v6970
    %v6972 = vrcp.pop %v6889
    %v6973 = vmul.f32 1.0, %v6972
    %v6974 = vrcp.pop %v6890
    %v6975 = vmul.f32 1.0, %v6974
    %v6976 = vrcp.pop %v6891
    %v6977 = vmul.f32 1.0, %v6976
    %v6978 = vrcp.pop %v6892
    %v6979 = vmul.f32 1.0, %v6978
    %v6980 = vrcp.pop %v6893
    %v6981 = vmul.f32 1.0, %v6980
    %v6982 = vrcp.pop %v6894
    %v6983 = vmul.f32 1.0, %v6982
    %v6984 = vrcp.pop %v6895
    %v6985 = vmul.f32 1.0, %v6984
    %v6986 = vrcp.pop %v6896
    %v6987 = vmul.f32 1.0, %v6986
    %v6988 = vrcp.pop %v6897
    %v6989 = vmul.f32 1.0, %v6988
    %v6990 = vrcp.pop %v6898
    %v6991 = vmul.f32 1.0, %v6990
    %v6992 = vrcp.pop %v6899
    %v6993 = vmul.f32 1.0, %v6992
    %v6994 = vrcp.pop %v6900
    %v6995 = vmul.f32 1.0, %v6994
    %v6996 = vrcp.pop %v6901
    %v6997 = vmul.f32 1.0, %v6996
    %v6998 = vrcp.pop %v6902
    %v6999 = vmul.f32 1.0, %v6998
    %v7000 = vrcp.pop %v6903
    %v7001 = vmul.f32 1.0, %v7000
    %v7002 = vrcp.pop %v6904
    %v7003 = vmul.f32 1.0, %v7002
    %v7004 = vrcp.pop %v6905
    %v7005 = vmul.f32 1.0, %v7004
    %v7006 = vrcp.pop %v6906
    %v7007 = vmul.f32 1.0, %v7006
    %v7008 = vrcp.pop %v6907
    %v7009 = vmul.f32 1.0, %v7008
    %v7010 = vrcp.pop %v6908
    %v7011 = vmul.f32 1.0, %v7010
    %v7012 = vrcp.pop %v6909
    %v7013 = vmul.f32 1.0, %v7012
    %v7014 = vrcp.pop %v6910
    %v7015 = vmul.f32 1.0, %v7014
    %v7016 = vrcp.pop %v6911
    %v7017 = vmul.f32 1.0, %v7016
    %v7018 = vrcp.pop %v6912
    %v7019 = vmul.f32 1.0, %v7018
    %v7020 = vrcp.pop %v6913
    %v7021 = vmul.f32 1.0, %v7020
    %v7022 = vrcp.pop %v6914
    %v7023 = vmul.f32 1.0, %v7022
    %v7024 = vrcp.pop %v6915
    %v7025 = vmul.f32 1.0, %v7024
    %v7026 = vrcp.pop %v6916
    %v7027 = vmul.f32 1.0, %v7026
    %v7028 = vrcp.pop %v6917
    %v7029 = vmul.f32 1.0, %v7028
    %v7030 = vrcp.pop %v6918
    %v7031 = vmul.f32 1.0, %v7030
    %v7032 = vrcp.pop %v6919
    %v7033 = vmul.f32 1.0, %v7032
    %v7034 = vrcp.pop %v6920
    %v7035 = vmul.f32 1.0, %v7034
    %v7036 = vrcp.pop %v6921
    %v7037 = vmul.f32 1.0, %v7036
    %v7038 = vrcp.pop %v6922
    %v7039 = vmul.f32 1.0, %v7038
    %v7040 = vrcp.pop %v6923
    %v7041 = vmul.f32 1.0, %v7040
    %v7042 = vrcp.pop %v6924
    %v7043 = vmul.f32 1.0, %v7042
    %v7044 = vrcp.pop %v6925
    %v7045 = vmul.f32 1.0, %v7044
    %v7046 = vrcp.pop %v6926
    %v7047 = vmul.f32 1.0, %v7046
    %v7048 = vrcp.pop %v6927
    %v7049 = vmul.f32 1.0, %v7048
    %v7050 = vrcp.pop %v6928
    %v7051 = vmul.f32 1.0, %v7050
    %v7052 = vrcp.pop %v6929
    %v7053 = vmul.f32 1.0, %v7052
    %v7054 = vrcp.pop %v6930
    %v7055 = vmul.f32 1.0, %v7054
    %v7056 = vrcp.pop %v6931
    %v7057 = vmul.f32 1.0, %v7056
    %v7058 = vrcp.pop %v6932
    %v7059 = vmul.f32 1.0, %v7058
    %v7060 = vrcp.pop %v6933
    %v7061 = vmul.f32 1.0, %v7060
    %v7062 = vmul.f32 %v6614, %v6935
    %v7063 = vmul.f32 %v6615, %v6937
    %v7064 = vmul.f32 %v6616, %v6939
    %v7065 = vmul.f32 %v6617, %v6941
    %v7066 = vmul.f32 %v6618, %v6943
    %v7067 = vmul.f32 %v6619, %v6945
    %v7068 = vmul.f32 %v6620, %v6947
    %v7069 = vmul.f32 %v6621, %v6949
    %v7070 = vmul.f32 %v6622, %v6951
    %v7071 = vmul.f32 %v6623, %v6953
    %v7072 = vmul.f32 %v6624, %v6955
    %v7073 = vmul.f32 %v6625, %v6957
    %v7074 = vmul.f32 %v6626, %v6959
    %v7075 = vmul.f32 %v6627, %v6961
    %v7076 = vmul.f32 %v6628, %v6963
    %v7077 = vmul.f32 %v6629, %v6965
    %v7078 = vmul.f32 %v6630, %v6967
    %v7079 = vmul.f32 %v6631, %v6969
    %v7080 = vmul.f32 %v6632, %v6971
    %v7081 = vmul.f32 %v6633, %v6973
    %v7082 = vmul.f32 %v6634, %v6975
    %v7083 = vmul.f32 %v6635, %v6977
    %v7084 = vmul.f32 %v6636, %v6979
    %v7085 = vmul.f32 %v6637, %v6981
    %v7086 = vmul.f32 %v6638, %v6983
    %v7087 = vmul.f32 %v6639, %v6985
    %v7088 = vmul.f32 %v6640, %v6987
    %v7089 = vmul.f32 %v6641, %v6989
    %v7090 = vmul.f32 %v6642, %v6991
    %v7091 = vmul.f32 %v6643, %v6993
    %v7092 = vmul.f32 %v6644, %v6995
    %v7093 = vmul.f32 %v6645, %v6997
    %v7094 = vmul.f32 %v6646, %v6999
    %v7095 = vmul.f32 %v6647, %v7001
    %v7096 = vmul.f32 %v6648, %v7003
    %v7097 = vmul.f32 %v6649, %v7005
    %v7098 = vmul.f32 %v6650, %v7007
    %v7099 = vmul.f32 %v6651, %v7009
    %v7100 = vmul.f32 %v6652, %v7011
    %v7101 = vmul.f32 %v6653, %v7013
    %v7102 = vmul.f32 %v6654, %v7015
    %v7103 = vmul.f32 %v6655, %v7017
    %v7104 = vmul.f32 %v6656, %v7019
    %v7105 = vmul.f32 %v6657, %v7021
    %v7106 = vmul.f32 %v6658, %v7023
    %v7107 = vmul.f32 %v6659, %v7025
    %v7108 = vmul.f32 %v6660, %v7027
    %v7109 = vmul.f32 %v6661, %v7029
    %v7110 = vmul.f32 %v6662, %v7031
    %v7111 = vmul.f32 %v6663, %v7033
    %v7112 = vmul.f32 %v6664, %v7035
    %v7113 = vmul.f32 %v6665, %v7037
    %v7114 = vmul.f32 %v6666, %v7039
    %v7115 = vmul.f32 %v6667, %v7041
    %v7116 = vmul.f32 %v6668, %v7043
    %v7117 = vmul.f32 %v6669, %v7045
    %v7118 = vmul.f32 %v6670, %v7047
    %v7119 = vmul.f32 %v6671, %v7049
    %v7120 = vmul.f32 %v6672, %v7051
    %v7121 = vmul.f32 %v6673, %v7053
    %v7122 = vmul.f32 %v6674, %v7055
    %v7123 = vmul.f32 %v6675, %v7057
    %v7124 = vmul.f32 %v6676, %v7059
    %v7125 = vmul.f32 %v6677, %v7061
    %7126 = vst [vmem:[#allocation3] sm:$0xff] %v7062
    %7127 = vst [vmem:[#allocation3 + $0x8] sm:$0xff] %v7063
    %7128 = vst [vmem:[#allocation3 + $0x10] sm:$0xff] %v7064
    %7129 = vst [vmem:[#allocation3 + $0x18] sm:$0xff] %v7065
    %7130 = vst [vmem:[#allocation3 + $0x20] sm:$0xff] %v7066
    %7131 = vst [vmem:[#allocation3 + $0x28] sm:$0xff] %v7067
    %7132 = vst [vmem:[#allocation3 + $0x30] sm:$0xff] %v7068
    %7133 = vst [vmem:[#allocation3 + $0x38] sm:$0xff] %v7069
    %7134 = vst [vmem:[#allocation3 + $0x40] sm:$0xff] %v7070
    %7135 = vst [vmem:[#allocation3 + $0x48] sm:$0xff] %v7071
    %7136 = vst [vmem:[#allocation3 + $0x50] sm:$0xff] %v7072
    %7137 = vst [vmem:[#allocation3 + $0x58] sm:$0xff] %v7073
    %7138 = vst [vmem:[#allocation3 + $0x60] sm:$0xff] %v7074
    %7139 = vst [vmem:[#allocation3 + $0x68] sm:$0xff] %v7075
    %7140 = vst [vmem:[#allocation3 + $0x70] sm:$0xff] %v7076
    %7141 = vst [vmem:[#allocation3 + $0x78] sm:$0xff] %v7077
    %7142 = vst [vmem:[#allocation3 + $0x80] sm:$0xff] %v7078
    %7143 = vst [vmem:[#allocation3 + $0x88] sm:$0xff] %v7079
    %7144 = vst [vmem:[#allocation3 + $0x90] sm:$0xff] %v7080
    %7145 = vst [vmem:[#allocation3 + $0x98] sm:$0xff] %v7081
    %7146 = vst [vmem:[#allocation3 + $0xa0] sm:$0xff] %v7082
    %7147 = vst [vmem:[#allocation3 + $0xa8] sm:$0xff] %v7083
    %7148 = vst [vmem:[#allocation3 + $0xb0] sm:$0xff] %v7084
    %7149 = vst [vmem:[#allocation3 + $0xb8] sm:$0xff] %v7085
    %7150 = vst [vmem:[#allocation3 + $0xc0] sm:$0xff] %v7086
    %7151 = vst [vmem:[#allocation3 + $0xc8] sm:$0xff] %v7087
    %7152 = vst [vmem:[#allocation3 + $0xd0] sm:$0xff] %v7088
    %7153 = vst [vmem:[#allocation3 + $0xd8] sm:$0xff] %v7089
    %7154 = vst [vmem:[#allocation3 + $0xe0] sm:$0xff] %v7090
    %7155 = vst [vmem:[#allocation3 + $0xe8] sm:$0xff] %v7091
    %7156 = vst [vmem:[#allocation3 + $0xf0] sm:$0xff] %v7092
    %7157 = vst [vmem:[#allocation3 + $0xf8] sm:$0xff] %v7093
    %7158 = vst [vmem:[#allocation3 + $0x100] sm:$0xff] %v7094
    %7159 = vst [vmem:[#allocation3 + $0x108] sm:$0xff] %v7095
    %7160 = vst [vmem:[#allocation3 + $0x110] sm:$0xff] %v7096
    %7161 = vst [vmem:[#allocation3 + $0x118] sm:$0xff] %v7097
    %7162 = vst [vmem:[#allocation3 + $0x120] sm:$0xff] %v7098
    %7163 = vst [vmem:[#allocation3 + $0x128] sm:$0xff] %v7099
    %7164 = vst [vmem:[#allocation3 + $0x130] sm:$0xff] %v7100
    %7165 = vst [vmem:[#allocation3 + $0x138] sm:$0xff] %v7101
    %7166 = vst [vmem:[#allocation3 + $0x140] sm:$0xff] %v7102
    %7167 = vst [vmem:[#allocation3 + $0x148] sm:$0xff] %v7103
    %7168 = vst [vmem:[#allocation3 + $0x150] sm:$0xff] %v7104
    %7169 = vst [vmem:[#allocation3 + $0x158] sm:$0xff] %v7105
    %7170 = vst [vmem:[#allocation3 + $0x160] sm:$0xff] %v7106
    %7171 = vst [vmem:[#allocation3 + $0x168] sm:$0xff] %v7107
    %7172 = vst [vmem:[#allocation3 + $0x170] sm:$0xff] %v7108
    %7173 = vst [vmem:[#allocation3 + $0x178] sm:$0xff] %v7109
    %7174 = vst [vmem:[#allocation3 + $0x180] sm:$0xff] %v7110
    %7175 = vst [vmem:[#allocation3 + $0x188] sm:$0xff] %v7111
    %7176 = vst [vmem:[#allocation3 + $0x190] sm:$0xff] %v7112
    %7177 = vst [vmem:[#allocation3 + $0x198] sm:$0xff] %v7113
    %7178 = vst [vmem:[#allocation3 + $0x1a0] sm:$0xff] %v7114
    %7179 = vst [vmem:[#allocation3 + $0x1a8] sm:$0xff] %v7115
    %7180 = vst [vmem:[#allocation3 + $0x1b0] sm:$0xff] %v7116
    %7181 = vst [vmem:[#allocation3 + $0x1b8] sm:$0xff] %v7117
    %7182 = vst [vmem:[#allocation3 + $0x1c0] sm:$0xff] %v7118
    %7183 = vst [vmem:[#allocation3 + $0x1c8] sm:$0xff] %v7119
    %7184 = vst [vmem:[#allocation3 + $0x1d0] sm:$0xff] %v7120
    %7185 = vst [vmem:[#allocation3 + $0x1d8] sm:$0xff] %v7121
    %7186 = vst [vmem:[#allocation3 + $0x1e0] sm:$0xff] %v7122
    %7187 = vst [vmem:[#allocation3 + $0x1e8] sm:$0xff] %v7123
    %7188 = vst [vmem:[#allocation3 + $0x1f0] sm:$0xff] %v7124
    %7189 = vst [vmem:[#allocation3 + $0x1f8] sm:$0xff] %v7125
    // Predicated region
    $region14: #{_apply_one.1} parent=1 // pred_check
      _
    $region15: #{_apply_one.1} parent=1 // pred_check_branch
      %7191 = sbr.rel (0) target = $region17
    $region16: #{_apply_one.1} parent=1 // pred_region
      %s7193 = ssub.s32 8192, 8192
      %7194 = vsyncadd [#allocation4], %s7193
      %s7195 = sshll.u32 [#allocation3], 4
      %s7196 = int_to_ptr.vmem [resolvable:$true] %s7195
      %7201 = dma.vmem_to_hbm [thread:$0]  %s7196, 8192, %s3, [#allocation4], 128, 128, 8
    $region17: #{_apply_one.1} parent=1 // pred_fallthru
      _
    // Predicated region
    $region18: #{_apply_one.1} parent=1 // pred_check
      _
    $region19: #{_apply_one.1} parent=1 // pred_check_branch
      %7203 = sbr.rel (0) target = $region21
    $region20: #{_apply_one.1} parent=1 // pred_region
      %7204 = dma.done [#allocation4], 8192
    $region21: #{_apply_one.1} parent=1 // pred_fallthru
      _
    %7205 = vsyncpa [#allocation4], 1

</llo_original>
